<compile_context>
chip_gen: v5e
topology: v5e:2x2
jax: 0.10.0
libtpu: 0.0.40
codegen_flags: <defaults>
</compile_context>

<pallas_src>
import math
import functools

import jax
import jax.numpy as jnp
from jax.experimental import pallas as pl
from jax.experimental.pallas import tpu as pltpu

DILATIONS = (6, 12, 18)
NB = len(DILATIONS)
KSIZE = 3
BN_EPS = 1e-5
LANES = 128
# tanh-approx GELU runs on the EUP slot (the VALU is the binding unit in this kernel).
# Flip to False for bit-faithful erf-exact GELU (PyTorch nn.GELU() default).
USE_TANH_GELU = True
_SQRT_2_OVER_PI = 0.7978845608028654


def _round_up(x, m):
    return (x + m - 1) // m * m


def _gelu_exact(x):
    # PyTorch nn.GELU() default: exact erf-based GELU.
    return 0.5 * x * (1.0 + jax.lax.erf(x * (1.0 / math.sqrt(2.0))))


def _gelu_tanh(x):
    return 0.5 * x * (1.0 + jnp.tanh(_SQRT_2_OVER_PI * (x + 0.044715 * (x * x * x))))


def _gelu_kernel(x):
    return _gelu_tanh(x) if USE_TANH_GELU else _gelu_exact(x)


def _vmem_capacity_bytes():
    """Per-core VMEM capacity; conservative 64 MiB fallback if the query is unavailable."""
    try:
        cap = int(getattr(pltpu.get_tpu_info(), "vmem_capacity_bytes"))
        if cap > 0:
            return cap
    except Exception:
        pass
    return 64 * 1024 * 1024


def _est_vmem_bytes(th, W, Wp, Cp, dmax):
    halo = th + 2 * dmax
    in_buf = 2 * halo * Wp * Cp * 4          # manual double-buffered input scratch
    out_buf = 2 * NB * th * W * Cp * 4       # auto double-buffered output block
    params = 2 * (NB * KSIZE * KSIZE * Cp + NB * Cp) * 4
    live = 3 * halo * W * Cp * 4             # shifted band + accumulator + one temp
    return in_buf + out_buf + params + live


def _choose_tile_h(H, W, Wp, Cp, dmax, budget):
    """Largest multiple-of-8 H tile (capped at round_up(H, 8)) under the VMEM budget.

    If even TH=8 exceeds the budget we still return 8 and the caller raises the
    scoped VMEM limit.  TODO(synk): W tiling would be the real fix for that case.
    """
    h8 = _round_up(H, 8)
    best = None
    for th in range(8, h8 + 1, 8):
        if _est_vmem_bytes(th, W, Wp, Cp, dmax) <= budget:
            best = th
    return min(best if best is not None else 8, h8)


def dil_kernel(x_hbm, w_ref, shift_ref, o_ref, xbuf, sem, *, TH, W, Cp, dmax, Hpad):
    """One grid step = one (batch, H-tile) pair; grid order is (batch outer, tile inner).

    x_hbm    : (B*Hpad, Wp, Cp) zero-padded input in HBM (manual DMA source)
    w_ref    : (NB, 3, 3, Cp)   depthwise filters with BN scale folded in
    shift_ref: (NB, Cp)         folded BN shift (beta - mean*scale)
    o_ref    : (NB, TH, W, Cp)  output block (batch b occupies rows [b*NB, b*NB+NB))
    xbuf     : (2, TH+2*dmax, Wp, Cp) VMEM double buffer
    sem      : DMA semaphores, one per buffer slot
    """
    b = pl.program_id(0)              # batch index (outer)
    jt = pl.program_id(1)             # H-tile index (inner)
    n_b = pl.num_programs(0)
    n_h = pl.num_programs(1)
    halo = TH + 2 * dmax

    step = b * n_h + jt               # linearized grid step
    slot = step % 2
    cur_row0 = b * Hpad + jt * TH

    def window_copy(row0, sl):
        return pltpu.make_async_copy(
            x_hbm.at[pl.ds(row0, halo)], xbuf.at[sl], sem.at[sl])

    @pl.when(step == 0)
    def _():                          # prime the pipeline once, at the very first step
        window_copy(cur_row0, slot).start()

    # Prefetch the next linearized step's window (crosses the H-tile -> next-batch boundary).
    last_tile = jt == n_h - 1
    nxt_b = jnp.where(last_tile, b + 1, b)
    nxt_jt = jnp.where(last_tile, 0, jt + 1)

    @pl.when(step + 1 < n_b * n_h)
    def _():
        window_copy(nxt_b * Hpad + nxt_jt * TH, 1 - slot).start()

    # Wait on the current window using the same descriptor it was started with.
    window_copy(cur_row0, slot).wait()

    for bi, d in enumerate(DILATIONS):            # static unroll: 3 branches
        acc = None
        for kx in range(KSIZE):
            c0 = dmax + (kx - 1) * d
            # One column-shifted band per (branch, kx), tall enough for all 3 ky taps.
            # The 3 ky taps are free leading-dim slices of this band (no extra
            # sublane-shift materializations).
            band = xbuf[slot, pl.ds(dmax - d, TH + 2 * d), pl.ds(c0, W), :]
            for ky in range(KSIZE):
                patch = band[ky * d: ky * d + TH]          # leading-dim slice: free
                term = patch * w_ref[bi, ky, kx, :]
                acc = term if acc is None else acc + term   # single fused expression
        y = acc + shift_ref[bi, :]                # BN shift (scale already in weights)
        y = _gelu_kernel(_gelu_kernel(y))         # branch GELU + post-concat GELU
        o_ref[bi] = y.astype(o_ref.dtype)         # direct per-branch store (no concat)


def dil_module_forward(x_nchw, weights, bn_gamma, bn_beta, bn_mean, bn_var):
    """weights: (NB, C, 1, 3, 3)  (PyTorch depthwise conv weight per branch)."""
    B, C, H, W = x_nchw.shape
    dmax = max(DILATIONS)
    Cp = _round_up(C, LANES)
    Wp = W + 2 * dmax

    # Per-chip VMEM budgets (v5e/v6e: 128 MiB, v7x: 64 MiB per core).
    cap = _vmem_capacity_bytes()
    usable = max(cap - (16 << 20), 24 << 20)      # headroom for Mosaic internal scratch
    budget = max(8 << 20, (usable * 3) // 4)      # resident-block budget

    TH = _choose_tile_h(H, W, Wp, Cp, dmax, budget)
    H_r = _round_up(H, TH)
    nH = H_r // TH
    Hpad = H_r + 2 * dmax
    halo = TH + 2 * dmax

    est = _est_vmem_bytes(TH, W, Wp, Cp, dmax)
    vmem_limit = int(min(max(est + (16 << 20), 48 << 20), max(usable, 32 << 20)))

    # NCHW -> NHWC; zero-pad H (halo + tile round-up), W (halo) and C (lane pad).
    # TODO(synk): emit NHWC directly at the producer/consumer to avoid these extra
    # HBM passes (layout plumbing only; kept for drop-in NCHW compatibility).
    x = jnp.transpose(x_nchw, (0, 2, 3, 1)).astype(jnp.float32)
    xpad = jnp.pad(x, ((0, 0), (dmax, dmax + H_r - H), (dmax, dmax), (0, Cp - C)))
    x_flat = xpad.reshape(B * Hpad, Wp, Cp)

    # Fold BN scale into the depthwise weights; keep only the shift for the kernel.
    scale = bn_gamma / jnp.sqrt(bn_var + BN_EPS)                         # (NB, C)
    shift = bn_beta - bn_mean * scale                                    # (NB, C)
    w = jnp.transpose(weights[:, :, 0, :, :], (0, 2, 3, 1))              # (NB, 3, 3, C)
    w = (w * scale[:, None, None, :]).astype(jnp.float32)
    w = jnp.pad(w, ((0, 0), (0, 0), (0, 0), (0, Cp - C)))                # (NB, 3, 3, Cp)
    shift = jnp.pad(shift.astype(jnp.float32), ((0, 0), (0, Cp - C)))    # (NB, Cp)

    kernel = functools.partial(dil_kernel, TH=TH, W=W, Cp=Cp, dmax=dmax, Hpad=Hpad)

    out = pl.pallas_call(
        kernel,
        out_shape=jax.ShapeDtypeStruct((B * NB, H_r, W, Cp), jnp.float32),
        grid_spec=pltpu.PrefetchScalarGridSpec(
            num_scalar_prefetch=0,
            grid=(B, nH),                                                # batch outer, H-tile inner
            in_specs=[
                pl.BlockSpec(memory_space=pl.ANY),                       # input stays in HBM
                pl.BlockSpec((NB, KSIZE, KSIZE, Cp), lambda b, jt: (0, 0, 0, 0)),
                pl.BlockSpec((NB, Cp), lambda b, jt: (0, 0)),
            ],
            out_specs=pl.BlockSpec((NB, TH, W, Cp), lambda b, jt: (b, jt, 0, 0)),
            scratch_shapes=[
                pltpu.VMEM((2, halo, Wp, Cp), jnp.float32),
                pltpu.SemaphoreType.DMA((2,)),
            ],
        ),
        # Both axes "arbitrary": the manual cross-step DMA pipeline requires strictly
        # sequential grid order (parallel vs arbitrary has ~zero impact on 1-TC parts).
        compiler_params=pltpu.CompilerParams(
            dimension_semantics=("arbitrary", "arbitrary"),
            vmem_limit_bytes=vmem_limit,
        ),
    )(x_flat, w, shift)

    out = out.reshape(B, NB, H_r, W, Cp)[:, :, :H, :, :C]   # strip tile/lane padding
    out = jnp.transpose(out, (0, 1, 4, 2, 3))                # (B, NB, C, H, W)
    return out.reshape(B, NB * C, H, W)


def reference(x, weights, gamma, beta, mean, var):
    """Pure-JAX/XLA reference of dil_module.forward (eval-mode BN, exact erf GELU)."""
    C = x.shape[1]
    outs = []
    for b, d in enumerate(DILATIONS):
        y = jax.lax.conv_general_dilated(
            x, weights[b],
            window_strides=(1, 1),
            padding=((d, d), (d, d)),
            rhs_dilation=(d, d),
            dimension_numbers=("NCHW", "OIHW", "NCHW"),
            feature_group_count=C)
        s = gamma[b] / jnp.sqrt(var[b] + BN_EPS)
        sh = beta[b] - mean[b] * s
        y = y * s[None, :, None, None] + sh[None, :, None, None]
        outs.append(_gelu_exact(y))
    y = jnp.concatenate(outs, axis=1)
    return _gelu_exact(y)


if __name__ == "__main__":
    key = jax.random.PRNGKey(0)
    B, C, H, W = 2, 4, 16, 16

    k1, k2, k3, k4, k5, k6 = jax.random.split(key, 6)
    x = jax.random.normal(k1, (B, C, H, W), jnp.float32)
    # depthwise conv weights: per branch (C, 1, 3, 3), groups = C, no bias
    weights = 0.2 * jax.random.normal(k2, (NB, C, 1, KSIZE, KSIZE), jnp.float32)
    # BatchNorm2d params (eval mode / running stats)
    gamma = 1.0 + 0.1 * jax.random.normal(k3, (NB, C), jnp.float32)
    beta = 0.1 * jax.random.normal(k4, (NB, C), jnp.float32)
    mean = 0.1 * jax.random.normal(k5, (NB, C), jnp.float32)
    var = jnp.abs(jax.random.normal(k6, (NB, C), jnp.float32)) + 0.5

    out = dil_module_forward(x, weights, gamma, beta, mean, var)
    out = jax.block_until_ready(out)

    ref = reference(x, weights, gamma, beta, mean, var)
    assert out.shape == (B, NB * C, H, W), out.shape
    # tanh-approx GELU deviates from exact erf GELU by <~1e-3 after two applications.
    tol = 2e-3 if USE_TANH_GELU else 2e-4
    assert jnp.allclose(out, ref, atol=tol, rtol=tol), float(jnp.abs(out - ref).max())

    print("KERNEL_OK")
</pallas_src>

<mosaic_0001>
module attributes {stable_mosaic.version = 11 : i64} {
  func.func @dil_kernel(%arg0: i32, %arg1: i32, %arg2: memref<104x52x128xf32, #tpu.memory_space<any>>, %arg3: memref<3x3x3x128xf32, #tpu.memory_space<vmem>>, %arg4: memref<3x128xf32, #tpu.memory_space<vmem>>, %arg5: memref<3x16x16x128xf32, #tpu.memory_space<vmem>>, %arg6: memref<2x52x52x128xf32, #tpu.memory_space<vmem>>, %arg7: memref<2x!tpu.dma_semaphore, #tpu.memory_space<semaphore_mem>>) attributes {dimension_semantics = [#tpu.dimension_semantics<arbitrary>, #tpu.dimension_semantics<arbitrary>], iteration_bounds = array<i64: 2, 1>, scalar_prefetch = 0 : i64, scratch_operands = 2 : i64, tpu.core_type = #tpu.core_type<tc>, window_params = [{}, {pipeline_mode = #tpu.pipeline_mode<synchronous>, transform_indices = @transform_1, window_bounds = array<i64: 3, 3, 3, 128>}, {pipeline_mode = #tpu.pipeline_mode<synchronous>, transform_indices = @transform_2, window_bounds = array<i64: 3, 128>}, {transform_indices = @transform_3, window_bounds = array<i64: 3, 16, 16, 128>}]} {
    %c1_i32 = arith.constant 1 : i32
    %0 = arith.muli %arg0, %c1_i32 : i32
    %1 = arith.addi %0, %arg1 : i32
    %c2_i32 = arith.constant 2 : i32
    %c0_i32 = arith.constant 0 : i32
    %2 = arith.cmpi eq, %c2_i32, %c0_i32 : i32
    %c1_i32_0 = arith.constant 1 : i32
    %3 = arith.select %2, %c1_i32_0, %c2_i32 : i32
    %4 = arith.remsi %1, %3 : i32
    %c0_i32_1 = arith.constant 0 : i32
    %5 = arith.cmpi ne, %4, %c0_i32_1 : i32
    %c0_i32_2 = arith.constant 0 : i32
    %6 = arith.cmpi slt, %4, %c0_i32_2 : i32
    %c0_i32_3 = arith.constant 0 : i32
    %7 = arith.cmpi slt, %3, %c0_i32_3 : i32
    %8 = arith.xori %6, %7 : i1
    %9 = arith.andi %8, %5 : i1
    %10 = arith.addi %4, %3 : i32
    %11 = arith.select %9, %10, %4 : i32
    %c52_i32 = arith.constant 52 : i32
    %12 = arith.muli %arg0, %c52_i32 : i32
    %c16_i32 = arith.constant 16 : i32
    %13 = arith.muli %arg1, %c16_i32 : i32
    %14 = arith.addi %12, %13 : i32
    %c0_i32_4 = arith.constant 0 : i32
    %15 = arith.cmpi eq, %1, %c0_i32_4 : i32
    %16 = arith.extui %15 : i1 to i32
    %c0_i32_5 = arith.constant 0 : i32
    %17 = arith.cmpi ne, %16, %c0_i32_5 : i32
    scf.if %17 {
      %c0_i32_185 = arith.constant 0 : i32
      %c0_i32_186 = arith.constant 0 : i32
      %347 = tpu.memref_slice %arg2[%14, %c0_i32_185, %c0_i32_186] : memref<104x52x128xf32, #tpu.memory_space<any>> -> memref<52x52x128xf32, #tpu.memory_space<any>>
      %c0_i32_187 = arith.constant 0 : i32
      %c0_i32_188 = arith.constant 0 : i32
      %c0_i32_189 = arith.constant 0 : i32
      %348 = tpu.memref_slice %arg6[%11, %c0_i32_187, %c0_i32_188, %c0_i32_189] : memref<2x52x52x128xf32, #tpu.memory_space<vmem>> -> memref<1x52x52x128xf32, #tpu.memory_space<vmem>>
      %349 = tpu.memref_squeeze %348 : memref<1x52x52x128xf32, #tpu.memory_space<vmem>> -> memref<52x52x128xf32, #tpu.memory_space<vmem>>
      %350 = tpu.memref_slice %arg7[%11] : memref<2x!tpu.dma_semaphore, #tpu.memory_space<semaphore_mem>> -> memref<1x!tpu.dma_semaphore, #tpu.memory_space<semaphore_mem>>
      %351 = tpu.memref_squeeze %350 : memref<1x!tpu.dma_semaphore, #tpu.memory_space<semaphore_mem>> -> memref<!tpu.dma_semaphore, #tpu.memory_space<semaphore_mem>>
      tpu.enqueue_dma source(%347 : memref<52x52x128xf32, #tpu.memory_space<any>>) target(%349 : memref<52x52x128xf32, #tpu.memory_space<vmem>>) target_semaphore(%351 : memref<!tpu.dma_semaphore, #tpu.memory_space<semaphore_mem>>)
    } else {
    }
    %c0_i32_6 = arith.constant 0 : i32
    %18 = arith.cmpi eq, %arg1, %c0_i32_6 : i32
    %c1_i32_7 = arith.constant 1 : i32
    %19 = arith.addi %arg0, %c1_i32_7 : i32
    %20 = arith.select %18, %19, %arg0 : i32
    %c1_i32_8 = arith.constant 1 : i32
    %21 = arith.addi %arg1, %c1_i32_8 : i32
    %c0_i32_9 = arith.constant 0 : i32
    %22 = arith.select %18, %c0_i32_9, %21 : i32
    %c1_i32_10 = arith.constant 1 : i32
    %23 = arith.addi %1, %c1_i32_10 : i32
    %c2_i32_11 = arith.constant 2 : i32
    %24 = arith.cmpi slt, %23, %c2_i32_11 : i32
    %25 = arith.extui %24 : i1 to i32
    %c0_i32_12 = arith.constant 0 : i32
    %26 = arith.cmpi ne, %25, %c0_i32_12 : i32
    scf.if %26 {
      %c52_i32_185 = arith.constant 52 : i32
      %347 = arith.muli %20, %c52_i32_185 : i32
      %c16_i32_186 = arith.constant 16 : i32
      %348 = arith.muli %22, %c16_i32_186 : i32
      %349 = arith.addi %347, %348 : i32
      %c1_i32_187 = arith.constant 1 : i32
      %350 = arith.subi %c1_i32_187, %11 : i32
      %c0_i32_188 = arith.constant 0 : i32
      %c0_i32_189 = arith.constant 0 : i32
      %351 = tpu.memref_slice %arg2[%349, %c0_i32_188, %c0_i32_189] : memref<104x52x128xf32, #tpu.memory_space<any>> -> memref<52x52x128xf32, #tpu.memory_space<any>>
      %c0_i32_190 = arith.constant 0 : i32
      %c0_i32_191 = arith.constant 0 : i32
      %c0_i32_192 = arith.constant 0 : i32
      %352 = tpu.memref_slice %arg6[%350, %c0_i32_190, %c0_i32_191, %c0_i32_192] : memref<2x52x52x128xf32, #tpu.memory_space<vmem>> -> memref<1x52x52x128xf32, #tpu.memory_space<vmem>>
      %353 = tpu.memref_squeeze %352 : memref<1x52x52x128xf32, #tpu.memory_space<vmem>> -> memref<52x52x128xf32, #tpu.memory_space<vmem>>
      %354 = tpu.memref_slice %arg7[%350] : memref<2x!tpu.dma_semaphore, #tpu.memory_space<semaphore_mem>> -> memref<1x!tpu.dma_semaphore, #tpu.memory_space<semaphore_mem>>
      %355 = tpu.memref_squeeze %354 : memref<1x!tpu.dma_semaphore, #tpu.memory_space<semaphore_mem>> -> memref<!tpu.dma_semaphore, #tpu.memory_space<semaphore_mem>>
      tpu.enqueue_dma source(%351 : memref<52x52x128xf32, #tpu.memory_space<any>>) target(%353 : memref<52x52x128xf32, #tpu.memory_space<vmem>>) target_semaphore(%355 : memref<!tpu.dma_semaphore, #tpu.memory_space<semaphore_mem>>)
    } else {
    }
    %c0_i32_13 = arith.constant 0 : i32
    %c0_i32_14 = arith.constant 0 : i32
    %27 = tpu.memref_slice %arg2[%14, %c0_i32_13, %c0_i32_14] : memref<104x52x128xf32, #tpu.memory_space<any>> -> memref<52x52x128xf32, #tpu.memory_space<any>>
    %c0_i32_15 = arith.constant 0 : i32
    %c0_i32_16 = arith.constant 0 : i32
    %c0_i32_17 = arith.constant 0 : i32
    %28 = tpu.memref_slice %arg6[%11, %c0_i32_15, %c0_i32_16, %c0_i32_17] : memref<2x52x52x128xf32, #tpu.memory_space<vmem>> -> memref<1x52x52x128xf32, #tpu.memory_space<vmem>>
    %29 = tpu.memref_squeeze %28 : memref<1x52x52x128xf32, #tpu.memory_space<vmem>> -> memref<52x52x128xf32, #tpu.memory_space<vmem>>
    %30 = tpu.memref_slice %arg7[%11] : memref<2x!tpu.dma_semaphore, #tpu.memory_space<semaphore_mem>> -> memref<1x!tpu.dma_semaphore, #tpu.memory_space<semaphore_mem>>
    %31 = tpu.memref_squeeze %30 : memref<1x!tpu.dma_semaphore, #tpu.memory_space<semaphore_mem>> -> memref<!tpu.dma_semaphore, #tpu.memory_space<semaphore_mem>>
    tpu.wait_dma2 semaphore(%31 : memref<!tpu.dma_semaphore, #tpu.memory_space<semaphore_mem>>) src(%27 : memref<52x52x128xf32, #tpu.memory_space<any>>) dst(%29 : memref<52x52x128xf32, #tpu.memory_space<vmem>>)
    %32 = arith.index_cast %11 : i32 to index
    %c12 = arith.constant 12 : index
    %c12_18 = arith.constant 12 : index
    %c0 = arith.constant 0 : index
    %33 = vector.load %arg6[%32, %c12, %c12_18, %c0] : memref<2x52x52x128xf32, #tpu.memory_space<vmem>>, vector<1x28x16x128xf32>
    %34 = vector.shape_cast %33 : vector<1x28x16x128xf32> to vector<28x16x128xf32>
    %35 = vector.extract_strided_slice %34 {offsets = [0, 0, 0], sizes = [16, 16, 128], strides = [1, 1, 1]} : vector<28x16x128xf32> to vector<16x16x128xf32>
    %c0_19 = arith.constant 0 : index
    %c0_20 = arith.constant 0 : index
    %c0_21 = arith.constant 0 : index
    %c0_22 = arith.constant 0 : index
    %36 = vector.load %arg3[%c0_19, %c0_20, %c0_21, %c0_22] : memref<3x3x3x128xf32, #tpu.memory_space<vmem>>, vector<1x1x1x128xf32>
    %37 = vector.shape_cast %36 : vector<1x1x1x128xf32> to vector<128xf32>
    %38 = vector.shape_cast %37 : vector<128xf32> to vector<1x1x128xf32>
    %39 = vector.broadcast %38 : vector<1x1x128xf32> to vector<16x16x128xf32>
    %40 = arith.mulf %35, %39 : vector<16x16x128xf32>
    %41 = vector.extract_strided_slice %34 {offsets = [6, 0, 0], sizes = [16, 16, 128], strides = [1, 1, 1]} : vector<28x16x128xf32> to vector<16x16x128xf32>
    %c0_23 = arith.constant 0 : index
    %c1 = arith.constant 1 : index
    %c0_24 = arith.constant 0 : index
    %c0_25 = arith.constant 0 : index
    %42 = vector.load %arg3[%c0_23, %c1, %c0_24, %c0_25] : memref<3x3x3x128xf32, #tpu.memory_space<vmem>>, vector<1x1x1x128xf32>
    %43 = vector.shape_cast %42 : vector<1x1x1x128xf32> to vector<128xf32>
    %44 = vector.shape_cast %43 : vector<128xf32> to vector<1x1x128xf32>
    %45 = vector.broadcast %44 : vector<1x1x128xf32> to vector<16x16x128xf32>
    %46 = arith.mulf %41, %45 : vector<16x16x128xf32>
    %47 = arith.addf %40, %46 : vector<16x16x128xf32>
    %48 = vector.extract_strided_slice %34 {offsets = [12, 0, 0], sizes = [16, 16, 128], strides = [1, 1, 1]} : vector<28x16x128xf32> to vector<16x16x128xf32>
    %c0_26 = arith.constant 0 : index
    %c2 = arith.constant 2 : index
    %c0_27 = arith.constant 0 : index
    %c0_28 = arith.constant 0 : index
    %49 = vector.load %arg3[%c0_26, %c2, %c0_27, %c0_28] : memref<3x3x3x128xf32, #tpu.memory_space<vmem>>, vector<1x1x1x128xf32>
    %50 = vector.shape_cast %49 : vector<1x1x1x128xf32> to vector<128xf32>
    %51 = vector.shape_cast %50 : vector<128xf32> to vector<1x1x128xf32>
    %52 = vector.broadcast %51 : vector<1x1x128xf32> to vector<16x16x128xf32>
    %53 = arith.mulf %48, %52 : vector<16x16x128xf32>
    %54 = arith.addf %47, %53 : vector<16x16x128xf32>
    %55 = arith.index_cast %11 : i32 to index
    %c12_29 = arith.constant 12 : index
    %c18 = arith.constant 18 : index
    %c0_30 = arith.constant 0 : index
    %56 = vector.load %arg6[%55, %c12_29, %c18, %c0_30] : memref<2x52x52x128xf32, #tpu.memory_space<vmem>>, vector<1x28x16x128xf32>
    %57 = vector.shape_cast %56 : vector<1x28x16x128xf32> to vector<28x16x128xf32>
    %58 = vector.extract_strided_slice %57 {offsets = [0, 0, 0], sizes = [16, 16, 128], strides = [1, 1, 1]} : vector<28x16x128xf32> to vector<16x16x128xf32>
    %c0_31 = arith.constant 0 : index
    %c0_32 = arith.constant 0 : index
    %c1_33 = arith.constant 1 : index
    %c0_34 = arith.constant 0 : index
    %59 = vector.load %arg3[%c0_31, %c0_32, %c1_33, %c0_34] : memref<3x3x3x128xf32, #tpu.memory_space<vmem>>, vector<1x1x1x128xf32>
    %60 = vector.shape_cast %59 : vector<1x1x1x128xf32> to vector<128xf32>
    %61 = vector.shape_cast %60 : vector<128xf32> to vector<1x1x128xf32>
    %62 = vector.broadcast %61 : vector<1x1x128xf32> to vector<16x16x128xf32>
    %63 = arith.mulf %58, %62 : vector<16x16x128xf32>
    %64 = arith.addf %54, %63 : vector<16x16x128xf32>
    %65 = vector.extract_strided_slice %57 {offsets = [6, 0, 0], sizes = [16, 16, 128], strides = [1, 1, 1]} : vector<28x16x128xf32> to vector<16x16x128xf32>
    %c0_35 = arith.constant 0 : index
    %c1_36 = arith.constant 1 : index
    %c1_37 = arith.constant 1 : index
    %c0_38 = arith.constant 0 : index
    %66 = vector.load %arg3[%c0_35, %c1_36, %c1_37, %c0_38] : memref<3x3x3x128xf32, #tpu.memory_space<vmem>>, vector<1x1x1x128xf32>
    %67 = vector.shape_cast %66 : vector<1x1x1x128xf32> to vector<128xf32>
    %68 = vector.shape_cast %67 : vector<128xf32> to vector<1x1x128xf32>
    %69 = vector.broadcast %68 : vector<1x1x128xf32> to vector<16x16x128xf32>
    %70 = arith.mulf %65, %69 : vector<16x16x128xf32>
    %71 = arith.addf %64, %70 : vector<16x16x128xf32>
    %72 = vector.extract_strided_slice %57 {offsets = [12, 0, 0], sizes = [16, 16, 128], strides = [1, 1, 1]} : vector<28x16x128xf32> to vector<16x16x128xf32>
    %c0_39 = arith.constant 0 : index
    %c2_40 = arith.constant 2 : index
    %c1_41 = arith.constant 1 : index
    %c0_42 = arith.constant 0 : index
    %73 = vector.load %arg3[%c0_39, %c2_40, %c1_41, %c0_42] : memref<3x3x3x128xf32, #tpu.memory_space<vmem>>, vector<1x1x1x128xf32>
    %74 = vector.shape_cast %73 : vector<1x1x1x128xf32> to vector<128xf32>
    %75 = vector.shape_cast %74 : vector<128xf32> to vector<1x1x128xf32>
    %76 = vector.broadcast %75 : vector<1x1x128xf32> to vector<16x16x128xf32>
    %77 = arith.mulf %72, %76 : vector<16x16x128xf32>
    %78 = arith.addf %71, %77 : vector<16x16x128xf32>
    %79 = arith.index_cast %11 : i32 to index
    %c12_43 = arith.constant 12 : index
    %c24 = arith.constant 24 : index
    %c0_44 = arith.constant 0 : index
    %80 = vector.load %arg6[%79, %c12_43, %c24, %c0_44] : memref<2x52x52x128xf32, #tpu.memory_space<vmem>>, vector<1x28x16x128xf32>
    %81 = vector.shape_cast %80 : vector<1x28x16x128xf32> to vector<28x16x128xf32>
    %82 = vector.extract_strided_slice %81 {offsets = [0, 0, 0], sizes = [16, 16, 128], strides = [1, 1, 1]} : vector<28x16x128xf32> to vector<16x16x128xf32>
    %c0_45 = arith.constant 0 : index
    %c0_46 = arith.constant 0 : index
    %c2_47 = arith.constant 2 : index
    %c0_48 = arith.constant 0 : index
    %83 = vector.load %arg3[%c0_45, %c0_46, %c2_47, %c0_48] : memref<3x3x3x128xf32, #tpu.memory_space<vmem>>, vector<1x1x1x128xf32>
    %84 = vector.shape_cast %83 : vector<1x1x1x128xf32> to vector<128xf32>
    %85 = vector.shape_cast %84 : vector<128xf32> to vector<1x1x128xf32>
    %86 = vector.broadcast %85 : vector<1x1x128xf32> to vector<16x16x128xf32>
    %87 = arith.mulf %82, %86 : vector<16x16x128xf32>
    %88 = arith.addf %78, %87 : vector<16x16x128xf32>
    %89 = vector.extract_strided_slice %81 {offsets = [6, 0, 0], sizes = [16, 16, 128], strides = [1, 1, 1]} : vector<28x16x128xf32> to vector<16x16x128xf32>
    %c0_49 = arith.constant 0 : index
    %c1_50 = arith.constant 1 : index
    %c2_51 = arith.constant 2 : index
    %c0_52 = arith.constant 0 : index
    %90 = vector.load %arg3[%c0_49, %c1_50, %c2_51, %c0_52] : memref<3x3x3x128xf32, #tpu.memory_space<vmem>>, vector<1x1x1x128xf32>
    %91 = vector.shape_cast %90 : vector<1x1x1x128xf32> to vector<128xf32>
    %92 = vector.shape_cast %91 : vector<128xf32> to vector<1x1x128xf32>
    %93 = vector.broadcast %92 : vector<1x1x128xf32> to vector<16x16x128xf32>
    %94 = arith.mulf %89, %93 : vector<16x16x128xf32>
    %95 = arith.addf %88, %94 : vector<16x16x128xf32>
    %96 = vector.extract_strided_slice %81 {offsets = [12, 0, 0], sizes = [16, 16, 128], strides = [1, 1, 1]} : vector<28x16x128xf32> to vector<16x16x128xf32>
    %c0_53 = arith.constant 0 : index
    %c2_54 = arith.constant 2 : index
    %c2_55 = arith.constant 2 : index
    %c0_56 = arith.constant 0 : index
    %97 = vector.load %arg3[%c0_53, %c2_54, %c2_55, %c0_56] : memref<3x3x3x128xf32, #tpu.memory_space<vmem>>, vector<1x1x1x128xf32>
    %98 = vector.shape_cast %97 : vector<1x1x1x128xf32> to vector<128xf32>
    %99 = vector.shape_cast %98 : vector<128xf32> to vector<1x1x128xf32>
    %100 = vector.broadcast %99 : vector<1x1x128xf32> to vector<16x16x128xf32>
    %101 = arith.mulf %96, %100 : vector<16x16x128xf32>
    %102 = arith.addf %95, %101 : vector<16x16x128xf32>
    %c0_57 = arith.constant 0 : index
    %c0_58 = arith.constant 0 : index
    %103 = vector.load %arg4[%c0_57, %c0_58] : memref<3x128xf32, #tpu.memory_space<vmem>>, vector<1x128xf32>
    %104 = vector.shape_cast %103 : vector<1x128xf32> to vector<128xf32>
    %105 = vector.shape_cast %104 : vector<128xf32> to vector<1x1x128xf32>
    %106 = vector.broadcast %105 : vector<1x1x128xf32> to vector<16x16x128xf32>
    %107 = arith.addf %102, %106 : vector<16x16x128xf32>
    %cst = arith.constant 5.000000e-01 : f32
    %108 = vector.broadcast %cst : f32 to vector<16x16x128xf32>
    %109 = arith.mulf %108, %107 : vector<16x16x128xf32>
    %110 = arith.mulf %107, %107 : vector<16x16x128xf32>
    %111 = arith.mulf %110, %107 : vector<16x16x128xf32>
    %cst_59 = arith.constant 4.471500e-02 : f32
    %112 = vector.broadcast %cst_59 : f32 to vector<16x16x128xf32>
    %113 = arith.mulf %112, %111 : vector<16x16x128xf32>
    %114 = arith.addf %107, %113 : vector<16x16x128xf32>
    %cst_60 = arith.constant 0.797884583 : f32
    %115 = vector.broadcast %cst_60 : f32 to vector<16x16x128xf32>
    %116 = arith.mulf %115, %114 : vector<16x16x128xf32>
    %117 = math.tanh %116 : vector<16x16x128xf32>
    %cst_61 = arith.constant 1.000000e+00 : f32
    %118 = vector.broadcast %cst_61 : f32 to vector<16x16x128xf32>
    %119 = arith.addf %118, %117 : vector<16x16x128xf32>
    %120 = arith.mulf %109, %119 : vector<16x16x128xf32>
    %cst_62 = arith.constant 5.000000e-01 : f32
    %121 = vector.broadcast %cst_62 : f32 to vector<16x16x128xf32>
    %122 = arith.mulf %121, %120 : vector<16x16x128xf32>
    %123 = arith.mulf %120, %120 : vector<16x16x128xf32>
    %124 = arith.mulf %123, %120 : vector<16x16x128xf32>
    %cst_63 = arith.constant 4.471500e-02 : f32
    %125 = vector.broadcast %cst_63 : f32 to vector<16x16x128xf32>
    %126 = arith.mulf %125, %124 : vector<16x16x128xf32>
    %127 = arith.addf %120, %126 : vector<16x16x128xf32>
    %cst_64 = arith.constant 0.797884583 : f32
    %128 = vector.broadcast %cst_64 : f32 to vector<16x16x128xf32>
    %129 = arith.mulf %128, %127 : vector<16x16x128xf32>
    %130 = math.tanh %129 : vector<16x16x128xf32>
    %cst_65 = arith.constant 1.000000e+00 : f32
    %131 = vector.broadcast %cst_65 : f32 to vector<16x16x128xf32>
    %132 = arith.addf %131, %130 : vector<16x16x128xf32>
    %133 = arith.mulf %122, %132 : vector<16x16x128xf32>
    %c0_66 = arith.constant 0 : index
    %c0_67 = arith.constant 0 : index
    %c0_68 = arith.constant 0 : index
    %c0_69 = arith.constant 0 : index
    %134 = vector.load %arg5[%c0_66, %c0_67, %c0_68, %c0_69] : memref<3x16x16x128xf32, #tpu.memory_space<vmem>>, vector<1x16x16x128xf32>
    %135 = vector.shape_cast %134 : vector<1x16x16x128xf32> to vector<16x16x128xf32>
    %136 = vector.shape_cast %133 : vector<16x16x128xf32> to vector<1x16x16x128xf32>
    tpu.vector_store %arg5[%c0_66, %c0_67, %c0_68, %c0_69], %136 {strides = array<i32>} : memref<3x16x16x128xf32, #tpu.memory_space<vmem>>, vector<1x16x16x128xf32>,
    %137 = arith.index_cast %11 : i32 to index
    %c6 = arith.constant 6 : index
    %c6_70 = arith.constant 6 : index
    %c0_71 = arith.constant 0 : index
    %138 = vector.load %arg6[%137, %c6, %c6_70, %c0_71] : memref<2x52x52x128xf32, #tpu.memory_space<vmem>>, vector<1x40x16x128xf32>
    %139 = vector.shape_cast %138 : vector<1x40x16x128xf32> to vector<40x16x128xf32>
    %140 = vector.extract_strided_slice %139 {offsets = [0, 0, 0], sizes = [16, 16, 128], strides = [1, 1, 1]} : vector<40x16x128xf32> to vector<16x16x128xf32>
    %c1_72 = arith.constant 1 : index
    %c0_73 = arith.constant 0 : index
    %c0_74 = arith.constant 0 : index
    %c0_75 = arith.constant 0 : index
    %141 = vector.load %arg3[%c1_72, %c0_73, %c0_74, %c0_75] : memref<3x3x3x128xf32, #tpu.memory_space<vmem>>, vector<1x1x1x128xf32>
    %142 = vector.shape_cast %141 : vector<1x1x1x128xf32> to vector<128xf32>
    %143 = vector.shape_cast %142 : vector<128xf32> to vector<1x1x128xf32>
    %144 = vector.broadcast %143 : vector<1x1x128xf32> to vector<16x16x128xf32>
    %145 = arith.mulf %140, %144 : vector<16x16x128xf32>
    %146 = vector.extract_strided_slice %139 {offsets = [12, 0, 0], sizes = [16, 16, 128], strides = [1, 1, 1]} : vector<40x16x128xf32> to vector<16x16x128xf32>
    %c1_76 = arith.constant 1 : index
    %c1_77 = arith.constant 1 : index
    %c0_78 = arith.constant 0 : index
    %c0_79 = arith.constant 0 : index
    %147 = vector.load %arg3[%c1_76, %c1_77, %c0_78, %c0_79] : memref<3x3x3x128xf32, #tpu.memory_space<vmem>>, vector<1x1x1x128xf32>
    %148 = vector.shape_cast %147 : vector<1x1x1x128xf32> to vector<128xf32>
    %149 = vector.shape_cast %148 : vector<128xf32> to vector<1x1x128xf32>
    %150 = vector.broadcast %149 : vector<1x1x128xf32> to vector<16x16x128xf32>
    %151 = arith.mulf %146, %150 : vector<16x16x128xf32>
    %152 = arith.addf %145, %151 : vector<16x16x128xf32>
    %153 = vector.extract_strided_slice %139 {offsets = [24, 0, 0], sizes = [16, 16, 128], strides = [1, 1, 1]} : vector<40x16x128xf32> to vector<16x16x128xf32>
    %c1_80 = arith.constant 1 : index
    %c2_81 = arith.constant 2 : index
    %c0_82 = arith.constant 0 : index
    %c0_83 = arith.constant 0 : index
    %154 = vector.load %arg3[%c1_80, %c2_81, %c0_82, %c0_83] : memref<3x3x3x128xf32, #tpu.memory_space<vmem>>, vector<1x1x1x128xf32>
    %155 = vector.shape_cast %154 : vector<1x1x1x128xf32> to vector<128xf32>
    %156 = vector.shape_cast %155 : vector<128xf32> to vector<1x1x128xf32>
    %157 = vector.broadcast %156 : vector<1x1x128xf32> to vector<16x16x128xf32>
    %158 = arith.mulf %153, %157 : vector<16x16x128xf32>
    %159 = arith.addf %152, %158 : vector<16x16x128xf32>
    %160 = arith.index_cast %11 : i32 to index
    %c6_84 = arith.constant 6 : index
    %c18_85 = arith.constant 18 : index
    %c0_86 = arith.constant 0 : index
    %161 = vector.load %arg6[%160, %c6_84, %c18_85, %c0_86] : memref<2x52x52x128xf32, #tpu.memory_space<vmem>>, vector<1x40x16x128xf32>
    %162 = vector.shape_cast %161 : vector<1x40x16x128xf32> to vector<40x16x128xf32>
    %163 = vector.extract_strided_slice %162 {offsets = [0, 0, 0], sizes = [16, 16, 128], strides = [1, 1, 1]} : vector<40x16x128xf32> to vector<16x16x128xf32>
    %c1_87 = arith.constant 1 : index
    %c0_88 = arith.constant 0 : index
    %c1_89 = arith.constant 1 : index
    %c0_90 = arith.constant 0 : index
    %164 = vector.load %arg3[%c1_87, %c0_88, %c1_89, %c0_90] : memref<3x3x3x128xf32, #tpu.memory_space<vmem>>, vector<1x1x1x128xf32>
    %165 = vector.shape_cast %164 : vector<1x1x1x128xf32> to vector<128xf32>
    %166 = vector.shape_cast %165 : vector<128xf32> to vector<1x1x128xf32>
    %167 = vector.broadcast %166 : vector<1x1x128xf32> to vector<16x16x128xf32>
    %168 = arith.mulf %163, %167 : vector<16x16x128xf32>
    %169 = arith.addf %159, %168 : vector<16x16x128xf32>
    %170 = vector.extract_strided_slice %162 {offsets = [12, 0, 0], sizes = [16, 16, 128], strides = [1, 1, 1]} : vector<40x16x128xf32> to vector<16x16x128xf32>
    %c1_91 = arith.constant 1 : index
    %c1_92 = arith.constant 1 : index
    %c1_93 = arith.constant 1 : index
    %c0_94 = arith.constant 0 : index
    %171 = vector.load %arg3[%c1_91, %c1_92, %c1_93, %c0_94] : memref<3x3x3x128xf32, #tpu.memory_space<vmem>>, vector<1x1x1x128xf32>
    %172 = vector.shape_cast %171 : vector<1x1x1x128xf32> to vector<128xf32>
    %173 = vector.shape_cast %172 : vector<128xf32> to vector<1x1x128xf32>
    %174 = vector.broadcast %173 : vector<1x1x128xf32> to vector<16x16x128xf32>
    %175 = arith.mulf %170, %174 : vector<16x16x128xf32>
    %176 = arith.addf %169, %175 : vector<16x16x128xf32>
    %177 = vector.extract_strided_slice %162 {offsets = [24, 0, 0], sizes = [16, 16, 128], strides = [1, 1, 1]} : vector<40x16x128xf32> to vector<16x16x128xf32>
    %c1_95 = arith.constant 1 : index
    %c2_96 = arith.constant 2 : index
    %c1_97 = arith.constant 1 : index
    %c0_98 = arith.constant 0 : index
    %178 = vector.load %arg3[%c1_95, %c2_96, %c1_97, %c0_98] : memref<3x3x3x128xf32, #tpu.memory_space<vmem>>, vector<1x1x1x128xf32>
    %179 = vector.shape_cast %178 : vector<1x1x1x128xf32> to vector<128xf32>
    %180 = vector.shape_cast %179 : vector<128xf32> to vector<1x1x128xf32>
    %181 = vector.broadcast %180 : vector<1x1x128xf32> to vector<16x16x128xf32>
    %182 = arith.mulf %177, %181 : vector<16x16x128xf32>
    %183 = arith.addf %176, %182 : vector<16x16x128xf32>
    %184 = arith.index_cast %11 : i32 to index
    %c6_99 = arith.constant 6 : index
    %c30 = arith.constant 30 : index
    %c0_100 = arith.constant 0 : index
    %185 = vector.load %arg6[%184, %c6_99, %c30, %c0_100] : memref<2x52x52x128xf32, #tpu.memory_space<vmem>>, vector<1x40x16x128xf32>
    %186 = vector.shape_cast %185 : vector<1x40x16x128xf32> to vector<40x16x128xf32>
    %187 = vector.extract_strided_slice %186 {offsets = [0, 0, 0], sizes = [16, 16, 128], strides = [1, 1, 1]} : vector<40x16x128xf32> to vector<16x16x128xf32>
    %c1_101 = arith.constant 1 : index
    %c0_102 = arith.constant 0 : index
    %c2_103 = arith.constant 2 : index
    %c0_104 = arith.constant 0 : index
    %188 = vector.load %arg3[%c1_101, %c0_102, %c2_103, %c0_104] : memref<3x3x3x128xf32, #tpu.memory_space<vmem>>, vector<1x1x1x128xf32>
    %189 = vector.shape_cast %188 : vector<1x1x1x128xf32> to vector<128xf32>
    %190 = vector.shape_cast %189 : vector<128xf32> to vector<1x1x128xf32>
    %191 = vector.broadcast %190 : vector<1x1x128xf32> to vector<16x16x128xf32>
    %192 = arith.mulf %187, %191 : vector<16x16x128xf32>
    %193 = arith.addf %183, %192 : vector<16x16x128xf32>
    %194 = vector.extract_strided_slice %186 {offsets = [12, 0, 0], sizes = [16, 16, 128], strides = [1, 1, 1]} : vector<40x16x128xf32> to vector<16x16x128xf32>
    %c1_105 = arith.constant 1 : index
    %c1_106 = arith.constant 1 : index
    %c2_107 = arith.constant 2 : index
    %c0_108 = arith.constant 0 : index
    %195 = vector.load %arg3[%c1_105, %c1_106, %c2_107, %c0_108] : memref<3x3x3x128xf32, #tpu.memory_space<vmem>>, vector<1x1x1x128xf32>
    %196 = vector.shape_cast %195 : vector<1x1x1x128xf32> to vector<128xf32>
    %197 = vector.shape_cast %196 : vector<128xf32> to vector<1x1x128xf32>
    %198 = vector.broadcast %197 : vector<1x1x128xf32> to vector<16x16x128xf32>
    %199 = arith.mulf %194, %198 : vector<16x16x128xf32>
    %200 = arith.addf %193, %199 : vector<16x16x128xf32>
    %201 = vector.extract_strided_slice %186 {offsets = [24, 0, 0], sizes = [16, 16, 128], strides = [1, 1, 1]} : vector<40x16x128xf32> to vector<16x16x128xf32>
    %c1_109 = arith.constant 1 : index
    %c2_110 = arith.constant 2 : index
    %c2_111 = arith.constant 2 : index
    %c0_112 = arith.constant 0 : index
    %202 = vector.load %arg3[%c1_109, %c2_110, %c2_111, %c0_112] : memref<3x3x3x128xf32, #tpu.memory_space<vmem>>, vector<1x1x1x128xf32>
    %203 = vector.shape_cast %202 : vector<1x1x1x128xf32> to vector<128xf32>
    %204 = vector.shape_cast %203 : vector<128xf32> to vector<1x1x128xf32>
    %205 = vector.broadcast %204 : vector<1x1x128xf32> to vector<16x16x128xf32>
    %206 = arith.mulf %201, %205 : vector<16x16x128xf32>
    %207 = arith.addf %200, %206 : vector<16x16x128xf32>
    %c1_113 = arith.constant 1 : index
    %c0_114 = arith.constant 0 : index
    %208 = vector.load %arg4[%c1_113, %c0_114] : memref<3x128xf32, #tpu.memory_space<vmem>>, vector<1x128xf32>
    %209 = vector.shape_cast %208 : vector<1x128xf32> to vector<128xf32>
    %210 = vector.shape_cast %209 : vector<128xf32> to vector<1x1x128xf32>
    %211 = vector.broadcast %210 : vector<1x1x128xf32> to vector<16x16x128xf32>
    %212 = arith.addf %207, %211 : vector<16x16x128xf32>
    %cst_115 = arith.constant 5.000000e-01 : f32
    %213 = vector.broadcast %cst_115 : f32 to vector<16x16x128xf32>
    %214 = arith.mulf %213, %212 : vector<16x16x128xf32>
    %215 = arith.mulf %212, %212 : vector<16x16x128xf32>
    %216 = arith.mulf %215, %212 : vector<16x16x128xf32>
    %cst_116 = arith.constant 4.471500e-02 : f32
    %217 = vector.broadcast %cst_116 : f32 to vector<16x16x128xf32>
    %218 = arith.mulf %217, %216 : vector<16x16x128xf32>
    %219 = arith.addf %212, %218 : vector<16x16x128xf32>
    %cst_117 = arith.constant 0.797884583 : f32
    %220 = vector.broadcast %cst_117 : f32 to vector<16x16x128xf32>
    %221 = arith.mulf %220, %219 : vector<16x16x128xf32>
    %222 = math.tanh %221 : vector<16x16x128xf32>
    %cst_118 = arith.constant 1.000000e+00 : f32
    %223 = vector.broadcast %cst_118 : f32 to vector<16x16x128xf32>
    %224 = arith.addf %223, %222 : vector<16x16x128xf32>
    %225 = arith.mulf %214, %224 : vector<16x16x128xf32>
    %cst_119 = arith.constant 5.000000e-01 : f32
    %226 = vector.broadcast %cst_119 : f32 to vector<16x16x128xf32>
    %227 = arith.mulf %226, %225 : vector<16x16x128xf32>
    %228 = arith.mulf %225, %225 : vector<16x16x128xf32>
    %229 = arith.mulf %228, %225 : vector<16x16x128xf32>
    %cst_120 = arith.constant 4.471500e-02 : f32
    %230 = vector.broadcast %cst_120 : f32 to vector<16x16x128xf32>
    %231 = arith.mulf %230, %229 : vector<16x16x128xf32>
    %232 = arith.addf %225, %231 : vector<16x16x128xf32>
    %cst_121 = arith.constant 0.797884583 : f32
    %233 = vector.broadcast %cst_121 : f32 to vector<16x16x128xf32>
    %234 = arith.mulf %233, %232 : vector<16x16x128xf32>
    %235 = math.tanh %234 : vector<16x16x128xf32>
    %cst_122 = arith.constant 1.000000e+00 : f32
    %236 = vector.broadcast %cst_122 : f32 to vector<16x16x128xf32>
    %237 = arith.addf %236, %235 : vector<16x16x128xf32>
    %238 = arith.mulf %227, %237 : vector<16x16x128xf32>
    %c1_123 = arith.constant 1 : index
    %c0_124 = arith.constant 0 : index
    %c0_125 = arith.constant 0 : index
    %c0_126 = arith.constant 0 : index
    %239 = vector.load %arg5[%c1_123, %c0_124, %c0_125, %c0_126] : memref<3x16x16x128xf32, #tpu.memory_space<vmem>>, vector<1x16x16x128xf32>
    %240 = vector.shape_cast %239 : vector<1x16x16x128xf32> to vector<16x16x128xf32>
    %241 = vector.shape_cast %238 : vector<16x16x128xf32> to vector<1x16x16x128xf32>
    tpu.vector_store %arg5[%c1_123, %c0_124, %c0_125, %c0_126], %241 {strides = array<i32>} : memref<3x16x16x128xf32, #tpu.memory_space<vmem>>, vector<1x16x16x128xf32>,
    %242 = arith.index_cast %11 : i32 to index
    %c0_127 = arith.constant 0 : index
    %c0_128 = arith.constant 0 : index
    %c0_129 = arith.constant 0 : index
    %243 = vector.load %arg6[%242, %c0_127, %c0_128, %c0_129] : memref<2x52x52x128xf32, #tpu.memory_space<vmem>>, vector<1x52x16x128xf32>
    %244 = vector.shape_cast %243 : vector<1x52x16x128xf32> to vector<52x16x128xf32>
    %245 = vector.extract_strided_slice %244 {offsets = [0, 0, 0], sizes = [16, 16, 128], strides = [1, 1, 1]} : vector<52x16x128xf32> to vector<16x16x128xf32>
    %c2_130 = arith.constant 2 : index
    %c0_131 = arith.constant 0 : index
    %c0_132 = arith.constant 0 : index
    %c0_133 = arith.constant 0 : index
    %246 = vector.load %arg3[%c2_130, %c0_131, %c0_132, %c0_133] : memref<3x3x3x128xf32, #tpu.memory_space<vmem>>, vector<1x1x1x128xf32>
    %247 = vector.shape_cast %246 : vector<1x1x1x128xf32> to vector<128xf32>
    %248 = vector.shape_cast %247 : vector<128xf32> to vector<1x1x128xf32>
    %249 = vector.broadcast %248 : vector<1x1x128xf32> to vector<16x16x128xf32>
    %250 = arith.mulf %245, %249 : vector<16x16x128xf32>
    %251 = vector.extract_strided_slice %244 {offsets = [18, 0, 0], sizes = [16, 16, 128], strides = [1, 1, 1]} : vector<52x16x128xf32> to vector<16x16x128xf32>
    %c2_134 = arith.constant 2 : index
    %c1_135 = arith.constant 1 : index
    %c0_136 = arith.constant 0 : index
    %c0_137 = arith.constant 0 : index
    %252 = vector.load %arg3[%c2_134, %c1_135, %c0_136, %c0_137] : memref<3x3x3x128xf32, #tpu.memory_space<vmem>>, vector<1x1x1x128xf32>
    %253 = vector.shape_cast %252 : vector<1x1x1x128xf32> to vector<128xf32>
    %254 = vector.shape_cast %253 : vector<128xf32> to vector<1x1x128xf32>
    %255 = vector.broadcast %254 : vector<1x1x128xf32> to vector<16x16x128xf32>
    %256 = arith.mulf %251, %255 : vector<16x16x128xf32>
    %257 = arith.addf %250, %256 : vector<16x16x128xf32>
    %258 = vector.extract_strided_slice %244 {offsets = [36, 0, 0], sizes = [16, 16, 128], strides = [1, 1, 1]} : vector<52x16x128xf32> to vector<16x16x128xf32>
    %c2_138 = arith.constant 2 : index
    %c2_139 = arith.constant 2 : index
    %c0_140 = arith.constant 0 : index
    %c0_141 = arith.constant 0 : index
    %259 = vector.load %arg3[%c2_138, %c2_139, %c0_140, %c0_141] : memref<3x3x3x128xf32, #tpu.memory_space<vmem>>, vector<1x1x1x128xf32>
    %260 = vector.shape_cast %259 : vector<1x1x1x128xf32> to vector<128xf32>
    %261 = vector.shape_cast %260 : vector<128xf32> to vector<1x1x128xf32>
    %262 = vector.broadcast %261 : vector<1x1x128xf32> to vector<16x16x128xf32>
    %263 = arith.mulf %258, %262 : vector<16x16x128xf32>
    %264 = arith.addf %257, %263 : vector<16x16x128xf32>
    %265 = arith.index_cast %11 : i32 to index
    %c0_142 = arith.constant 0 : index
    %c18_143 = arith.constant 18 : index
    %c0_144 = arith.constant 0 : index
    %266 = vector.load %arg6[%265, %c0_142, %c18_143, %c0_144] : memref<2x52x52x128xf32, #tpu.memory_space<vmem>>, vector<1x52x16x128xf32>
    %267 = vector.shape_cast %266 : vector<1x52x16x128xf32> to vector<52x16x128xf32>
    %268 = vector.extract_strided_slice %267 {offsets = [0, 0, 0], sizes = [16, 16, 128], strides = [1, 1, 1]} : vector<52x16x128xf32> to vector<16x16x128xf32>
    %c2_145 = arith.constant 2 : index
    %c0_146 = arith.constant 0 : index
    %c1_147 = arith.constant 1 : index
    %c0_148 = arith.constant 0 : index
    %269 = vector.load %arg3[%c2_145, %c0_146, %c1_147, %c0_148] : memref<3x3x3x128xf32, #tpu.memory_space<vmem>>, vector<1x1x1x128xf32>
    %270 = vector.shape_cast %269 : vector<1x1x1x128xf32> to vector<128xf32>
    %271 = vector.shape_cast %270 : vector<128xf32> to vector<1x1x128xf32>
    %272 = vector.broadcast %271 : vector<1x1x128xf32> to vector<16x16x128xf32>
    %273 = arith.mulf %268, %272 : vector<16x16x128xf32>
    %274 = arith.addf %264, %273 : vector<16x16x128xf32>
    %275 = vector.extract_strided_slice %267 {offsets = [18, 0, 0], sizes = [16, 16, 128], strides = [1, 1, 1]} : vector<52x16x128xf32> to vector<16x16x128xf32>
    %c2_149 = arith.constant 2 : index
    %c1_150 = arith.constant 1 : index
    %c1_151 = arith.constant 1 : index
    %c0_152 = arith.constant 0 : index
    %276 = vector.load %arg3[%c2_149, %c1_150, %c1_151, %c0_152] : memref<3x3x3x128xf32, #tpu.memory_space<vmem>>, vector<1x1x1x128xf32>
    %277 = vector.shape_cast %276 : vector<1x1x1x128xf32> to vector<128xf32>
    %278 = vector.shape_cast %277 : vector<128xf32> to vector<1x1x128xf32>
    %279 = vector.broadcast %278 : vector<1x1x128xf32> to vector<16x16x128xf32>
    %280 = arith.mulf %275, %279 : vector<16x16x128xf32>
    %281 = arith.addf %274, %280 : vector<16x16x128xf32>
    %282 = vector.extract_strided_slice %267 {offsets = [36, 0, 0], sizes = [16, 16, 128], strides = [1, 1, 1]} : vector<52x16x128xf32> to vector<16x16x128xf32>
    %c2_153 = arith.constant 2 : index
    %c2_154 = arith.constant 2 : index
    %c1_155 = arith.constant 1 : index
    %c0_156 = arith.constant 0 : index
    %283 = vector.load %arg3[%c2_153, %c2_154, %c1_155, %c0_156] : memref<3x3x3x128xf32, #tpu.memory_space<vmem>>, vector<1x1x1x128xf32>
    %284 = vector.shape_cast %283 : vector<1x1x1x128xf32> to vector<128xf32>
    %285 = vector.shape_cast %284 : vector<128xf32> to vector<1x1x128xf32>
    %286 = vector.broadcast %285 : vector<1x1x128xf32> to vector<16x16x128xf32>
    %287 = arith.mulf %282, %286 : vector<16x16x128xf32>
    %288 = arith.addf %281, %287 : vector<16x16x128xf32>
    %289 = arith.index_cast %11 : i32 to index
    %c0_157 = arith.constant 0 : index
    %c36 = arith.constant 36 : index
    %c0_158 = arith.constant 0 : index
    %290 = vector.load %arg6[%289, %c0_157, %c36, %c0_158] : memref<2x52x52x128xf32, #tpu.memory_space<vmem>>, vector<1x52x16x128xf32>
    %291 = vector.shape_cast %290 : vector<1x52x16x128xf32> to vector<52x16x128xf32>
    %292 = vector.extract_strided_slice %291 {offsets = [0, 0, 0], sizes = [16, 16, 128], strides = [1, 1, 1]} : vector<52x16x128xf32> to vector<16x16x128xf32>
    %c2_159 = arith.constant 2 : index
    %c0_160 = arith.constant 0 : index
    %c2_161 = arith.constant 2 : index
    %c0_162 = arith.constant 0 : index
    %293 = vector.load %arg3[%c2_159, %c0_160, %c2_161, %c0_162] : memref<3x3x3x128xf32, #tpu.memory_space<vmem>>, vector<1x1x1x128xf32>
    %294 = vector.shape_cast %293 : vector<1x1x1x128xf32> to vector<128xf32>
    %295 = vector.shape_cast %294 : vector<128xf32> to vector<1x1x128xf32>
    %296 = vector.broadcast %295 : vector<1x1x128xf32> to vector<16x16x128xf32>
    %297 = arith.mulf %292, %296 : vector<16x16x128xf32>
    %298 = arith.addf %288, %297 : vector<16x16x128xf32>
    %299 = vector.extract_strided_slice %291 {offsets = [18, 0, 0], sizes = [16, 16, 128], strides = [1, 1, 1]} : vector<52x16x128xf32> to vector<16x16x128xf32>
    %c2_163 = arith.constant 2 : index
    %c1_164 = arith.constant 1 : index
    %c2_165 = arith.constant 2 : index
    %c0_166 = arith.constant 0 : index
    %300 = vector.load %arg3[%c2_163, %c1_164, %c2_165, %c0_166] : memref<3x3x3x128xf32, #tpu.memory_space<vmem>>, vector<1x1x1x128xf32>
    %301 = vector.shape_cast %300 : vector<1x1x1x128xf32> to vector<128xf32>
    %302 = vector.shape_cast %301 : vector<128xf32> to vector<1x1x128xf32>
    %303 = vector.broadcast %302 : vector<1x1x128xf32> to vector<16x16x128xf32>
    %304 = arith.mulf %299, %303 : vector<16x16x128xf32>
    %305 = arith.addf %298, %304 : vector<16x16x128xf32>
    %306 = vector.extract_strided_slice %291 {offsets = [36, 0, 0], sizes = [16, 16, 128], strides = [1, 1, 1]} : vector<52x16x128xf32> to vector<16x16x128xf32>
    %c2_167 = arith.constant 2 : index
    %c2_168 = arith.constant 2 : index
    %c2_169 = arith.constant 2 : index
    %c0_170 = arith.constant 0 : index
    %307 = vector.load %arg3[%c2_167, %c2_168, %c2_169, %c0_170] : memref<3x3x3x128xf32, #tpu.memory_space<vmem>>, vector<1x1x1x128xf32>
    %308 = vector.shape_cast %307 : vector<1x1x1x128xf32> to vector<128xf32>
    %309 = vector.shape_cast %308 : vector<128xf32> to vector<1x1x128xf32>
    %310 = vector.broadcast %309 : vector<1x1x128xf32> to vector<16x16x128xf32>
    %311 = arith.mulf %306, %310 : vector<16x16x128xf32>
    %312 = arith.addf %305, %311 : vector<16x16x128xf32>
    %c2_171 = arith.constant 2 : index
    %c0_172 = arith.constant 0 : index
    %313 = vector.load %arg4[%c2_171, %c0_172] : memref<3x128xf32, #tpu.memory_space<vmem>>, vector<1x128xf32>
    %314 = vector.shape_cast %313 : vector<1x128xf32> to vector<128xf32>
    %315 = vector.shape_cast %314 : vector<128xf32> to vector<1x1x128xf32>
    %316 = vector.broadcast %315 : vector<1x1x128xf32> to vector<16x16x128xf32>
    %317 = arith.addf %312, %316 : vector<16x16x128xf32>
    %cst_173 = arith.constant 5.000000e-01 : f32
    %318 = vector.broadcast %cst_173 : f32 to vector<16x16x128xf32>
    %319 = arith.mulf %318, %317 : vector<16x16x128xf32>
    %320 = arith.mulf %317, %317 : vector<16x16x128xf32>
    %321 = arith.mulf %320, %317 : vector<16x16x128xf32>
    %cst_174 = arith.constant 4.471500e-02 : f32
    %322 = vector.broadcast %cst_174 : f32 to vector<16x16x128xf32>
    %323 = arith.mulf %322, %321 : vector<16x16x128xf32>
    %324 = arith.addf %317, %323 : vector<16x16x128xf32>
    %cst_175 = arith.constant 0.797884583 : f32
    %325 = vector.broadcast %cst_175 : f32 to vector<16x16x128xf32>
    %326 = arith.mulf %325, %324 : vector<16x16x128xf32>
    %327 = math.tanh %326 : vector<16x16x128xf32>
    %cst_176 = arith.constant 1.000000e+00 : f32
    %328 = vector.broadcast %cst_176 : f32 to vector<16x16x128xf32>
    %329 = arith.addf %328, %327 : vector<16x16x128xf32>
    %330 = arith.mulf %319, %329 : vector<16x16x128xf32>
    %cst_177 = arith.constant 5.000000e-01 : f32
    %331 = vector.broadcast %cst_177 : f32 to vector<16x16x128xf32>
    %332 = arith.mulf %331, %330 : vector<16x16x128xf32>
    %333 = arith.mulf %330, %330 : vector<16x16x128xf32>
    %334 = arith.mulf %333, %330 : vector<16x16x128xf32>
    %cst_178 = arith.constant 4.471500e-02 : f32
    %335 = vector.broadcast %cst_178 : f32 to vector<16x16x128xf32>
    %336 = arith.mulf %335, %334 : vector<16x16x128xf32>
    %337 = arith.addf %330, %336 : vector<16x16x128xf32>
    %cst_179 = arith.constant 0.797884583 : f32
    %338 = vector.broadcast %cst_179 : f32 to vector<16x16x128xf32>
    %339 = arith.mulf %338, %337 : vector<16x16x128xf32>
    %340 = math.tanh %339 : vector<16x16x128xf32>
    %cst_180 = arith.constant 1.000000e+00 : f32
    %341 = vector.broadcast %cst_180 : f32 to vector<16x16x128xf32>
    %342 = arith.addf %341, %340 : vector<16x16x128xf32>
    %343 = arith.mulf %332, %342 : vector<16x16x128xf32>
    %c2_181 = arith.constant 2 : index
    %c0_182 = arith.constant 0 : index
    %c0_183 = arith.constant 0 : index
    %c0_184 = arith.constant 0 : index
    %344 = vector.load %arg5[%c2_181, %c0_182, %c0_183, %c0_184] : memref<3x16x16x128xf32, #tpu.memory_space<vmem>>, vector<1x16x16x128xf32>
    %345 = vector.shape_cast %344 : vector<1x16x16x128xf32> to vector<16x16x128xf32>
    %346 = vector.shape_cast %343 : vector<16x16x128xf32> to vector<1x16x16x128xf32>
    tpu.vector_store %arg5[%c2_181, %c0_182, %c0_183, %c0_184], %346 {strides = array<i32>} : memref<3x16x16x128xf32, #tpu.memory_space<vmem>>, vector<1x16x16x128xf32>,
    return
  }
  func.func @transform_1(%arg0: i32, %arg1: i32) -> (i32, i32, i32, i32) {
    %c0_i32 = arith.constant 0 : i32
    %c0_i32_0 = arith.constant 0 : i32
    %c0_i32_1 = arith.constant 0 : i32
    %c0_i32_2 = arith.constant 0 : i32
    %c0_i32_3 = arith.constant 0 : i32
    return %c0_i32, %c0_i32_0, %c0_i32_1, %c0_i32_2 : i32, i32, i32, i32
  }
  func.func @transform_2(%arg0: i32, %arg1: i32) -> (i32, i32) {
    %c0_i32 = arith.constant 0 : i32
    %c0_i32_0 = arith.constant 0 : i32
    %c0_i32_1 = arith.constant 0 : i32
    return %c0_i32, %c0_i32_0 : i32, i32
  }
  func.func @transform_3(%arg0: i32, %arg1: i32) -> (i32, i32, i32, i32) {
    %c0_i32 = arith.constant 0 : i32
    %c0_i32_0 = arith.constant 0 : i32
    %c0_i32_1 = arith.constant 0 : i32
    return %arg0, %arg1, %c0_i32, %c0_i32_0 : i32, i32, i32, i32
  }
}

</mosaic_0001>

<llo_original>
// kernel: tpu_custom_call.1
$region0: #{tpu_custom_call.1}
  #allocation0 [shape = 'u32[]', space=smem, size = 0x4, offset = 0x4, fixed_abs, tag = 'smem constant byte address 0x4 - core index']
  #allocation1 [shape = 'u32[72,128]{1,0:T(1,128)}', space=vmem, size = 0x9000, scoped, tag = 'internal scratch']
  #allocation2 [shape = 'f32[2,52,52,128]{3,2,1,0:T(8,128)}', space=vmem, size = 0x2d8000, scoped, tag = 'scratch operand']
  #allocation3 [shape = 's32[2]{0}', space=sflag, size = 0x8, scoped, tag = 'scratch operand']
  #allocation6 [shape = 's32[]', space=sflag, size = 0x4, offset = 0, fixed_abs, tag = 'sflag constant byte address 0x0 - dummy sync flag']
  #allocation7 [shape = 's32[]', space=sflag, size = 0x4, offset = 0, fixed_abs, tag = 'sflag constant byte address 0x0 - dummy sync flag']
  %s0 = inlined_call_operand.vmem [shape: f32[104,52,128], index: 0, kind: input, shape index: {}]
  %s1 = inlined_call_operand.vmem [shape: f32[3,3,3,128], index: 1, kind: input, shape index: {}]
  %s2 = inlined_call_operand.vmem [shape: f32[3,128], index: 2, kind: input, shape index: {}]
  %s3 = inlined_call_operand.hbm [shape: f32[6,16,16,128], index: 3, kind: output, shape index: {}]
  %s4 = sld [smem:[#allocation0]]
  $region93: #{tpu_custom_call.1} parent=0
    _
  %s6 = ssub.s32 1, %s4
  %s7 = scalar_select 0, %s6, %s4
  $region1: #{tpu_custom_call.1} parent=0
    #allocation4 [shape = 'u8[786432]{0}', space=vmem, size = 0xc0000, scoped, tag = 'output window, operand 0']
    #allocation5 [shape = 's32[2]{0}', space=sflag, size = 0x8, scoped, tag = 'scoped memory for tpu_custom_call.1']
    %8 = vsyncpa [#allocation5], 0
    %s9 = scalar_lea.sflag [#allocation5], 1
    %10 = vsyncpa %s9, 0
    loop: start=0, step=1, limit=4
    $region2: #{tpu_custom_call.1} parent=1 // loop_pre_header
      _
    $region3: #{tpu_custom_call.1} parent=1 // loop_header
      %s12 = sphi 0, %s16
      %p13 = scmp.ge.s32.totalorder %s12, 4
      %s19 = sphi 0, %s31
      %s20 = sphi 0, %s27
      %s21 = sphi 0, %s19
      %s22 = sphi 0, %s20
      %s23 = sphi 0, %s21
      %s24 = sphi 0, %s22
      %s32 = sphi 0, %s32
      %s34 = sphi 0, %s32
      %s35 = sphi 0, %s34
      %s49 = sphi 0, %s35
      %s53 = sphi 0, %s53
      %s55 = sphi 0, %s53
      %s56 = sphi 0, %s55
      %s70 = sphi 0, %s56
      %s78 = sphi 0, %s80
      %s81 = sphi 0, %s78
      %s82 = sphi 0, %s81
      %s98 = sphi 0, %s82
    $region4: #{tpu_custom_call.1} parent=1 // loop_header_branch
      %15 = sbr.rel (%p13) target = $region8
    $region5: #{tpu_custom_call.1} parent=1 // loop_body
      %s17 = ssub.s32 %s12, 1
      %s18 = ssub.s32 %s12, 2
      %s25 = sadd.s32 1, %s20
      %p26 = scmp.ge.s32.totalorder %s25, 1
      %s27 = scalar_select %p26, 0, %s25
      %s28 = sadd.s32 1, %s19
      %s29 = scalar_select %p26, %s28, %s19
      %p30 = scmp.ge.s32.totalorder %s29, 2
      %s31 = scalar_select %p30, 0, %s29
      %s33 = sadd.s32 %s32, 1
      %p36 = scmp.eq.s32.totalorder %s12, 1
      %p37 = scmp.ne.s32.totalorder %s32, %s34
      %p38 = scmp.eq.s32.totalorder %s12, 0
      %p39 = por %p37, %p38
      %p40 = scmp.ne.s32.totalorder %s32, %s34
      %p41 = scmp.eq.s32.totalorder %s17, 1
      %p42 = por %p40, %p41
      %p43 = scmp.ne.s32.totalorder %s34, %s35
      %p44 = scmp.eq.s32.totalorder %s17, 0
      %p45 = por %p43, %p44
      %p46 = scmp.ne.s32.totalorder %s34, %s35
      %p47 = scmp.eq.s32.totalorder %s18, 1
      %p48 = por %p46, %p47
      %p50 = scmp.ne.s32.totalorder %s35, %s49
      %p51 = scmp.eq.s32.totalorder %s18, 0
      %p52 = por %p50, %p51
      %s54 = sadd.s32 %s53, 1
      %p57 = scmp.eq.s32.totalorder %s12, 1
      %p58 = scmp.ne.s32.totalorder %s53, %s55
      %p59 = scmp.eq.s32.totalorder %s12, 0
      %p60 = por %p58, %p59
      %p61 = scmp.ne.s32.totalorder %s53, %s55
      %p62 = scmp.eq.s32.totalorder %s17, 1
      %p63 = por %p61, %p62
      %p64 = scmp.ne.s32.totalorder %s55, %s56
      %p65 = scmp.eq.s32.totalorder %s17, 0
      %p66 = por %p64, %p65
      %p67 = scmp.ne.s32.totalorder %s55, %s56
      %p68 = scmp.eq.s32.totalorder %s18, 1
      %p69 = por %p67, %p68
      %p71 = scmp.ne.s32.totalorder %s56, %s70
      %p72 = scmp.eq.s32.totalorder %s18, 0
      %p73 = por %p71, %p72
      %s74 = ssub.s32 %s19, %s31
      %s75 = ssub.s32 %s20, %s27
      %s76 = sor.u32 %s74, %s75
      %p77 = scmp.eq.s32.totalorder %s76, 0
      %s79 = sadd.s32 %s78, 1
      %s80 = scalar_select %p77, %s78, %s79
      %p83 = pneg %p77
      %p84 = scmp.eq.s32.totalorder %s12, 1
      %p85 = por %p83, %p84
      %p86 = scmp.ne.s32.totalorder %s78, %s81
      %p87 = scmp.eq.s32.totalorder %s12, 0
      %p88 = por %p86, %p87
      %p89 = scmp.ne.s32.totalorder %s78, %s81
      %p90 = scmp.eq.s32.totalorder %s17, 1
      %p91 = por %p89, %p90
      %p92 = scmp.ne.s32.totalorder %s81, %s82
      %p93 = scmp.eq.s32.totalorder %s17, 0
      %p94 = por %p92, %p93
      %p95 = scmp.ne.s32.totalorder %s81, %s82
      %p96 = scmp.eq.s32.totalorder %s18, 1
      %p97 = por %p95, %p96
      %p99 = scmp.ne.s32.totalorder %s82, %s98
      %p100 = scmp.eq.s32.totalorder %s18, 0
      %p101 = por %p99, %p100
      %p102 = scmp.le.s32.totalorder 1, %s12
      %p103 = scmp.lt.s32.totalorder %s12, 3
      %p104 = pnand %p102, %p103
      %p105 = pneg %p104
      // Predicated region
      $region9: #{tpu_custom_call.1} parent=5 // pred_check
        _
      $region10: #{tpu_custom_call.1} parent=5 // pred_check_branch
        %107 = sbr.rel (%p104) target = $region12
      $region11: #{tpu_custom_call.1} parent=5 // pred_region
        %s108 = ssub.s32 %s12, 1
        // Predicated region
        $region13: #{tpu_custom_call.1} parent=11 // pred_check
          %p109 = pneg %p45
        $region14: #{tpu_custom_call.1} parent=11 // pred_check_branch
          %111 = sbr.rel (%p109) target = $region16
        $region15: #{tpu_custom_call.1} parent=11 // pred_region
          _
        $region16: #{tpu_custom_call.1} parent=11 // pred_fallthru
          _
        // Predicated region
        $region17: #{tpu_custom_call.1} parent=11 // pred_check
          %p112 = pneg %p66
        $region18: #{tpu_custom_call.1} parent=11 // pred_check_branch
          %114 = sbr.rel (%p112) target = $region20
        $region19: #{tpu_custom_call.1} parent=11 // pred_region
          _
        $region20: #{tpu_custom_call.1} parent=11 // pred_fallthru
          _
      $region12: #{tpu_custom_call.1} parent=5 // pred_fallthru
        _
      %p115 = scmp.lt.s32.totalorder %s12, 2
      // Predicated region
      $region21: #{tpu_custom_call.1} parent=5 // pred_check
        %p116 = pneg %p115
      $region22: #{tpu_custom_call.1} parent=5 // pred_check_branch
        %118 = sbr.rel (%p116) target = $region24
      $region23: #{tpu_custom_call.1} parent=5 // pred_region
        _
      $region24: #{tpu_custom_call.1} parent=5 // pred_fallthru
        _
      %p119 = scmp.le.s32.totalorder 1, %s12
      %p120 = scmp.lt.s32.totalorder %s12, 3
      %p121 = pnand %p119, %p120
      %p122 = pneg %p121
      // Predicated region
      $region25: #{tpu_custom_call.1} parent=5 // pred_check
        _
      $region26: #{tpu_custom_call.1} parent=5 // pred_check_branch
        %124 = sbr.rel (%p121) target = $region28
      $region27: #{tpu_custom_call.1} parent=5 // pred_region
        %s125 = ssub.s32 %s12, 1
        %p126 = pneg %p45
        %p127 = pneg %p42
        %p128 = pneg %p66
        %p129 = pneg %p63
        %p130 = pneg %p94
        %p131 = pneg %p91
        %s132 = sand.u32 %s81, 1
        %s133 = scalar_lea.sflag [#allocation5], %s132
        %s134 = sand.u32 %s81, 1
        %s135 = smul.addr %s134, 768
        %s136 = scalar_lea.vmem [#allocation4], %s135
        %s137 = smul.u32 3, %s21
        %s138 = smul.u32 16, %s22
        %s139 = sadd.s32 %s21, %s22
        %p140 = scmp.lt.s32.totalorder %s139, 0
        %s141 = ssub.s32 0, %s139
        %s142 = scalar_select %p140, %s141, %s139
        %s143 = sand.u32 %s142, 1
        %s144 = ssub.s32 0, %s143
        %s145 = scalar_select %p140, %s144, %s143
        %p146 = scmp.ne.s32.totalorder %s145, 0
        %p147 = scmp.lt.s32.totalorder %s145, 0
        %p148 = pnand %p147, %p146
        %p149 = pneg %p148
        %s150 = sadd.s32 %s145, 2
        %s151 = scalar_select %p149, %s150, %s145
        %s152 = smul.u32 %s21, 52
        %s153 = smul.u32 %s22, 16
        %s154 = sadd.s32 %s152, %s153
        %p155 = scmp.eq.s32.totalorder %s139, 0
        // Predicated region
        $region29: #{tpu_custom_call.1} parent=27 // pred_check
          %p156 = pneg %p155
        $region30: #{tpu_custom_call.1} parent=27 // pred_check_branch
          %158 = sbr.rel (%p156) target = $region32
        $region31: #{tpu_custom_call.1} parent=27 // pred_region
          %s159 = smul.u32 %s154, 56
          %s160 = scalar_lea.vmem %s0, %s159
          %s161 = smul.u32 %s151, 2912
          %s162 = scalar_lea.vmem [#allocation2], %s161
          %s163 = scalar_lea.sflag [#allocation3], %s151
          // Predicated region
          $region33: #{tpu_custom_call.1} parent=31 // pred_check
            _
          $region34: #{tpu_custom_call.1} parent=31 // pred_check_branch
            %165 = sbr.rel (0) target = $region36
          $region35: #{tpu_custom_call.1} parent=31 // pred_region
            %s166 = scalar_lea.vmem %s160, 48
            %s167 = scalar_lea.vmem %s162, 48 [#allocation2]
            loop: start=0, step=1, limit=1
            $region37: #{tpu_custom_call.1} parent=35 // loop_pre_header
              _
            $region38: #{tpu_custom_call.1} parent=35 // loop_header
              %s169 = sphi 0, %s173
              %p170 = scmp.ge.s32.totalorder %s169, 1
              %s174 = sphi %s160, %s160
              %s175 = sphi %s162, %s162
            $region39: #{tpu_custom_call.1} parent=35 // loop_header_branch
              %172 = sbr.rel (%p170) target = $region43
            $region40: #{tpu_custom_call.1} parent=35 // loop_body
              %v176 = vld [vmem:[%s174] sm:$0xff]
              %177 = vst [vmem:[%s175] sm:$0xff] %v176
              %v178 = vld [vmem:[%s174 + $0x8] sm:$0xff]
              %179 = vst [vmem:[%s175 + $0x8] sm:$0xff] %v178
              %v180 = vld [vmem:[%s174 + $0x10] sm:$0xff]
              %181 = vst [vmem:[%s175 + $0x10] sm:$0xff] %v180
              %v182 = vld [vmem:[%s174 + $0x18] sm:$0xff]
              %183 = vst [vmem:[%s175 + $0x18] sm:$0xff] %v182
              %v184 = vld [vmem:[%s174 + $0x20] sm:$0xff]
              %185 = vst [vmem:[%s175 + $0x20] sm:$0xff] %v184
              %v186 = vld [vmem:[%s174 + $0x28] sm:$0xff]
              %187 = vst [vmem:[%s175 + $0x28] sm:$0xff] %v186
              %v188 = vld [vmem:[%s174 + $0x38] sm:$0xff]
              %189 = vst [vmem:[%s175 + $0x38] sm:$0xff] %v188
              %v190 = vld [vmem:[%s174 + $0x40] sm:$0xff]
              %191 = vst [vmem:[%s175 + $0x40] sm:$0xff] %v190
              %v192 = vld [vmem:[%s174 + $0x48] sm:$0xff]
              %193 = vst [vmem:[%s175 + $0x48] sm:$0xff] %v192
              %v194 = vld [vmem:[%s174 + $0x50] sm:$0xff]
              %195 = vst [vmem:[%s175 + $0x50] sm:$0xff] %v194
              %v196 = vld [vmem:[%s174 + $0x58] sm:$0xff]
              %197 = vst [vmem:[%s175 + $0x58] sm:$0xff] %v196
              %v198 = vld [vmem:[%s174 + $0x60] sm:$0xff]
              %199 = vst [vmem:[%s175 + $0x60] sm:$0xff] %v198
              %v200 = vld [vmem:[%s174 + $0x70] sm:$0xff]
              %201 = vst [vmem:[%s175 + $0x70] sm:$0xff] %v200
              %v202 = vld [vmem:[%s174 + $0x78] sm:$0xff]
              %203 = vst [vmem:[%s175 + $0x78] sm:$0xff] %v202
              %v204 = vld [vmem:[%s174 + $0x80] sm:$0xff]
              %205 = vst [vmem:[%s175 + $0x80] sm:$0xff] %v204
              %v206 = vld [vmem:[%s174 + $0x88] sm:$0xff]
              %207 = vst [vmem:[%s175 + $0x88] sm:$0xff] %v206
              %v208 = vld [vmem:[%s174 + $0x90] sm:$0xff]
              %209 = vst [vmem:[%s175 + $0x90] sm:$0xff] %v208
              %v210 = vld [vmem:[%s174 + $0x98] sm:$0xff]
              %211 = vst [vmem:[%s175 + $0x98] sm:$0xff] %v210
              %v212 = vld [vmem:[%s174 + $0xa8] sm:$0xff]
              %213 = vst [vmem:[%s175 + $0xa8] sm:$0xff] %v212
              %v214 = vld [vmem:[%s174 + $0xb0] sm:$0xff]
              %215 = vst [vmem:[%s175 + $0xb0] sm:$0xff] %v214
              %v216 = vld [vmem:[%s174 + $0xb8] sm:$0xff]
              %217 = vst [vmem:[%s175 + $0xb8] sm:$0xff] %v216
              %v218 = vld [vmem:[%s174 + $0xc0] sm:$0xff]
              %219 = vst [vmem:[%s175 + $0xc0] sm:$0xff] %v218
              %v220 = vld [vmem:[%s174 + $0xc8] sm:$0xff]
              %221 = vst [vmem:[%s175 + $0xc8] sm:$0xff] %v220
              %v222 = vld [vmem:[%s174 + $0xd0] sm:$0xff]
              %223 = vst [vmem:[%s175 + $0xd0] sm:$0xff] %v222
              %v224 = vld [vmem:[%s174 + $0xe0] sm:$0xff]
              %225 = vst [vmem:[%s175 + $0xe0] sm:$0xff] %v224
              %v226 = vld [vmem:[%s174 + $0xe8] sm:$0xff]
              %227 = vst [vmem:[%s175 + $0xe8] sm:$0xff] %v226
              %v228 = vld [vmem:[%s174 + $0xf0] sm:$0xff]
              %229 = vst [vmem:[%s175 + $0xf0] sm:$0xff] %v228
              %v230 = vld [vmem:[%s174 + $0xf8] sm:$0xff]
              %231 = vst [vmem:[%s175 + $0xf8] sm:$0xff] %v230
              %v232 = vld [vmem:[%s174 + $0x100] sm:$0xff]
              %233 = vst [vmem:[%s175 + $0x100] sm:$0xff] %v232
              %v234 = vld [vmem:[%s174 + $0x108] sm:$0xff]
              %235 = vst [vmem:[%s175 + $0x108] sm:$0xff] %v234
              %v236 = vld [vmem:[%s174 + $0x118] sm:$0xff]
              %237 = vst [vmem:[%s175 + $0x118] sm:$0xff] %v236
              %v238 = vld [vmem:[%s174 + $0x120] sm:$0xff]
              %239 = vst [vmem:[%s175 + $0x120] sm:$0xff] %v238
              %v240 = vld [vmem:[%s174 + $0x128] sm:$0xff]
              %241 = vst [vmem:[%s175 + $0x128] sm:$0xff] %v240
              %v242 = vld [vmem:[%s174 + $0x130] sm:$0xff]
              %243 = vst [vmem:[%s175 + $0x130] sm:$0xff] %v242
              %v244 = vld [vmem:[%s174 + $0x138] sm:$0xff]
              %245 = vst [vmem:[%s175 + $0x138] sm:$0xff] %v244
              %v246 = vld [vmem:[%s174 + $0x140] sm:$0xff]
              %247 = vst [vmem:[%s175 + $0x140] sm:$0xff] %v246
              %v248 = vld [vmem:[%s174 + $0x150] sm:$0xff]
              %249 = vst [vmem:[%s175 + $0x150] sm:$0xff] %v248
              %v250 = vld [vmem:[%s174 + $0x158] sm:$0xff]
              %251 = vst [vmem:[%s175 + $0x158] sm:$0xff] %v250
              %v252 = vld [vmem:[%s174 + $0x160] sm:$0xff]
              %253 = vst [vmem:[%s175 + $0x160] sm:$0xff] %v252
              %v254 = vld [vmem:[%s174 + $0x168] sm:$0xff]
              %255 = vst [vmem:[%s175 + $0x168] sm:$0xff] %v254
              %v256 = vld [vmem:[%s174 + $0x170] sm:$0xff]
              %257 = vst [vmem:[%s175 + $0x170] sm:$0xff] %v256
              %v258 = vld [vmem:[%s174 + $0x178] sm:$0xff]
              %259 = vst [vmem:[%s175 + $0x178] sm:$0xff] %v258
              %v260 = vld [vmem:[%s174 + $0x188] sm:$0xff]
              %261 = vst [vmem:[%s175 + $0x188] sm:$0xff] %v260
              %v262 = vld [vmem:[%s174 + $0x190] sm:$0xff]
              %263 = vst [vmem:[%s175 + $0x190] sm:$0xff] %v262
              %v264 = vld [vmem:[%s174 + $0x198] sm:$0xff]
              %265 = vst [vmem:[%s175 + $0x198] sm:$0xff] %v264
              %v266 = vld [vmem:[%s174 + $0x1a0] sm:$0xff]
              %267 = vst [vmem:[%s175 + $0x1a0] sm:$0xff] %v266
              %v268 = vld [vmem:[%s174 + $0x1a8] sm:$0xff]
              %269 = vst [vmem:[%s175 + $0x1a8] sm:$0xff] %v268
              %v270 = vld [vmem:[%s174 + $0x1b0] sm:$0xff]
              %271 = vst [vmem:[%s175 + $0x1b0] sm:$0xff] %v270
              %v272 = vld [vmem:[%s174 + $0x1c0] sm:$0xff]
              %273 = vst [vmem:[%s175 + $0x1c0] sm:$0xff] %v272
              %v274 = vld [vmem:[%s174 + $0x1c8] sm:$0xff]
              %275 = vst [vmem:[%s175 + $0x1c8] sm:$0xff] %v274
              %v276 = vld [vmem:[%s174 + $0x1d0] sm:$0xff]
              %277 = vst [vmem:[%s175 + $0x1d0] sm:$0xff] %v276
              %v278 = vld [vmem:[%s174 + $0x1d8] sm:$0xff]
              %279 = vst [vmem:[%s175 + $0x1d8] sm:$0xff] %v278
              %v280 = vld [vmem:[%s174 + $0x1e0] sm:$0xff]
              %281 = vst [vmem:[%s175 + $0x1e0] sm:$0xff] %v280
              %v282 = vld [vmem:[%s174 + $0x1e8] sm:$0xff]
              %283 = vst [vmem:[%s175 + $0x1e8] sm:$0xff] %v282
              %v284 = vld [vmem:[%s174 + $0x1f8] sm:$0xff]
              %285 = vst [vmem:[%s175 + $0x1f8] sm:$0xff] %v284
              %v286 = vld [vmem:[%s174 + $0x200] sm:$0xff]
              %287 = vst [vmem:[%s175 + $0x200] sm:$0xff] %v286
              %v288 = vld [vmem:[%s174 + $0x208] sm:$0xff]
              %289 = vst [vmem:[%s175 + $0x208] sm:$0xff] %v288
              %v290 = vld [vmem:[%s174 + $0x210] sm:$0xff]
              %291 = vst [vmem:[%s175 + $0x210] sm:$0xff] %v290
              %v292 = vld [vmem:[%s174 + $0x218] sm:$0xff]
              %293 = vst [vmem:[%s175 + $0x218] sm:$0xff] %v292
              %v294 = vld [vmem:[%s174 + $0x220] sm:$0xff]
              %295 = vst [vmem:[%s175 + $0x220] sm:$0xff] %v294
              %v296 = vld [vmem:[%s174 + $0x230] sm:$0xff]
              %297 = vst [vmem:[%s175 + $0x230] sm:$0xff] %v296
              %v298 = vld [vmem:[%s174 + $0x238] sm:$0xff]
              %299 = vst [vmem:[%s175 + $0x238] sm:$0xff] %v298
              %v300 = vld [vmem:[%s174 + $0x240] sm:$0xff]
              %301 = vst [vmem:[%s175 + $0x240] sm:$0xff] %v300
              %v302 = vld [vmem:[%s174 + $0x248] sm:$0xff]
              %303 = vst [vmem:[%s175 + $0x248] sm:$0xff] %v302
              %v304 = vld [vmem:[%s174 + $0x250] sm:$0xff]
              %305 = vst [vmem:[%s175 + $0x250] sm:$0xff] %v304
              %v306 = vld [vmem:[%s174 + $0x258] sm:$0xff]
              %307 = vst [vmem:[%s175 + $0x258] sm:$0xff] %v306
              %v308 = vld [vmem:[%s174 + $0x268] sm:$0xff]
              %309 = vst [vmem:[%s175 + $0x268] sm:$0xff] %v308
              %v310 = vld [vmem:[%s174 + $0x270] sm:$0xff]
              %311 = vst [vmem:[%s175 + $0x270] sm:$0xff] %v310
              %v312 = vld [vmem:[%s174 + $0x278] sm:$0xff]
              %313 = vst [vmem:[%s175 + $0x278] sm:$0xff] %v312
              %v314 = vld [vmem:[%s174 + $0x280] sm:$0xff]
              %315 = vst [vmem:[%s175 + $0x280] sm:$0xff] %v314
              %v316 = vld [vmem:[%s174 + $0x288] sm:$0xff]
              %317 = vst [vmem:[%s175 + $0x288] sm:$0xff] %v316
              %v318 = vld [vmem:[%s174 + $0x290] sm:$0xff]
              %319 = vst [vmem:[%s175 + $0x290] sm:$0xff] %v318
              %v320 = vld [vmem:[%s174 + $0x2a0] sm:$0xff]
              %321 = vst [vmem:[%s175 + $0x2a0] sm:$0xff] %v320
              %v322 = vld [vmem:[%s174 + $0x2a8] sm:$0xff]
              %323 = vst [vmem:[%s175 + $0x2a8] sm:$0xff] %v322
              %v324 = vld [vmem:[%s174 + $0x2b0] sm:$0xff]
              %325 = vst [vmem:[%s175 + $0x2b0] sm:$0xff] %v324
              %v326 = vld [vmem:[%s174 + $0x2b8] sm:$0xff]
              %327 = vst [vmem:[%s175 + $0x2b8] sm:$0xff] %v326
              %v328 = vld [vmem:[%s174 + $0x2c0] sm:$0xff]
              %329 = vst [vmem:[%s175 + $0x2c0] sm:$0xff] %v328
              %v330 = vld [vmem:[%s174 + $0x2c8] sm:$0xff]
              %331 = vst [vmem:[%s175 + $0x2c8] sm:$0xff] %v330
              %v332 = vld [vmem:[%s174 + $0x2d8] sm:$0xff]
              %333 = vst [vmem:[%s175 + $0x2d8] sm:$0xff] %v332
              %v334 = vld [vmem:[%s174 + $0x2e0] sm:$0xff]
              %335 = vst [vmem:[%s175 + $0x2e0] sm:$0xff] %v334
              %v336 = vld [vmem:[%s174 + $0x2e8] sm:$0xff]
              %337 = vst [vmem:[%s175 + $0x2e8] sm:$0xff] %v336
              %v338 = vld [vmem:[%s174 + $0x2f0] sm:$0xff]
              %339 = vst [vmem:[%s175 + $0x2f0] sm:$0xff] %v338
              %v340 = vld [vmem:[%s174 + $0x2f8] sm:$0xff]
              %341 = vst [vmem:[%s175 + $0x2f8] sm:$0xff] %v340
              %v342 = vld [vmem:[%s174 + $0x300] sm:$0xff]
              %343 = vst [vmem:[%s175 + $0x300] sm:$0xff] %v342
              %v344 = vld [vmem:[%s174 + $0x310] sm:$0xff]
              %345 = vst [vmem:[%s175 + $0x310] sm:$0xff] %v344
              %v346 = vld [vmem:[%s174 + $0x318] sm:$0xff]
              %347 = vst [vmem:[%s175 + $0x318] sm:$0xff] %v346
              %v348 = vld [vmem:[%s174 + $0x320] sm:$0xff]
              %349 = vst [vmem:[%s175 + $0x320] sm:$0xff] %v348
              %v350 = vld [vmem:[%s174 + $0x328] sm:$0xff]
              %351 = vst [vmem:[%s175 + $0x328] sm:$0xff] %v350
              %v352 = vld [vmem:[%s174 + $0x330] sm:$0xff]
              %353 = vst [vmem:[%s175 + $0x330] sm:$0xff] %v352
              %v354 = vld [vmem:[%s174 + $0x338] sm:$0xff]
              %355 = vst [vmem:[%s175 + $0x338] sm:$0xff] %v354
              %v356 = vld [vmem:[%s174 + $0x348] sm:$0xff]
              %357 = vst [vmem:[%s175 + $0x348] sm:$0xff] %v356
              %v358 = vld [vmem:[%s174 + $0x350] sm:$0xff]
              %359 = vst [vmem:[%s175 + $0x350] sm:$0xff] %v358
              %v360 = vld [vmem:[%s174 + $0x358] sm:$0xff]
              %361 = vst [vmem:[%s175 + $0x358] sm:$0xff] %v360
              %v362 = vld [vmem:[%s174 + $0x360] sm:$0xff]
              %363 = vst [vmem:[%s175 + $0x360] sm:$0xff] %v362
              %v364 = vld [vmem:[%s174 + $0x368] sm:$0xff]
              %365 = vst [vmem:[%s175 + $0x368] sm:$0xff] %v364
              %v366 = vld [vmem:[%s174 + $0x370] sm:$0xff]
              %367 = vst [vmem:[%s175 + $0x370] sm:$0xff] %v366
              %v368 = vld [vmem:[%s174 + $0x380] sm:$0xff]
              %369 = vst [vmem:[%s175 + $0x380] sm:$0xff] %v368
              %v370 = vld [vmem:[%s174 + $0x388] sm:$0xff]
              %371 = vst [vmem:[%s175 + $0x388] sm:$0xff] %v370
              %v372 = vld [vmem:[%s174 + $0x390] sm:$0xff]
              %373 = vst [vmem:[%s175 + $0x390] sm:$0xff] %v372
              %v374 = vld [vmem:[%s174 + $0x398] sm:$0xff]
              %375 = vst [vmem:[%s175 + $0x398] sm:$0xff] %v374
              %v376 = vld [vmem:[%s174 + $0x3a0] sm:$0xff]
              %377 = vst [vmem:[%s175 + $0x3a0] sm:$0xff] %v376
              %v378 = vld [vmem:[%s174 + $0x3a8] sm:$0xff]
              %379 = vst [vmem:[%s175 + $0x3a8] sm:$0xff] %v378
              %v380 = vld [vmem:[%s174 + $0x3b8] sm:$0xff]
              %381 = vst [vmem:[%s175 + $0x3b8] sm:$0xff] %v380
              %v382 = vld [vmem:[%s174 + $0x3c0] sm:$0xff]
              %383 = vst [vmem:[%s175 + $0x3c0] sm:$0xff] %v382
              %v384 = vld [vmem:[%s174 + $0x3c8] sm:$0xff]
              %385 = vst [vmem:[%s175 + $0x3c8] sm:$0xff] %v384
              %v386 = vld [vmem:[%s174 + $0x3d0] sm:$0xff]
              %387 = vst [vmem:[%s175 + $0x3d0] sm:$0xff] %v386
              %v388 = vld [vmem:[%s174 + $0x3d8] sm:$0xff]
              %389 = vst [vmem:[%s175 + $0x3d8] sm:$0xff] %v388
              %v390 = vld [vmem:[%s174 + $0x3e0] sm:$0xff]
              %391 = vst [vmem:[%s175 + $0x3e0] sm:$0xff] %v390
              %v392 = vld [vmem:[%s174 + $0x3f0] sm:$0xff]
              %393 = vst [vmem:[%s175 + $0x3f0] sm:$0xff] %v392
              %v394 = vld [vmem:[%s174 + $0x3f8] sm:$0xff]
              %395 = vst [vmem:[%s175 + $0x3f8] sm:$0xff] %v394
              %v396 = vld [vmem:[%s174 + $0x400] sm:$0xff]
              %397 = vst [vmem:[%s175 + $0x400] sm:$0xff] %v396
              %v398 = vld [vmem:[%s174 + $0x408] sm:$0xff]
              %399 = vst [vmem:[%s175 + $0x408] sm:$0xff] %v398
              %v400 = vld [vmem:[%s174 + $0x410] sm:$0xff]
              %401 = vst [vmem:[%s175 + $0x410] sm:$0xff] %v400
              %v402 = vld [vmem:[%s174 + $0x418] sm:$0xff]
              %403 = vst [vmem:[%s175 + $0x418] sm:$0xff] %v402
              %v404 = vld [vmem:[%s174 + $0x428] sm:$0xff]
              %405 = vst [vmem:[%s175 + $0x428] sm:$0xff] %v404
              %v406 = vld [vmem:[%s174 + $0x430] sm:$0xff]
              %407 = vst [vmem:[%s175 + $0x430] sm:$0xff] %v406
              %v408 = vld [vmem:[%s174 + $0x438] sm:$0xff]
              %409 = vst [vmem:[%s175 + $0x438] sm:$0xff] %v408
              %v410 = vld [vmem:[%s174 + $0x440] sm:$0xff]
              %411 = vst [vmem:[%s175 + $0x440] sm:$0xff] %v410
              %v412 = vld [vmem:[%s174 + $0x448] sm:$0xff]
              %413 = vst [vmem:[%s175 + $0x448] sm:$0xff] %v412
              %v414 = vld [vmem:[%s174 + $0x450] sm:$0xff]
              %415 = vst [vmem:[%s175 + $0x450] sm:$0xff] %v414
              %v416 = vld [vmem:[%s174 + $0x460] sm:$0xff]
              %417 = vst [vmem:[%s175 + $0x460] sm:$0xff] %v416
              %v418 = vld [vmem:[%s174 + $0x468] sm:$0xff]
              %419 = vst [vmem:[%s175 + $0x468] sm:$0xff] %v418
              %v420 = vld [vmem:[%s174 + $0x470] sm:$0xff]
              %421 = vst [vmem:[%s175 + $0x470] sm:$0xff] %v420
              %v422 = vld [vmem:[%s174 + $0x478] sm:$0xff]
              %423 = vst [vmem:[%s175 + $0x478] sm:$0xff] %v422
              %v424 = vld [vmem:[%s174 + $0x480] sm:$0xff]
              %425 = vst [vmem:[%s175 + $0x480] sm:$0xff] %v424
              %v426 = vld [vmem:[%s174 + $0x488] sm:$0xff]
              %427 = vst [vmem:[%s175 + $0x488] sm:$0xff] %v426
              %v428 = vld [vmem:[%s174 + $0x498] sm:$0xff]
              %429 = vst [vmem:[%s175 + $0x498] sm:$0xff] %v428
              %v430 = vld [vmem:[%s174 + $0x4a0] sm:$0xff]
              %431 = vst [vmem:[%s175 + $0x4a0] sm:$0xff] %v430
              %v432 = vld [vmem:[%s174 + $0x4a8] sm:$0xff]
              %433 = vst [vmem:[%s175 + $0x4a8] sm:$0xff] %v432
              %v434 = vld [vmem:[%s174 + $0x4b0] sm:$0xff]
              %435 = vst [vmem:[%s175 + $0x4b0] sm:$0xff] %v434
              %v436 = vld [vmem:[%s174 + $0x4b8] sm:$0xff]
              %437 = vst [vmem:[%s175 + $0x4b8] sm:$0xff] %v436
              %v438 = vld [vmem:[%s174 + $0x4c0] sm:$0xff]
              %439 = vst [vmem:[%s175 + $0x4c0] sm:$0xff] %v438
              %v440 = vld [vmem:[%s174 + $0x4d0] sm:$0xff]
              %441 = vst [vmem:[%s175 + $0x4d0] sm:$0xff] %v440
              %v442 = vld [vmem:[%s174 + $0x4d8] sm:$0xff]
              %443 = vst [vmem:[%s175 + $0x4d8] sm:$0xff] %v442
              %v444 = vld [vmem:[%s174 + $0x4e0] sm:$0xff]
              %445 = vst [vmem:[%s175 + $0x4e0] sm:$0xff] %v444
              %v446 = vld [vmem:[%s174 + $0x4e8] sm:$0xff]
              %447 = vst [vmem:[%s175 + $0x4e8] sm:$0xff] %v446
              %v448 = vld [vmem:[%s174 + $0x4f0] sm:$0xff]
              %449 = vst [vmem:[%s175 + $0x4f0] sm:$0xff] %v448
              %v450 = vld [vmem:[%s174 + $0x4f8] sm:$0xff]
              %451 = vst [vmem:[%s175 + $0x4f8] sm:$0xff] %v450
              %v452 = vld [vmem:[%s174 + $0x508] sm:$0xff]
              %453 = vst [vmem:[%s175 + $0x508] sm:$0xff] %v452
              %v454 = vld [vmem:[%s174 + $0x510] sm:$0xff]
              %455 = vst [vmem:[%s175 + $0x510] sm:$0xff] %v454
              %v456 = vld [vmem:[%s174 + $0x518] sm:$0xff]
              %457 = vst [vmem:[%s175 + $0x518] sm:$0xff] %v456
              %v458 = vld [vmem:[%s174 + $0x520] sm:$0xff]
              %459 = vst [vmem:[%s175 + $0x520] sm:$0xff] %v458
              %v460 = vld [vmem:[%s174 + $0x528] sm:$0xff]
              %461 = vst [vmem:[%s175 + $0x528] sm:$0xff] %v460
              %v462 = vld [vmem:[%s174 + $0x530] sm:$0xff]
              %463 = vst [vmem:[%s175 + $0x530] sm:$0xff] %v462
              %v464 = vld [vmem:[%s174 + $0x540] sm:$0xff]
              %465 = vst [vmem:[%s175 + $0x540] sm:$0xff] %v464
              %v466 = vld [vmem:[%s174 + $0x548] sm:$0xff]
              %467 = vst [vmem:[%s175 + $0x548] sm:$0xff] %v466
              %v468 = vld [vmem:[%s174 + $0x550] sm:$0xff]
              %469 = vst [vmem:[%s175 + $0x550] sm:$0xff] %v468
              %v470 = vld [vmem:[%s174 + $0x558] sm:$0xff]
              %471 = vst [vmem:[%s175 + $0x558] sm:$0xff] %v470
              %v472 = vld [vmem:[%s174 + $0x560] sm:$0xff]
              %473 = vst [vmem:[%s175 + $0x560] sm:$0xff] %v472
              %v474 = vld [vmem:[%s174 + $0x568] sm:$0xff]
              %475 = vst [vmem:[%s175 + $0x568] sm:$0xff] %v474
              %v476 = vld [vmem:[%s174 + $0x578] sm:$0xff]
              %477 = vst [vmem:[%s175 + $0x578] sm:$0xff] %v476
              %v478 = vld [vmem:[%s174 + $0x580] sm:$0xff]
              %479 = vst [vmem:[%s175 + $0x580] sm:$0xff] %v478
              %v480 = vld [vmem:[%s174 + $0x588] sm:$0xff]
              %481 = vst [vmem:[%s175 + $0x588] sm:$0xff] %v480
              %v482 = vld [vmem:[%s174 + $0x590] sm:$0xff]
              %483 = vst [vmem:[%s175 + $0x590] sm:$0xff] %v482
              %v484 = vld [vmem:[%s174 + $0x598] sm:$0xff]
              %485 = vst [vmem:[%s175 + $0x598] sm:$0xff] %v484
              %v486 = vld [vmem:[%s174 + $0x5a0] sm:$0xff]
              %487 = vst [vmem:[%s175 + $0x5a0] sm:$0xff] %v486
              %v488 = vld [vmem:[%s174 + $0x5b0] sm:$0xff]
              %489 = vst [vmem:[%s175 + $0x5b0] sm:$0xff] %v488
              %v490 = vld [vmem:[%s174 + $0x5b8] sm:$0xff]
              %491 = vst [vmem:[%s175 + $0x5b8] sm:$0xff] %v490
              %v492 = vld [vmem:[%s174 + $0x5c0] sm:$0xff]
              %493 = vst [vmem:[%s175 + $0x5c0] sm:$0xff] %v492
              %v494 = vld [vmem:[%s174 + $0x5c8] sm:$0xff]
              %495 = vst [vmem:[%s175 + $0x5c8] sm:$0xff] %v494
              %v496 = vld [vmem:[%s174 + $0x5d0] sm:$0xff]
              %497 = vst [vmem:[%s175 + $0x5d0] sm:$0xff] %v496
              %v498 = vld [vmem:[%s174 + $0x5d8] sm:$0xff]
              %499 = vst [vmem:[%s175 + $0x5d8] sm:$0xff] %v498
              %v500 = vld [vmem:[%s174 + $0x5e8] sm:$0xff]
              %501 = vst [vmem:[%s175 + $0x5e8] sm:$0xff] %v500
              %v502 = vld [vmem:[%s174 + $0x5f0] sm:$0xff]
              %503 = vst [vmem:[%s175 + $0x5f0] sm:$0xff] %v502
              %v504 = vld [vmem:[%s174 + $0x5f8] sm:$0xff]
              %505 = vst [vmem:[%s175 + $0x5f8] sm:$0xff] %v504
              %v506 = vld [vmem:[%s174 + $0x600] sm:$0xff]
              %507 = vst [vmem:[%s175 + $0x600] sm:$0xff] %v506
              %v508 = vld [vmem:[%s174 + $0x608] sm:$0xff]
              %509 = vst [vmem:[%s175 + $0x608] sm:$0xff] %v508
              %v510 = vld [vmem:[%s174 + $0x610] sm:$0xff]
              %511 = vst [vmem:[%s175 + $0x610] sm:$0xff] %v510
              %v512 = vld [vmem:[%s174 + $0x620] sm:$0xff]
              %513 = vst [vmem:[%s175 + $0x620] sm:$0xff] %v512
              %v514 = vld [vmem:[%s174 + $0x628] sm:$0xff]
              %515 = vst [vmem:[%s175 + $0x628] sm:$0xff] %v514
              %v516 = vld [vmem:[%s174 + $0x630] sm:$0xff]
              %517 = vst [vmem:[%s175 + $0x630] sm:$0xff] %v516
              %v518 = vld [vmem:[%s174 + $0x638] sm:$0xff]
              %519 = vst [vmem:[%s175 + $0x638] sm:$0xff] %v518
              %v520 = vld [vmem:[%s174 + $0x640] sm:$0xff]
              %521 = vst [vmem:[%s175 + $0x640] sm:$0xff] %v520
              %v522 = vld [vmem:[%s174 + $0x648] sm:$0xff]
              %523 = vst [vmem:[%s175 + $0x648] sm:$0xff] %v522
              %v524 = vld [vmem:[%s174 + $0x658] sm:$0xff]
              %525 = vst [vmem:[%s175 + $0x658] sm:$0xff] %v524
              %v526 = vld [vmem:[%s174 + $0x660] sm:$0xff]
              %527 = vst [vmem:[%s175 + $0x660] sm:$0xff] %v526
              %v528 = vld [vmem:[%s174 + $0x668] sm:$0xff]
              %529 = vst [vmem:[%s175 + $0x668] sm:$0xff] %v528
              %v530 = vld [vmem:[%s174 + $0x670] sm:$0xff]
              %531 = vst [vmem:[%s175 + $0x670] sm:$0xff] %v530
              %v532 = vld [vmem:[%s174 + $0x678] sm:$0xff]
              %533 = vst [vmem:[%s175 + $0x678] sm:$0xff] %v532
              %v534 = vld [vmem:[%s174 + $0x680] sm:$0xff]
              %535 = vst [vmem:[%s175 + $0x680] sm:$0xff] %v534
              %v536 = vld [vmem:[%s174 + $0x690] sm:$0xff]
              %537 = vst [vmem:[%s175 + $0x690] sm:$0xff] %v536
              %v538 = vld [vmem:[%s174 + $0x698] sm:$0xff]
              %539 = vst [vmem:[%s175 + $0x698] sm:$0xff] %v538
              %v540 = vld [vmem:[%s174 + $0x6a0] sm:$0xff]
              %541 = vst [vmem:[%s175 + $0x6a0] sm:$0xff] %v540
              %v542 = vld [vmem:[%s174 + $0x6a8] sm:$0xff]
              %543 = vst [vmem:[%s175 + $0x6a8] sm:$0xff] %v542
              %v544 = vld [vmem:[%s174 + $0x6b0] sm:$0xff]
              %545 = vst [vmem:[%s175 + $0x6b0] sm:$0xff] %v544
              %v546 = vld [vmem:[%s174 + $0x6b8] sm:$0xff]
              %547 = vst [vmem:[%s175 + $0x6b8] sm:$0xff] %v546
              %v548 = vld [vmem:[%s174 + $0x6c8] sm:$0xff]
              %549 = vst [vmem:[%s175 + $0x6c8] sm:$0xff] %v548
              %v550 = vld [vmem:[%s174 + $0x6d0] sm:$0xff]
              %551 = vst [vmem:[%s175 + $0x6d0] sm:$0xff] %v550
              %v552 = vld [vmem:[%s174 + $0x6d8] sm:$0xff]
              %553 = vst [vmem:[%s175 + $0x6d8] sm:$0xff] %v552
              %v554 = vld [vmem:[%s174 + $0x6e0] sm:$0xff]
              %555 = vst [vmem:[%s175 + $0x6e0] sm:$0xff] %v554
              %v556 = vld [vmem:[%s174 + $0x6e8] sm:$0xff]
              %557 = vst [vmem:[%s175 + $0x6e8] sm:$0xff] %v556
              %v558 = vld [vmem:[%s174 + $0x6f0] sm:$0xff]
              %559 = vst [vmem:[%s175 + $0x6f0] sm:$0xff] %v558
              %v560 = vld [vmem:[%s174 + $0x700] sm:$0xff]
              %561 = vst [vmem:[%s175 + $0x700] sm:$0xff] %v560
              %v562 = vld [vmem:[%s174 + $0x708] sm:$0xff]
              %563 = vst [vmem:[%s175 + $0x708] sm:$0xff] %v562
              %v564 = vld [vmem:[%s174 + $0x710] sm:$0xff]
              %565 = vst [vmem:[%s175 + $0x710] sm:$0xff] %v564
              %v566 = vld [vmem:[%s174 + $0x718] sm:$0xff]
              %567 = vst [vmem:[%s175 + $0x718] sm:$0xff] %v566
              %v568 = vld [vmem:[%s174 + $0x720] sm:$0xff]
              %569 = vst [vmem:[%s175 + $0x720] sm:$0xff] %v568
              %v570 = vld [vmem:[%s174 + $0x728] sm:$0xff]
              %571 = vst [vmem:[%s175 + $0x728] sm:$0xff] %v570
              %v572 = vld [vmem:[%s174 + $0x738] sm:$0xff]
              %573 = vst [vmem:[%s175 + $0x738] sm:$0xff] %v572
              %v574 = vld [vmem:[%s174 + $0x740] sm:$0xff]
              %575 = vst [vmem:[%s175 + $0x740] sm:$0xff] %v574
              %v576 = vld [vmem:[%s174 + $0x748] sm:$0xff]
              %577 = vst [vmem:[%s175 + $0x748] sm:$0xff] %v576
              %v578 = vld [vmem:[%s174 + $0x750] sm:$0xff]
              %579 = vst [vmem:[%s175 + $0x750] sm:$0xff] %v578
              %v580 = vld [vmem:[%s174 + $0x758] sm:$0xff]
              %581 = vst [vmem:[%s175 + $0x758] sm:$0xff] %v580
              %v582 = vld [vmem:[%s174 + $0x760] sm:$0xff]
              %583 = vst [vmem:[%s175 + $0x760] sm:$0xff] %v582
              %v584 = vld [vmem:[%s174 + $0x770] sm:$0xff]
              %585 = vst [vmem:[%s175 + $0x770] sm:$0xff] %v584
              %v586 = vld [vmem:[%s174 + $0x778] sm:$0xff]
              %587 = vst [vmem:[%s175 + $0x778] sm:$0xff] %v586
              %v588 = vld [vmem:[%s174 + $0x780] sm:$0xff]
              %589 = vst [vmem:[%s175 + $0x780] sm:$0xff] %v588
              %v590 = vld [vmem:[%s174 + $0x788] sm:$0xff]
              %591 = vst [vmem:[%s175 + $0x788] sm:$0xff] %v590
              %v592 = vld [vmem:[%s174 + $0x790] sm:$0xff]
              %593 = vst [vmem:[%s175 + $0x790] sm:$0xff] %v592
              %v594 = vld [vmem:[%s174 + $0x798] sm:$0xff]
              %595 = vst [vmem:[%s175 + $0x798] sm:$0xff] %v594
              %v596 = vld [vmem:[%s174 + $0x7a8] sm:$0xff]
              %597 = vst [vmem:[%s175 + $0x7a8] sm:$0xff] %v596
              %v598 = vld [vmem:[%s174 + $0x7b0] sm:$0xff]
              %599 = vst [vmem:[%s175 + $0x7b0] sm:$0xff] %v598
              %v600 = vld [vmem:[%s174 + $0x7b8] sm:$0xff]
              %601 = vst [vmem:[%s175 + $0x7b8] sm:$0xff] %v600
              %v602 = vld [vmem:[%s174 + $0x7c0] sm:$0xff]
              %603 = vst [vmem:[%s175 + $0x7c0] sm:$0xff] %v602
              %v604 = vld [vmem:[%s174 + $0x7c8] sm:$0xff]
              %605 = vst [vmem:[%s175 + $0x7c8] sm:$0xff] %v604
              %v606 = vld [vmem:[%s174 + $0x7d0] sm:$0xff]
              %607 = vst [vmem:[%s175 + $0x7d0] sm:$0xff] %v606
              %v608 = vld [vmem:[%s174 + $0x7e0] sm:$0xff]
              %609 = vst [vmem:[%s175 + $0x7e0] sm:$0xff] %v608
              %v610 = vld [vmem:[%s174 + $0x7e8] sm:$0xff]
              %611 = vst [vmem:[%s175 + $0x7e8] sm:$0xff] %v610
              %v612 = vld [vmem:[%s174 + $0x7f0] sm:$0xff]
              %613 = vst [vmem:[%s175 + $0x7f0] sm:$0xff] %v612
              %v614 = vld [vmem:[%s174 + $0x7f8] sm:$0xff]
              %615 = vst [vmem:[%s175 + $0x7f8] sm:$0xff] %v614
              %v616 = vld [vmem:[%s174 + $0x800] sm:$0xff]
              %617 = vst [vmem:[%s175 + $0x800] sm:$0xff] %v616
              %v618 = vld [vmem:[%s174 + $0x808] sm:$0xff]
              %619 = vst [vmem:[%s175 + $0x808] sm:$0xff] %v618
              %v620 = vld [vmem:[%s174 + $0x818] sm:$0xff]
              %621 = vst [vmem:[%s175 + $0x818] sm:$0xff] %v620
              %v622 = vld [vmem:[%s174 + $0x820] sm:$0xff]
              %623 = vst [vmem:[%s175 + $0x820] sm:$0xff] %v622
              %v624 = vld [vmem:[%s174 + $0x828] sm:$0xff]
              %625 = vst [vmem:[%s175 + $0x828] sm:$0xff] %v624
              %v626 = vld [vmem:[%s174 + $0x830] sm:$0xff]
              %627 = vst [vmem:[%s175 + $0x830] sm:$0xff] %v626
              %v628 = vld [vmem:[%s174 + $0x838] sm:$0xff]
              %629 = vst [vmem:[%s175 + $0x838] sm:$0xff] %v628
              %v630 = vld [vmem:[%s174 + $0x840] sm:$0xff]
              %631 = vst [vmem:[%s175 + $0x840] sm:$0xff] %v630
              %v632 = vld [vmem:[%s174 + $0x850] sm:$0xff]
              %633 = vst [vmem:[%s175 + $0x850] sm:$0xff] %v632
              %v634 = vld [vmem:[%s174 + $0x858] sm:$0xff]
              %635 = vst [vmem:[%s175 + $0x858] sm:$0xff] %v634
              %v636 = vld [vmem:[%s174 + $0x860] sm:$0xff]
              %637 = vst [vmem:[%s175 + $0x860] sm:$0xff] %v636
              %v638 = vld [vmem:[%s174 + $0x868] sm:$0xff]
              %639 = vst [vmem:[%s175 + $0x868] sm:$0xff] %v638
              %v640 = vld [vmem:[%s174 + $0x870] sm:$0xff]
              %641 = vst [vmem:[%s175 + $0x870] sm:$0xff] %v640
              %v642 = vld [vmem:[%s174 + $0x878] sm:$0xff]
              %643 = vst [vmem:[%s175 + $0x878] sm:$0xff] %v642
              %v644 = vld [vmem:[%s174 + $0x888] sm:$0xff]
              %645 = vst [vmem:[%s175 + $0x888] sm:$0xff] %v644
              %v646 = vld [vmem:[%s174 + $0x890] sm:$0xff]
              %647 = vst [vmem:[%s175 + $0x890] sm:$0xff] %v646
              %v648 = vld [vmem:[%s174 + $0x898] sm:$0xff]
              %649 = vst [vmem:[%s175 + $0x898] sm:$0xff] %v648
              %v650 = vld [vmem:[%s174 + $0x8a0] sm:$0xff]
              %651 = vst [vmem:[%s175 + $0x8a0] sm:$0xff] %v650
              %v652 = vld [vmem:[%s174 + $0x8a8] sm:$0xff]
              %653 = vst [vmem:[%s175 + $0x8a8] sm:$0xff] %v652
              %v654 = vld [vmem:[%s174 + $0x8b0] sm:$0xff]
              %655 = vst [vmem:[%s175 + $0x8b0] sm:$0xff] %v654
              %v656 = vld [vmem:[%s174 + $0x8c0] sm:$0xff]
              %657 = vst [vmem:[%s175 + $0x8c0] sm:$0xff] %v656
              %v658 = vld [vmem:[%s174 + $0x8c8] sm:$0xff]
              %659 = vst [vmem:[%s175 + $0x8c8] sm:$0xff] %v658
              %v660 = vld [vmem:[%s174 + $0x8d0] sm:$0xff]
              %661 = vst [vmem:[%s175 + $0x8d0] sm:$0xff] %v660
              %v662 = vld [vmem:[%s174 + $0x8d8] sm:$0xff]
              %663 = vst [vmem:[%s175 + $0x8d8] sm:$0xff] %v662
              %v664 = vld [vmem:[%s174 + $0x8e0] sm:$0xff]
              %665 = vst [vmem:[%s175 + $0x8e0] sm:$0xff] %v664
              %v666 = vld [vmem:[%s174 + $0x8e8] sm:$0xff]
              %667 = vst [vmem:[%s175 + $0x8e8] sm:$0xff] %v666
              %v668 = vld [vmem:[%s174 + $0x8f8] sm:$0xff]
              %669 = vst [vmem:[%s175 + $0x8f8] sm:$0xff] %v668
              %v670 = vld [vmem:[%s174 + $0x900] sm:$0xff]
              %671 = vst [vmem:[%s175 + $0x900] sm:$0xff] %v670
              %v672 = vld [vmem:[%s174 + $0x908] sm:$0xff]
              %673 = vst [vmem:[%s175 + $0x908] sm:$0xff] %v672
              %v674 = vld [vmem:[%s174 + $0x910] sm:$0xff]
              %675 = vst [vmem:[%s175 + $0x910] sm:$0xff] %v674
              %v676 = vld [vmem:[%s174 + $0x918] sm:$0xff]
              %677 = vst [vmem:[%s175 + $0x918] sm:$0xff] %v676
              %v678 = vld [vmem:[%s174 + $0x920] sm:$0xff]
              %679 = vst [vmem:[%s175 + $0x920] sm:$0xff] %v678
              %v680 = vld [vmem:[%s174 + $0x930] sm:$0xff]
              %681 = vst [vmem:[%s175 + $0x930] sm:$0xff] %v680
              %v682 = vld [vmem:[%s174 + $0x938] sm:$0xff]
              %683 = vst [vmem:[%s175 + $0x938] sm:$0xff] %v682
              %v684 = vld [vmem:[%s174 + $0x940] sm:$0xff]
              %685 = vst [vmem:[%s175 + $0x940] sm:$0xff] %v684
              %v686 = vld [vmem:[%s174 + $0x948] sm:$0xff]
              %687 = vst [vmem:[%s175 + $0x948] sm:$0xff] %v686
              %v688 = vld [vmem:[%s174 + $0x950] sm:$0xff]
              %689 = vst [vmem:[%s175 + $0x950] sm:$0xff] %v688
              %v690 = vld [vmem:[%s174 + $0x958] sm:$0xff]
              %691 = vst [vmem:[%s175 + $0x958] sm:$0xff] %v690
              %v692 = vld [vmem:[%s174 + $0x968] sm:$0xff]
              %693 = vst [vmem:[%s175 + $0x968] sm:$0xff] %v692
              %v694 = vld [vmem:[%s174 + $0x970] sm:$0xff]
              %695 = vst [vmem:[%s175 + $0x970] sm:$0xff] %v694
              %v696 = vld [vmem:[%s174 + $0x978] sm:$0xff]
              %697 = vst [vmem:[%s175 + $0x978] sm:$0xff] %v696
              %v698 = vld [vmem:[%s174 + $0x980] sm:$0xff]
              %699 = vst [vmem:[%s175 + $0x980] sm:$0xff] %v698
              %v700 = vld [vmem:[%s174 + $0x988] sm:$0xff]
              %701 = vst [vmem:[%s175 + $0x988] sm:$0xff] %v700
              %v702 = vld [vmem:[%s174 + $0x990] sm:$0xff]
              %703 = vst [vmem:[%s175 + $0x990] sm:$0xff] %v702
              %v704 = vld [vmem:[%s174 + $0x9a0] sm:$0xff]
              %705 = vst [vmem:[%s175 + $0x9a0] sm:$0xff] %v704
              %v706 = vld [vmem:[%s174 + $0x9a8] sm:$0xff]
              %707 = vst [vmem:[%s175 + $0x9a8] sm:$0xff] %v706
              %v708 = vld [vmem:[%s174 + $0x9b0] sm:$0xff]
              %709 = vst [vmem:[%s175 + $0x9b0] sm:$0xff] %v708
              %v710 = vld [vmem:[%s174 + $0x9b8] sm:$0xff]
              %711 = vst [vmem:[%s175 + $0x9b8] sm:$0xff] %v710
              %v712 = vld [vmem:[%s174 + $0x9c0] sm:$0xff]
              %713 = vst [vmem:[%s175 + $0x9c0] sm:$0xff] %v712
              %v714 = vld [vmem:[%s174 + $0x9c8] sm:$0xff]
              %715 = vst [vmem:[%s175 + $0x9c8] sm:$0xff] %v714
              %v716 = vld [vmem:[%s174 + $0x9d8] sm:$0xff]
              %717 = vst [vmem:[%s175 + $0x9d8] sm:$0xff] %v716
              %v718 = vld [vmem:[%s174 + $0x9e0] sm:$0xff]
              %719 = vst [vmem:[%s175 + $0x9e0] sm:$0xff] %v718
              %v720 = vld [vmem:[%s174 + $0x9e8] sm:$0xff]
              %721 = vst [vmem:[%s175 + $0x9e8] sm:$0xff] %v720
              %v722 = vld [vmem:[%s174 + $0x9f0] sm:$0xff]
              %723 = vst [vmem:[%s175 + $0x9f0] sm:$0xff] %v722
              %v724 = vld [vmem:[%s174 + $0x9f8] sm:$0xff]
              %725 = vst [vmem:[%s175 + $0x9f8] sm:$0xff] %v724
              %v726 = vld [vmem:[%s174 + $0xa00] sm:$0xff]
              %727 = vst [vmem:[%s175 + $0xa00] sm:$0xff] %v726
              %v728 = vld [vmem:[%s174 + $0xa10] sm:$0xff]
              %729 = vst [vmem:[%s175 + $0xa10] sm:$0xff] %v728
              %v730 = vld [vmem:[%s174 + $0xa18] sm:$0xff]
              %731 = vst [vmem:[%s175 + $0xa18] sm:$0xff] %v730
              %v732 = vld [vmem:[%s174 + $0xa20] sm:$0xff]
              %733 = vst [vmem:[%s175 + $0xa20] sm:$0xff] %v732
              %v734 = vld [vmem:[%s174 + $0xa28] sm:$0xff]
              %735 = vst [vmem:[%s175 + $0xa28] sm:$0xff] %v734
              %v736 = vld [vmem:[%s174 + $0xa30] sm:$0xff]
              %737 = vst [vmem:[%s175 + $0xa30] sm:$0xff] %v736
              %v738 = vld [vmem:[%s174 + $0xa38] sm:$0xff]
              %739 = vst [vmem:[%s175 + $0xa38] sm:$0xff] %v738
              %v740 = vld [vmem:[%s174 + $0xa48] sm:$0xff]
              %741 = vst [vmem:[%s175 + $0xa48] sm:$0xff] %v740
              %v742 = vld [vmem:[%s174 + $0xa50] sm:$0xff]
              %743 = vst [vmem:[%s175 + $0xa50] sm:$0xff] %v742
              %v744 = vld [vmem:[%s174 + $0xa58] sm:$0xff]
              %745 = vst [vmem:[%s175 + $0xa58] sm:$0xff] %v744
              %v746 = vld [vmem:[%s174 + $0xa60] sm:$0xff]
              %747 = vst [vmem:[%s175 + $0xa60] sm:$0xff] %v746
              %v748 = vld [vmem:[%s174 + $0xa68] sm:$0xff]
              %749 = vst [vmem:[%s175 + $0xa68] sm:$0xff] %v748
              %v750 = vld [vmem:[%s174 + $0xa70] sm:$0xff]
              %751 = vst [vmem:[%s175 + $0xa70] sm:$0xff] %v750
              %v752 = vld [vmem:[%s174 + $0xa80] sm:$0xff]
              %753 = vst [vmem:[%s175 + $0xa80] sm:$0xff] %v752
              %v754 = vld [vmem:[%s174 + $0xa88] sm:$0xff]
              %755 = vst [vmem:[%s175 + $0xa88] sm:$0xff] %v754
              %v756 = vld [vmem:[%s174 + $0xa90] sm:$0xff]
              %757 = vst [vmem:[%s175 + $0xa90] sm:$0xff] %v756
              %v758 = vld [vmem:[%s174 + $0xa98] sm:$0xff]
              %759 = vst [vmem:[%s175 + $0xa98] sm:$0xff] %v758
              %v760 = vld [vmem:[%s174 + $0xaa0] sm:$0xff]
              %761 = vst [vmem:[%s175 + $0xaa0] sm:$0xff] %v760
              %v762 = vld [vmem:[%s174 + $0xaa8] sm:$0xff]
              %763 = vst [vmem:[%s175 + $0xaa8] sm:$0xff] %v762
              %v764 = vld [vmem:[%s174 + $0xab8] sm:$0xff]
              %765 = vst [vmem:[%s175 + $0xab8] sm:$0xff] %v764
              %v766 = vld [vmem:[%s174 + $0xac0] sm:$0xff]
              %767 = vst [vmem:[%s175 + $0xac0] sm:$0xff] %v766
              %v768 = vld [vmem:[%s174 + $0xac8] sm:$0xff]
              %769 = vst [vmem:[%s175 + $0xac8] sm:$0xff] %v768
              %v770 = vld [vmem:[%s174 + $0xad0] sm:$0xff]
              %771 = vst [vmem:[%s175 + $0xad0] sm:$0xff] %v770
              %v772 = vld [vmem:[%s174 + $0xad8] sm:$0xff]
              %773 = vst [vmem:[%s175 + $0xad8] sm:$0xff] %v772
              %v774 = vld [vmem:[%s174 + $0xae0] sm:$0xff]
              %775 = vst [vmem:[%s175 + $0xae0] sm:$0xff] %v774
              %v776 = vld [vmem:[%s174 + $0xaf0] sm:$0xff]
              %777 = vst [vmem:[%s175 + $0xaf0] sm:$0xff] %v776
              %v778 = vld [vmem:[%s174 + $0xaf8] sm:$0xff]
              %779 = vst [vmem:[%s175 + $0xaf8] sm:$0xff] %v778
              %v780 = vld [vmem:[%s174 + $0xb00] sm:$0xff]
              %781 = vst [vmem:[%s175 + $0xb00] sm:$0xff] %v780
              %v782 = vld [vmem:[%s174 + $0xb08] sm:$0xff]
              %783 = vst [vmem:[%s175 + $0xb08] sm:$0xff] %v782
              %v784 = vld [vmem:[%s174 + $0xb10] sm:$0xff]
              %785 = vst [vmem:[%s175 + $0xb10] sm:$0xff] %v784
              %v786 = vld [vmem:[%s174 + $0xb18] sm:$0xff]
              %787 = vst [vmem:[%s175 + $0xb18] sm:$0xff] %v786
              %v788 = vld [vmem:[%s174 + $0xb28] sm:$0xff]
              %789 = vst [vmem:[%s175 + $0xb28] sm:$0xff] %v788
              %v790 = vld [vmem:[%s174 + $0xb30] sm:$0xff]
              %791 = vst [vmem:[%s175 + $0xb30] sm:$0xff] %v790
              %v792 = vld [vmem:[%s174 + $0xb38] sm:$0xff]
              %793 = vst [vmem:[%s175 + $0xb38] sm:$0xff] %v792
              %v794 = vld [vmem:[%s174 + $0xb40] sm:$0xff]
              %795 = vst [vmem:[%s175 + $0xb40] sm:$0xff] %v794
              %v796 = vld [vmem:[%s174 + $0xb48] sm:$0xff]
              %797 = vst [vmem:[%s175 + $0xb48] sm:$0xff] %v796
              %v798 = vld [vmem:[%s174 + $0xb50] sm:$0xff]
              %799 = vst [vmem:[%s175 + $0xb50] sm:$0xff] %v798
            $region41: #{tpu_custom_call.1} parent=35 // loop_footer
              %s173 = sadd.s32 1, %s169
            $region42: #{tpu_custom_call.1} parent=35 // loop_footer_branch
              %168 = sbr.rel target = $region38
            $region43: #{tpu_custom_call.1} parent=35 // loop_exit
              _
            %s801 = ssub.s32 16, 1
            loop: start=0, step=1, limit=1
            $region44: #{tpu_custom_call.1} parent=35 // loop_pre_header
              _
            $region45: #{tpu_custom_call.1} parent=35 // loop_header
              %s803 = sphi 0, %s807
              %p804 = scmp.ge.s32.totalorder %s803, 1
              %s808 = sphi %s166, %s166
              %s809 = sphi %s167, %s167
            $region46: #{tpu_custom_call.1} parent=35 // loop_header_branch
              %806 = sbr.rel (%p804) target = $region50
            $region47: #{tpu_custom_call.1} parent=35 // loop_body
              %v810 = vld [vmem:[%s808] sm:%s801]
              %811 = vst [vmem:[%s809] sm:%s801] %v810
              %v812 = vld [vmem:[%s808 + $0x38] sm:%s801]
              %813 = vst [vmem:[%s809 + $0x38] sm:%s801] %v812
              %v814 = vld [vmem:[%s808 + $0x70] sm:%s801]
              %815 = vst [vmem:[%s809 + $0x70] sm:%s801] %v814
              %v816 = vld [vmem:[%s808 + $0xa8] sm:%s801]
              %817 = vst [vmem:[%s809 + $0xa8] sm:%s801] %v816
              %v818 = vld [vmem:[%s808 + $0xe0] sm:%s801]
              %819 = vst [vmem:[%s809 + $0xe0] sm:%s801] %v818
              %v820 = vld [vmem:[%s808 + $0x118] sm:%s801]
              %821 = vst [vmem:[%s809 + $0x118] sm:%s801] %v820
              %v822 = vld [vmem:[%s808 + $0x150] sm:%s801]
              %823 = vst [vmem:[%s809 + $0x150] sm:%s801] %v822
              %v824 = vld [vmem:[%s808 + $0x188] sm:%s801]
              %825 = vst [vmem:[%s809 + $0x188] sm:%s801] %v824
              %v826 = vld [vmem:[%s808 + $0x1c0] sm:%s801]
              %827 = vst [vmem:[%s809 + $0x1c0] sm:%s801] %v826
              %v828 = vld [vmem:[%s808 + $0x1f8] sm:%s801]
              %829 = vst [vmem:[%s809 + $0x1f8] sm:%s801] %v828
              %v830 = vld [vmem:[%s808 + $0x230] sm:%s801]
              %831 = vst [vmem:[%s809 + $0x230] sm:%s801] %v830
              %v832 = vld [vmem:[%s808 + $0x268] sm:%s801]
              %833 = vst [vmem:[%s809 + $0x268] sm:%s801] %v832
              %v834 = vld [vmem:[%s808 + $0x2a0] sm:%s801]
              %835 = vst [vmem:[%s809 + $0x2a0] sm:%s801] %v834
              %v836 = vld [vmem:[%s808 + $0x2d8] sm:%s801]
              %837 = vst [vmem:[%s809 + $0x2d8] sm:%s801] %v836
              %v838 = vld [vmem:[%s808 + $0x310] sm:%s801]
              %839 = vst [vmem:[%s809 + $0x310] sm:%s801] %v838
              %v840 = vld [vmem:[%s808 + $0x348] sm:%s801]
              %841 = vst [vmem:[%s809 + $0x348] sm:%s801] %v840
              %v842 = vld [vmem:[%s808 + $0x380] sm:%s801]
              %843 = vst [vmem:[%s809 + $0x380] sm:%s801] %v842
              %v844 = vld [vmem:[%s808 + $0x3b8] sm:%s801]
              %845 = vst [vmem:[%s809 + $0x3b8] sm:%s801] %v844
              %v846 = vld [vmem:[%s808 + $0x3f0] sm:%s801]
              %847 = vst [vmem:[%s809 + $0x3f0] sm:%s801] %v846
              %v848 = vld [vmem:[%s808 + $0x428] sm:%s801]
              %849 = vst [vmem:[%s809 + $0x428] sm:%s801] %v848
              %v850 = vld [vmem:[%s808 + $0x460] sm:%s801]
              %851 = vst [vmem:[%s809 + $0x460] sm:%s801] %v850
              %v852 = vld [vmem:[%s808 + $0x498] sm:%s801]
              %853 = vst [vmem:[%s809 + $0x498] sm:%s801] %v852
              %v854 = vld [vmem:[%s808 + $0x4d0] sm:%s801]
              %855 = vst [vmem:[%s809 + $0x4d0] sm:%s801] %v854
              %v856 = vld [vmem:[%s808 + $0x508] sm:%s801]
              %857 = vst [vmem:[%s809 + $0x508] sm:%s801] %v856
              %v858 = vld [vmem:[%s808 + $0x540] sm:%s801]
              %859 = vst [vmem:[%s809 + $0x540] sm:%s801] %v858
              %v860 = vld [vmem:[%s808 + $0x578] sm:%s801]
              %861 = vst [vmem:[%s809 + $0x578] sm:%s801] %v860
              %v862 = vld [vmem:[%s808 + $0x5b0] sm:%s801]
              %863 = vst [vmem:[%s809 + $0x5b0] sm:%s801] %v862
              %v864 = vld [vmem:[%s808 + $0x5e8] sm:%s801]
              %865 = vst [vmem:[%s809 + $0x5e8] sm:%s801] %v864
              %v866 = vld [vmem:[%s808 + $0x620] sm:%s801]
              %867 = vst [vmem:[%s809 + $0x620] sm:%s801] %v866
              %v868 = vld [vmem:[%s808 + $0x658] sm:%s801]
              %869 = vst [vmem:[%s809 + $0x658] sm:%s801] %v868
              %v870 = vld [vmem:[%s808 + $0x690] sm:%s801]
              %871 = vst [vmem:[%s809 + $0x690] sm:%s801] %v870
              %v872 = vld [vmem:[%s808 + $0x6c8] sm:%s801]
              %873 = vst [vmem:[%s809 + $0x6c8] sm:%s801] %v872
              %v874 = vld [vmem:[%s808 + $0x700] sm:%s801]
              %875 = vst [vmem:[%s809 + $0x700] sm:%s801] %v874
              %v876 = vld [vmem:[%s808 + $0x738] sm:%s801]
              %877 = vst [vmem:[%s809 + $0x738] sm:%s801] %v876
              %v878 = vld [vmem:[%s808 + $0x770] sm:%s801]
              %879 = vst [vmem:[%s809 + $0x770] sm:%s801] %v878
              %v880 = vld [vmem:[%s808 + $0x7a8] sm:%s801]
              %881 = vst [vmem:[%s809 + $0x7a8] sm:%s801] %v880
              %v882 = vld [vmem:[%s808 + $0x7e0] sm:%s801]
              %883 = vst [vmem:[%s809 + $0x7e0] sm:%s801] %v882
              %v884 = vld [vmem:[%s808 + $0x818] sm:%s801]
              %885 = vst [vmem:[%s809 + $0x818] sm:%s801] %v884
              %v886 = vld [vmem:[%s808 + $0x850] sm:%s801]
              %887 = vst [vmem:[%s809 + $0x850] sm:%s801] %v886
              %v888 = vld [vmem:[%s808 + $0x888] sm:%s801]
              %889 = vst [vmem:[%s809 + $0x888] sm:%s801] %v888
              %v890 = vld [vmem:[%s808 + $0x8c0] sm:%s801]
              %891 = vst [vmem:[%s809 + $0x8c0] sm:%s801] %v890
              %v892 = vld [vmem:[%s808 + $0x8f8] sm:%s801]
              %893 = vst [vmem:[%s809 + $0x8f8] sm:%s801] %v892
              %v894 = vld [vmem:[%s808 + $0x930] sm:%s801]
              %895 = vst [vmem:[%s809 + $0x930] sm:%s801] %v894
              %v896 = vld [vmem:[%s808 + $0x968] sm:%s801]
              %897 = vst [vmem:[%s809 + $0x968] sm:%s801] %v896
              %v898 = vld [vmem:[%s808 + $0x9a0] sm:%s801]
              %899 = vst [vmem:[%s809 + $0x9a0] sm:%s801] %v898
              %v900 = vld [vmem:[%s808 + $0x9d8] sm:%s801]
              %901 = vst [vmem:[%s809 + $0x9d8] sm:%s801] %v900
              %v902 = vld [vmem:[%s808 + $0xa10] sm:%s801]
              %903 = vst [vmem:[%s809 + $0xa10] sm:%s801] %v902
              %v904 = vld [vmem:[%s808 + $0xa48] sm:%s801]
              %905 = vst [vmem:[%s809 + $0xa48] sm:%s801] %v904
              %v906 = vld [vmem:[%s808 + $0xa80] sm:%s801]
              %907 = vst [vmem:[%s809 + $0xa80] sm:%s801] %v906
              %v908 = vld [vmem:[%s808 + $0xab8] sm:%s801]
              %909 = vst [vmem:[%s809 + $0xab8] sm:%s801] %v908
              %v910 = vld [vmem:[%s808 + $0xaf0] sm:%s801]
              %911 = vst [vmem:[%s809 + $0xaf0] sm:%s801] %v910
              %v912 = vld [vmem:[%s808 + $0xb28] sm:%s801]
              %913 = vst [vmem:[%s809 + $0xb28] sm:%s801] %v912
            $region48: #{tpu_custom_call.1} parent=35 // loop_footer
              %s807 = sadd.s32 1, %s803
            $region49: #{tpu_custom_call.1} parent=35 // loop_footer_branch
              %802 = sbr.rel target = $region45
            $region50: #{tpu_custom_call.1} parent=35 // loop_exit
              _
          $region36: #{tpu_custom_call.1} parent=31 // pred_fallthru
            _
          // Predicated region
          $region51: #{tpu_custom_call.1} parent=31 // pred_check
            _
          $region52: #{tpu_custom_call.1} parent=31 // pred_check_branch
            %916 = sbr.rel (0) target = $region54
          $region53: #{tpu_custom_call.1} parent=31 // pred_region
            %917 = vsyncadd %s163, 43264
          $region54: #{tpu_custom_call.1} parent=31 // pred_fallthru
            _
        $region32: #{tpu_custom_call.1} parent=27 // pred_fallthru
          _
        %p918 = scmp.eq.s32.totalorder %s22, 0
        %s919 = sadd.s32 %s21, 1
        %s920 = scalar_select %p918, %s919, %s21
        %s921 = sadd.s32 %s22, 1
        %s922 = scalar_select %p918, 0, %s921
        %s923 = sadd.s32 %s139, 1
        %p924 = scmp.lt.s32.totalorder %s923, 2
        // Predicated region
        $region55: #{tpu_custom_call.1} parent=27 // pred_check
          %p925 = pneg %p924
        $region56: #{tpu_custom_call.1} parent=27 // pred_check_branch
          %927 = sbr.rel (%p925) target = $region58
        $region57: #{tpu_custom_call.1} parent=27 // pred_region
          %s928 = smul.u32 %s920, 52
          %s929 = smul.u32 %s922, 16
          %s930 = sadd.s32 %s928, %s929
          %s931 = ssub.s32 1, %s151
          %s932 = smul.u32 %s930, 56
          %s933 = scalar_lea.vmem %s0, %s932
          %s934 = smul.u32 %s931, 2912
          %s935 = scalar_lea.vmem [#allocation2], %s934
          %s936 = scalar_lea.sflag [#allocation3], %s931
          // Predicated region
          $region59: #{tpu_custom_call.1} parent=57 // pred_check
            _
          $region60: #{tpu_custom_call.1} parent=57 // pred_check_branch
            %938 = sbr.rel (0) target = $region62
          $region61: #{tpu_custom_call.1} parent=57 // pred_region
            %s939 = scalar_lea.vmem %s933, 48
            %s940 = scalar_lea.vmem %s935, 48 [#allocation2]
            loop: start=0, step=1, limit=1
            $region63: #{tpu_custom_call.1} parent=61 // loop_pre_header
              _
            $region64: #{tpu_custom_call.1} parent=61 // loop_header
              %s942 = sphi 0, %s946
              %p943 = scmp.ge.s32.totalorder %s942, 1
              %s947 = sphi %s933, %s933
              %s948 = sphi %s935, %s935
            $region65: #{tpu_custom_call.1} parent=61 // loop_header_branch
              %945 = sbr.rel (%p943) target = $region69
            $region66: #{tpu_custom_call.1} parent=61 // loop_body
              %v949 = vld [vmem:[%s947] sm:$0xff]
              %950 = vst [vmem:[%s948] sm:$0xff] %v949
              %v951 = vld [vmem:[%s947 + $0x8] sm:$0xff]
              %952 = vst [vmem:[%s948 + $0x8] sm:$0xff] %v951
              %v953 = vld [vmem:[%s947 + $0x10] sm:$0xff]
              %954 = vst [vmem:[%s948 + $0x10] sm:$0xff] %v953
              %v955 = vld [vmem:[%s947 + $0x18] sm:$0xff]
              %956 = vst [vmem:[%s948 + $0x18] sm:$0xff] %v955
              %v957 = vld [vmem:[%s947 + $0x20] sm:$0xff]
              %958 = vst [vmem:[%s948 + $0x20] sm:$0xff] %v957
              %v959 = vld [vmem:[%s947 + $0x28] sm:$0xff]
              %960 = vst [vmem:[%s948 + $0x28] sm:$0xff] %v959
              %v961 = vld [vmem:[%s947 + $0x38] sm:$0xff]
              %962 = vst [vmem:[%s948 + $0x38] sm:$0xff] %v961
              %v963 = vld [vmem:[%s947 + $0x40] sm:$0xff]
              %964 = vst [vmem:[%s948 + $0x40] sm:$0xff] %v963
              %v965 = vld [vmem:[%s947 + $0x48] sm:$0xff]
              %966 = vst [vmem:[%s948 + $0x48] sm:$0xff] %v965
              %v967 = vld [vmem:[%s947 + $0x50] sm:$0xff]
              %968 = vst [vmem:[%s948 + $0x50] sm:$0xff] %v967
              %v969 = vld [vmem:[%s947 + $0x58] sm:$0xff]
              %970 = vst [vmem:[%s948 + $0x58] sm:$0xff] %v969
              %v971 = vld [vmem:[%s947 + $0x60] sm:$0xff]
              %972 = vst [vmem:[%s948 + $0x60] sm:$0xff] %v971
              %v973 = vld [vmem:[%s947 + $0x70] sm:$0xff]
              %974 = vst [vmem:[%s948 + $0x70] sm:$0xff] %v973
              %v975 = vld [vmem:[%s947 + $0x78] sm:$0xff]
              %976 = vst [vmem:[%s948 + $0x78] sm:$0xff] %v975
              %v977 = vld [vmem:[%s947 + $0x80] sm:$0xff]
              %978 = vst [vmem:[%s948 + $0x80] sm:$0xff] %v977
              %v979 = vld [vmem:[%s947 + $0x88] sm:$0xff]
              %980 = vst [vmem:[%s948 + $0x88] sm:$0xff] %v979
              %v981 = vld [vmem:[%s947 + $0x90] sm:$0xff]
              %982 = vst [vmem:[%s948 + $0x90] sm:$0xff] %v981
              %v983 = vld [vmem:[%s947 + $0x98] sm:$0xff]
              %984 = vst [vmem:[%s948 + $0x98] sm:$0xff] %v983
              %v985 = vld [vmem:[%s947 + $0xa8] sm:$0xff]
              %986 = vst [vmem:[%s948 + $0xa8] sm:$0xff] %v985
              %v987 = vld [vmem:[%s947 + $0xb0] sm:$0xff]
              %988 = vst [vmem:[%s948 + $0xb0] sm:$0xff] %v987
              %v989 = vld [vmem:[%s947 + $0xb8] sm:$0xff]
              %990 = vst [vmem:[%s948 + $0xb8] sm:$0xff] %v989
              %v991 = vld [vmem:[%s947 + $0xc0] sm:$0xff]
              %992 = vst [vmem:[%s948 + $0xc0] sm:$0xff] %v991
              %v993 = vld [vmem:[%s947 + $0xc8] sm:$0xff]
              %994 = vst [vmem:[%s948 + $0xc8] sm:$0xff] %v993
              %v995 = vld [vmem:[%s947 + $0xd0] sm:$0xff]
              %996 = vst [vmem:[%s948 + $0xd0] sm:$0xff] %v995
              %v997 = vld [vmem:[%s947 + $0xe0] sm:$0xff]
              %998 = vst [vmem:[%s948 + $0xe0] sm:$0xff] %v997
              %v999 = vld [vmem:[%s947 + $0xe8] sm:$0xff]
              %1000 = vst [vmem:[%s948 + $0xe8] sm:$0xff] %v999
              %v1001 = vld [vmem:[%s947 + $0xf0] sm:$0xff]
              %1002 = vst [vmem:[%s948 + $0xf0] sm:$0xff] %v1001
              %v1003 = vld [vmem:[%s947 + $0xf8] sm:$0xff]
              %1004 = vst [vmem:[%s948 + $0xf8] sm:$0xff] %v1003
              %v1005 = vld [vmem:[%s947 + $0x100] sm:$0xff]
              %1006 = vst [vmem:[%s948 + $0x100] sm:$0xff] %v1005
              %v1007 = vld [vmem:[%s947 + $0x108] sm:$0xff]
              %1008 = vst [vmem:[%s948 + $0x108] sm:$0xff] %v1007
              %v1009 = vld [vmem:[%s947 + $0x118] sm:$0xff]
              %1010 = vst [vmem:[%s948 + $0x118] sm:$0xff] %v1009
              %v1011 = vld [vmem:[%s947 + $0x120] sm:$0xff]
              %1012 = vst [vmem:[%s948 + $0x120] sm:$0xff] %v1011
              %v1013 = vld [vmem:[%s947 + $0x128] sm:$0xff]
              %1014 = vst [vmem:[%s948 + $0x128] sm:$0xff] %v1013
              %v1015 = vld [vmem:[%s947 + $0x130] sm:$0xff]
              %1016 = vst [vmem:[%s948 + $0x130] sm:$0xff] %v1015
              %v1017 = vld [vmem:[%s947 + $0x138] sm:$0xff]
              %1018 = vst [vmem:[%s948 + $0x138] sm:$0xff] %v1017
              %v1019 = vld [vmem:[%s947 + $0x140] sm:$0xff]
              %1020 = vst [vmem:[%s948 + $0x140] sm:$0xff] %v1019
              %v1021 = vld [vmem:[%s947 + $0x150] sm:$0xff]
              %1022 = vst [vmem:[%s948 + $0x150] sm:$0xff] %v1021
              %v1023 = vld [vmem:[%s947 + $0x158] sm:$0xff]
              %1024 = vst [vmem:[%s948 + $0x158] sm:$0xff] %v1023
              %v1025 = vld [vmem:[%s947 + $0x160] sm:$0xff]
              %1026 = vst [vmem:[%s948 + $0x160] sm:$0xff] %v1025
              %v1027 = vld [vmem:[%s947 + $0x168] sm:$0xff]
              %1028 = vst [vmem:[%s948 + $0x168] sm:$0xff] %v1027
              %v1029 = vld [vmem:[%s947 + $0x170] sm:$0xff]
              %1030 = vst [vmem:[%s948 + $0x170] sm:$0xff] %v1029
              %v1031 = vld [vmem:[%s947 + $0x178] sm:$0xff]
              %1032 = vst [vmem:[%s948 + $0x178] sm:$0xff] %v1031
              %v1033 = vld [vmem:[%s947 + $0x188] sm:$0xff]
              %1034 = vst [vmem:[%s948 + $0x188] sm:$0xff] %v1033
              %v1035 = vld [vmem:[%s947 + $0x190] sm:$0xff]
              %1036 = vst [vmem:[%s948 + $0x190] sm:$0xff] %v1035
              %v1037 = vld [vmem:[%s947 + $0x198] sm:$0xff]
              %1038 = vst [vmem:[%s948 + $0x198] sm:$0xff] %v1037
              %v1039 = vld [vmem:[%s947 + $0x1a0] sm:$0xff]
              %1040 = vst [vmem:[%s948 + $0x1a0] sm:$0xff] %v1039
              %v1041 = vld [vmem:[%s947 + $0x1a8] sm:$0xff]
              %1042 = vst [vmem:[%s948 + $0x1a8] sm:$0xff] %v1041
              %v1043 = vld [vmem:[%s947 + $0x1b0] sm:$0xff]
              %1044 = vst [vmem:[%s948 + $0x1b0] sm:$0xff] %v1043
              %v1045 = vld [vmem:[%s947 + $0x1c0] sm:$0xff]
              %1046 = vst [vmem:[%s948 + $0x1c0] sm:$0xff] %v1045
              %v1047 = vld [vmem:[%s947 + $0x1c8] sm:$0xff]
              %1048 = vst [vmem:[%s948 + $0x1c8] sm:$0xff] %v1047
              %v1049 = vld [vmem:[%s947 + $0x1d0] sm:$0xff]
              %1050 = vst [vmem:[%s948 + $0x1d0] sm:$0xff] %v1049
              %v1051 = vld [vmem:[%s947 + $0x1d8] sm:$0xff]
              %1052 = vst [vmem:[%s948 + $0x1d8] sm:$0xff] %v1051
              %v1053 = vld [vmem:[%s947 + $0x1e0] sm:$0xff]
              %1054 = vst [vmem:[%s948 + $0x1e0] sm:$0xff] %v1053
              %v1055 = vld [vmem:[%s947 + $0x1e8] sm:$0xff]
              %1056 = vst [vmem:[%s948 + $0x1e8] sm:$0xff] %v1055
              %v1057 = vld [vmem:[%s947 + $0x1f8] sm:$0xff]
              %1058 = vst [vmem:[%s948 + $0x1f8] sm:$0xff] %v1057
              %v1059 = vld [vmem:[%s947 + $0x200] sm:$0xff]
              %1060 = vst [vmem:[%s948 + $0x200] sm:$0xff] %v1059
              %v1061 = vld [vmem:[%s947 + $0x208] sm:$0xff]
              %1062 = vst [vmem:[%s948 + $0x208] sm:$0xff] %v1061
              %v1063 = vld [vmem:[%s947 + $0x210] sm:$0xff]
              %1064 = vst [vmem:[%s948 + $0x210] sm:$0xff] %v1063
              %v1065 = vld [vmem:[%s947 + $0x218] sm:$0xff]
              %1066 = vst [vmem:[%s948 + $0x218] sm:$0xff] %v1065
              %v1067 = vld [vmem:[%s947 + $0x220] sm:$0xff]
              %1068 = vst [vmem:[%s948 + $0x220] sm:$0xff] %v1067
              %v1069 = vld [vmem:[%s947 + $0x230] sm:$0xff]
              %1070 = vst [vmem:[%s948 + $0x230] sm:$0xff] %v1069
              %v1071 = vld [vmem:[%s947 + $0x238] sm:$0xff]
              %1072 = vst [vmem:[%s948 + $0x238] sm:$0xff] %v1071
              %v1073 = vld [vmem:[%s947 + $0x240] sm:$0xff]
              %1074 = vst [vmem:[%s948 + $0x240] sm:$0xff] %v1073
              %v1075 = vld [vmem:[%s947 + $0x248] sm:$0xff]
              %1076 = vst [vmem:[%s948 + $0x248] sm:$0xff] %v1075
              %v1077 = vld [vmem:[%s947 + $0x250] sm:$0xff]
              %1078 = vst [vmem:[%s948 + $0x250] sm:$0xff] %v1077
              %v1079 = vld [vmem:[%s947 + $0x258] sm:$0xff]
              %1080 = vst [vmem:[%s948 + $0x258] sm:$0xff] %v1079
              %v1081 = vld [vmem:[%s947 + $0x268] sm:$0xff]
              %1082 = vst [vmem:[%s948 + $0x268] sm:$0xff] %v1081
              %v1083 = vld [vmem:[%s947 + $0x270] sm:$0xff]
              %1084 = vst [vmem:[%s948 + $0x270] sm:$0xff] %v1083
              %v1085 = vld [vmem:[%s947 + $0x278] sm:$0xff]
              %1086 = vst [vmem:[%s948 + $0x278] sm:$0xff] %v1085
              %v1087 = vld [vmem:[%s947 + $0x280] sm:$0xff]
              %1088 = vst [vmem:[%s948 + $0x280] sm:$0xff] %v1087
              %v1089 = vld [vmem:[%s947 + $0x288] sm:$0xff]
              %1090 = vst [vmem:[%s948 + $0x288] sm:$0xff] %v1089
              %v1091 = vld [vmem:[%s947 + $0x290] sm:$0xff]
              %1092 = vst [vmem:[%s948 + $0x290] sm:$0xff] %v1091
              %v1093 = vld [vmem:[%s947 + $0x2a0] sm:$0xff]
              %1094 = vst [vmem:[%s948 + $0x2a0] sm:$0xff] %v1093
              %v1095 = vld [vmem:[%s947 + $0x2a8] sm:$0xff]
              %1096 = vst [vmem:[%s948 + $0x2a8] sm:$0xff] %v1095
              %v1097 = vld [vmem:[%s947 + $0x2b0] sm:$0xff]
              %1098 = vst [vmem:[%s948 + $0x2b0] sm:$0xff] %v1097
              %v1099 = vld [vmem:[%s947 + $0x2b8] sm:$0xff]
              %1100 = vst [vmem:[%s948 + $0x2b8] sm:$0xff] %v1099
              %v1101 = vld [vmem:[%s947 + $0x2c0] sm:$0xff]
              %1102 = vst [vmem:[%s948 + $0x2c0] sm:$0xff] %v1101
              %v1103 = vld [vmem:[%s947 + $0x2c8] sm:$0xff]
              %1104 = vst [vmem:[%s948 + $0x2c8] sm:$0xff] %v1103
              %v1105 = vld [vmem:[%s947 + $0x2d8] sm:$0xff]
              %1106 = vst [vmem:[%s948 + $0x2d8] sm:$0xff] %v1105
              %v1107 = vld [vmem:[%s947 + $0x2e0] sm:$0xff]
              %1108 = vst [vmem:[%s948 + $0x2e0] sm:$0xff] %v1107
              %v1109 = vld [vmem:[%s947 + $0x2e8] sm:$0xff]
              %1110 = vst [vmem:[%s948 + $0x2e8] sm:$0xff] %v1109
              %v1111 = vld [vmem:[%s947 + $0x2f0] sm:$0xff]
              %1112 = vst [vmem:[%s948 + $0x2f0] sm:$0xff] %v1111
              %v1113 = vld [vmem:[%s947 + $0x2f8] sm:$0xff]
              %1114 = vst [vmem:[%s948 + $0x2f8] sm:$0xff] %v1113
              %v1115 = vld [vmem:[%s947 + $0x300] sm:$0xff]
              %1116 = vst [vmem:[%s948 + $0x300] sm:$0xff] %v1115
              %v1117 = vld [vmem:[%s947 + $0x310] sm:$0xff]
              %1118 = vst [vmem:[%s948 + $0x310] sm:$0xff] %v1117
              %v1119 = vld [vmem:[%s947 + $0x318] sm:$0xff]
              %1120 = vst [vmem:[%s948 + $0x318] sm:$0xff] %v1119
              %v1121 = vld [vmem:[%s947 + $0x320] sm:$0xff]
              %1122 = vst [vmem:[%s948 + $0x320] sm:$0xff] %v1121
              %v1123 = vld [vmem:[%s947 + $0x328] sm:$0xff]
              %1124 = vst [vmem:[%s948 + $0x328] sm:$0xff] %v1123
              %v1125 = vld [vmem:[%s947 + $0x330] sm:$0xff]
              %1126 = vst [vmem:[%s948 + $0x330] sm:$0xff] %v1125
              %v1127 = vld [vmem:[%s947 + $0x338] sm:$0xff]
              %1128 = vst [vmem:[%s948 + $0x338] sm:$0xff] %v1127
              %v1129 = vld [vmem:[%s947 + $0x348] sm:$0xff]
              %1130 = vst [vmem:[%s948 + $0x348] sm:$0xff] %v1129
              %v1131 = vld [vmem:[%s947 + $0x350] sm:$0xff]
              %1132 = vst [vmem:[%s948 + $0x350] sm:$0xff] %v1131
              %v1133 = vld [vmem:[%s947 + $0x358] sm:$0xff]
              %1134 = vst [vmem:[%s948 + $0x358] sm:$0xff] %v1133
              %v1135 = vld [vmem:[%s947 + $0x360] sm:$0xff]
              %1136 = vst [vmem:[%s948 + $0x360] sm:$0xff] %v1135
              %v1137 = vld [vmem:[%s947 + $0x368] sm:$0xff]
              %1138 = vst [vmem:[%s948 + $0x368] sm:$0xff] %v1137
              %v1139 = vld [vmem:[%s947 + $0x370] sm:$0xff]
              %1140 = vst [vmem:[%s948 + $0x370] sm:$0xff] %v1139
              %v1141 = vld [vmem:[%s947 + $0x380] sm:$0xff]
              %1142 = vst [vmem:[%s948 + $0x380] sm:$0xff] %v1141
              %v1143 = vld [vmem:[%s947 + $0x388] sm:$0xff]
              %1144 = vst [vmem:[%s948 + $0x388] sm:$0xff] %v1143
              %v1145 = vld [vmem:[%s947 + $0x390] sm:$0xff]
              %1146 = vst [vmem:[%s948 + $0x390] sm:$0xff] %v1145
              %v1147 = vld [vmem:[%s947 + $0x398] sm:$0xff]
              %1148 = vst [vmem:[%s948 + $0x398] sm:$0xff] %v1147
              %v1149 = vld [vmem:[%s947 + $0x3a0] sm:$0xff]
              %1150 = vst [vmem:[%s948 + $0x3a0] sm:$0xff] %v1149
              %v1151 = vld [vmem:[%s947 + $0x3a8] sm:$0xff]
              %1152 = vst [vmem:[%s948 + $0x3a8] sm:$0xff] %v1151
              %v1153 = vld [vmem:[%s947 + $0x3b8] sm:$0xff]
              %1154 = vst [vmem:[%s948 + $0x3b8] sm:$0xff] %v1153
              %v1155 = vld [vmem:[%s947 + $0x3c0] sm:$0xff]
              %1156 = vst [vmem:[%s948 + $0x3c0] sm:$0xff] %v1155
              %v1157 = vld [vmem:[%s947 + $0x3c8] sm:$0xff]
              %1158 = vst [vmem:[%s948 + $0x3c8] sm:$0xff] %v1157
              %v1159 = vld [vmem:[%s947 + $0x3d0] sm:$0xff]
              %1160 = vst [vmem:[%s948 + $0x3d0] sm:$0xff] %v1159
              %v1161 = vld [vmem:[%s947 + $0x3d8] sm:$0xff]
              %1162 = vst [vmem:[%s948 + $0x3d8] sm:$0xff] %v1161
              %v1163 = vld [vmem:[%s947 + $0x3e0] sm:$0xff]
              %1164 = vst [vmem:[%s948 + $0x3e0] sm:$0xff] %v1163
              %v1165 = vld [vmem:[%s947 + $0x3f0] sm:$0xff]
              %1166 = vst [vmem:[%s948 + $0x3f0] sm:$0xff] %v1165
              %v1167 = vld [vmem:[%s947 + $0x3f8] sm:$0xff]
              %1168 = vst [vmem:[%s948 + $0x3f8] sm:$0xff] %v1167
              %v1169 = vld [vmem:[%s947 + $0x400] sm:$0xff]
              %1170 = vst [vmem:[%s948 + $0x400] sm:$0xff] %v1169
              %v1171 = vld [vmem:[%s947 + $0x408] sm:$0xff]
              %1172 = vst [vmem:[%s948 + $0x408] sm:$0xff] %v1171
              %v1173 = vld [vmem:[%s947 + $0x410] sm:$0xff]
              %1174 = vst [vmem:[%s948 + $0x410] sm:$0xff] %v1173
              %v1175 = vld [vmem:[%s947 + $0x418] sm:$0xff]
              %1176 = vst [vmem:[%s948 + $0x418] sm:$0xff] %v1175
              %v1177 = vld [vmem:[%s947 + $0x428] sm:$0xff]
              %1178 = vst [vmem:[%s948 + $0x428] sm:$0xff] %v1177
              %v1179 = vld [vmem:[%s947 + $0x430] sm:$0xff]
              %1180 = vst [vmem:[%s948 + $0x430] sm:$0xff] %v1179
              %v1181 = vld [vmem:[%s947 + $0x438] sm:$0xff]
              %1182 = vst [vmem:[%s948 + $0x438] sm:$0xff] %v1181
              %v1183 = vld [vmem:[%s947 + $0x440] sm:$0xff]
              %1184 = vst [vmem:[%s948 + $0x440] sm:$0xff] %v1183
              %v1185 = vld [vmem:[%s947 + $0x448] sm:$0xff]
              %1186 = vst [vmem:[%s948 + $0x448] sm:$0xff] %v1185
              %v1187 = vld [vmem:[%s947 + $0x450] sm:$0xff]
              %1188 = vst [vmem:[%s948 + $0x450] sm:$0xff] %v1187
              %v1189 = vld [vmem:[%s947 + $0x460] sm:$0xff]
              %1190 = vst [vmem:[%s948 + $0x460] sm:$0xff] %v1189
              %v1191 = vld [vmem:[%s947 + $0x468] sm:$0xff]
              %1192 = vst [vmem:[%s948 + $0x468] sm:$0xff] %v1191
              %v1193 = vld [vmem:[%s947 + $0x470] sm:$0xff]
              %1194 = vst [vmem:[%s948 + $0x470] sm:$0xff] %v1193
              %v1195 = vld [vmem:[%s947 + $0x478] sm:$0xff]
              %1196 = vst [vmem:[%s948 + $0x478] sm:$0xff] %v1195
              %v1197 = vld [vmem:[%s947 + $0x480] sm:$0xff]
              %1198 = vst [vmem:[%s948 + $0x480] sm:$0xff] %v1197
              %v1199 = vld [vmem:[%s947 + $0x488] sm:$0xff]
              %1200 = vst [vmem:[%s948 + $0x488] sm:$0xff] %v1199
              %v1201 = vld [vmem:[%s947 + $0x498] sm:$0xff]
              %1202 = vst [vmem:[%s948 + $0x498] sm:$0xff] %v1201
              %v1203 = vld [vmem:[%s947 + $0x4a0] sm:$0xff]
              %1204 = vst [vmem:[%s948 + $0x4a0] sm:$0xff] %v1203
              %v1205 = vld [vmem:[%s947 + $0x4a8] sm:$0xff]
              %1206 = vst [vmem:[%s948 + $0x4a8] sm:$0xff] %v1205
              %v1207 = vld [vmem:[%s947 + $0x4b0] sm:$0xff]
              %1208 = vst [vmem:[%s948 + $0x4b0] sm:$0xff] %v1207
              %v1209 = vld [vmem:[%s947 + $0x4b8] sm:$0xff]
              %1210 = vst [vmem:[%s948 + $0x4b8] sm:$0xff] %v1209
              %v1211 = vld [vmem:[%s947 + $0x4c0] sm:$0xff]
              %1212 = vst [vmem:[%s948 + $0x4c0] sm:$0xff] %v1211
              %v1213 = vld [vmem:[%s947 + $0x4d0] sm:$0xff]
              %1214 = vst [vmem:[%s948 + $0x4d0] sm:$0xff] %v1213
              %v1215 = vld [vmem:[%s947 + $0x4d8] sm:$0xff]
              %1216 = vst [vmem:[%s948 + $0x4d8] sm:$0xff] %v1215
              %v1217 = vld [vmem:[%s947 + $0x4e0] sm:$0xff]
              %1218 = vst [vmem:[%s948 + $0x4e0] sm:$0xff] %v1217
              %v1219 = vld [vmem:[%s947 + $0x4e8] sm:$0xff]
              %1220 = vst [vmem:[%s948 + $0x4e8] sm:$0xff] %v1219
              %v1221 = vld [vmem:[%s947 + $0x4f0] sm:$0xff]
              %1222 = vst [vmem:[%s948 + $0x4f0] sm:$0xff] %v1221
              %v1223 = vld [vmem:[%s947 + $0x4f8] sm:$0xff]
              %1224 = vst [vmem:[%s948 + $0x4f8] sm:$0xff] %v1223
              %v1225 = vld [vmem:[%s947 + $0x508] sm:$0xff]
              %1226 = vst [vmem:[%s948 + $0x508] sm:$0xff] %v1225
              %v1227 = vld [vmem:[%s947 + $0x510] sm:$0xff]
              %1228 = vst [vmem:[%s948 + $0x510] sm:$0xff] %v1227
              %v1229 = vld [vmem:[%s947 + $0x518] sm:$0xff]
              %1230 = vst [vmem:[%s948 + $0x518] sm:$0xff] %v1229
              %v1231 = vld [vmem:[%s947 + $0x520] sm:$0xff]
              %1232 = vst [vmem:[%s948 + $0x520] sm:$0xff] %v1231
              %v1233 = vld [vmem:[%s947 + $0x528] sm:$0xff]
              %1234 = vst [vmem:[%s948 + $0x528] sm:$0xff] %v1233
              %v1235 = vld [vmem:[%s947 + $0x530] sm:$0xff]
              %1236 = vst [vmem:[%s948 + $0x530] sm:$0xff] %v1235
              %v1237 = vld [vmem:[%s947 + $0x540] sm:$0xff]
              %1238 = vst [vmem:[%s948 + $0x540] sm:$0xff] %v1237
              %v1239 = vld [vmem:[%s947 + $0x548] sm:$0xff]
              %1240 = vst [vmem:[%s948 + $0x548] sm:$0xff] %v1239
              %v1241 = vld [vmem:[%s947 + $0x550] sm:$0xff]
              %1242 = vst [vmem:[%s948 + $0x550] sm:$0xff] %v1241
              %v1243 = vld [vmem:[%s947 + $0x558] sm:$0xff]
              %1244 = vst [vmem:[%s948 + $0x558] sm:$0xff] %v1243
              %v1245 = vld [vmem:[%s947 + $0x560] sm:$0xff]
              %1246 = vst [vmem:[%s948 + $0x560] sm:$0xff] %v1245
              %v1247 = vld [vmem:[%s947 + $0x568] sm:$0xff]
              %1248 = vst [vmem:[%s948 + $0x568] sm:$0xff] %v1247
              %v1249 = vld [vmem:[%s947 + $0x578] sm:$0xff]
              %1250 = vst [vmem:[%s948 + $0x578] sm:$0xff] %v1249
              %v1251 = vld [vmem:[%s947 + $0x580] sm:$0xff]
              %1252 = vst [vmem:[%s948 + $0x580] sm:$0xff] %v1251
              %v1253 = vld [vmem:[%s947 + $0x588] sm:$0xff]
              %1254 = vst [vmem:[%s948 + $0x588] sm:$0xff] %v1253
              %v1255 = vld [vmem:[%s947 + $0x590] sm:$0xff]
              %1256 = vst [vmem:[%s948 + $0x590] sm:$0xff] %v1255
              %v1257 = vld [vmem:[%s947 + $0x598] sm:$0xff]
              %1258 = vst [vmem:[%s948 + $0x598] sm:$0xff] %v1257
              %v1259 = vld [vmem:[%s947 + $0x5a0] sm:$0xff]
              %1260 = vst [vmem:[%s948 + $0x5a0] sm:$0xff] %v1259
              %v1261 = vld [vmem:[%s947 + $0x5b0] sm:$0xff]
              %1262 = vst [vmem:[%s948 + $0x5b0] sm:$0xff] %v1261
              %v1263 = vld [vmem:[%s947 + $0x5b8] sm:$0xff]
              %1264 = vst [vmem:[%s948 + $0x5b8] sm:$0xff] %v1263
              %v1265 = vld [vmem:[%s947 + $0x5c0] sm:$0xff]
              %1266 = vst [vmem:[%s948 + $0x5c0] sm:$0xff] %v1265
              %v1267 = vld [vmem:[%s947 + $0x5c8] sm:$0xff]
              %1268 = vst [vmem:[%s948 + $0x5c8] sm:$0xff] %v1267
              %v1269 = vld [vmem:[%s947 + $0x5d0] sm:$0xff]
              %1270 = vst [vmem:[%s948 + $0x5d0] sm:$0xff] %v1269
              %v1271 = vld [vmem:[%s947 + $0x5d8] sm:$0xff]
              %1272 = vst [vmem:[%s948 + $0x5d8] sm:$0xff] %v1271
              %v1273 = vld [vmem:[%s947 + $0x5e8] sm:$0xff]
              %1274 = vst [vmem:[%s948 + $0x5e8] sm:$0xff] %v1273
              %v1275 = vld [vmem:[%s947 + $0x5f0] sm:$0xff]
              %1276 = vst [vmem:[%s948 + $0x5f0] sm:$0xff] %v1275
              %v1277 = vld [vmem:[%s947 + $0x5f8] sm:$0xff]
              %1278 = vst [vmem:[%s948 + $0x5f8] sm:$0xff] %v1277
              %v1279 = vld [vmem:[%s947 + $0x600] sm:$0xff]
              %1280 = vst [vmem:[%s948 + $0x600] sm:$0xff] %v1279
              %v1281 = vld [vmem:[%s947 + $0x608] sm:$0xff]
              %1282 = vst [vmem:[%s948 + $0x608] sm:$0xff] %v1281
              %v1283 = vld [vmem:[%s947 + $0x610] sm:$0xff]
              %1284 = vst [vmem:[%s948 + $0x610] sm:$0xff] %v1283
              %v1285 = vld [vmem:[%s947 + $0x620] sm:$0xff]
              %1286 = vst [vmem:[%s948 + $0x620] sm:$0xff] %v1285
              %v1287 = vld [vmem:[%s947 + $0x628] sm:$0xff]
              %1288 = vst [vmem:[%s948 + $0x628] sm:$0xff] %v1287
              %v1289 = vld [vmem:[%s947 + $0x630] sm:$0xff]
              %1290 = vst [vmem:[%s948 + $0x630] sm:$0xff] %v1289
              %v1291 = vld [vmem:[%s947 + $0x638] sm:$0xff]
              %1292 = vst [vmem:[%s948 + $0x638] sm:$0xff] %v1291
              %v1293 = vld [vmem:[%s947 + $0x640] sm:$0xff]
              %1294 = vst [vmem:[%s948 + $0x640] sm:$0xff] %v1293
              %v1295 = vld [vmem:[%s947 + $0x648] sm:$0xff]
              %1296 = vst [vmem:[%s948 + $0x648] sm:$0xff] %v1295
              %v1297 = vld [vmem:[%s947 + $0x658] sm:$0xff]
              %1298 = vst [vmem:[%s948 + $0x658] sm:$0xff] %v1297
              %v1299 = vld [vmem:[%s947 + $0x660] sm:$0xff]
              %1300 = vst [vmem:[%s948 + $0x660] sm:$0xff] %v1299
              %v1301 = vld [vmem:[%s947 + $0x668] sm:$0xff]
              %1302 = vst [vmem:[%s948 + $0x668] sm:$0xff] %v1301
              %v1303 = vld [vmem:[%s947 + $0x670] sm:$0xff]
              %1304 = vst [vmem:[%s948 + $0x670] sm:$0xff] %v1303
              %v1305 = vld [vmem:[%s947 + $0x678] sm:$0xff]
              %1306 = vst [vmem:[%s948 + $0x678] sm:$0xff] %v1305
              %v1307 = vld [vmem:[%s947 + $0x680] sm:$0xff]
              %1308 = vst [vmem:[%s948 + $0x680] sm:$0xff] %v1307
              %v1309 = vld [vmem:[%s947 + $0x690] sm:$0xff]
              %1310 = vst [vmem:[%s948 + $0x690] sm:$0xff] %v1309
              %v1311 = vld [vmem:[%s947 + $0x698] sm:$0xff]
              %1312 = vst [vmem:[%s948 + $0x698] sm:$0xff] %v1311
              %v1313 = vld [vmem:[%s947 + $0x6a0] sm:$0xff]
              %1314 = vst [vmem:[%s948 + $0x6a0] sm:$0xff] %v1313
              %v1315 = vld [vmem:[%s947 + $0x6a8] sm:$0xff]
              %1316 = vst [vmem:[%s948 + $0x6a8] sm:$0xff] %v1315
              %v1317 = vld [vmem:[%s947 + $0x6b0] sm:$0xff]
              %1318 = vst [vmem:[%s948 + $0x6b0] sm:$0xff] %v1317
              %v1319 = vld [vmem:[%s947 + $0x6b8] sm:$0xff]
              %1320 = vst [vmem:[%s948 + $0x6b8] sm:$0xff] %v1319
              %v1321 = vld [vmem:[%s947 + $0x6c8] sm:$0xff]
              %1322 = vst [vmem:[%s948 + $0x6c8] sm:$0xff] %v1321
              %v1323 = vld [vmem:[%s947 + $0x6d0] sm:$0xff]
              %1324 = vst [vmem:[%s948 + $0x6d0] sm:$0xff] %v1323
              %v1325 = vld [vmem:[%s947 + $0x6d8] sm:$0xff]
              %1326 = vst [vmem:[%s948 + $0x6d8] sm:$0xff] %v1325
              %v1327 = vld [vmem:[%s947 + $0x6e0] sm:$0xff]
              %1328 = vst [vmem:[%s948 + $0x6e0] sm:$0xff] %v1327
              %v1329 = vld [vmem:[%s947 + $0x6e8] sm:$0xff]
              %1330 = vst [vmem:[%s948 + $0x6e8] sm:$0xff] %v1329
              %v1331 = vld [vmem:[%s947 + $0x6f0] sm:$0xff]
              %1332 = vst [vmem:[%s948 + $0x6f0] sm:$0xff] %v1331
              %v1333 = vld [vmem:[%s947 + $0x700] sm:$0xff]
              %1334 = vst [vmem:[%s948 + $0x700] sm:$0xff] %v1333
              %v1335 = vld [vmem:[%s947 + $0x708] sm:$0xff]
              %1336 = vst [vmem:[%s948 + $0x708] sm:$0xff] %v1335
              %v1337 = vld [vmem:[%s947 + $0x710] sm:$0xff]
              %1338 = vst [vmem:[%s948 + $0x710] sm:$0xff] %v1337
              %v1339 = vld [vmem:[%s947 + $0x718] sm:$0xff]
              %1340 = vst [vmem:[%s948 + $0x718] sm:$0xff] %v1339
              %v1341 = vld [vmem:[%s947 + $0x720] sm:$0xff]
              %1342 = vst [vmem:[%s948 + $0x720] sm:$0xff] %v1341
              %v1343 = vld [vmem:[%s947 + $0x728] sm:$0xff]
              %1344 = vst [vmem:[%s948 + $0x728] sm:$0xff] %v1343
              %v1345 = vld [vmem:[%s947 + $0x738] sm:$0xff]
              %1346 = vst [vmem:[%s948 + $0x738] sm:$0xff] %v1345
              %v1347 = vld [vmem:[%s947 + $0x740] sm:$0xff]
              %1348 = vst [vmem:[%s948 + $0x740] sm:$0xff] %v1347
              %v1349 = vld [vmem:[%s947 + $0x748] sm:$0xff]
              %1350 = vst [vmem:[%s948 + $0x748] sm:$0xff] %v1349
              %v1351 = vld [vmem:[%s947 + $0x750] sm:$0xff]
              %1352 = vst [vmem:[%s948 + $0x750] sm:$0xff] %v1351
              %v1353 = vld [vmem:[%s947 + $0x758] sm:$0xff]
              %1354 = vst [vmem:[%s948 + $0x758] sm:$0xff] %v1353
              %v1355 = vld [vmem:[%s947 + $0x760] sm:$0xff]
              %1356 = vst [vmem:[%s948 + $0x760] sm:$0xff] %v1355
              %v1357 = vld [vmem:[%s947 + $0x770] sm:$0xff]
              %1358 = vst [vmem:[%s948 + $0x770] sm:$0xff] %v1357
              %v1359 = vld [vmem:[%s947 + $0x778] sm:$0xff]
              %1360 = vst [vmem:[%s948 + $0x778] sm:$0xff] %v1359
              %v1361 = vld [vmem:[%s947 + $0x780] sm:$0xff]
              %1362 = vst [vmem:[%s948 + $0x780] sm:$0xff] %v1361
              %v1363 = vld [vmem:[%s947 + $0x788] sm:$0xff]
              %1364 = vst [vmem:[%s948 + $0x788] sm:$0xff] %v1363
              %v1365 = vld [vmem:[%s947 + $0x790] sm:$0xff]
              %1366 = vst [vmem:[%s948 + $0x790] sm:$0xff] %v1365
              %v1367 = vld [vmem:[%s947 + $0x798] sm:$0xff]
              %1368 = vst [vmem:[%s948 + $0x798] sm:$0xff] %v1367
              %v1369 = vld [vmem:[%s947 + $0x7a8] sm:$0xff]
              %1370 = vst [vmem:[%s948 + $0x7a8] sm:$0xff] %v1369
              %v1371 = vld [vmem:[%s947 + $0x7b0] sm:$0xff]
              %1372 = vst [vmem:[%s948 + $0x7b0] sm:$0xff] %v1371
              %v1373 = vld [vmem:[%s947 + $0x7b8] sm:$0xff]
              %1374 = vst [vmem:[%s948 + $0x7b8] sm:$0xff] %v1373
              %v1375 = vld [vmem:[%s947 + $0x7c0] sm:$0xff]
              %1376 = vst [vmem:[%s948 + $0x7c0] sm:$0xff] %v1375
              %v1377 = vld [vmem:[%s947 + $0x7c8] sm:$0xff]
              %1378 = vst [vmem:[%s948 + $0x7c8] sm:$0xff] %v1377
              %v1379 = vld [vmem:[%s947 + $0x7d0] sm:$0xff]
              %1380 = vst [vmem:[%s948 + $0x7d0] sm:$0xff] %v1379
              %v1381 = vld [vmem:[%s947 + $0x7e0] sm:$0xff]
              %1382 = vst [vmem:[%s948 + $0x7e0] sm:$0xff] %v1381
              %v1383 = vld [vmem:[%s947 + $0x7e8] sm:$0xff]
              %1384 = vst [vmem:[%s948 + $0x7e8] sm:$0xff] %v1383
              %v1385 = vld [vmem:[%s947 + $0x7f0] sm:$0xff]
              %1386 = vst [vmem:[%s948 + $0x7f0] sm:$0xff] %v1385
              %v1387 = vld [vmem:[%s947 + $0x7f8] sm:$0xff]
              %1388 = vst [vmem:[%s948 + $0x7f8] sm:$0xff] %v1387
              %v1389 = vld [vmem:[%s947 + $0x800] sm:$0xff]
              %1390 = vst [vmem:[%s948 + $0x800] sm:$0xff] %v1389
              %v1391 = vld [vmem:[%s947 + $0x808] sm:$0xff]
              %1392 = vst [vmem:[%s948 + $0x808] sm:$0xff] %v1391
              %v1393 = vld [vmem:[%s947 + $0x818] sm:$0xff]
              %1394 = vst [vmem:[%s948 + $0x818] sm:$0xff] %v1393
              %v1395 = vld [vmem:[%s947 + $0x820] sm:$0xff]
              %1396 = vst [vmem:[%s948 + $0x820] sm:$0xff] %v1395
              %v1397 = vld [vmem:[%s947 + $0x828] sm:$0xff]
              %1398 = vst [vmem:[%s948 + $0x828] sm:$0xff] %v1397
              %v1399 = vld [vmem:[%s947 + $0x830] sm:$0xff]
              %1400 = vst [vmem:[%s948 + $0x830] sm:$0xff] %v1399
              %v1401 = vld [vmem:[%s947 + $0x838] sm:$0xff]
              %1402 = vst [vmem:[%s948 + $0x838] sm:$0xff] %v1401
              %v1403 = vld [vmem:[%s947 + $0x840] sm:$0xff]
              %1404 = vst [vmem:[%s948 + $0x840] sm:$0xff] %v1403
              %v1405 = vld [vmem:[%s947 + $0x850] sm:$0xff]
              %1406 = vst [vmem:[%s948 + $0x850] sm:$0xff] %v1405
              %v1407 = vld [vmem:[%s947 + $0x858] sm:$0xff]
              %1408 = vst [vmem:[%s948 + $0x858] sm:$0xff] %v1407
              %v1409 = vld [vmem:[%s947 + $0x860] sm:$0xff]
              %1410 = vst [vmem:[%s948 + $0x860] sm:$0xff] %v1409
              %v1411 = vld [vmem:[%s947 + $0x868] sm:$0xff]
              %1412 = vst [vmem:[%s948 + $0x868] sm:$0xff] %v1411
              %v1413 = vld [vmem:[%s947 + $0x870] sm:$0xff]
              %1414 = vst [vmem:[%s948 + $0x870] sm:$0xff] %v1413
              %v1415 = vld [vmem:[%s947 + $0x878] sm:$0xff]
              %1416 = vst [vmem:[%s948 + $0x878] sm:$0xff] %v1415
              %v1417 = vld [vmem:[%s947 + $0x888] sm:$0xff]
              %1418 = vst [vmem:[%s948 + $0x888] sm:$0xff] %v1417
              %v1419 = vld [vmem:[%s947 + $0x890] sm:$0xff]
              %1420 = vst [vmem:[%s948 + $0x890] sm:$0xff] %v1419
              %v1421 = vld [vmem:[%s947 + $0x898] sm:$0xff]
              %1422 = vst [vmem:[%s948 + $0x898] sm:$0xff] %v1421
              %v1423 = vld [vmem:[%s947 + $0x8a0] sm:$0xff]
              %1424 = vst [vmem:[%s948 + $0x8a0] sm:$0xff] %v1423
              %v1425 = vld [vmem:[%s947 + $0x8a8] sm:$0xff]
              %1426 = vst [vmem:[%s948 + $0x8a8] sm:$0xff] %v1425
              %v1427 = vld [vmem:[%s947 + $0x8b0] sm:$0xff]
              %1428 = vst [vmem:[%s948 + $0x8b0] sm:$0xff] %v1427
              %v1429 = vld [vmem:[%s947 + $0x8c0] sm:$0xff]
              %1430 = vst [vmem:[%s948 + $0x8c0] sm:$0xff] %v1429
              %v1431 = vld [vmem:[%s947 + $0x8c8] sm:$0xff]
              %1432 = vst [vmem:[%s948 + $0x8c8] sm:$0xff] %v1431
              %v1433 = vld [vmem:[%s947 + $0x8d0] sm:$0xff]
              %1434 = vst [vmem:[%s948 + $0x8d0] sm:$0xff] %v1433
              %v1435 = vld [vmem:[%s947 + $0x8d8] sm:$0xff]
              %1436 = vst [vmem:[%s948 + $0x8d8] sm:$0xff] %v1435
              %v1437 = vld [vmem:[%s947 + $0x8e0] sm:$0xff]
              %1438 = vst [vmem:[%s948 + $0x8e0] sm:$0xff] %v1437
              %v1439 = vld [vmem:[%s947 + $0x8e8] sm:$0xff]
              %1440 = vst [vmem:[%s948 + $0x8e8] sm:$0xff] %v1439
              %v1441 = vld [vmem:[%s947 + $0x8f8] sm:$0xff]
              %1442 = vst [vmem:[%s948 + $0x8f8] sm:$0xff] %v1441
              %v1443 = vld [vmem:[%s947 + $0x900] sm:$0xff]
              %1444 = vst [vmem:[%s948 + $0x900] sm:$0xff] %v1443
              %v1445 = vld [vmem:[%s947 + $0x908] sm:$0xff]
              %1446 = vst [vmem:[%s948 + $0x908] sm:$0xff] %v1445
              %v1447 = vld [vmem:[%s947 + $0x910] sm:$0xff]
              %1448 = vst [vmem:[%s948 + $0x910] sm:$0xff] %v1447
              %v1449 = vld [vmem:[%s947 + $0x918] sm:$0xff]
              %1450 = vst [vmem:[%s948 + $0x918] sm:$0xff] %v1449
              %v1451 = vld [vmem:[%s947 + $0x920] sm:$0xff]
              %1452 = vst [vmem:[%s948 + $0x920] sm:$0xff] %v1451
              %v1453 = vld [vmem:[%s947 + $0x930] sm:$0xff]
              %1454 = vst [vmem:[%s948 + $0x930] sm:$0xff] %v1453
              %v1455 = vld [vmem:[%s947 + $0x938] sm:$0xff]
              %1456 = vst [vmem:[%s948 + $0x938] sm:$0xff] %v1455
              %v1457 = vld [vmem:[%s947 + $0x940] sm:$0xff]
              %1458 = vst [vmem:[%s948 + $0x940] sm:$0xff] %v1457
              %v1459 = vld [vmem:[%s947 + $0x948] sm:$0xff]
              %1460 = vst [vmem:[%s948 + $0x948] sm:$0xff] %v1459
              %v1461 = vld [vmem:[%s947 + $0x950] sm:$0xff]
              %1462 = vst [vmem:[%s948 + $0x950] sm:$0xff] %v1461
              %v1463 = vld [vmem:[%s947 + $0x958] sm:$0xff]
              %1464 = vst [vmem:[%s948 + $0x958] sm:$0xff] %v1463
              %v1465 = vld [vmem:[%s947 + $0x968] sm:$0xff]
              %1466 = vst [vmem:[%s948 + $0x968] sm:$0xff] %v1465
              %v1467 = vld [vmem:[%s947 + $0x970] sm:$0xff]
              %1468 = vst [vmem:[%s948 + $0x970] sm:$0xff] %v1467
              %v1469 = vld [vmem:[%s947 + $0x978] sm:$0xff]
              %1470 = vst [vmem:[%s948 + $0x978] sm:$0xff] %v1469
              %v1471 = vld [vmem:[%s947 + $0x980] sm:$0xff]
              %1472 = vst [vmem:[%s948 + $0x980] sm:$0xff] %v1471
              %v1473 = vld [vmem:[%s947 + $0x988] sm:$0xff]
              %1474 = vst [vmem:[%s948 + $0x988] sm:$0xff] %v1473
              %v1475 = vld [vmem:[%s947 + $0x990] sm:$0xff]
              %1476 = vst [vmem:[%s948 + $0x990] sm:$0xff] %v1475
              %v1477 = vld [vmem:[%s947 + $0x9a0] sm:$0xff]
              %1478 = vst [vmem:[%s948 + $0x9a0] sm:$0xff] %v1477
              %v1479 = vld [vmem:[%s947 + $0x9a8] sm:$0xff]
              %1480 = vst [vmem:[%s948 + $0x9a8] sm:$0xff] %v1479
              %v1481 = vld [vmem:[%s947 + $0x9b0] sm:$0xff]
              %1482 = vst [vmem:[%s948 + $0x9b0] sm:$0xff] %v1481
              %v1483 = vld [vmem:[%s947 + $0x9b8] sm:$0xff]
              %1484 = vst [vmem:[%s948 + $0x9b8] sm:$0xff] %v1483
              %v1485 = vld [vmem:[%s947 + $0x9c0] sm:$0xff]
              %1486 = vst [vmem:[%s948 + $0x9c0] sm:$0xff] %v1485
              %v1487 = vld [vmem:[%s947 + $0x9c8] sm:$0xff]
              %1488 = vst [vmem:[%s948 + $0x9c8] sm:$0xff] %v1487
              %v1489 = vld [vmem:[%s947 + $0x9d8] sm:$0xff]
              %1490 = vst [vmem:[%s948 + $0x9d8] sm:$0xff] %v1489
              %v1491 = vld [vmem:[%s947 + $0x9e0] sm:$0xff]
              %1492 = vst [vmem:[%s948 + $0x9e0] sm:$0xff] %v1491
              %v1493 = vld [vmem:[%s947 + $0x9e8] sm:$0xff]
              %1494 = vst [vmem:[%s948 + $0x9e8] sm:$0xff] %v1493
              %v1495 = vld [vmem:[%s947 + $0x9f0] sm:$0xff]
              %1496 = vst [vmem:[%s948 + $0x9f0] sm:$0xff] %v1495
              %v1497 = vld [vmem:[%s947 + $0x9f8] sm:$0xff]
              %1498 = vst [vmem:[%s948 + $0x9f8] sm:$0xff] %v1497
              %v1499 = vld [vmem:[%s947 + $0xa00] sm:$0xff]
              %1500 = vst [vmem:[%s948 + $0xa00] sm:$0xff] %v1499
              %v1501 = vld [vmem:[%s947 + $0xa10] sm:$0xff]
              %1502 = vst [vmem:[%s948 + $0xa10] sm:$0xff] %v1501
              %v1503 = vld [vmem:[%s947 + $0xa18] sm:$0xff]
              %1504 = vst [vmem:[%s948 + $0xa18] sm:$0xff] %v1503
              %v1505 = vld [vmem:[%s947 + $0xa20] sm:$0xff]
              %1506 = vst [vmem:[%s948 + $0xa20] sm:$0xff] %v1505
              %v1507 = vld [vmem:[%s947 + $0xa28] sm:$0xff]
              %1508 = vst [vmem:[%s948 + $0xa28] sm:$0xff] %v1507
              %v1509 = vld [vmem:[%s947 + $0xa30] sm:$0xff]
              %1510 = vst [vmem:[%s948 + $0xa30] sm:$0xff] %v1509
              %v1511 = vld [vmem:[%s947 + $0xa38] sm:$0xff]
              %1512 = vst [vmem:[%s948 + $0xa38] sm:$0xff] %v1511
              %v1513 = vld [vmem:[%s947 + $0xa48] sm:$0xff]
              %1514 = vst [vmem:[%s948 + $0xa48] sm:$0xff] %v1513
              %v1515 = vld [vmem:[%s947 + $0xa50] sm:$0xff]
              %1516 = vst [vmem:[%s948 + $0xa50] sm:$0xff] %v1515
              %v1517 = vld [vmem:[%s947 + $0xa58] sm:$0xff]
              %1518 = vst [vmem:[%s948 + $0xa58] sm:$0xff] %v1517
              %v1519 = vld [vmem:[%s947 + $0xa60] sm:$0xff]
              %1520 = vst [vmem:[%s948 + $0xa60] sm:$0xff] %v1519
              %v1521 = vld [vmem:[%s947 + $0xa68] sm:$0xff]
              %1522 = vst [vmem:[%s948 + $0xa68] sm:$0xff] %v1521
              %v1523 = vld [vmem:[%s947 + $0xa70] sm:$0xff]
              %1524 = vst [vmem:[%s948 + $0xa70] sm:$0xff] %v1523
              %v1525 = vld [vmem:[%s947 + $0xa80] sm:$0xff]
              %1526 = vst [vmem:[%s948 + $0xa80] sm:$0xff] %v1525
              %v1527 = vld [vmem:[%s947 + $0xa88] sm:$0xff]
              %1528 = vst [vmem:[%s948 + $0xa88] sm:$0xff] %v1527
              %v1529 = vld [vmem:[%s947 + $0xa90] sm:$0xff]
              %1530 = vst [vmem:[%s948 + $0xa90] sm:$0xff] %v1529
              %v1531 = vld [vmem:[%s947 + $0xa98] sm:$0xff]
              %1532 = vst [vmem:[%s948 + $0xa98] sm:$0xff] %v1531
              %v1533 = vld [vmem:[%s947 + $0xaa0] sm:$0xff]
              %1534 = vst [vmem:[%s948 + $0xaa0] sm:$0xff] %v1533
              %v1535 = vld [vmem:[%s947 + $0xaa8] sm:$0xff]
              %1536 = vst [vmem:[%s948 + $0xaa8] sm:$0xff] %v1535
              %v1537 = vld [vmem:[%s947 + $0xab8] sm:$0xff]
              %1538 = vst [vmem:[%s948 + $0xab8] sm:$0xff] %v1537
              %v1539 = vld [vmem:[%s947 + $0xac0] sm:$0xff]
              %1540 = vst [vmem:[%s948 + $0xac0] sm:$0xff] %v1539
              %v1541 = vld [vmem:[%s947 + $0xac8] sm:$0xff]
              %1542 = vst [vmem:[%s948 + $0xac8] sm:$0xff] %v1541
              %v1543 = vld [vmem:[%s947 + $0xad0] sm:$0xff]
              %1544 = vst [vmem:[%s948 + $0xad0] sm:$0xff] %v1543
              %v1545 = vld [vmem:[%s947 + $0xad8] sm:$0xff]
              %1546 = vst [vmem:[%s948 + $0xad8] sm:$0xff] %v1545
              %v1547 = vld [vmem:[%s947 + $0xae0] sm:$0xff]
              %1548 = vst [vmem:[%s948 + $0xae0] sm:$0xff] %v1547
              %v1549 = vld [vmem:[%s947 + $0xaf0] sm:$0xff]
              %1550 = vst [vmem:[%s948 + $0xaf0] sm:$0xff] %v1549
              %v1551 = vld [vmem:[%s947 + $0xaf8] sm:$0xff]
              %1552 = vst [vmem:[%s948 + $0xaf8] sm:$0xff] %v1551
              %v1553 = vld [vmem:[%s947 + $0xb00] sm:$0xff]
              %1554 = vst [vmem:[%s948 + $0xb00] sm:$0xff] %v1553
              %v1555 = vld [vmem:[%s947 + $0xb08] sm:$0xff]
              %1556 = vst [vmem:[%s948 + $0xb08] sm:$0xff] %v1555
              %v1557 = vld [vmem:[%s947 + $0xb10] sm:$0xff]
              %1558 = vst [vmem:[%s948 + $0xb10] sm:$0xff] %v1557
              %v1559 = vld [vmem:[%s947 + $0xb18] sm:$0xff]
              %1560 = vst [vmem:[%s948 + $0xb18] sm:$0xff] %v1559
              %v1561 = vld [vmem:[%s947 + $0xb28] sm:$0xff]
              %1562 = vst [vmem:[%s948 + $0xb28] sm:$0xff] %v1561
              %v1563 = vld [vmem:[%s947 + $0xb30] sm:$0xff]
              %1564 = vst [vmem:[%s948 + $0xb30] sm:$0xff] %v1563
              %v1565 = vld [vmem:[%s947 + $0xb38] sm:$0xff]
              %1566 = vst [vmem:[%s948 + $0xb38] sm:$0xff] %v1565
              %v1567 = vld [vmem:[%s947 + $0xb40] sm:$0xff]
              %1568 = vst [vmem:[%s948 + $0xb40] sm:$0xff] %v1567
              %v1569 = vld [vmem:[%s947 + $0xb48] sm:$0xff]
              %1570 = vst [vmem:[%s948 + $0xb48] sm:$0xff] %v1569
              %v1571 = vld [vmem:[%s947 + $0xb50] sm:$0xff]
              %1572 = vst [vmem:[%s948 + $0xb50] sm:$0xff] %v1571
            $region67: #{tpu_custom_call.1} parent=61 // loop_footer
              %s946 = sadd.s32 1, %s942
            $region68: #{tpu_custom_call.1} parent=61 // loop_footer_branch
              %941 = sbr.rel target = $region64
            $region69: #{tpu_custom_call.1} parent=61 // loop_exit
              _
            %s1574 = ssub.s32 16, 1
            loop: start=0, step=1, limit=1
            $region70: #{tpu_custom_call.1} parent=61 // loop_pre_header
              _
            $region71: #{tpu_custom_call.1} parent=61 // loop_header
              %s1576 = sphi 0, %s1580
              %p1577 = scmp.ge.s32.totalorder %s1576, 1
              %s1581 = sphi %s939, %s939
              %s1582 = sphi %s940, %s940
            $region72: #{tpu_custom_call.1} parent=61 // loop_header_branch
              %1579 = sbr.rel (%p1577) target = $region76
            $region73: #{tpu_custom_call.1} parent=61 // loop_body
              %v1583 = vld [vmem:[%s1581] sm:%s1574]
              %1584 = vst [vmem:[%s1582] sm:%s1574] %v1583
              %v1585 = vld [vmem:[%s1581 + $0x38] sm:%s1574]
              %1586 = vst [vmem:[%s1582 + $0x38] sm:%s1574] %v1585
              %v1587 = vld [vmem:[%s1581 + $0x70] sm:%s1574]
              %1588 = vst [vmem:[%s1582 + $0x70] sm:%s1574] %v1587
              %v1589 = vld [vmem:[%s1581 + $0xa8] sm:%s1574]
              %1590 = vst [vmem:[%s1582 + $0xa8] sm:%s1574] %v1589
              %v1591 = vld [vmem:[%s1581 + $0xe0] sm:%s1574]
              %1592 = vst [vmem:[%s1582 + $0xe0] sm:%s1574] %v1591
              %v1593 = vld [vmem:[%s1581 + $0x118] sm:%s1574]
              %1594 = vst [vmem:[%s1582 + $0x118] sm:%s1574] %v1593
              %v1595 = vld [vmem:[%s1581 + $0x150] sm:%s1574]
              %1596 = vst [vmem:[%s1582 + $0x150] sm:%s1574] %v1595
              %v1597 = vld [vmem:[%s1581 + $0x188] sm:%s1574]
              %1598 = vst [vmem:[%s1582 + $0x188] sm:%s1574] %v1597
              %v1599 = vld [vmem:[%s1581 + $0x1c0] sm:%s1574]
              %1600 = vst [vmem:[%s1582 + $0x1c0] sm:%s1574] %v1599
              %v1601 = vld [vmem:[%s1581 + $0x1f8] sm:%s1574]
              %1602 = vst [vmem:[%s1582 + $0x1f8] sm:%s1574] %v1601
              %v1603 = vld [vmem:[%s1581 + $0x230] sm:%s1574]
              %1604 = vst [vmem:[%s1582 + $0x230] sm:%s1574] %v1603
              %v1605 = vld [vmem:[%s1581 + $0x268] sm:%s1574]
              %1606 = vst [vmem:[%s1582 + $0x268] sm:%s1574] %v1605
              %v1607 = vld [vmem:[%s1581 + $0x2a0] sm:%s1574]
              %1608 = vst [vmem:[%s1582 + $0x2a0] sm:%s1574] %v1607
              %v1609 = vld [vmem:[%s1581 + $0x2d8] sm:%s1574]
              %1610 = vst [vmem:[%s1582 + $0x2d8] sm:%s1574] %v1609
              %v1611 = vld [vmem:[%s1581 + $0x310] sm:%s1574]
              %1612 = vst [vmem:[%s1582 + $0x310] sm:%s1574] %v1611
              %v1613 = vld [vmem:[%s1581 + $0x348] sm:%s1574]
              %1614 = vst [vmem:[%s1582 + $0x348] sm:%s1574] %v1613
              %v1615 = vld [vmem:[%s1581 + $0x380] sm:%s1574]
              %1616 = vst [vmem:[%s1582 + $0x380] sm:%s1574] %v1615
              %v1617 = vld [vmem:[%s1581 + $0x3b8] sm:%s1574]
              %1618 = vst [vmem:[%s1582 + $0x3b8] sm:%s1574] %v1617
              %v1619 = vld [vmem:[%s1581 + $0x3f0] sm:%s1574]
              %1620 = vst [vmem:[%s1582 + $0x3f0] sm:%s1574] %v1619
              %v1621 = vld [vmem:[%s1581 + $0x428] sm:%s1574]
              %1622 = vst [vmem:[%s1582 + $0x428] sm:%s1574] %v1621
              %v1623 = vld [vmem:[%s1581 + $0x460] sm:%s1574]
              %1624 = vst [vmem:[%s1582 + $0x460] sm:%s1574] %v1623
              %v1625 = vld [vmem:[%s1581 + $0x498] sm:%s1574]
              %1626 = vst [vmem:[%s1582 + $0x498] sm:%s1574] %v1625
              %v1627 = vld [vmem:[%s1581 + $0x4d0] sm:%s1574]
              %1628 = vst [vmem:[%s1582 + $0x4d0] sm:%s1574] %v1627
              %v1629 = vld [vmem:[%s1581 + $0x508] sm:%s1574]
              %1630 = vst [vmem:[%s1582 + $0x508] sm:%s1574] %v1629
              %v1631 = vld [vmem:[%s1581 + $0x540] sm:%s1574]
              %1632 = vst [vmem:[%s1582 + $0x540] sm:%s1574] %v1631
              %v1633 = vld [vmem:[%s1581 + $0x578] sm:%s1574]
              %1634 = vst [vmem:[%s1582 + $0x578] sm:%s1574] %v1633
              %v1635 = vld [vmem:[%s1581 + $0x5b0] sm:%s1574]
              %1636 = vst [vmem:[%s1582 + $0x5b0] sm:%s1574] %v1635
              %v1637 = vld [vmem:[%s1581 + $0x5e8] sm:%s1574]
              %1638 = vst [vmem:[%s1582 + $0x5e8] sm:%s1574] %v1637
              %v1639 = vld [vmem:[%s1581 + $0x620] sm:%s1574]
              %1640 = vst [vmem:[%s1582 + $0x620] sm:%s1574] %v1639
              %v1641 = vld [vmem:[%s1581 + $0x658] sm:%s1574]
              %1642 = vst [vmem:[%s1582 + $0x658] sm:%s1574] %v1641
              %v1643 = vld [vmem:[%s1581 + $0x690] sm:%s1574]
              %1644 = vst [vmem:[%s1582 + $0x690] sm:%s1574] %v1643
              %v1645 = vld [vmem:[%s1581 + $0x6c8] sm:%s1574]
              %1646 = vst [vmem:[%s1582 + $0x6c8] sm:%s1574] %v1645
              %v1647 = vld [vmem:[%s1581 + $0x700] sm:%s1574]
              %1648 = vst [vmem:[%s1582 + $0x700] sm:%s1574] %v1647
              %v1649 = vld [vmem:[%s1581 + $0x738] sm:%s1574]
              %1650 = vst [vmem:[%s1582 + $0x738] sm:%s1574] %v1649
              %v1651 = vld [vmem:[%s1581 + $0x770] sm:%s1574]
              %1652 = vst [vmem:[%s1582 + $0x770] sm:%s1574] %v1651
              %v1653 = vld [vmem:[%s1581 + $0x7a8] sm:%s1574]
              %1654 = vst [vmem:[%s1582 + $0x7a8] sm:%s1574] %v1653
              %v1655 = vld [vmem:[%s1581 + $0x7e0] sm:%s1574]
              %1656 = vst [vmem:[%s1582 + $0x7e0] sm:%s1574] %v1655
              %v1657 = vld [vmem:[%s1581 + $0x818] sm:%s1574]
              %1658 = vst [vmem:[%s1582 + $0x818] sm:%s1574] %v1657
              %v1659 = vld [vmem:[%s1581 + $0x850] sm:%s1574]
              %1660 = vst [vmem:[%s1582 + $0x850] sm:%s1574] %v1659
              %v1661 = vld [vmem:[%s1581 + $0x888] sm:%s1574]
              %1662 = vst [vmem:[%s1582 + $0x888] sm:%s1574] %v1661
              %v1663 = vld [vmem:[%s1581 + $0x8c0] sm:%s1574]
              %1664 = vst [vmem:[%s1582 + $0x8c0] sm:%s1574] %v1663
              %v1665 = vld [vmem:[%s1581 + $0x8f8] sm:%s1574]
              %1666 = vst [vmem:[%s1582 + $0x8f8] sm:%s1574] %v1665
              %v1667 = vld [vmem:[%s1581 + $0x930] sm:%s1574]
              %1668 = vst [vmem:[%s1582 + $0x930] sm:%s1574] %v1667
              %v1669 = vld [vmem:[%s1581 + $0x968] sm:%s1574]
              %1670 = vst [vmem:[%s1582 + $0x968] sm:%s1574] %v1669
              %v1671 = vld [vmem:[%s1581 + $0x9a0] sm:%s1574]
              %1672 = vst [vmem:[%s1582 + $0x9a0] sm:%s1574] %v1671
              %v1673 = vld [vmem:[%s1581 + $0x9d8] sm:%s1574]
              %1674 = vst [vmem:[%s1582 + $0x9d8] sm:%s1574] %v1673
              %v1675 = vld [vmem:[%s1581 + $0xa10] sm:%s1574]
              %1676 = vst [vmem:[%s1582 + $0xa10] sm:%s1574] %v1675
              %v1677 = vld [vmem:[%s1581 + $0xa48] sm:%s1574]
              %1678 = vst [vmem:[%s1582 + $0xa48] sm:%s1574] %v1677
              %v1679 = vld [vmem:[%s1581 + $0xa80] sm:%s1574]
              %1680 = vst [vmem:[%s1582 + $0xa80] sm:%s1574] %v1679
              %v1681 = vld [vmem:[%s1581 + $0xab8] sm:%s1574]
              %1682 = vst [vmem:[%s1582 + $0xab8] sm:%s1574] %v1681
              %v1683 = vld [vmem:[%s1581 + $0xaf0] sm:%s1574]
              %1684 = vst [vmem:[%s1582 + $0xaf0] sm:%s1574] %v1683
              %v1685 = vld [vmem:[%s1581 + $0xb28] sm:%s1574]
              %1686 = vst [vmem:[%s1582 + $0xb28] sm:%s1574] %v1685
            $region74: #{tpu_custom_call.1} parent=61 // loop_footer
              %s1580 = sadd.s32 1, %s1576
            $region75: #{tpu_custom_call.1} parent=61 // loop_footer_branch
              %1575 = sbr.rel target = $region71
            $region76: #{tpu_custom_call.1} parent=61 // loop_exit
              _
          $region62: #{tpu_custom_call.1} parent=57 // pred_fallthru
            _
          // Predicated region
          $region77: #{tpu_custom_call.1} parent=57 // pred_check
            _
          $region78: #{tpu_custom_call.1} parent=57 // pred_check_branch
            %1689 = sbr.rel (0) target = $region80
          $region79: #{tpu_custom_call.1} parent=57 // pred_region
            %1690 = vsyncadd %s936, 43264
          $region80: #{tpu_custom_call.1} parent=57 // pred_fallthru
            _
        $region58: #{tpu_custom_call.1} parent=27 // pred_fallthru
          _
        %s1691 = smul.u32 %s151, 2912
        %s1692 = scalar_lea.vmem [#allocation2], %s1691
        %s1693 = scalar_lea.sflag [#allocation3], %s151
        %s1694 = smul.u32 52, 52
        %s1695 = smul.u32 %s1694, 1
        %s1696 = sshll.u32 %s1695, 4
        %1697 = dma.done %s1693, %s1696
        %s1698 = sadd.s32 672, %s1691
        %s1699 = scalar_lea.vmem [#allocation2], %s1698
        %v1700 = vld [vmem:[%s1699 + $0xc] sm:$0xff]
        %v1701 = vld [vmem:[%s1699 + $0x14] sm:$0xff]
        %v1702 = vld [vmem:[%s1699 + $0x44] sm:$0xff]
        %v1703 = vld [vmem:[%s1699 + $0x4c] sm:$0xff]
        %v1704 = vld [vmem:[%s1699 + $0x7c] sm:$0xff]
        %v1705 = vld [vmem:[%s1699 + $0x84] sm:$0xff]
        %v1706 = vld [vmem:[%s1699 + $0xb4] sm:$0xff]
        %v1707 = vld [vmem:[%s1699 + $0xbc] sm:$0xff]
        %v1708 = vld [vmem:[%s1699 + $0xec] sm:$0xff]
        %v1709 = vld [vmem:[%s1699 + $0xf4] sm:$0xff]
        %v1710 = vld [vmem:[%s1699 + $0x124] sm:$0xff]
        %v1711 = vld [vmem:[%s1699 + $0x12c] sm:$0xff]
        %v1712 = vld [vmem:[%s1699 + $0x15c] sm:$0xff]
        %v1713 = vld [vmem:[%s1699 + $0x164] sm:$0xff]
        %v1714 = vld [vmem:[%s1699 + $0x194] sm:$0xff]
        %v1715 = vld [vmem:[%s1699 + $0x19c] sm:$0xff]
        %v1716 = vld [vmem:[%s1699 + $0x1cc] sm:$0xff]
        %v1717 = vld [vmem:[%s1699 + $0x1d4] sm:$0xff]
        %v1718 = vld [vmem:[%s1699 + $0x204] sm:$0xff]
        %v1719 = vld [vmem:[%s1699 + $0x20c] sm:$0xff]
        %v1720 = vld [vmem:[%s1699 + $0x23c] sm:$0xff]
        %v1721 = vld [vmem:[%s1699 + $0x244] sm:$0xff]
        %v1722 = vld [vmem:[%s1699 + $0x274] sm:$0xff]
        %v1723 = vld [vmem:[%s1699 + $0x27c] sm:$0xff]
        %v1724 = vld [vmem:[%s1699 + $0x2ac] sm:$0xff]
        %v1725 = vld [vmem:[%s1699 + $0x2b4] sm:$0xff]
        %v1726 = vld [vmem:[%s1699 + $0x2e4] sm:$0xff]
        %v1727 = vld [vmem:[%s1699 + $0x2ec] sm:$0xff]
        %v1728 = vld [vmem:[%s1699 + $0x31c] sm:$0xff]
        %v1729 = vld [vmem:[%s1699 + $0x324] sm:$0xff]
        %v1730 = vld [vmem:[%s1699 + $0x354] sm:$0xff]
        %v1731 = vld [vmem:[%s1699 + $0x35c] sm:$0xff]
        %v1732 = vld [vmem:[%s1699 + $0x38c] sm:$0xff]
        %v1733 = vld [vmem:[%s1699 + $0x394] sm:$0xff]
        %v1734 = vld [vmem:[%s1699 + $0x3c4] sm:$0xff]
        %v1735 = vld [vmem:[%s1699 + $0x3cc] sm:$0xff]
        %v1736 = vld [vmem:[%s1699 + $0x3fc] sm:$0xff]
        %v1737 = vld [vmem:[%s1699 + $0x404] sm:$0xff]
        %v1738 = vld [vmem:[%s1699 + $0x434] sm:$0xff]
        %v1739 = vld [vmem:[%s1699 + $0x43c] sm:$0xff]
        %v1740 = vld [vmem:[%s1699 + $0x46c] sm:$0xff]
        %v1741 = vld [vmem:[%s1699 + $0x474] sm:$0xff]
        %v1742 = vld [vmem:[%s1699 + $0x4a4] sm:$0xff]
        %v1743 = vld [vmem:[%s1699 + $0x4ac] sm:$0xff]
        %v1744 = vld [vmem:[%s1699 + $0x4dc] sm:$0xff]
        %v1745 = vld [vmem:[%s1699 + $0x4e4] sm:$0xff]
        %v1746 = vld [vmem:[%s1699 + $0x514] sm:$0xff]
        %v1747 = vld [vmem:[%s1699 + $0x51c] sm:$0xff]
        %v1748 = vld [vmem:[%s1699 + $0x54c] sm:$0xff]
        %v1749 = vld [vmem:[%s1699 + $0x554] sm:$0xff]
        %v1750 = vld [vmem:[%s1699 + $0x584] sm:$0xff]
        %v1751 = vld [vmem:[%s1699 + $0x58c] sm:$0xff]
        %v1752 = vld [vmem:[%s1699 + $0x5bc] sm:$0xff]
        %v1753 = vld [vmem:[%s1699 + $0x5c4] sm:$0xff]
        %v1754 = vld [vmem:[%s1699 + $0x5f4] sm:$0xff]
        %v1755 = vld [vmem:[%s1699 + $0x5fc] sm:$0xff]
        %v1756 = vld [vmem:[%s1] sm:$0x1]
        %v1757 = vperm.slane %v1756, 0
        %v1758 = vmul.f32 %v1700, %v1757
        %v1759 = vmul.f32 %v1701, %v1757
        %v1760 = vmul.f32 %v1702, %v1757
        %v1761 = vmul.f32 %v1703, %v1757
        %v1762 = vmul.f32 %v1704, %v1757
        %v1763 = vmul.f32 %v1705, %v1757
        %v1764 = vmul.f32 %v1706, %v1757
        %v1765 = vmul.f32 %v1707, %v1757
        %v1766 = vmul.f32 %v1708, %v1757
        %v1767 = vmul.f32 %v1709, %v1757
        %v1768 = vmul.f32 %v1710, %v1757
        %v1769 = vmul.f32 %v1711, %v1757
        %v1770 = vmul.f32 %v1712, %v1757
        %v1771 = vmul.f32 %v1713, %v1757
        %v1772 = vmul.f32 %v1714, %v1757
        %v1773 = vmul.f32 %v1715, %v1757
        %v1774 = vmul.f32 %v1716, %v1757
        %v1775 = vmul.f32 %v1717, %v1757
        %v1776 = vmul.f32 %v1718, %v1757
        %v1777 = vmul.f32 %v1719, %v1757
        %v1778 = vmul.f32 %v1720, %v1757
        %v1779 = vmul.f32 %v1721, %v1757
        %v1780 = vmul.f32 %v1722, %v1757
        %v1781 = vmul.f32 %v1723, %v1757
        %v1782 = vmul.f32 %v1724, %v1757
        %v1783 = vmul.f32 %v1725, %v1757
        %v1784 = vmul.f32 %v1726, %v1757
        %v1785 = vmul.f32 %v1727, %v1757
        %v1786 = vmul.f32 %v1728, %v1757
        %v1787 = vmul.f32 %v1729, %v1757
        %v1788 = vmul.f32 %v1730, %v1757
        %v1789 = vmul.f32 %v1731, %v1757
        %s1790 = scalar_lea.vmem %s1, 4
        %v1791 = vld [vmem:[%s1790] sm:$0x1]
        %v1792 = vperm.slane %v1791, 0
        %v1793 = vmul.f32 %v1712, %v1792
        %v1794 = vmul.f32 %v1713, %v1792
        %v1795 = vmul.f32 %v1714, %v1792
        %v1796 = vmul.f32 %v1715, %v1792
        %v1797 = vmul.f32 %v1716, %v1792
        %v1798 = vmul.f32 %v1717, %v1792
        %v1799 = vmul.f32 %v1718, %v1792
        %v1800 = vmul.f32 %v1719, %v1792
        %v1801 = vmul.f32 %v1720, %v1792
        %v1802 = vmul.f32 %v1721, %v1792
        %v1803 = vmul.f32 %v1722, %v1792
        %v1804 = vmul.f32 %v1723, %v1792
        %v1805 = vmul.f32 %v1724, %v1792
        %v1806 = vmul.f32 %v1725, %v1792
        %v1807 = vmul.f32 %v1726, %v1792
        %v1808 = vmul.f32 %v1727, %v1792
        %v1809 = vmul.f32 %v1728, %v1792
        %v1810 = vmul.f32 %v1729, %v1792
        %v1811 = vmul.f32 %v1730, %v1792
        %v1812 = vmul.f32 %v1731, %v1792
        %v1813 = vmul.f32 %v1732, %v1792
        %v1814 = vmul.f32 %v1733, %v1792
        %v1815 = vmul.f32 %v1734, %v1792
        %v1816 = vmul.f32 %v1735, %v1792
        %v1817 = vmul.f32 %v1736, %v1792
        %v1818 = vmul.f32 %v1737, %v1792
        %v1819 = vmul.f32 %v1738, %v1792
        %v1820 = vmul.f32 %v1739, %v1792
        %v1821 = vmul.f32 %v1740, %v1792
        %v1822 = vmul.f32 %v1741, %v1792
        %v1823 = vmul.f32 %v1742, %v1792
        %v1824 = vmul.f32 %v1743, %v1792
        %v1825 = vadd.f32 %v1758, %v1793
        %v1826 = vadd.f32 %v1759, %v1794
        %v1827 = vadd.f32 %v1760, %v1795
        %v1828 = vadd.f32 %v1761, %v1796
        %v1829 = vadd.f32 %v1762, %v1797
        %v1830 = vadd.f32 %v1763, %v1798
        %v1831 = vadd.f32 %v1764, %v1799
        %v1832 = vadd.f32 %v1765, %v1800
        %v1833 = vadd.f32 %v1766, %v1801
        %v1834 = vadd.f32 %v1767, %v1802
        %v1835 = vadd.f32 %v1768, %v1803
        %v1836 = vadd.f32 %v1769, %v1804
        %v1837 = vadd.f32 %v1770, %v1805
        %v1838 = vadd.f32 %v1771, %v1806
        %v1839 = vadd.f32 %v1772, %v1807
        %v1840 = vadd.f32 %v1773, %v1808
        %v1841 = vadd.f32 %v1774, %v1809
        %v1842 = vadd.f32 %v1775, %v1810
        %v1843 = vadd.f32 %v1776, %v1811
        %v1844 = vadd.f32 %v1777, %v1812
        %v1845 = vadd.f32 %v1778, %v1813
        %v1846 = vadd.f32 %v1779, %v1814
        %v1847 = vadd.f32 %v1780, %v1815
        %v1848 = vadd.f32 %v1781, %v1816
        %v1849 = vadd.f32 %v1782, %v1817
        %v1850 = vadd.f32 %v1783, %v1818
        %v1851 = vadd.f32 %v1784, %v1819
        %v1852 = vadd.f32 %v1785, %v1820
        %v1853 = vadd.f32 %v1786, %v1821
        %v1854 = vadd.f32 %v1787, %v1822
        %v1855 = vadd.f32 %v1788, %v1823
        %v1856 = vadd.f32 %v1789, %v1824
        %s1857 = scalar_lea.vmem %s1, 8
        %v1858 = vld [vmem:[%s1857] sm:$0x1]
        %v1859 = vperm.slane %v1858, 0
        %v1860 = vmul.f32 %v1724, %v1859
        %v1861 = vmul.f32 %v1725, %v1859
        %v1862 = vmul.f32 %v1726, %v1859
        %v1863 = vmul.f32 %v1727, %v1859
        %v1864 = vmul.f32 %v1728, %v1859
        %v1865 = vmul.f32 %v1729, %v1859
        %v1866 = vmul.f32 %v1730, %v1859
        %v1867 = vmul.f32 %v1731, %v1859
        %v1868 = vmul.f32 %v1732, %v1859
        %v1869 = vmul.f32 %v1733, %v1859
        %v1870 = vmul.f32 %v1734, %v1859
        %v1871 = vmul.f32 %v1735, %v1859
        %v1872 = vmul.f32 %v1736, %v1859
        %v1873 = vmul.f32 %v1737, %v1859
        %v1874 = vmul.f32 %v1738, %v1859
        %v1875 = vmul.f32 %v1739, %v1859
        %v1876 = vmul.f32 %v1740, %v1859
        %v1877 = vmul.f32 %v1741, %v1859
        %v1878 = vmul.f32 %v1742, %v1859
        %v1879 = vmul.f32 %v1743, %v1859
        %v1880 = vmul.f32 %v1744, %v1859
        %v1881 = vmul.f32 %v1745, %v1859
        %v1882 = vmul.f32 %v1746, %v1859
        %v1883 = vmul.f32 %v1747, %v1859
        %v1884 = vmul.f32 %v1748, %v1859
        %v1885 = vmul.f32 %v1749, %v1859
        %v1886 = vmul.f32 %v1750, %v1859
        %v1887 = vmul.f32 %v1751, %v1859
        %v1888 = vmul.f32 %v1752, %v1859
        %v1889 = vmul.f32 %v1753, %v1859
        %v1890 = vmul.f32 %v1754, %v1859
        %v1891 = vmul.f32 %v1755, %v1859
        %v1892 = vadd.f32 %v1825, %v1860
        %v1893 = vadd.f32 %v1826, %v1861
        %v1894 = vadd.f32 %v1827, %v1862
        %v1895 = vadd.f32 %v1828, %v1863
        %v1896 = vadd.f32 %v1829, %v1864
        %v1897 = vadd.f32 %v1830, %v1865
        %v1898 = vadd.f32 %v1831, %v1866
        %v1899 = vadd.f32 %v1832, %v1867
        %v1900 = vadd.f32 %v1833, %v1868
        %v1901 = vadd.f32 %v1834, %v1869
        %v1902 = vadd.f32 %v1835, %v1870
        %v1903 = vadd.f32 %v1836, %v1871
        %v1904 = vadd.f32 %v1837, %v1872
        %v1905 = vadd.f32 %v1838, %v1873
        %v1906 = vadd.f32 %v1839, %v1874
        %v1907 = vadd.f32 %v1840, %v1875
        %v1908 = vadd.f32 %v1841, %v1876
        %v1909 = vadd.f32 %v1842, %v1877
        %v1910 = vadd.f32 %v1843, %v1878
        %v1911 = vadd.f32 %v1844, %v1879
        %v1912 = vadd.f32 %v1845, %v1880
        %v1913 = vadd.f32 %v1846, %v1881
        %v1914 = vadd.f32 %v1847, %v1882
        %v1915 = vadd.f32 %v1848, %v1883
        %v1916 = vadd.f32 %v1849, %v1884
        %v1917 = vadd.f32 %v1850, %v1885
        %v1918 = vadd.f32 %v1851, %v1886
        %v1919 = vadd.f32 %v1852, %v1887
        %v1920 = vadd.f32 %v1853, %v1888
        %v1921 = vadd.f32 %v1854, %v1889
        %v1922 = vadd.f32 %v1855, %v1890
        %v1923 = vadd.f32 %v1856, %v1891
        %v1924 = vld [vmem:[%s1699 + $0x12] sm:$0xff]
        %v1925 = vld [vmem:[%s1699 + $0x1a] sm:$0xff]
        %v1926 = vld [vmem:[%s1699 + $0x4a] sm:$0xff]
        %v1927 = vld [vmem:[%s1699 + $0x52] sm:$0xff]
        %v1928 = vld [vmem:[%s1699 + $0x82] sm:$0xff]
        %v1929 = vld [vmem:[%s1699 + $0x8a] sm:$0xff]
        %v1930 = vld [vmem:[%s1699 + $0xba] sm:$0xff]
        %v1931 = vld [vmem:[%s1699 + $0xc2] sm:$0xff]
        %v1932 = vld [vmem:[%s1699 + $0xf2] sm:$0xff]
        %v1933 = vld [vmem:[%s1699 + $0xfa] sm:$0xff]
        %v1934 = vld [vmem:[%s1699 + $0x12a] sm:$0xff]
        %v1935 = vld [vmem:[%s1699 + $0x132] sm:$0xff]
        %v1936 = vld [vmem:[%s1699 + $0x162] sm:$0xff]
        %v1937 = vld [vmem:[%s1699 + $0x16a] sm:$0xff]
        %v1938 = vld [vmem:[%s1699 + $0x19a] sm:$0xff]
        %v1939 = vld [vmem:[%s1699 + $0x1a2] sm:$0xff]
        %v1940 = vld [vmem:[%s1699 + $0x1d2] sm:$0xff]
        %v1941 = vld [vmem:[%s1699 + $0x1da] sm:$0xff]
        %v1942 = vld [vmem:[%s1699 + $0x20a] sm:$0xff]
        %v1943 = vld [vmem:[%s1699 + $0x212] sm:$0xff]
        %v1944 = vld [vmem:[%s1699 + $0x242] sm:$0xff]
        %v1945 = vld [vmem:[%s1699 + $0x24a] sm:$0xff]
        %v1946 = vld [vmem:[%s1699 + $0x27a] sm:$0xff]
        %v1947 = vld [vmem:[%s1699 + $0x282] sm:$0xff]
        %v1948 = vld [vmem:[%s1699 + $0x2b2] sm:$0xff]
        %v1949 = vld [vmem:[%s1699 + $0x2ba] sm:$0xff]
        %v1950 = vld [vmem:[%s1699 + $0x2ea] sm:$0xff]
        %v1951 = vld [vmem:[%s1699 + $0x2f2] sm:$0xff]
        %v1952 = vld [vmem:[%s1699 + $0x322] sm:$0xff]
        %v1953 = vld [vmem:[%s1699 + $0x32a] sm:$0xff]
        %v1954 = vld [vmem:[%s1699 + $0x35a] sm:$0xff]
        %v1955 = vld [vmem:[%s1699 + $0x362] sm:$0xff]
        %v1956 = vld [vmem:[%s1699 + $0x392] sm:$0xff]
        %v1957 = vld [vmem:[%s1699 + $0x39a] sm:$0xff]
        %v1958 = vld [vmem:[%s1699 + $0x3ca] sm:$0xff]
        %v1959 = vld [vmem:[%s1699 + $0x3d2] sm:$0xff]
        %v1960 = vld [vmem:[%s1699 + $0x402] sm:$0xff]
        %v1961 = vld [vmem:[%s1699 + $0x40a] sm:$0xff]
        %v1962 = vld [vmem:[%s1699 + $0x43a] sm:$0xff]
        %v1963 = vld [vmem:[%s1699 + $0x442] sm:$0xff]
        %v1964 = vld [vmem:[%s1699 + $0x472] sm:$0xff]
        %v1965 = vld [vmem:[%s1699 + $0x47a] sm:$0xff]
        %v1966 = vld [vmem:[%s1699 + $0x4aa] sm:$0xff]
        %v1967 = vld [vmem:[%s1699 + $0x4b2] sm:$0xff]
        %v1968 = vld [vmem:[%s1699 + $0x4e2] sm:$0xff]
        %v1969 = vld [vmem:[%s1699 + $0x4ea] sm:$0xff]
        %v1970 = vld [vmem:[%s1699 + $0x51a] sm:$0xff]
        %v1971 = vld [vmem:[%s1699 + $0x522] sm:$0xff]
        %v1972 = vld [vmem:[%s1699 + $0x552] sm:$0xff]
        %v1973 = vld [vmem:[%s1699 + $0x55a] sm:$0xff]
        %v1974 = vld [vmem:[%s1699 + $0x58a] sm:$0xff]
        %v1975 = vld [vmem:[%s1699 + $0x592] sm:$0xff]
        %v1976 = vld [vmem:[%s1699 + $0x5c2] sm:$0xff]
        %v1977 = vld [vmem:[%s1699 + $0x5ca] sm:$0xff]
        %v1978 = vld [vmem:[%s1699 + $0x5fa] sm:$0xff]
        %v1979 = vld [vmem:[%s1699 + $0x602] sm:$0xff]
        %v1980 = vld [vmem:[%s1 + $0x1] sm:$0x1]
        %v1981 = vperm.slane %v1980, 0
        %v1982 = vmul.f32 %v1924, %v1981
        %v1983 = vmul.f32 %v1925, %v1981
        %v1984 = vmul.f32 %v1926, %v1981
        %v1985 = vmul.f32 %v1927, %v1981
        %v1986 = vmul.f32 %v1928, %v1981
        %v1987 = vmul.f32 %v1929, %v1981
        %v1988 = vmul.f32 %v1930, %v1981
        %v1989 = vmul.f32 %v1931, %v1981
        %v1990 = vmul.f32 %v1932, %v1981
        %v1991 = vmul.f32 %v1933, %v1981
        %v1992 = vmul.f32 %v1934, %v1981
        %v1993 = vmul.f32 %v1935, %v1981
        %v1994 = vmul.f32 %v1936, %v1981
        %v1995 = vmul.f32 %v1937, %v1981
        %v1996 = vmul.f32 %v1938, %v1981
        %v1997 = vmul.f32 %v1939, %v1981
        %v1998 = vmul.f32 %v1940, %v1981
        %v1999 = vmul.f32 %v1941, %v1981
        %v2000 = vmul.f32 %v1942, %v1981
        %v2001 = vmul.f32 %v1943, %v1981
        %v2002 = vmul.f32 %v1944, %v1981
        %v2003 = vmul.f32 %v1945, %v1981
        %v2004 = vmul.f32 %v1946, %v1981
        %v2005 = vmul.f32 %v1947, %v1981
        %v2006 = vmul.f32 %v1948, %v1981
        %v2007 = vmul.f32 %v1949, %v1981
        %v2008 = vmul.f32 %v1950, %v1981
        %v2009 = vmul.f32 %v1951, %v1981
        %v2010 = vmul.f32 %v1952, %v1981
        %v2011 = vmul.f32 %v1953, %v1981
        %v2012 = vmul.f32 %v1954, %v1981
        %v2013 = vmul.f32 %v1955, %v1981
        %v2014 = vadd.f32 %v1892, %v1982
        %v2015 = vadd.f32 %v1893, %v1983
        %v2016 = vadd.f32 %v1894, %v1984
        %v2017 = vadd.f32 %v1895, %v1985
        %v2018 = vadd.f32 %v1896, %v1986
        %v2019 = vadd.f32 %v1897, %v1987
        %v2020 = vadd.f32 %v1898, %v1988
        %v2021 = vadd.f32 %v1899, %v1989
        %v2022 = vadd.f32 %v1900, %v1990
        %v2023 = vadd.f32 %v1901, %v1991
        %v2024 = vadd.f32 %v1902, %v1992
        %v2025 = vadd.f32 %v1903, %v1993
        %v2026 = vadd.f32 %v1904, %v1994
        %v2027 = vadd.f32 %v1905, %v1995
        %v2028 = vadd.f32 %v1906, %v1996
        %v2029 = vadd.f32 %v1907, %v1997
        %v2030 = vadd.f32 %v1908, %v1998
        %v2031 = vadd.f32 %v1909, %v1999
        %v2032 = vadd.f32 %v1910, %v2000
        %v2033 = vadd.f32 %v1911, %v2001
        %v2034 = vadd.f32 %v1912, %v2002
        %v2035 = vadd.f32 %v1913, %v2003
        %v2036 = vadd.f32 %v1914, %v2004
        %v2037 = vadd.f32 %v1915, %v2005
        %v2038 = vadd.f32 %v1916, %v2006
        %v2039 = vadd.f32 %v1917, %v2007
        %v2040 = vadd.f32 %v1918, %v2008
        %v2041 = vadd.f32 %v1919, %v2009
        %v2042 = vadd.f32 %v1920, %v2010
        %v2043 = vadd.f32 %v1921, %v2011
        %v2044 = vadd.f32 %v1922, %v2012
        %v2045 = vadd.f32 %v1923, %v2013
        %v2046 = vld [vmem:[%s1790 + $0x1] sm:$0x1]
        %v2047 = vperm.slane %v2046, 0
        %v2048 = vmul.f32 %v1936, %v2047
        %v2049 = vmul.f32 %v1937, %v2047
        %v2050 = vmul.f32 %v1938, %v2047
        %v2051 = vmul.f32 %v1939, %v2047
        %v2052 = vmul.f32 %v1940, %v2047
        %v2053 = vmul.f32 %v1941, %v2047
        %v2054 = vmul.f32 %v1942, %v2047
        %v2055 = vmul.f32 %v1943, %v2047
        %v2056 = vmul.f32 %v1944, %v2047
        %v2057 = vmul.f32 %v1945, %v2047
        %v2058 = vmul.f32 %v1946, %v2047
        %v2059 = vmul.f32 %v1947, %v2047
        %v2060 = vmul.f32 %v1948, %v2047
        %v2061 = vmul.f32 %v1949, %v2047
        %v2062 = vmul.f32 %v1950, %v2047
        %v2063 = vmul.f32 %v1951, %v2047
        %v2064 = vmul.f32 %v1952, %v2047
        %v2065 = vmul.f32 %v1953, %v2047
        %v2066 = vmul.f32 %v1954, %v2047
        %v2067 = vmul.f32 %v1955, %v2047
        %v2068 = vmul.f32 %v1956, %v2047
        %v2069 = vmul.f32 %v1957, %v2047
        %v2070 = vmul.f32 %v1958, %v2047
        %v2071 = vmul.f32 %v1959, %v2047
        %v2072 = vmul.f32 %v1960, %v2047
        %v2073 = vmul.f32 %v1961, %v2047
        %v2074 = vmul.f32 %v1962, %v2047
        %v2075 = vmul.f32 %v1963, %v2047
        %v2076 = vmul.f32 %v1964, %v2047
        %v2077 = vmul.f32 %v1965, %v2047
        %v2078 = vmul.f32 %v1966, %v2047
        %v2079 = vmul.f32 %v1967, %v2047
        %v2080 = vadd.f32 %v2014, %v2048
        %v2081 = vadd.f32 %v2015, %v2049
        %v2082 = vadd.f32 %v2016, %v2050
        %v2083 = vadd.f32 %v2017, %v2051
        %v2084 = vadd.f32 %v2018, %v2052
        %v2085 = vadd.f32 %v2019, %v2053
        %v2086 = vadd.f32 %v2020, %v2054
        %v2087 = vadd.f32 %v2021, %v2055
        %v2088 = vadd.f32 %v2022, %v2056
        %v2089 = vadd.f32 %v2023, %v2057
        %v2090 = vadd.f32 %v2024, %v2058
        %v2091 = vadd.f32 %v2025, %v2059
        %v2092 = vadd.f32 %v2026, %v2060
        %v2093 = vadd.f32 %v2027, %v2061
        %v2094 = vadd.f32 %v2028, %v2062
        %v2095 = vadd.f32 %v2029, %v2063
        %v2096 = vadd.f32 %v2030, %v2064
        %v2097 = vadd.f32 %v2031, %v2065
        %v2098 = vadd.f32 %v2032, %v2066
        %v2099 = vadd.f32 %v2033, %v2067
        %v2100 = vadd.f32 %v2034, %v2068
        %v2101 = vadd.f32 %v2035, %v2069
        %v2102 = vadd.f32 %v2036, %v2070
        %v2103 = vadd.f32 %v2037, %v2071
        %v2104 = vadd.f32 %v2038, %v2072
        %v2105 = vadd.f32 %v2039, %v2073
        %v2106 = vadd.f32 %v2040, %v2074
        %v2107 = vadd.f32 %v2041, %v2075
        %v2108 = vadd.f32 %v2042, %v2076
        %v2109 = vadd.f32 %v2043, %v2077
        %v2110 = vadd.f32 %v2044, %v2078
        %v2111 = vadd.f32 %v2045, %v2079
        %v2112 = vld [vmem:[%s1857 + $0x1] sm:$0x1]
        %v2113 = vperm.slane %v2112, 0
        %v2114 = vmul.f32 %v1948, %v2113
        %v2115 = vmul.f32 %v1949, %v2113
        %v2116 = vmul.f32 %v1950, %v2113
        %v2117 = vmul.f32 %v1951, %v2113
        %v2118 = vmul.f32 %v1952, %v2113
        %v2119 = vmul.f32 %v1953, %v2113
        %v2120 = vmul.f32 %v1954, %v2113
        %v2121 = vmul.f32 %v1955, %v2113
        %v2122 = vmul.f32 %v1956, %v2113
        %v2123 = vmul.f32 %v1957, %v2113
        %v2124 = vmul.f32 %v1958, %v2113
        %v2125 = vmul.f32 %v1959, %v2113
        %v2126 = vmul.f32 %v1960, %v2113
        %v2127 = vmul.f32 %v1961, %v2113
        %v2128 = vmul.f32 %v1962, %v2113
        %v2129 = vmul.f32 %v1963, %v2113
        %v2130 = vmul.f32 %v1964, %v2113
        %v2131 = vmul.f32 %v1965, %v2113
        %v2132 = vmul.f32 %v1966, %v2113
        %v2133 = vmul.f32 %v1967, %v2113
        %v2134 = vmul.f32 %v1968, %v2113
        %v2135 = vmul.f32 %v1969, %v2113
        %v2136 = vmul.f32 %v1970, %v2113
        %v2137 = vmul.f32 %v1971, %v2113
        %v2138 = vmul.f32 %v1972, %v2113
        %v2139 = vmul.f32 %v1973, %v2113
        %v2140 = vmul.f32 %v1974, %v2113
        %v2141 = vmul.f32 %v1975, %v2113
        %v2142 = vmul.f32 %v1976, %v2113
        %v2143 = vmul.f32 %v1977, %v2113
        %v2144 = vmul.f32 %v1978, %v2113
        %v2145 = vmul.f32 %v1979, %v2113
        %v2146 = vadd.f32 %v2080, %v2114
        %v2147 = vadd.f32 %v2081, %v2115
        %v2148 = vadd.f32 %v2082, %v2116
        %v2149 = vadd.f32 %v2083, %v2117
        %v2150 = vadd.f32 %v2084, %v2118
        %v2151 = vadd.f32 %v2085, %v2119
        %v2152 = vadd.f32 %v2086, %v2120
        %v2153 = vadd.f32 %v2087, %v2121
        %v2154 = vadd.f32 %v2088, %v2122
        %v2155 = vadd.f32 %v2089, %v2123
        %v2156 = vadd.f32 %v2090, %v2124
        %v2157 = vadd.f32 %v2091, %v2125
        %v2158 = vadd.f32 %v2092, %v2126
        %v2159 = vadd.f32 %v2093, %v2127
        %v2160 = vadd.f32 %v2094, %v2128
        %v2161 = vadd.f32 %v2095, %v2129
        %v2162 = vadd.f32 %v2096, %v2130
        %v2163 = vadd.f32 %v2097, %v2131
        %v2164 = vadd.f32 %v2098, %v2132
        %v2165 = vadd.f32 %v2099, %v2133
        %v2166 = vadd.f32 %v2100, %v2134
        %v2167 = vadd.f32 %v2101, %v2135
        %v2168 = vadd.f32 %v2102, %v2136
        %v2169 = vadd.f32 %v2103, %v2137
        %v2170 = vadd.f32 %v2104, %v2138
        %v2171 = vadd.f32 %v2105, %v2139
        %v2172 = vadd.f32 %v2106, %v2140
        %v2173 = vadd.f32 %v2107, %v2141
        %v2174 = vadd.f32 %v2108, %v2142
        %v2175 = vadd.f32 %v2109, %v2143
        %v2176 = vadd.f32 %v2110, %v2144
        %v2177 = vadd.f32 %v2111, %v2145
        %v2178 = vld [vmem:[%s1699 + $0x18] sm:$0xff]
        %v2179 = vld [vmem:[%s1699 + $0x20] sm:$0xff]
        %v2180 = vld [vmem:[%s1699 + $0x50] sm:$0xff]
        %v2181 = vld [vmem:[%s1699 + $0x58] sm:$0xff]
        %v2182 = vld [vmem:[%s1699 + $0x88] sm:$0xff]
        %v2183 = vld [vmem:[%s1699 + $0x90] sm:$0xff]
        %v2184 = vld [vmem:[%s1699 + $0xc0] sm:$0xff]
        %v2185 = vld [vmem:[%s1699 + $0xc8] sm:$0xff]
        %v2186 = vld [vmem:[%s1699 + $0xf8] sm:$0xff]
        %v2187 = vld [vmem:[%s1699 + $0x100] sm:$0xff]
        %v2188 = vld [vmem:[%s1699 + $0x130] sm:$0xff]
        %v2189 = vld [vmem:[%s1699 + $0x138] sm:$0xff]
        %v2190 = vld [vmem:[%s1699 + $0x168] sm:$0xff]
        %v2191 = vld [vmem:[%s1699 + $0x170] sm:$0xff]
        %v2192 = vld [vmem:[%s1699 + $0x1a0] sm:$0xff]
        %v2193 = vld [vmem:[%s1699 + $0x1a8] sm:$0xff]
        %v2194 = vld [vmem:[%s1699 + $0x1d8] sm:$0xff]
        %v2195 = vld [vmem:[%s1699 + $0x1e0] sm:$0xff]
        %v2196 = vld [vmem:[%s1699 + $0x210] sm:$0xff]
        %v2197 = vld [vmem:[%s1699 + $0x218] sm:$0xff]
        %v2198 = vld [vmem:[%s1699 + $0x248] sm:$0xff]
        %v2199 = vld [vmem:[%s1699 + $0x250] sm:$0xff]
        %v2200 = vld [vmem:[%s1699 + $0x280] sm:$0xff]
        %v2201 = vld [vmem:[%s1699 + $0x288] sm:$0xff]
        %v2202 = vld [vmem:[%s1699 + $0x2b8] sm:$0xff]
        %v2203 = vld [vmem:[%s1699 + $0x2c0] sm:$0xff]
        %v2204 = vld [vmem:[%s1699 + $0x2f0] sm:$0xff]
        %v2205 = vld [vmem:[%s1699 + $0x2f8] sm:$0xff]
        %v2206 = vld [vmem:[%s1699 + $0x328] sm:$0xff]
        %v2207 = vld [vmem:[%s1699 + $0x330] sm:$0xff]
        %v2208 = vld [vmem:[%s1699 + $0x360] sm:$0xff]
        %v2209 = vld [vmem:[%s1699 + $0x368] sm:$0xff]
        %v2210 = vld [vmem:[%s1699 + $0x398] sm:$0xff]
        %v2211 = vld [vmem:[%s1699 + $0x3a0] sm:$0xff]
        %v2212 = vld [vmem:[%s1699 + $0x3d0] sm:$0xff]
        %v2213 = vld [vmem:[%s1699 + $0x3d8] sm:$0xff]
        %v2214 = vld [vmem:[%s1699 + $0x408] sm:$0xff]
        %v2215 = vld [vmem:[%s1699 + $0x410] sm:$0xff]
        %v2216 = vld [vmem:[%s1699 + $0x440] sm:$0xff]
        %v2217 = vld [vmem:[%s1699 + $0x448] sm:$0xff]
        %v2218 = vld [vmem:[%s1699 + $0x478] sm:$0xff]
        %v2219 = vld [vmem:[%s1699 + $0x480] sm:$0xff]
        %v2220 = vld [vmem:[%s1699 + $0x4b0] sm:$0xff]
        %v2221 = vld [vmem:[%s1699 + $0x4b8] sm:$0xff]
        %v2222 = vld [vmem:[%s1699 + $0x4e8] sm:$0xff]
        %v2223 = vld [vmem:[%s1699 + $0x4f0] sm:$0xff]
        %v2224 = vld [vmem:[%s1699 + $0x520] sm:$0xff]
        %v2225 = vld [vmem:[%s1699 + $0x528] sm:$0xff]
        %v2226 = vld [vmem:[%s1699 + $0x558] sm:$0xff]
        %v2227 = vld [vmem:[%s1699 + $0x560] sm:$0xff]
        %v2228 = vld [vmem:[%s1699 + $0x590] sm:$0xff]
        %v2229 = vld [vmem:[%s1699 + $0x598] sm:$0xff]
        %v2230 = vld [vmem:[%s1699 + $0x5c8] sm:$0xff]
        %v2231 = vld [vmem:[%s1699 + $0x5d0] sm:$0xff]
        %v2232 = vld [vmem:[%s1699 + $0x600] sm:$0xff]
        %v2233 = vld [vmem:[%s1699 + $0x608] sm:$0xff]
        %v2234 = vld [vmem:[%s1 + $0x2] sm:$0x1]
        %v2235 = vperm.slane %v2234, 0
        %v2236 = vmul.f32 %v2178, %v2235
        %v2237 = vmul.f32 %v2179, %v2235
        %v2238 = vmul.f32 %v2180, %v2235
        %v2239 = vmul.f32 %v2181, %v2235
        %v2240 = vmul.f32 %v2182, %v2235
        %v2241 = vmul.f32 %v2183, %v2235
        %v2242 = vmul.f32 %v2184, %v2235
        %v2243 = vmul.f32 %v2185, %v2235
        %v2244 = vmul.f32 %v2186, %v2235
        %v2245 = vmul.f32 %v2187, %v2235
        %v2246 = vmul.f32 %v2188, %v2235
        %v2247 = vmul.f32 %v2189, %v2235
        %v2248 = vmul.f32 %v2190, %v2235
        %v2249 = vmul.f32 %v2191, %v2235
        %v2250 = vmul.f32 %v2192, %v2235
        %v2251 = vmul.f32 %v2193, %v2235
        %v2252 = vmul.f32 %v2194, %v2235
        %v2253 = vmul.f32 %v2195, %v2235
        %v2254 = vmul.f32 %v2196, %v2235
        %v2255 = vmul.f32 %v2197, %v2235
        %v2256 = vmul.f32 %v2198, %v2235
        %v2257 = vmul.f32 %v2199, %v2235
        %v2258 = vmul.f32 %v2200, %v2235
        %v2259 = vmul.f32 %v2201, %v2235
        %v2260 = vmul.f32 %v2202, %v2235
        %v2261 = vmul.f32 %v2203, %v2235
        %v2262 = vmul.f32 %v2204, %v2235
        %v2263 = vmul.f32 %v2205, %v2235
        %v2264 = vmul.f32 %v2206, %v2235
        %v2265 = vmul.f32 %v2207, %v2235
        %v2266 = vmul.f32 %v2208, %v2235
        %v2267 = vmul.f32 %v2209, %v2235
        %v2268 = vadd.f32 %v2146, %v2236
        %v2269 = vadd.f32 %v2147, %v2237
        %v2270 = vadd.f32 %v2148, %v2238
        %v2271 = vadd.f32 %v2149, %v2239
        %v2272 = vadd.f32 %v2150, %v2240
        %v2273 = vadd.f32 %v2151, %v2241
        %v2274 = vadd.f32 %v2152, %v2242
        %v2275 = vadd.f32 %v2153, %v2243
        %v2276 = vadd.f32 %v2154, %v2244
        %v2277 = vadd.f32 %v2155, %v2245
        %v2278 = vadd.f32 %v2156, %v2246
        %v2279 = vadd.f32 %v2157, %v2247
        %v2280 = vadd.f32 %v2158, %v2248
        %v2281 = vadd.f32 %v2159, %v2249
        %v2282 = vadd.f32 %v2160, %v2250
        %v2283 = vadd.f32 %v2161, %v2251
        %v2284 = vadd.f32 %v2162, %v2252
        %v2285 = vadd.f32 %v2163, %v2253
        %v2286 = vadd.f32 %v2164, %v2254
        %v2287 = vadd.f32 %v2165, %v2255
        %v2288 = vadd.f32 %v2166, %v2256
        %v2289 = vadd.f32 %v2167, %v2257
        %v2290 = vadd.f32 %v2168, %v2258
        %v2291 = vadd.f32 %v2169, %v2259
        %v2292 = vadd.f32 %v2170, %v2260
        %v2293 = vadd.f32 %v2171, %v2261
        %v2294 = vadd.f32 %v2172, %v2262
        %v2295 = vadd.f32 %v2173, %v2263
        %v2296 = vadd.f32 %v2174, %v2264
        %v2297 = vadd.f32 %v2175, %v2265
        %v2298 = vadd.f32 %v2176, %v2266
        %v2299 = vadd.f32 %v2177, %v2267
        %v2300 = vld [vmem:[%s1790 + $0x2] sm:$0x1]
        %v2301 = vperm.slane %v2300, 0
        %v2302 = vmul.f32 %v2190, %v2301
        %v2303 = vmul.f32 %v2191, %v2301
        %v2304 = vmul.f32 %v2192, %v2301
        %v2305 = vmul.f32 %v2193, %v2301
        %v2306 = vmul.f32 %v2194, %v2301
        %v2307 = vmul.f32 %v2195, %v2301
        %v2308 = vmul.f32 %v2196, %v2301
        %v2309 = vmul.f32 %v2197, %v2301
        %v2310 = vmul.f32 %v2198, %v2301
        %v2311 = vmul.f32 %v2199, %v2301
        %v2312 = vmul.f32 %v2200, %v2301
        %v2313 = vmul.f32 %v2201, %v2301
        %v2314 = vmul.f32 %v2202, %v2301
        %v2315 = vmul.f32 %v2203, %v2301
        %v2316 = vmul.f32 %v2204, %v2301
        %v2317 = vmul.f32 %v2205, %v2301
        %v2318 = vmul.f32 %v2206, %v2301
        %v2319 = vmul.f32 %v2207, %v2301
        %v2320 = vmul.f32 %v2208, %v2301
        %v2321 = vmul.f32 %v2209, %v2301
        %v2322 = vmul.f32 %v2210, %v2301
        %v2323 = vmul.f32 %v2211, %v2301
        %v2324 = vmul.f32 %v2212, %v2301
        %v2325 = vmul.f32 %v2213, %v2301
        %v2326 = vmul.f32 %v2214, %v2301
        %v2327 = vmul.f32 %v2215, %v2301
        %v2328 = vmul.f32 %v2216, %v2301
        %v2329 = vmul.f32 %v2217, %v2301
        %v2330 = vmul.f32 %v2218, %v2301
        %v2331 = vmul.f32 %v2219, %v2301
        %v2332 = vmul.f32 %v2220, %v2301
        %v2333 = vmul.f32 %v2221, %v2301
        %v2334 = vadd.f32 %v2268, %v2302
        %v2335 = vadd.f32 %v2269, %v2303
        %v2336 = vadd.f32 %v2270, %v2304
        %v2337 = vadd.f32 %v2271, %v2305
        %v2338 = vadd.f32 %v2272, %v2306
        %v2339 = vadd.f32 %v2273, %v2307
        %v2340 = vadd.f32 %v2274, %v2308
        %v2341 = vadd.f32 %v2275, %v2309
        %v2342 = vadd.f32 %v2276, %v2310
        %v2343 = vadd.f32 %v2277, %v2311
        %v2344 = vadd.f32 %v2278, %v2312
        %v2345 = vadd.f32 %v2279, %v2313
        %v2346 = vadd.f32 %v2280, %v2314
        %v2347 = vadd.f32 %v2281, %v2315
        %v2348 = vadd.f32 %v2282, %v2316
        %v2349 = vadd.f32 %v2283, %v2317
        %v2350 = vadd.f32 %v2284, %v2318
        %v2351 = vadd.f32 %v2285, %v2319
        %v2352 = vadd.f32 %v2286, %v2320
        %v2353 = vadd.f32 %v2287, %v2321
        %v2354 = vadd.f32 %v2288, %v2322
        %v2355 = vadd.f32 %v2289, %v2323
        %v2356 = vadd.f32 %v2290, %v2324
        %v2357 = vadd.f32 %v2291, %v2325
        %v2358 = vadd.f32 %v2292, %v2326
        %v2359 = vadd.f32 %v2293, %v2327
        %v2360 = vadd.f32 %v2294, %v2328
        %v2361 = vadd.f32 %v2295, %v2329
        %v2362 = vadd.f32 %v2296, %v2330
        %v2363 = vadd.f32 %v2297, %v2331
        %v2364 = vadd.f32 %v2298, %v2332
        %v2365 = vadd.f32 %v2299, %v2333
        %v2366 = vld [vmem:[%s1857 + $0x2] sm:$0x1]
        %v2367 = vperm.slane %v2366, 0
        %v2368 = vmul.f32 %v2202, %v2367
        %v2369 = vmul.f32 %v2203, %v2367
        %v2370 = vmul.f32 %v2204, %v2367
        %v2371 = vmul.f32 %v2205, %v2367
        %v2372 = vmul.f32 %v2206, %v2367
        %v2373 = vmul.f32 %v2207, %v2367
        %v2374 = vmul.f32 %v2208, %v2367
        %v2375 = vmul.f32 %v2209, %v2367
        %v2376 = vmul.f32 %v2210, %v2367
        %v2377 = vmul.f32 %v2211, %v2367
        %v2378 = vmul.f32 %v2212, %v2367
        %v2379 = vmul.f32 %v2213, %v2367
        %v2380 = vmul.f32 %v2214, %v2367
        %v2381 = vmul.f32 %v2215, %v2367
        %v2382 = vmul.f32 %v2216, %v2367
        %v2383 = vmul.f32 %v2217, %v2367
        %v2384 = vmul.f32 %v2218, %v2367
        %v2385 = vmul.f32 %v2219, %v2367
        %v2386 = vmul.f32 %v2220, %v2367
        %v2387 = vmul.f32 %v2221, %v2367
        %v2388 = vmul.f32 %v2222, %v2367
        %v2389 = vmul.f32 %v2223, %v2367
        %v2390 = vmul.f32 %v2224, %v2367
        %v2391 = vmul.f32 %v2225, %v2367
        %v2392 = vmul.f32 %v2226, %v2367
        %v2393 = vmul.f32 %v2227, %v2367
        %v2394 = vmul.f32 %v2228, %v2367
        %v2395 = vmul.f32 %v2229, %v2367
        %v2396 = vmul.f32 %v2230, %v2367
        %v2397 = vmul.f32 %v2231, %v2367
        %v2398 = vmul.f32 %v2232, %v2367
        %v2399 = vmul.f32 %v2233, %v2367
        %v2400 = vadd.f32 %v2334, %v2368
        %v2401 = vadd.f32 %v2335, %v2369
        %v2402 = vadd.f32 %v2336, %v2370
        %v2403 = vadd.f32 %v2337, %v2371
        %v2404 = vadd.f32 %v2338, %v2372
        %v2405 = vadd.f32 %v2339, %v2373
        %v2406 = vadd.f32 %v2340, %v2374
        %v2407 = vadd.f32 %v2341, %v2375
        %v2408 = vadd.f32 %v2342, %v2376
        %v2409 = vadd.f32 %v2343, %v2377
        %v2410 = vadd.f32 %v2344, %v2378
        %v2411 = vadd.f32 %v2345, %v2379
        %v2412 = vadd.f32 %v2346, %v2380
        %v2413 = vadd.f32 %v2347, %v2381
        %v2414 = vadd.f32 %v2348, %v2382
        %v2415 = vadd.f32 %v2349, %v2383
        %v2416 = vadd.f32 %v2350, %v2384
        %v2417 = vadd.f32 %v2351, %v2385
        %v2418 = vadd.f32 %v2352, %v2386
        %v2419 = vadd.f32 %v2353, %v2387
        %v2420 = vadd.f32 %v2354, %v2388
        %v2421 = vadd.f32 %v2355, %v2389
        %v2422 = vadd.f32 %v2356, %v2390
        %v2423 = vadd.f32 %v2357, %v2391
        %v2424 = vadd.f32 %v2358, %v2392
        %v2425 = vadd.f32 %v2359, %v2393
        %v2426 = vadd.f32 %v2360, %v2394
        %v2427 = vadd.f32 %v2361, %v2395
        %v2428 = vadd.f32 %v2362, %v2396
        %v2429 = vadd.f32 %v2363, %v2397
        %v2430 = vadd.f32 %v2364, %v2398
        %v2431 = vadd.f32 %v2365, %v2399
        %v2432 = vld [vmem:[%s2] sm:$0x1]
        %v2433 = vperm.slane %v2432, 0
        %v2434 = vadd.f32 %v2400, %v2433
        %v2435 = vadd.f32 %v2401, %v2433
        %v2436 = vadd.f32 %v2402, %v2433
        %v2437 = vadd.f32 %v2403, %v2433
        %v2438 = vadd.f32 %v2404, %v2433
        %v2439 = vadd.f32 %v2405, %v2433
        %v2440 = vadd.f32 %v2406, %v2433
        %v2441 = vadd.f32 %v2407, %v2433
        %v2442 = vadd.f32 %v2408, %v2433
        %v2443 = vadd.f32 %v2409, %v2433
        %v2444 = vadd.f32 %v2410, %v2433
        %v2445 = vadd.f32 %v2411, %v2433
        %v2446 = vadd.f32 %v2412, %v2433
        %v2447 = vadd.f32 %v2413, %v2433
        %v2448 = vadd.f32 %v2414, %v2433
        %v2449 = vadd.f32 %v2415, %v2433
        %v2450 = vadd.f32 %v2416, %v2433
        %v2451 = vadd.f32 %v2417, %v2433
        %v2452 = vadd.f32 %v2418, %v2433
        %v2453 = vadd.f32 %v2419, %v2433
        %v2454 = vadd.f32 %v2420, %v2433
        %v2455 = vadd.f32 %v2421, %v2433
        %v2456 = vadd.f32 %v2422, %v2433
        %v2457 = vadd.f32 %v2423, %v2433
        %v2458 = vadd.f32 %v2424, %v2433
        %v2459 = vadd.f32 %v2425, %v2433
        %v2460 = vadd.f32 %v2426, %v2433
        %v2461 = vadd.f32 %v2427, %v2433
        %v2462 = vadd.f32 %v2428, %v2433
        %v2463 = vadd.f32 %v2429, %v2433
        %v2464 = vadd.f32 %v2430, %v2433
        %v2465 = vadd.f32 %v2431, %v2433
        %v2466 = vmul.f32 %v2434, 0.5
        %v2467 = vmul.f32 %v2435, 0.5
        %v2468 = vmul.f32 %v2436, 0.5
        %v2469 = vmul.f32 %v2437, 0.5
        %v2470 = vmul.f32 %v2438, 0.5
        %v2471 = vmul.f32 %v2439, 0.5
        %v2472 = vmul.f32 %v2440, 0.5
        %v2473 = vmul.f32 %v2441, 0.5
        %v2474 = vmul.f32 %v2442, 0.5
        %v2475 = vmul.f32 %v2443, 0.5
        %v2476 = vmul.f32 %v2444, 0.5
        %v2477 = vmul.f32 %v2445, 0.5
        %v2478 = vmul.f32 %v2446, 0.5
        %v2479 = vmul.f32 %v2447, 0.5
        %v2480 = vmul.f32 %v2448, 0.5
        %v2481 = vmul.f32 %v2449, 0.5
        %v2482 = vmul.f32 %v2450, 0.5
        %v2483 = vmul.f32 %v2451, 0.5
        %v2484 = vmul.f32 %v2452, 0.5
        %v2485 = vmul.f32 %v2453, 0.5
        %v2486 = vmul.f32 %v2454, 0.5
        %v2487 = vmul.f32 %v2455, 0.5
        %v2488 = vmul.f32 %v2456, 0.5
        %v2489 = vmul.f32 %v2457, 0.5
        %v2490 = vmul.f32 %v2458, 0.5
        %v2491 = vmul.f32 %v2459, 0.5
        %v2492 = vmul.f32 %v2460, 0.5
        %v2493 = vmul.f32 %v2461, 0.5
        %v2494 = vmul.f32 %v2462, 0.5
        %v2495 = vmul.f32 %v2463, 0.5
        %v2496 = vmul.f32 %v2464, 0.5
        %v2497 = vmul.f32 %v2465, 0.5
        %v2498 = vmul.f32 %v2434, %v2434
        %v2499 = vmul.f32 %v2435, %v2435
        %v2500 = vmul.f32 %v2436, %v2436
        %v2501 = vmul.f32 %v2437, %v2437
        %v2502 = vmul.f32 %v2438, %v2438
        %v2503 = vmul.f32 %v2439, %v2439
        %v2504 = vmul.f32 %v2440, %v2440
        %v2505 = vmul.f32 %v2441, %v2441
        %v2506 = vmul.f32 %v2442, %v2442
        %v2507 = vmul.f32 %v2443, %v2443
        %v2508 = vmul.f32 %v2444, %v2444
        %v2509 = vmul.f32 %v2445, %v2445
        %v2510 = vmul.f32 %v2446, %v2446
        %v2511 = vmul.f32 %v2447, %v2447
        %v2512 = vmul.f32 %v2448, %v2448
        %v2513 = vmul.f32 %v2449, %v2449
        %v2514 = vmul.f32 %v2450, %v2450
        %v2515 = vmul.f32 %v2451, %v2451
        %v2516 = vmul.f32 %v2452, %v2452
        %v2517 = vmul.f32 %v2453, %v2453
        %v2518 = vmul.f32 %v2454, %v2454
        %v2519 = vmul.f32 %v2455, %v2455
        %v2520 = vmul.f32 %v2456, %v2456
        %v2521 = vmul.f32 %v2457, %v2457
        %v2522 = vmul.f32 %v2458, %v2458
        %v2523 = vmul.f32 %v2459, %v2459
        %v2524 = vmul.f32 %v2460, %v2460
        %v2525 = vmul.f32 %v2461, %v2461
        %v2526 = vmul.f32 %v2462, %v2462
        %v2527 = vmul.f32 %v2463, %v2463
        %v2528 = vmul.f32 %v2464, %v2464
        %v2529 = vmul.f32 %v2465, %v2465
        %v2530 = vmul.f32 %v2498, %v2434
        %v2531 = vmul.f32 %v2499, %v2435
        %v2532 = vmul.f32 %v2500, %v2436
        %v2533 = vmul.f32 %v2501, %v2437
        %v2534 = vmul.f32 %v2502, %v2438
        %v2535 = vmul.f32 %v2503, %v2439
        %v2536 = vmul.f32 %v2504, %v2440
        %v2537 = vmul.f32 %v2505, %v2441
        %v2538 = vmul.f32 %v2506, %v2442
        %v2539 = vmul.f32 %v2507, %v2443
        %v2540 = vmul.f32 %v2508, %v2444
        %v2541 = vmul.f32 %v2509, %v2445
        %v2542 = vmul.f32 %v2510, %v2446
        %v2543 = vmul.f32 %v2511, %v2447
        %v2544 = vmul.f32 %v2512, %v2448
        %v2545 = vmul.f32 %v2513, %v2449
        %v2546 = vmul.f32 %v2514, %v2450
        %v2547 = vmul.f32 %v2515, %v2451
        %v2548 = vmul.f32 %v2516, %v2452
        %v2549 = vmul.f32 %v2517, %v2453
        %v2550 = vmul.f32 %v2518, %v2454
        %v2551 = vmul.f32 %v2519, %v2455
        %v2552 = vmul.f32 %v2520, %v2456
        %v2553 = vmul.f32 %v2521, %v2457
        %v2554 = vmul.f32 %v2522, %v2458
        %v2555 = vmul.f32 %v2523, %v2459
        %v2556 = vmul.f32 %v2524, %v2460
        %v2557 = vmul.f32 %v2525, %v2461
        %v2558 = vmul.f32 %v2526, %v2462
        %v2559 = vmul.f32 %v2527, %v2463
        %v2560 = vmul.f32 %v2528, %v2464
        %v2561 = vmul.f32 %v2529, %v2465
        %v2562 = vmul.f32 %v2530, 0.044715
        %v2563 = vmul.f32 %v2531, 0.044715
        %v2564 = vmul.f32 %v2532, 0.044715
        %v2565 = vmul.f32 %v2533, 0.044715
        %v2566 = vmul.f32 %v2534, 0.044715
        %v2567 = vmul.f32 %v2535, 0.044715
        %v2568 = vmul.f32 %v2536, 0.044715
        %v2569 = vmul.f32 %v2537, 0.044715
        %v2570 = vmul.f32 %v2538, 0.044715
        %v2571 = vmul.f32 %v2539, 0.044715
        %v2572 = vmul.f32 %v2540, 0.044715
        %v2573 = vmul.f32 %v2541, 0.044715
        %v2574 = vmul.f32 %v2542, 0.044715
        %v2575 = vmul.f32 %v2543, 0.044715
        %v2576 = vmul.f32 %v2544, 0.044715
        %v2577 = vmul.f32 %v2545, 0.044715
        %v2578 = vmul.f32 %v2546, 0.044715
        %v2579 = vmul.f32 %v2547, 0.044715
        %v2580 = vmul.f32 %v2548, 0.044715
        %v2581 = vmul.f32 %v2549, 0.044715
        %v2582 = vmul.f32 %v2550, 0.044715
        %v2583 = vmul.f32 %v2551, 0.044715
        %v2584 = vmul.f32 %v2552, 0.044715
        %v2585 = vmul.f32 %v2553, 0.044715
        %v2586 = vmul.f32 %v2554, 0.044715
        %v2587 = vmul.f32 %v2555, 0.044715
        %v2588 = vmul.f32 %v2556, 0.044715
        %v2589 = vmul.f32 %v2557, 0.044715
        %v2590 = vmul.f32 %v2558, 0.044715
        %v2591 = vmul.f32 %v2559, 0.044715
        %v2592 = vmul.f32 %v2560, 0.044715
        %v2593 = vmul.f32 %v2561, 0.044715
        %v2594 = vadd.f32 %v2434, %v2562
        %v2595 = vadd.f32 %v2435, %v2563
        %v2596 = vadd.f32 %v2436, %v2564
        %v2597 = vadd.f32 %v2437, %v2565
        %v2598 = vadd.f32 %v2438, %v2566
        %v2599 = vadd.f32 %v2439, %v2567
        %v2600 = vadd.f32 %v2440, %v2568
        %v2601 = vadd.f32 %v2441, %v2569
        %v2602 = vadd.f32 %v2442, %v2570
        %v2603 = vadd.f32 %v2443, %v2571
        %v2604 = vadd.f32 %v2444, %v2572
        %v2605 = vadd.f32 %v2445, %v2573
        %v2606 = vadd.f32 %v2446, %v2574
        %v2607 = vadd.f32 %v2447, %v2575
        %v2608 = vadd.f32 %v2448, %v2576
        %v2609 = vadd.f32 %v2449, %v2577
        %v2610 = vadd.f32 %v2450, %v2578
        %v2611 = vadd.f32 %v2451, %v2579
        %v2612 = vadd.f32 %v2452, %v2580
        %v2613 = vadd.f32 %v2453, %v2581
        %v2614 = vadd.f32 %v2454, %v2582
        %v2615 = vadd.f32 %v2455, %v2583
        %v2616 = vadd.f32 %v2456, %v2584
        %v2617 = vadd.f32 %v2457, %v2585
        %v2618 = vadd.f32 %v2458, %v2586
        %v2619 = vadd.f32 %v2459, %v2587
        %v2620 = vadd.f32 %v2460, %v2588
        %v2621 = vadd.f32 %v2461, %v2589
        %v2622 = vadd.f32 %v2462, %v2590
        %v2623 = vadd.f32 %v2463, %v2591
        %v2624 = vadd.f32 %v2464, %v2592
        %v2625 = vadd.f32 %v2465, %v2593
        %v2626 = vmul.f32 %v2594, 0.7978846
        %v2627 = vmul.f32 %v2595, 0.7978846
        %v2628 = vmul.f32 %v2596, 0.7978846
        %v2629 = vmul.f32 %v2597, 0.7978846
        %v2630 = vmul.f32 %v2598, 0.7978846
        %v2631 = vmul.f32 %v2599, 0.7978846
        %v2632 = vmul.f32 %v2600, 0.7978846
        %v2633 = vmul.f32 %v2601, 0.7978846
        %v2634 = vmul.f32 %v2602, 0.7978846
        %v2635 = vmul.f32 %v2603, 0.7978846
        %v2636 = vmul.f32 %v2604, 0.7978846
        %v2637 = vmul.f32 %v2605, 0.7978846
        %v2638 = vmul.f32 %v2606, 0.7978846
        %v2639 = vmul.f32 %v2607, 0.7978846
        %v2640 = vmul.f32 %v2608, 0.7978846
        %v2641 = vmul.f32 %v2609, 0.7978846
        %v2642 = vmul.f32 %v2610, 0.7978846
        %v2643 = vmul.f32 %v2611, 0.7978846
        %v2644 = vmul.f32 %v2612, 0.7978846
        %v2645 = vmul.f32 %v2613, 0.7978846
        %v2646 = vmul.f32 %v2614, 0.7978846
        %v2647 = vmul.f32 %v2615, 0.7978846
        %v2648 = vmul.f32 %v2616, 0.7978846
        %v2649 = vmul.f32 %v2617, 0.7978846
        %v2650 = vmul.f32 %v2618, 0.7978846
        %v2651 = vmul.f32 %v2619, 0.7978846
        %v2652 = vmul.f32 %v2620, 0.7978846
        %v2653 = vmul.f32 %v2621, 0.7978846
        %v2654 = vmul.f32 %v2622, 0.7978846
        %v2655 = vmul.f32 %v2623, 0.7978846
        %v2656 = vmul.f32 %v2624, 0.7978846
        %v2657 = vmul.f32 %v2625, 0.7978846
        %v2658 = vtanh.pop %v2626
        %v2659 = vtanh.pop %v2627
        %v2660 = vtanh.pop %v2628
        %v2661 = vtanh.pop %v2629
        %v2662 = vtanh.pop %v2630
        %v2663 = vtanh.pop %v2631
        %v2664 = vtanh.pop %v2632
        %v2665 = vtanh.pop %v2633
        %v2666 = vtanh.pop %v2634
        %v2667 = vtanh.pop %v2635
        %v2668 = vtanh.pop %v2636
        %v2669 = vtanh.pop %v2637
        %v2670 = vtanh.pop %v2638
        %v2671 = vtanh.pop %v2639
        %v2672 = vtanh.pop %v2640
        %v2673 = vtanh.pop %v2641
        %v2674 = vtanh.pop %v2642
        %v2675 = vtanh.pop %v2643
        %v2676 = vtanh.pop %v2644
        %v2677 = vtanh.pop %v2645
        %v2678 = vtanh.pop %v2646
        %v2679 = vtanh.pop %v2647
        %v2680 = vtanh.pop %v2648
        %v2681 = vtanh.pop %v2649
        %v2682 = vtanh.pop %v2650
        %v2683 = vtanh.pop %v2651
        %v2684 = vtanh.pop %v2652
        %v2685 = vtanh.pop %v2653
        %v2686 = vtanh.pop %v2654
        %v2687 = vtanh.pop %v2655
        %v2688 = vtanh.pop %v2656
        %v2689 = vtanh.pop %v2657
        %v2690 = vadd.f32 %v2658, 1.0
        %v2691 = vadd.f32 %v2659, 1.0
        %v2692 = vadd.f32 %v2660, 1.0
        %v2693 = vadd.f32 %v2661, 1.0
        %v2694 = vadd.f32 %v2662, 1.0
        %v2695 = vadd.f32 %v2663, 1.0
        %v2696 = vadd.f32 %v2664, 1.0
        %v2697 = vadd.f32 %v2665, 1.0
        %v2698 = vadd.f32 %v2666, 1.0
        %v2699 = vadd.f32 %v2667, 1.0
        %v2700 = vadd.f32 %v2668, 1.0
        %v2701 = vadd.f32 %v2669, 1.0
        %v2702 = vadd.f32 %v2670, 1.0
        %v2703 = vadd.f32 %v2671, 1.0
        %v2704 = vadd.f32 %v2672, 1.0
        %v2705 = vadd.f32 %v2673, 1.0
        %v2706 = vadd.f32 %v2674, 1.0
        %v2707 = vadd.f32 %v2675, 1.0
        %v2708 = vadd.f32 %v2676, 1.0
        %v2709 = vadd.f32 %v2677, 1.0
        %v2710 = vadd.f32 %v2678, 1.0
        %v2711 = vadd.f32 %v2679, 1.0
        %v2712 = vadd.f32 %v2680, 1.0
        %v2713 = vadd.f32 %v2681, 1.0
        %v2714 = vadd.f32 %v2682, 1.0
        %v2715 = vadd.f32 %v2683, 1.0
        %v2716 = vadd.f32 %v2684, 1.0
        %v2717 = vadd.f32 %v2685, 1.0
        %v2718 = vadd.f32 %v2686, 1.0
        %v2719 = vadd.f32 %v2687, 1.0
        %v2720 = vadd.f32 %v2688, 1.0
        %v2721 = vadd.f32 %v2689, 1.0
        %v2722 = vmul.f32 %v2466, %v2690
        %v2723 = vmul.f32 %v2467, %v2691
        %v2724 = vmul.f32 %v2468, %v2692
        %v2725 = vmul.f32 %v2469, %v2693
        %v2726 = vmul.f32 %v2470, %v2694
        %v2727 = vmul.f32 %v2471, %v2695
        %v2728 = vmul.f32 %v2472, %v2696
        %v2729 = vmul.f32 %v2473, %v2697
        %v2730 = vmul.f32 %v2474, %v2698
        %v2731 = vmul.f32 %v2475, %v2699
        %v2732 = vmul.f32 %v2476, %v2700
        %v2733 = vmul.f32 %v2477, %v2701
        %v2734 = vmul.f32 %v2478, %v2702
        %v2735 = vmul.f32 %v2479, %v2703
        %v2736 = vmul.f32 %v2480, %v2704
        %v2737 = vmul.f32 %v2481, %v2705
        %v2738 = vmul.f32 %v2482, %v2706
        %v2739 = vmul.f32 %v2483, %v2707
        %v2740 = vmul.f32 %v2484, %v2708
        %v2741 = vmul.f32 %v2485, %v2709
        %v2742 = vmul.f32 %v2486, %v2710
        %v2743 = vmul.f32 %v2487, %v2711
        %v2744 = vmul.f32 %v2488, %v2712
        %v2745 = vmul.f32 %v2489, %v2713
        %v2746 = vmul.f32 %v2490, %v2714
        %v2747 = vmul.f32 %v2491, %v2715
        %v2748 = vmul.f32 %v2492, %v2716
        %v2749 = vmul.f32 %v2493, %v2717
        %v2750 = vmul.f32 %v2494, %v2718
        %v2751 = vmul.f32 %v2495, %v2719
        %v2752 = vmul.f32 %v2496, %v2720
        %v2753 = vmul.f32 %v2497, %v2721
        %v2754 = vmul.f32 %v2722, 0.5
        %v2755 = vmul.f32 %v2723, 0.5
        %v2756 = vmul.f32 %v2724, 0.5
        %v2757 = vmul.f32 %v2725, 0.5
        %v2758 = vmul.f32 %v2726, 0.5
        %v2759 = vmul.f32 %v2727, 0.5
        %v2760 = vmul.f32 %v2728, 0.5
        %v2761 = vmul.f32 %v2729, 0.5
        %v2762 = vmul.f32 %v2730, 0.5
        %v2763 = vmul.f32 %v2731, 0.5
        %v2764 = vmul.f32 %v2732, 0.5
        %v2765 = vmul.f32 %v2733, 0.5
        %v2766 = vmul.f32 %v2734, 0.5
        %v2767 = vmul.f32 %v2735, 0.5
        %v2768 = vmul.f32 %v2736, 0.5
        %v2769 = vmul.f32 %v2737, 0.5
        %v2770 = vmul.f32 %v2738, 0.5
        %v2771 = vmul.f32 %v2739, 0.5
        %v2772 = vmul.f32 %v2740, 0.5
        %v2773 = vmul.f32 %v2741, 0.5
        %v2774 = vmul.f32 %v2742, 0.5
        %v2775 = vmul.f32 %v2743, 0.5
        %v2776 = vmul.f32 %v2744, 0.5
        %v2777 = vmul.f32 %v2745, 0.5
        %v2778 = vmul.f32 %v2746, 0.5
        %v2779 = vmul.f32 %v2747, 0.5
        %v2780 = vmul.f32 %v2748, 0.5
        %v2781 = vmul.f32 %v2749, 0.5
        %v2782 = vmul.f32 %v2750, 0.5
        %v2783 = vmul.f32 %v2751, 0.5
        %v2784 = vmul.f32 %v2752, 0.5
        %v2785 = vmul.f32 %v2753, 0.5
        %v2786 = vmul.f32 %v2722, %v2722
        %v2787 = vmul.f32 %v2723, %v2723
        %v2788 = vmul.f32 %v2724, %v2724
        %v2789 = vmul.f32 %v2725, %v2725
        %v2790 = vmul.f32 %v2726, %v2726
        %v2791 = vmul.f32 %v2727, %v2727
        %v2792 = vmul.f32 %v2728, %v2728
        %v2793 = vmul.f32 %v2729, %v2729
        %v2794 = vmul.f32 %v2730, %v2730
        %v2795 = vmul.f32 %v2731, %v2731
        %v2796 = vmul.f32 %v2732, %v2732
        %v2797 = vmul.f32 %v2733, %v2733
        %v2798 = vmul.f32 %v2734, %v2734
        %v2799 = vmul.f32 %v2735, %v2735
        %v2800 = vmul.f32 %v2736, %v2736
        %v2801 = vmul.f32 %v2737, %v2737
        %v2802 = vmul.f32 %v2738, %v2738
        %v2803 = vmul.f32 %v2739, %v2739
        %v2804 = vmul.f32 %v2740, %v2740
        %v2805 = vmul.f32 %v2741, %v2741
        %v2806 = vmul.f32 %v2742, %v2742
        %v2807 = vmul.f32 %v2743, %v2743
        %v2808 = vmul.f32 %v2744, %v2744
        %v2809 = vmul.f32 %v2745, %v2745
        %v2810 = vmul.f32 %v2746, %v2746
        %v2811 = vmul.f32 %v2747, %v2747
        %v2812 = vmul.f32 %v2748, %v2748
        %v2813 = vmul.f32 %v2749, %v2749
        %v2814 = vmul.f32 %v2750, %v2750
        %v2815 = vmul.f32 %v2751, %v2751
        %v2816 = vmul.f32 %v2752, %v2752
        %v2817 = vmul.f32 %v2753, %v2753
        %v2818 = vmul.f32 %v2786, %v2722
        %v2819 = vmul.f32 %v2787, %v2723
        %v2820 = vmul.f32 %v2788, %v2724
        %v2821 = vmul.f32 %v2789, %v2725
        %v2822 = vmul.f32 %v2790, %v2726
        %v2823 = vmul.f32 %v2791, %v2727
        %v2824 = vmul.f32 %v2792, %v2728
        %v2825 = vmul.f32 %v2793, %v2729
        %v2826 = vmul.f32 %v2794, %v2730
        %v2827 = vmul.f32 %v2795, %v2731
        %v2828 = vmul.f32 %v2796, %v2732
        %v2829 = vmul.f32 %v2797, %v2733
        %v2830 = vmul.f32 %v2798, %v2734
        %v2831 = vmul.f32 %v2799, %v2735
        %v2832 = vmul.f32 %v2800, %v2736
        %v2833 = vmul.f32 %v2801, %v2737
        %v2834 = vmul.f32 %v2802, %v2738
        %v2835 = vmul.f32 %v2803, %v2739
        %v2836 = vmul.f32 %v2804, %v2740
        %v2837 = vmul.f32 %v2805, %v2741
        %v2838 = vmul.f32 %v2806, %v2742
        %v2839 = vmul.f32 %v2807, %v2743
        %v2840 = vmul.f32 %v2808, %v2744
        %v2841 = vmul.f32 %v2809, %v2745
        %v2842 = vmul.f32 %v2810, %v2746
        %v2843 = vmul.f32 %v2811, %v2747
        %v2844 = vmul.f32 %v2812, %v2748
        %v2845 = vmul.f32 %v2813, %v2749
        %v2846 = vmul.f32 %v2814, %v2750
        %v2847 = vmul.f32 %v2815, %v2751
        %v2848 = vmul.f32 %v2816, %v2752
        %v2849 = vmul.f32 %v2817, %v2753
        %v2850 = vmul.f32 %v2818, 0.044715
        %v2851 = vmul.f32 %v2819, 0.044715
        %v2852 = vmul.f32 %v2820, 0.044715
        %v2853 = vmul.f32 %v2821, 0.044715
        %v2854 = vmul.f32 %v2822, 0.044715
        %v2855 = vmul.f32 %v2823, 0.044715
        %v2856 = vmul.f32 %v2824, 0.044715
        %v2857 = vmul.f32 %v2825, 0.044715
        %v2858 = vmul.f32 %v2826, 0.044715
        %v2859 = vmul.f32 %v2827, 0.044715
        %v2860 = vmul.f32 %v2828, 0.044715
        %v2861 = vmul.f32 %v2829, 0.044715
        %v2862 = vmul.f32 %v2830, 0.044715
        %v2863 = vmul.f32 %v2831, 0.044715
        %v2864 = vmul.f32 %v2832, 0.044715
        %v2865 = vmul.f32 %v2833, 0.044715
        %v2866 = vmul.f32 %v2834, 0.044715
        %v2867 = vmul.f32 %v2835, 0.044715
        %v2868 = vmul.f32 %v2836, 0.044715
        %v2869 = vmul.f32 %v2837, 0.044715
        %v2870 = vmul.f32 %v2838, 0.044715
        %v2871 = vmul.f32 %v2839, 0.044715
        %v2872 = vmul.f32 %v2840, 0.044715
        %v2873 = vmul.f32 %v2841, 0.044715
        %v2874 = vmul.f32 %v2842, 0.044715
        %v2875 = vmul.f32 %v2843, 0.044715
        %v2876 = vmul.f32 %v2844, 0.044715
        %v2877 = vmul.f32 %v2845, 0.044715
        %v2878 = vmul.f32 %v2846, 0.044715
        %v2879 = vmul.f32 %v2847, 0.044715
        %v2880 = vmul.f32 %v2848, 0.044715
        %v2881 = vmul.f32 %v2849, 0.044715
        %v2882 = vadd.f32 %v2722, %v2850
        %v2883 = vadd.f32 %v2723, %v2851
        %v2884 = vadd.f32 %v2724, %v2852
        %v2885 = vadd.f32 %v2725, %v2853
        %v2886 = vadd.f32 %v2726, %v2854
        %v2887 = vadd.f32 %v2727, %v2855
        %v2888 = vadd.f32 %v2728, %v2856
        %v2889 = vadd.f32 %v2729, %v2857
        %v2890 = vadd.f32 %v2730, %v2858
        %v2891 = vadd.f32 %v2731, %v2859
        %v2892 = vadd.f32 %v2732, %v2860
        %v2893 = vadd.f32 %v2733, %v2861
        %v2894 = vadd.f32 %v2734, %v2862
        %v2895 = vadd.f32 %v2735, %v2863
        %v2896 = vadd.f32 %v2736, %v2864
        %v2897 = vadd.f32 %v2737, %v2865
        %v2898 = vadd.f32 %v2738, %v2866
        %v2899 = vadd.f32 %v2739, %v2867
        %v2900 = vadd.f32 %v2740, %v2868
        %v2901 = vadd.f32 %v2741, %v2869
        %v2902 = vadd.f32 %v2742, %v2870
        %v2903 = vadd.f32 %v2743, %v2871
        %v2904 = vadd.f32 %v2744, %v2872
        %v2905 = vadd.f32 %v2745, %v2873
        %v2906 = vadd.f32 %v2746, %v2874
        %v2907 = vadd.f32 %v2747, %v2875
        %v2908 = vadd.f32 %v2748, %v2876
        %v2909 = vadd.f32 %v2749, %v2877
        %v2910 = vadd.f32 %v2750, %v2878
        %v2911 = vadd.f32 %v2751, %v2879
        %v2912 = vadd.f32 %v2752, %v2880
        %v2913 = vadd.f32 %v2753, %v2881
        %v2914 = vmul.f32 %v2882, 0.7978846
        %v2915 = vmul.f32 %v2883, 0.7978846
        %v2916 = vmul.f32 %v2884, 0.7978846
        %v2917 = vmul.f32 %v2885, 0.7978846
        %v2918 = vmul.f32 %v2886, 0.7978846
        %v2919 = vmul.f32 %v2887, 0.7978846
        %v2920 = vmul.f32 %v2888, 0.7978846
        %v2921 = vmul.f32 %v2889, 0.7978846
        %v2922 = vmul.f32 %v2890, 0.7978846
        %v2923 = vmul.f32 %v2891, 0.7978846
        %v2924 = vmul.f32 %v2892, 0.7978846
        %v2925 = vmul.f32 %v2893, 0.7978846
        %v2926 = vmul.f32 %v2894, 0.7978846
        %v2927 = vmul.f32 %v2895, 0.7978846
        %v2928 = vmul.f32 %v2896, 0.7978846
        %v2929 = vmul.f32 %v2897, 0.7978846
        %v2930 = vmul.f32 %v2898, 0.7978846
        %v2931 = vmul.f32 %v2899, 0.7978846
        %v2932 = vmul.f32 %v2900, 0.7978846
        %v2933 = vmul.f32 %v2901, 0.7978846
        %v2934 = vmul.f32 %v2902, 0.7978846
        %v2935 = vmul.f32 %v2903, 0.7978846
        %v2936 = vmul.f32 %v2904, 0.7978846
        %v2937 = vmul.f32 %v2905, 0.7978846
        %v2938 = vmul.f32 %v2906, 0.7978846
        %v2939 = vmul.f32 %v2907, 0.7978846
        %v2940 = vmul.f32 %v2908, 0.7978846
        %v2941 = vmul.f32 %v2909, 0.7978846
        %v2942 = vmul.f32 %v2910, 0.7978846
        %v2943 = vmul.f32 %v2911, 0.7978846
        %v2944 = vmul.f32 %v2912, 0.7978846
        %v2945 = vmul.f32 %v2913, 0.7978846
        %v2946 = vtanh.pop %v2914
        %v2947 = vtanh.pop %v2915
        %v2948 = vtanh.pop %v2916
        %v2949 = vtanh.pop %v2917
        %v2950 = vtanh.pop %v2918
        %v2951 = vtanh.pop %v2919
        %v2952 = vtanh.pop %v2920
        %v2953 = vtanh.pop %v2921
        %v2954 = vtanh.pop %v2922
        %v2955 = vtanh.pop %v2923
        %v2956 = vtanh.pop %v2924
        %v2957 = vtanh.pop %v2925
        %v2958 = vtanh.pop %v2926
        %v2959 = vtanh.pop %v2927
        %v2960 = vtanh.pop %v2928
        %v2961 = vtanh.pop %v2929
        %v2962 = vtanh.pop %v2930
        %v2963 = vtanh.pop %v2931
        %v2964 = vtanh.pop %v2932
        %v2965 = vtanh.pop %v2933
        %v2966 = vtanh.pop %v2934
        %v2967 = vtanh.pop %v2935
        %v2968 = vtanh.pop %v2936
        %v2969 = vtanh.pop %v2937
        %v2970 = vtanh.pop %v2938
        %v2971 = vtanh.pop %v2939
        %v2972 = vtanh.pop %v2940
        %v2973 = vtanh.pop %v2941
        %v2974 = vtanh.pop %v2942
        %v2975 = vtanh.pop %v2943
        %v2976 = vtanh.pop %v2944
        %v2977 = vtanh.pop %v2945
        %v2978 = vadd.f32 %v2946, 1.0
        %v2979 = vadd.f32 %v2947, 1.0
        %v2980 = vadd.f32 %v2948, 1.0
        %v2981 = vadd.f32 %v2949, 1.0
        %v2982 = vadd.f32 %v2950, 1.0
        %v2983 = vadd.f32 %v2951, 1.0
        %v2984 = vadd.f32 %v2952, 1.0
        %v2985 = vadd.f32 %v2953, 1.0
        %v2986 = vadd.f32 %v2954, 1.0
        %v2987 = vadd.f32 %v2955, 1.0
        %v2988 = vadd.f32 %v2956, 1.0
        %v2989 = vadd.f32 %v2957, 1.0
        %v2990 = vadd.f32 %v2958, 1.0
        %v2991 = vadd.f32 %v2959, 1.0
        %v2992 = vadd.f32 %v2960, 1.0
        %v2993 = vadd.f32 %v2961, 1.0
        %v2994 = vadd.f32 %v2962, 1.0
        %v2995 = vadd.f32 %v2963, 1.0
        %v2996 = vadd.f32 %v2964, 1.0
        %v2997 = vadd.f32 %v2965, 1.0
        %v2998 = vadd.f32 %v2966, 1.0
        %v2999 = vadd.f32 %v2967, 1.0
        %v3000 = vadd.f32 %v2968, 1.0
        %v3001 = vadd.f32 %v2969, 1.0
        %v3002 = vadd.f32 %v2970, 1.0
        %v3003 = vadd.f32 %v2971, 1.0
        %v3004 = vadd.f32 %v2972, 1.0
        %v3005 = vadd.f32 %v2973, 1.0
        %v3006 = vadd.f32 %v2974, 1.0
        %v3007 = vadd.f32 %v2975, 1.0
        %v3008 = vadd.f32 %v2976, 1.0
        %v3009 = vadd.f32 %v2977, 1.0
        %v3010 = vmul.f32 %v2754, %v2978
        %v3011 = vmul.f32 %v2755, %v2979
        %v3012 = vmul.f32 %v2756, %v2980
        %v3013 = vmul.f32 %v2757, %v2981
        %v3014 = vmul.f32 %v2758, %v2982
        %v3015 = vmul.f32 %v2759, %v2983
        %v3016 = vmul.f32 %v2760, %v2984
        %v3017 = vmul.f32 %v2761, %v2985
        %v3018 = vmul.f32 %v2762, %v2986
        %v3019 = vmul.f32 %v2763, %v2987
        %v3020 = vmul.f32 %v2764, %v2988
        %v3021 = vmul.f32 %v2765, %v2989
        %v3022 = vmul.f32 %v2766, %v2990
        %v3023 = vmul.f32 %v2767, %v2991
        %v3024 = vmul.f32 %v2768, %v2992
        %v3025 = vmul.f32 %v2769, %v2993
        %v3026 = vmul.f32 %v2770, %v2994
        %v3027 = vmul.f32 %v2771, %v2995
        %v3028 = vmul.f32 %v2772, %v2996
        %v3029 = vmul.f32 %v2773, %v2997
        %v3030 = vmul.f32 %v2774, %v2998
        %v3031 = vmul.f32 %v2775, %v2999
        %v3032 = vmul.f32 %v2776, %v3000
        %v3033 = vmul.f32 %v2777, %v3001
        %v3034 = vmul.f32 %v2778, %v3002
        %v3035 = vmul.f32 %v2779, %v3003
        %v3036 = vmul.f32 %v2780, %v3004
        %v3037 = vmul.f32 %v2781, %v3005
        %v3038 = vmul.f32 %v2782, %v3006
        %v3039 = vmul.f32 %v2783, %v3007
        %v3040 = vmul.f32 %v2784, %v3008
        %v3041 = vmul.f32 %v2785, %v3009
        %3042 = vst [vmem:[%s136] sm:$0xff] %v3010
        %3043 = vst [vmem:[%s136 + $0x8] sm:$0xff] %v3011
        %3044 = vst [vmem:[%s136 + $0x10] sm:$0xff] %v3012
        %3045 = vst [vmem:[%s136 + $0x18] sm:$0xff] %v3013
        %3046 = vst [vmem:[%s136 + $0x20] sm:$0xff] %v3014
        %3047 = vst [vmem:[%s136 + $0x28] sm:$0xff] %v3015
        %3048 = vst [vmem:[%s136 + $0x30] sm:$0xff] %v3016
        %3049 = vst [vmem:[%s136 + $0x38] sm:$0xff] %v3017
        %3050 = vst [vmem:[%s136 + $0x40] sm:$0xff] %v3018
        %3051 = vst [vmem:[%s136 + $0x48] sm:$0xff] %v3019
        %3052 = vst [vmem:[%s136 + $0x50] sm:$0xff] %v3020
        %3053 = vst [vmem:[%s136 + $0x58] sm:$0xff] %v3021
        %3054 = vst [vmem:[%s136 + $0x60] sm:$0xff] %v3022
        %3055 = vst [vmem:[%s136 + $0x68] sm:$0xff] %v3023
        %3056 = vst [vmem:[%s136 + $0x70] sm:$0xff] %v3024
        %3057 = vst [vmem:[%s136 + $0x78] sm:$0xff] %v3025
        %3058 = vst [vmem:[%s136 + $0x80] sm:$0xff] %v3026
        %3059 = vst [vmem:[%s136 + $0x88] sm:$0xff] %v3027
        %3060 = vst [vmem:[%s136 + $0x90] sm:$0xff] %v3028
        %3061 = vst [vmem:[%s136 + $0x98] sm:$0xff] %v3029
        %3062 = vst [vmem:[%s136 + $0xa0] sm:$0xff] %v3030
        %3063 = vst [vmem:[%s136 + $0xa8] sm:$0xff] %v3031
        %3064 = vst [vmem:[%s136 + $0xb0] sm:$0xff] %v3032
        %3065 = vst [vmem:[%s136 + $0xb8] sm:$0xff] %v3033
        %3066 = vst [vmem:[%s136 + $0xc0] sm:$0xff] %v3034
        %3067 = vst [vmem:[%s136 + $0xc8] sm:$0xff] %v3035
        %3068 = vst [vmem:[%s136 + $0xd0] sm:$0xff] %v3036
        %3069 = vst [vmem:[%s136 + $0xd8] sm:$0xff] %v3037
        %3070 = vst [vmem:[%s136 + $0xe0] sm:$0xff] %v3038
        %3071 = vst [vmem:[%s136 + $0xe8] sm:$0xff] %v3039
        %3072 = vst [vmem:[%s136 + $0xf0] sm:$0xff] %v3040
        %3073 = vst [vmem:[%s136 + $0xf8] sm:$0xff] %v3041
        %s3074 = sadd.s32 336, %s1691
        %s3075 = scalar_lea.vmem [#allocation2], %s3074
        %v3076 = vld [vmem:[%s3075 + $0x6] sm:$0xff]
        %v3077 = vld [vmem:[%s3075 + $0xe] sm:$0xff]
        %v3078 = vld [vmem:[%s3075 + $0x3e] sm:$0xff]
        %v3079 = vld [vmem:[%s3075 + $0x46] sm:$0xff]
        %v3080 = vld [vmem:[%s3075 + $0x76] sm:$0xff]
        %v3081 = vld [vmem:[%s3075 + $0x7e] sm:$0xff]
        %v3082 = vld [vmem:[%s3075 + $0xae] sm:$0xff]
        %v3083 = vld [vmem:[%s3075 + $0xb6] sm:$0xff]
        %v3084 = vld [vmem:[%s3075 + $0xe6] sm:$0xff]
        %v3085 = vld [vmem:[%s3075 + $0xee] sm:$0xff]
        %v3086 = vld [vmem:[%s3075 + $0x11e] sm:$0xff]
        %v3087 = vld [vmem:[%s3075 + $0x126] sm:$0xff]
        %v3088 = vld [vmem:[%s3075 + $0x156] sm:$0xff]
        %v3089 = vld [vmem:[%s3075 + $0x15e] sm:$0xff]
        %v3090 = vld [vmem:[%s3075 + $0x18e] sm:$0xff]
        %v3091 = vld [vmem:[%s3075 + $0x196] sm:$0xff]
        %v3092 = vld [vmem:[%s3075 + $0x1c6] sm:$0xff]
        %v3093 = vld [vmem:[%s3075 + $0x1ce] sm:$0xff]
        %v3094 = vld [vmem:[%s3075 + $0x1fe] sm:$0xff]
        %v3095 = vld [vmem:[%s3075 + $0x206] sm:$0xff]
        %v3096 = vld [vmem:[%s3075 + $0x236] sm:$0xff]
        %v3097 = vld [vmem:[%s3075 + $0x23e] sm:$0xff]
        %v3098 = vld [vmem:[%s3075 + $0x26e] sm:$0xff]
        %v3099 = vld [vmem:[%s3075 + $0x276] sm:$0xff]
        %v3100 = vld [vmem:[%s3075 + $0x2a6] sm:$0xff]
        %v3101 = vld [vmem:[%s3075 + $0x2ae] sm:$0xff]
        %v3102 = vld [vmem:[%s3075 + $0x2de] sm:$0xff]
        %v3103 = vld [vmem:[%s3075 + $0x2e6] sm:$0xff]
        %v3104 = vld [vmem:[%s3075 + $0x316] sm:$0xff]
        %v3105 = vld [vmem:[%s3075 + $0x31e] sm:$0xff]
        %v3106 = vld [vmem:[%s3075 + $0x34e] sm:$0xff]
        %v3107 = vld [vmem:[%s3075 + $0x356] sm:$0xff]
        %v3108 = vld [vmem:[%s3075 + $0x386] sm:$0xff]
        %v3109 = vld [vmem:[%s3075 + $0x38e] sm:$0xff]
        %v3110 = vld [vmem:[%s3075 + $0x3be] sm:$0xff]
        %v3111 = vld [vmem:[%s3075 + $0x3c6] sm:$0xff]
        %v3112 = vld [vmem:[%s3075 + $0x3f6] sm:$0xff]
        %v3113 = vld [vmem:[%s3075 + $0x3fe] sm:$0xff]
        %v3114 = vld [vmem:[%s3075 + $0x42e] sm:$0xff]
        %v3115 = vld [vmem:[%s3075 + $0x436] sm:$0xff]
        %v3116 = vld [vmem:[%s3075 + $0x466] sm:$0xff]
        %v3117 = vld [vmem:[%s3075 + $0x46e] sm:$0xff]
        %v3118 = vld [vmem:[%s3075 + $0x49e] sm:$0xff]
        %v3119 = vld [vmem:[%s3075 + $0x4a6] sm:$0xff]
        %v3120 = vld [vmem:[%s3075 + $0x4d6] sm:$0xff]
        %v3121 = vld [vmem:[%s3075 + $0x4de] sm:$0xff]
        %v3122 = vld [vmem:[%s3075 + $0x50e] sm:$0xff]
        %v3123 = vld [vmem:[%s3075 + $0x516] sm:$0xff]
        %v3124 = vld [vmem:[%s3075 + $0x546] sm:$0xff]
        %v3125 = vld [vmem:[%s3075 + $0x54e] sm:$0xff]
        %v3126 = vld [vmem:[%s3075 + $0x57e] sm:$0xff]
        %v3127 = vld [vmem:[%s3075 + $0x586] sm:$0xff]
        %v3128 = vld [vmem:[%s3075 + $0x5b6] sm:$0xff]
        %v3129 = vld [vmem:[%s3075 + $0x5be] sm:$0xff]
        %v3130 = vld [vmem:[%s3075 + $0x5ee] sm:$0xff]
        %v3131 = vld [vmem:[%s3075 + $0x5f6] sm:$0xff]
        %v3132 = vld [vmem:[%s3075 + $0x626] sm:$0xff]
        %v3133 = vld [vmem:[%s3075 + $0x62e] sm:$0xff]
        %v3134 = vld [vmem:[%s3075 + $0x65e] sm:$0xff]
        %v3135 = vld [vmem:[%s3075 + $0x666] sm:$0xff]
        %v3136 = vld [vmem:[%s3075 + $0x696] sm:$0xff]
        %v3137 = vld [vmem:[%s3075 + $0x69e] sm:$0xff]
        %v3138 = vld [vmem:[%s3075 + $0x6ce] sm:$0xff]
        %v3139 = vld [vmem:[%s3075 + $0x6d6] sm:$0xff]
        %v3140 = vld [vmem:[%s3075 + $0x706] sm:$0xff]
        %v3141 = vld [vmem:[%s3075 + $0x70e] sm:$0xff]
        %v3142 = vld [vmem:[%s3075 + $0x73e] sm:$0xff]
        %v3143 = vld [vmem:[%s3075 + $0x746] sm:$0xff]
        %v3144 = vld [vmem:[%s3075 + $0x776] sm:$0xff]
        %v3145 = vld [vmem:[%s3075 + $0x77e] sm:$0xff]
        %v3146 = vld [vmem:[%s3075 + $0x7ae] sm:$0xff]
        %v3147 = vld [vmem:[%s3075 + $0x7b6] sm:$0xff]
        %v3148 = vld [vmem:[%s3075 + $0x7e6] sm:$0xff]
        %v3149 = vld [vmem:[%s3075 + $0x7ee] sm:$0xff]
        %v3150 = vld [vmem:[%s3075 + $0x81e] sm:$0xff]
        %v3151 = vld [vmem:[%s3075 + $0x826] sm:$0xff]
        %v3152 = vld [vmem:[%s3075 + $0x856] sm:$0xff]
        %v3153 = vld [vmem:[%s3075 + $0x85e] sm:$0xff]
        %v3154 = vld [vmem:[%s3075 + $0x88e] sm:$0xff]
        %v3155 = vld [vmem:[%s3075 + $0x896] sm:$0xff]
        %s3156 = scalar_lea.vmem %s1, 12
        %v3157 = vld [vmem:[%s3156] sm:$0x1]
        %v3158 = vperm.slane %v3157, 0
        %v3159 = vmul.f32 %v3076, %v3158
        %v3160 = vmul.f32 %v3077, %v3158
        %v3161 = vmul.f32 %v3078, %v3158
        %v3162 = vmul.f32 %v3079, %v3158
        %v3163 = vmul.f32 %v3080, %v3158
        %v3164 = vmul.f32 %v3081, %v3158
        %v3165 = vmul.f32 %v3082, %v3158
        %v3166 = vmul.f32 %v3083, %v3158
        %v3167 = vmul.f32 %v3084, %v3158
        %v3168 = vmul.f32 %v3085, %v3158
        %v3169 = vmul.f32 %v3086, %v3158
        %v3170 = vmul.f32 %v3087, %v3158
        %v3171 = vmul.f32 %v3088, %v3158
        %v3172 = vmul.f32 %v3089, %v3158
        %v3173 = vmul.f32 %v3090, %v3158
        %v3174 = vmul.f32 %v3091, %v3158
        %v3175 = vmul.f32 %v3092, %v3158
        %v3176 = vmul.f32 %v3093, %v3158
        %v3177 = vmul.f32 %v3094, %v3158
        %v3178 = vmul.f32 %v3095, %v3158
        %v3179 = vmul.f32 %v3096, %v3158
        %v3180 = vmul.f32 %v3097, %v3158
        %v3181 = vmul.f32 %v3098, %v3158
        %v3182 = vmul.f32 %v3099, %v3158
        %v3183 = vmul.f32 %v3100, %v3158
        %v3184 = vmul.f32 %v3101, %v3158
        %v3185 = vmul.f32 %v3102, %v3158
        %v3186 = vmul.f32 %v3103, %v3158
        %v3187 = vmul.f32 %v3104, %v3158
        %v3188 = vmul.f32 %v3105, %v3158
        %v3189 = vmul.f32 %v3106, %v3158
        %v3190 = vmul.f32 %v3107, %v3158
        %s3191 = scalar_lea.vmem %s1, 16
        %v3192 = vld [vmem:[%s3191] sm:$0x1]
        %v3193 = vperm.slane %v3192, 0
        %v3194 = vmul.f32 %v3100, %v3193
        %v3195 = vmul.f32 %v3101, %v3193
        %v3196 = vmul.f32 %v3102, %v3193
        %v3197 = vmul.f32 %v3103, %v3193
        %v3198 = vmul.f32 %v3104, %v3193
        %v3199 = vmul.f32 %v3105, %v3193
        %v3200 = vmul.f32 %v3106, %v3193
        %v3201 = vmul.f32 %v3107, %v3193
        %v3202 = vmul.f32 %v3108, %v3193
        %v3203 = vmul.f32 %v3109, %v3193
        %v3204 = vmul.f32 %v3110, %v3193
        %v3205 = vmul.f32 %v3111, %v3193
        %v3206 = vmul.f32 %v3112, %v3193
        %v3207 = vmul.f32 %v3113, %v3193
        %v3208 = vmul.f32 %v3114, %v3193
        %v3209 = vmul.f32 %v3115, %v3193
        %v3210 = vmul.f32 %v3116, %v3193
        %v3211 = vmul.f32 %v3117, %v3193
        %v3212 = vmul.f32 %v3118, %v3193
        %v3213 = vmul.f32 %v3119, %v3193
        %v3214 = vmul.f32 %v3120, %v3193
        %v3215 = vmul.f32 %v3121, %v3193
        %v3216 = vmul.f32 %v3122, %v3193
        %v3217 = vmul.f32 %v3123, %v3193
        %v3218 = vmul.f32 %v3124, %v3193
        %v3219 = vmul.f32 %v3125, %v3193
        %v3220 = vmul.f32 %v3126, %v3193
        %v3221 = vmul.f32 %v3127, %v3193
        %v3222 = vmul.f32 %v3128, %v3193
        %v3223 = vmul.f32 %v3129, %v3193
        %v3224 = vmul.f32 %v3130, %v3193
        %v3225 = vmul.f32 %v3131, %v3193
        %v3226 = vadd.f32 %v3159, %v3194
        %v3227 = vadd.f32 %v3160, %v3195
        %v3228 = vadd.f32 %v3161, %v3196
        %v3229 = vadd.f32 %v3162, %v3197
        %v3230 = vadd.f32 %v3163, %v3198
        %v3231 = vadd.f32 %v3164, %v3199
        %v3232 = vadd.f32 %v3165, %v3200
        %v3233 = vadd.f32 %v3166, %v3201
        %v3234 = vadd.f32 %v3167, %v3202
        %v3235 = vadd.f32 %v3168, %v3203
        %v3236 = vadd.f32 %v3169, %v3204
        %v3237 = vadd.f32 %v3170, %v3205
        %v3238 = vadd.f32 %v3171, %v3206
        %v3239 = vadd.f32 %v3172, %v3207
        %v3240 = vadd.f32 %v3173, %v3208
        %v3241 = vadd.f32 %v3174, %v3209
        %v3242 = vadd.f32 %v3175, %v3210
        %v3243 = vadd.f32 %v3176, %v3211
        %v3244 = vadd.f32 %v3177, %v3212
        %v3245 = vadd.f32 %v3178, %v3213
        %v3246 = vadd.f32 %v3179, %v3214
        %v3247 = vadd.f32 %v3180, %v3215
        %v3248 = vadd.f32 %v3181, %v3216
        %v3249 = vadd.f32 %v3182, %v3217
        %v3250 = vadd.f32 %v3183, %v3218
        %v3251 = vadd.f32 %v3184, %v3219
        %v3252 = vadd.f32 %v3185, %v3220
        %v3253 = vadd.f32 %v3186, %v3221
        %v3254 = vadd.f32 %v3187, %v3222
        %v3255 = vadd.f32 %v3188, %v3223
        %v3256 = vadd.f32 %v3189, %v3224
        %v3257 = vadd.f32 %v3190, %v3225
        %s3258 = scalar_lea.vmem %s1, 20
        %v3259 = vld [vmem:[%s3258] sm:$0x1]
        %v3260 = vperm.slane %v3259, 0
        %v3261 = vmul.f32 %v3124, %v3260
        %v3262 = vmul.f32 %v3125, %v3260
        %v3263 = vmul.f32 %v3126, %v3260
        %v3264 = vmul.f32 %v3127, %v3260
        %v3265 = vmul.f32 %v3128, %v3260
        %v3266 = vmul.f32 %v3129, %v3260
        %v3267 = vmul.f32 %v3130, %v3260
        %v3268 = vmul.f32 %v3131, %v3260
        %v3269 = vmul.f32 %v3132, %v3260
        %v3270 = vmul.f32 %v3133, %v3260
        %v3271 = vmul.f32 %v3134, %v3260
        %v3272 = vmul.f32 %v3135, %v3260
        %v3273 = vmul.f32 %v3136, %v3260
        %v3274 = vmul.f32 %v3137, %v3260
        %v3275 = vmul.f32 %v3138, %v3260
        %v3276 = vmul.f32 %v3139, %v3260
        %v3277 = vmul.f32 %v3140, %v3260
        %v3278 = vmul.f32 %v3141, %v3260
        %v3279 = vmul.f32 %v3142, %v3260
        %v3280 = vmul.f32 %v3143, %v3260
        %v3281 = vmul.f32 %v3144, %v3260
        %v3282 = vmul.f32 %v3145, %v3260
        %v3283 = vmul.f32 %v3146, %v3260
        %v3284 = vmul.f32 %v3147, %v3260
        %v3285 = vmul.f32 %v3148, %v3260
        %v3286 = vmul.f32 %v3149, %v3260
        %v3287 = vmul.f32 %v3150, %v3260
        %v3288 = vmul.f32 %v3151, %v3260
        %v3289 = vmul.f32 %v3152, %v3260
        %v3290 = vmul.f32 %v3153, %v3260
        %v3291 = vmul.f32 %v3154, %v3260
        %v3292 = vmul.f32 %v3155, %v3260
        %v3293 = vadd.f32 %v3226, %v3261
        %v3294 = vadd.f32 %v3227, %v3262
        %v3295 = vadd.f32 %v3228, %v3263
        %v3296 = vadd.f32 %v3229, %v3264
        %v3297 = vadd.f32 %v3230, %v3265
        %v3298 = vadd.f32 %v3231, %v3266
        %v3299 = vadd.f32 %v3232, %v3267
        %v3300 = vadd.f32 %v3233, %v3268
        %v3301 = vadd.f32 %v3234, %v3269
        %v3302 = vadd.f32 %v3235, %v3270
        %v3303 = vadd.f32 %v3236, %v3271
        %v3304 = vadd.f32 %v3237, %v3272
        %v3305 = vadd.f32 %v3238, %v3273
        %v3306 = vadd.f32 %v3239, %v3274
        %v3307 = vadd.f32 %v3240, %v3275
        %v3308 = vadd.f32 %v3241, %v3276
        %v3309 = vadd.f32 %v3242, %v3277
        %v3310 = vadd.f32 %v3243, %v3278
        %v3311 = vadd.f32 %v3244, %v3279
        %v3312 = vadd.f32 %v3245, %v3280
        %v3313 = vadd.f32 %v3246, %v3281
        %v3314 = vadd.f32 %v3247, %v3282
        %v3315 = vadd.f32 %v3248, %v3283
        %v3316 = vadd.f32 %v3249, %v3284
        %v3317 = vadd.f32 %v3250, %v3285
        %v3318 = vadd.f32 %v3251, %v3286
        %v3319 = vadd.f32 %v3252, %v3287
        %v3320 = vadd.f32 %v3253, %v3288
        %v3321 = vadd.f32 %v3254, %v3289
        %v3322 = vadd.f32 %v3255, %v3290
        %v3323 = vadd.f32 %v3256, %v3291
        %v3324 = vadd.f32 %v3257, %v3292
        %v3325 = vld [vmem:[%s3075 + $0x12] sm:$0xff]
        %v3326 = vld [vmem:[%s3075 + $0x1a] sm:$0xff]
        %v3327 = vld [vmem:[%s3075 + $0x4a] sm:$0xff]
        %v3328 = vld [vmem:[%s3075 + $0x52] sm:$0xff]
        %v3329 = vld [vmem:[%s3075 + $0x82] sm:$0xff]
        %v3330 = vld [vmem:[%s3075 + $0x8a] sm:$0xff]
        %v3331 = vld [vmem:[%s3075 + $0xba] sm:$0xff]
        %v3332 = vld [vmem:[%s3075 + $0xc2] sm:$0xff]
        %v3333 = vld [vmem:[%s3075 + $0xf2] sm:$0xff]
        %v3334 = vld [vmem:[%s3075 + $0xfa] sm:$0xff]
        %v3335 = vld [vmem:[%s3075 + $0x12a] sm:$0xff]
        %v3336 = vld [vmem:[%s3075 + $0x132] sm:$0xff]
        %v3337 = vld [vmem:[%s3075 + $0x162] sm:$0xff]
        %v3338 = vld [vmem:[%s3075 + $0x16a] sm:$0xff]
        %v3339 = vld [vmem:[%s3075 + $0x19a] sm:$0xff]
        %v3340 = vld [vmem:[%s3075 + $0x1a2] sm:$0xff]
        %v3341 = vld [vmem:[%s3075 + $0x1d2] sm:$0xff]
        %v3342 = vld [vmem:[%s3075 + $0x1da] sm:$0xff]
        %v3343 = vld [vmem:[%s3075 + $0x20a] sm:$0xff]
        %v3344 = vld [vmem:[%s3075 + $0x212] sm:$0xff]
        %v3345 = vld [vmem:[%s3075 + $0x242] sm:$0xff]
        %v3346 = vld [vmem:[%s3075 + $0x24a] sm:$0xff]
        %v3347 = vld [vmem:[%s3075 + $0x27a] sm:$0xff]
        %v3348 = vld [vmem:[%s3075 + $0x282] sm:$0xff]
        %v3349 = vld [vmem:[%s3075 + $0x2b2] sm:$0xff]
        %v3350 = vld [vmem:[%s3075 + $0x2ba] sm:$0xff]
        %v3351 = vld [vmem:[%s3075 + $0x2ea] sm:$0xff]
        %v3352 = vld [vmem:[%s3075 + $0x2f2] sm:$0xff]
        %v3353 = vld [vmem:[%s3075 + $0x322] sm:$0xff]
        %v3354 = vld [vmem:[%s3075 + $0x32a] sm:$0xff]
        %v3355 = vld [vmem:[%s3075 + $0x35a] sm:$0xff]
        %v3356 = vld [vmem:[%s3075 + $0x362] sm:$0xff]
        %v3357 = vld [vmem:[%s3075 + $0x392] sm:$0xff]
        %v3358 = vld [vmem:[%s3075 + $0x39a] sm:$0xff]
        %v3359 = vld [vmem:[%s3075 + $0x3ca] sm:$0xff]
        %v3360 = vld [vmem:[%s3075 + $0x3d2] sm:$0xff]
        %v3361 = vld [vmem:[%s3075 + $0x402] sm:$0xff]
        %v3362 = vld [vmem:[%s3075 + $0x40a] sm:$0xff]
        %v3363 = vld [vmem:[%s3075 + $0x43a] sm:$0xff]
        %v3364 = vld [vmem:[%s3075 + $0x442] sm:$0xff]
        %v3365 = vld [vmem:[%s3075 + $0x472] sm:$0xff]
        %v3366 = vld [vmem:[%s3075 + $0x47a] sm:$0xff]
        %v3367 = vld [vmem:[%s3075 + $0x4aa] sm:$0xff]
        %v3368 = vld [vmem:[%s3075 + $0x4b2] sm:$0xff]
        %v3369 = vld [vmem:[%s3075 + $0x4e2] sm:$0xff]
        %v3370 = vld [vmem:[%s3075 + $0x4ea] sm:$0xff]
        %v3371 = vld [vmem:[%s3075 + $0x51a] sm:$0xff]
        %v3372 = vld [vmem:[%s3075 + $0x522] sm:$0xff]
        %v3373 = vld [vmem:[%s3075 + $0x552] sm:$0xff]
        %v3374 = vld [vmem:[%s3075 + $0x55a] sm:$0xff]
        %v3375 = vld [vmem:[%s3075 + $0x58a] sm:$0xff]
        %v3376 = vld [vmem:[%s3075 + $0x592] sm:$0xff]
        %v3377 = vld [vmem:[%s3075 + $0x5c2] sm:$0xff]
        %v3378 = vld [vmem:[%s3075 + $0x5ca] sm:$0xff]
        %v3379 = vld [vmem:[%s3075 + $0x5fa] sm:$0xff]
        %v3380 = vld [vmem:[%s3075 + $0x602] sm:$0xff]
        %v3381 = vld [vmem:[%s3075 + $0x632] sm:$0xff]
        %v3382 = vld [vmem:[%s3075 + $0x63a] sm:$0xff]
        %v3383 = vld [vmem:[%s3075 + $0x66a] sm:$0xff]
        %v3384 = vld [vmem:[%s3075 + $0x672] sm:$0xff]
        %v3385 = vld [vmem:[%s3075 + $0x6a2] sm:$0xff]
        %v3386 = vld [vmem:[%s3075 + $0x6aa] sm:$0xff]
        %v3387 = vld [vmem:[%s3075 + $0x6da] sm:$0xff]
        %v3388 = vld [vmem:[%s3075 + $0x6e2] sm:$0xff]
        %v3389 = vld [vmem:[%s3075 + $0x712] sm:$0xff]
        %v3390 = vld [vmem:[%s3075 + $0x71a] sm:$0xff]
        %v3391 = vld [vmem:[%s3075 + $0x74a] sm:$0xff]
        %v3392 = vld [vmem:[%s3075 + $0x752] sm:$0xff]
        %v3393 = vld [vmem:[%s3075 + $0x782] sm:$0xff]
        %v3394 = vld [vmem:[%s3075 + $0x78a] sm:$0xff]
        %v3395 = vld [vmem:[%s3075 + $0x7ba] sm:$0xff]
        %v3396 = vld [vmem:[%s3075 + $0x7c2] sm:$0xff]
        %v3397 = vld [vmem:[%s3075 + $0x7f2] sm:$0xff]
        %v3398 = vld [vmem:[%s3075 + $0x7fa] sm:$0xff]
        %v3399 = vld [vmem:[%s3075 + $0x82a] sm:$0xff]
        %v3400 = vld [vmem:[%s3075 + $0x832] sm:$0xff]
        %v3401 = vld [vmem:[%s3075 + $0x862] sm:$0xff]
        %v3402 = vld [vmem:[%s3075 + $0x86a] sm:$0xff]
        %v3403 = vld [vmem:[%s3075 + $0x89a] sm:$0xff]
        %v3404 = vld [vmem:[%s3075 + $0x8a2] sm:$0xff]
        %v3405 = vld [vmem:[%s3156 + $0x1] sm:$0x1]
        %v3406 = vperm.slane %v3405, 0
        %v3407 = vmul.f32 %v3325, %v3406
        %v3408 = vmul.f32 %v3326, %v3406
        %v3409 = vmul.f32 %v3327, %v3406
        %v3410 = vmul.f32 %v3328, %v3406
        %v3411 = vmul.f32 %v3329, %v3406
        %v3412 = vmul.f32 %v3330, %v3406
        %v3413 = vmul.f32 %v3331, %v3406
        %v3414 = vmul.f32 %v3332, %v3406
        %v3415 = vmul.f32 %v3333, %v3406
        %v3416 = vmul.f32 %v3334, %v3406
        %v3417 = vmul.f32 %v3335, %v3406
        %v3418 = vmul.f32 %v3336, %v3406
        %v3419 = vmul.f32 %v3337, %v3406
        %v3420 = vmul.f32 %v3338, %v3406
        %v3421 = vmul.f32 %v3339, %v3406
        %v3422 = vmul.f32 %v3340, %v3406
        %v3423 = vmul.f32 %v3341, %v3406
        %v3424 = vmul.f32 %v3342, %v3406
        %v3425 = vmul.f32 %v3343, %v3406
        %v3426 = vmul.f32 %v3344, %v3406
        %v3427 = vmul.f32 %v3345, %v3406
        %v3428 = vmul.f32 %v3346, %v3406
        %v3429 = vmul.f32 %v3347, %v3406
        %v3430 = vmul.f32 %v3348, %v3406
        %v3431 = vmul.f32 %v3349, %v3406
        %v3432 = vmul.f32 %v3350, %v3406
        %v3433 = vmul.f32 %v3351, %v3406
        %v3434 = vmul.f32 %v3352, %v3406
        %v3435 = vmul.f32 %v3353, %v3406
        %v3436 = vmul.f32 %v3354, %v3406
        %v3437 = vmul.f32 %v3355, %v3406
        %v3438 = vmul.f32 %v3356, %v3406
        %v3439 = vadd.f32 %v3293, %v3407
        %v3440 = vadd.f32 %v3294, %v3408
        %v3441 = vadd.f32 %v3295, %v3409
        %v3442 = vadd.f32 %v3296, %v3410
        %v3443 = vadd.f32 %v3297, %v3411
        %v3444 = vadd.f32 %v3298, %v3412
        %v3445 = vadd.f32 %v3299, %v3413
        %v3446 = vadd.f32 %v3300, %v3414
        %v3447 = vadd.f32 %v3301, %v3415
        %v3448 = vadd.f32 %v3302, %v3416
        %v3449 = vadd.f32 %v3303, %v3417
        %v3450 = vadd.f32 %v3304, %v3418
        %v3451 = vadd.f32 %v3305, %v3419
        %v3452 = vadd.f32 %v3306, %v3420
        %v3453 = vadd.f32 %v3307, %v3421
        %v3454 = vadd.f32 %v3308, %v3422
        %v3455 = vadd.f32 %v3309, %v3423
        %v3456 = vadd.f32 %v3310, %v3424
        %v3457 = vadd.f32 %v3311, %v3425
        %v3458 = vadd.f32 %v3312, %v3426
        %v3459 = vadd.f32 %v3313, %v3427
        %v3460 = vadd.f32 %v3314, %v3428
        %v3461 = vadd.f32 %v3315, %v3429
        %v3462 = vadd.f32 %v3316, %v3430
        %v3463 = vadd.f32 %v3317, %v3431
        %v3464 = vadd.f32 %v3318, %v3432
        %v3465 = vadd.f32 %v3319, %v3433
        %v3466 = vadd.f32 %v3320, %v3434
        %v3467 = vadd.f32 %v3321, %v3435
        %v3468 = vadd.f32 %v3322, %v3436
        %v3469 = vadd.f32 %v3323, %v3437
        %v3470 = vadd.f32 %v3324, %v3438
        %v3471 = vld [vmem:[%s3191 + $0x1] sm:$0x1]
        %v3472 = vperm.slane %v3471, 0
        %v3473 = vmul.f32 %v3349, %v3472
        %v3474 = vmul.f32 %v3350, %v3472
        %v3475 = vmul.f32 %v3351, %v3472
        %v3476 = vmul.f32 %v3352, %v3472
        %v3477 = vmul.f32 %v3353, %v3472
        %v3478 = vmul.f32 %v3354, %v3472
        %v3479 = vmul.f32 %v3355, %v3472
        %v3480 = vmul.f32 %v3356, %v3472
        %v3481 = vmul.f32 %v3357, %v3472
        %v3482 = vmul.f32 %v3358, %v3472
        %v3483 = vmul.f32 %v3359, %v3472
        %v3484 = vmul.f32 %v3360, %v3472
        %v3485 = vmul.f32 %v3361, %v3472
        %v3486 = vmul.f32 %v3362, %v3472
        %v3487 = vmul.f32 %v3363, %v3472
        %v3488 = vmul.f32 %v3364, %v3472
        %v3489 = vmul.f32 %v3365, %v3472
        %v3490 = vmul.f32 %v3366, %v3472
        %v3491 = vmul.f32 %v3367, %v3472
        %v3492 = vmul.f32 %v3368, %v3472
        %v3493 = vmul.f32 %v3369, %v3472
        %v3494 = vmul.f32 %v3370, %v3472
        %v3495 = vmul.f32 %v3371, %v3472
        %v3496 = vmul.f32 %v3372, %v3472
        %v3497 = vmul.f32 %v3373, %v3472
        %v3498 = vmul.f32 %v3374, %v3472
        %v3499 = vmul.f32 %v3375, %v3472
        %v3500 = vmul.f32 %v3376, %v3472
        %v3501 = vmul.f32 %v3377, %v3472
        %v3502 = vmul.f32 %v3378, %v3472
        %v3503 = vmul.f32 %v3379, %v3472
        %v3504 = vmul.f32 %v3380, %v3472
        %v3505 = vadd.f32 %v3439, %v3473
        %v3506 = vadd.f32 %v3440, %v3474
        %v3507 = vadd.f32 %v3441, %v3475
        %v3508 = vadd.f32 %v3442, %v3476
        %v3509 = vadd.f32 %v3443, %v3477
        %v3510 = vadd.f32 %v3444, %v3478
        %v3511 = vadd.f32 %v3445, %v3479
        %v3512 = vadd.f32 %v3446, %v3480
        %v3513 = vadd.f32 %v3447, %v3481
        %v3514 = vadd.f32 %v3448, %v3482
        %v3515 = vadd.f32 %v3449, %v3483
        %v3516 = vadd.f32 %v3450, %v3484
        %v3517 = vadd.f32 %v3451, %v3485
        %v3518 = vadd.f32 %v3452, %v3486
        %v3519 = vadd.f32 %v3453, %v3487
        %v3520 = vadd.f32 %v3454, %v3488
        %v3521 = vadd.f32 %v3455, %v3489
        %v3522 = vadd.f32 %v3456, %v3490
        %v3523 = vadd.f32 %v3457, %v3491
        %v3524 = vadd.f32 %v3458, %v3492
        %v3525 = vadd.f32 %v3459, %v3493
        %v3526 = vadd.f32 %v3460, %v3494
        %v3527 = vadd.f32 %v3461, %v3495
        %v3528 = vadd.f32 %v3462, %v3496
        %v3529 = vadd.f32 %v3463, %v3497
        %v3530 = vadd.f32 %v3464, %v3498
        %v3531 = vadd.f32 %v3465, %v3499
        %v3532 = vadd.f32 %v3466, %v3500
        %v3533 = vadd.f32 %v3467, %v3501
        %v3534 = vadd.f32 %v3468, %v3502
        %v3535 = vadd.f32 %v3469, %v3503
        %v3536 = vadd.f32 %v3470, %v3504
        %v3537 = vld [vmem:[%s3258 + $0x1] sm:$0x1]
        %v3538 = vperm.slane %v3537, 0
        %v3539 = vmul.f32 %v3373, %v3538
        %v3540 = vmul.f32 %v3374, %v3538
        %v3541 = vmul.f32 %v3375, %v3538
        %v3542 = vmul.f32 %v3376, %v3538
        %v3543 = vmul.f32 %v3377, %v3538
        %v3544 = vmul.f32 %v3378, %v3538
        %v3545 = vmul.f32 %v3379, %v3538
        %v3546 = vmul.f32 %v3380, %v3538
        %v3547 = vmul.f32 %v3381, %v3538
        %v3548 = vmul.f32 %v3382, %v3538
        %v3549 = vmul.f32 %v3383, %v3538
        %v3550 = vmul.f32 %v3384, %v3538
        %v3551 = vmul.f32 %v3385, %v3538
        %v3552 = vmul.f32 %v3386, %v3538
        %v3553 = vmul.f32 %v3387, %v3538
        %v3554 = vmul.f32 %v3388, %v3538
        %v3555 = vmul.f32 %v3389, %v3538
        %v3556 = vmul.f32 %v3390, %v3538
        %v3557 = vmul.f32 %v3391, %v3538
        %v3558 = vmul.f32 %v3392, %v3538
        %v3559 = vmul.f32 %v3393, %v3538
        %v3560 = vmul.f32 %v3394, %v3538
        %v3561 = vmul.f32 %v3395, %v3538
        %v3562 = vmul.f32 %v3396, %v3538
        %v3563 = vmul.f32 %v3397, %v3538
        %v3564 = vmul.f32 %v3398, %v3538
        %v3565 = vmul.f32 %v3399, %v3538
        %v3566 = vmul.f32 %v3400, %v3538
        %v3567 = vmul.f32 %v3401, %v3538
        %v3568 = vmul.f32 %v3402, %v3538
        %v3569 = vmul.f32 %v3403, %v3538
        %v3570 = vmul.f32 %v3404, %v3538
        %v3571 = vadd.f32 %v3505, %v3539
        %v3572 = vadd.f32 %v3506, %v3540
        %v3573 = vadd.f32 %v3507, %v3541
        %v3574 = vadd.f32 %v3508, %v3542
        %v3575 = vadd.f32 %v3509, %v3543
        %v3576 = vadd.f32 %v3510, %v3544
        %v3577 = vadd.f32 %v3511, %v3545
        %v3578 = vadd.f32 %v3512, %v3546
        %v3579 = vadd.f32 %v3513, %v3547
        %v3580 = vadd.f32 %v3514, %v3548
        %v3581 = vadd.f32 %v3515, %v3549
        %v3582 = vadd.f32 %v3516, %v3550
        %v3583 = vadd.f32 %v3517, %v3551
        %v3584 = vadd.f32 %v3518, %v3552
        %v3585 = vadd.f32 %v3519, %v3553
        %v3586 = vadd.f32 %v3520, %v3554
        %v3587 = vadd.f32 %v3521, %v3555
        %v3588 = vadd.f32 %v3522, %v3556
        %v3589 = vadd.f32 %v3523, %v3557
        %v3590 = vadd.f32 %v3524, %v3558
        %v3591 = vadd.f32 %v3525, %v3559
        %v3592 = vadd.f32 %v3526, %v3560
        %v3593 = vadd.f32 %v3527, %v3561
        %v3594 = vadd.f32 %v3528, %v3562
        %v3595 = vadd.f32 %v3529, %v3563
        %v3596 = vadd.f32 %v3530, %v3564
        %v3597 = vadd.f32 %v3531, %v3565
        %v3598 = vadd.f32 %v3532, %v3566
        %v3599 = vadd.f32 %v3533, %v3567
        %v3600 = vadd.f32 %v3534, %v3568
        %v3601 = vadd.f32 %v3535, %v3569
        %v3602 = vadd.f32 %v3536, %v3570
        %v3603 = vld [vmem:[%s3075 + $0x1e] sm:$0xff]
        %v3604 = vld [vmem:[%s3075 + $0x26] sm:$0xff]
        %v3605 = vld [vmem:[%s3075 + $0x56] sm:$0xff]
        %v3606 = vld [vmem:[%s3075 + $0x5e] sm:$0xff]
        %v3607 = vld [vmem:[%s3075 + $0x8e] sm:$0xff]
        %v3608 = vld [vmem:[%s3075 + $0x96] sm:$0xff]
        %v3609 = vld [vmem:[%s3075 + $0xc6] sm:$0xff]
        %v3610 = vld [vmem:[%s3075 + $0xce] sm:$0xff]
        %v3611 = vld [vmem:[%s3075 + $0xfe] sm:$0xff]
        %v3612 = vld [vmem:[%s3075 + $0x106] sm:$0xff]
        %v3613 = vld [vmem:[%s3075 + $0x136] sm:$0xff]
        %v3614 = vld [vmem:[%s3075 + $0x13e] sm:$0xff]
        %v3615 = vld [vmem:[%s3075 + $0x16e] sm:$0xff]
        %v3616 = vld [vmem:[%s3075 + $0x176] sm:$0xff]
        %v3617 = vld [vmem:[%s3075 + $0x1a6] sm:$0xff]
        %v3618 = vld [vmem:[%s3075 + $0x1ae] sm:$0xff]
        %v3619 = vld [vmem:[%s3075 + $0x1de] sm:$0xff]
        %v3620 = vld [vmem:[%s3075 + $0x1e6] sm:$0xff]
        %v3621 = vld [vmem:[%s3075 + $0x216] sm:$0xff]
        %v3622 = vld [vmem:[%s3075 + $0x21e] sm:$0xff]
        %v3623 = vld [vmem:[%s3075 + $0x24e] sm:$0xff]
        %v3624 = vld [vmem:[%s3075 + $0x256] sm:$0xff]
        %v3625 = vld [vmem:[%s3075 + $0x286] sm:$0xff]
        %v3626 = vld [vmem:[%s3075 + $0x28e] sm:$0xff]
        %v3627 = vld [vmem:[%s3075 + $0x2be] sm:$0xff]
        %v3628 = vld [vmem:[%s3075 + $0x2c6] sm:$0xff]
        %v3629 = vld [vmem:[%s3075 + $0x2f6] sm:$0xff]
        %v3630 = vld [vmem:[%s3075 + $0x2fe] sm:$0xff]
        %v3631 = vld [vmem:[%s3075 + $0x32e] sm:$0xff]
        %v3632 = vld [vmem:[%s3075 + $0x336] sm:$0xff]
        %v3633 = vld [vmem:[%s3075 + $0x366] sm:$0xff]
        %v3634 = vld [vmem:[%s3075 + $0x36e] sm:$0xff]
        %v3635 = vld [vmem:[%s3075 + $0x39e] sm:$0xff]
        %v3636 = vld [vmem:[%s3075 + $0x3a6] sm:$0xff]
        %v3637 = vld [vmem:[%s3075 + $0x3d6] sm:$0xff]
        %v3638 = vld [vmem:[%s3075 + $0x3de] sm:$0xff]
        %v3639 = vld [vmem:[%s3075 + $0x40e] sm:$0xff]
        %v3640 = vld [vmem:[%s3075 + $0x416] sm:$0xff]
        %v3641 = vld [vmem:[%s3075 + $0x446] sm:$0xff]
        %v3642 = vld [vmem:[%s3075 + $0x44e] sm:$0xff]
        %v3643 = vld [vmem:[%s3075 + $0x47e] sm:$0xff]
        %v3644 = vld [vmem:[%s3075 + $0x486] sm:$0xff]
        %v3645 = vld [vmem:[%s3075 + $0x4b6] sm:$0xff]
        %v3646 = vld [vmem:[%s3075 + $0x4be] sm:$0xff]
        %v3647 = vld [vmem:[%s3075 + $0x4ee] sm:$0xff]
        %v3648 = vld [vmem:[%s3075 + $0x4f6] sm:$0xff]
        %v3649 = vld [vmem:[%s3075 + $0x526] sm:$0xff]
        %v3650 = vld [vmem:[%s3075 + $0x52e] sm:$0xff]
        %v3651 = vld [vmem:[%s3075 + $0x55e] sm:$0xff]
        %v3652 = vld [vmem:[%s3075 + $0x566] sm:$0xff]
        %v3653 = vld [vmem:[%s3075 + $0x596] sm:$0xff]
        %v3654 = vld [vmem:[%s3075 + $0x59e] sm:$0xff]
        %v3655 = vld [vmem:[%s3075 + $0x5ce] sm:$0xff]
        %v3656 = vld [vmem:[%s3075 + $0x5d6] sm:$0xff]
        %v3657 = vld [vmem:[%s3075 + $0x606] sm:$0xff]
        %v3658 = vld [vmem:[%s3075 + $0x60e] sm:$0xff]
        %v3659 = vld [vmem:[%s3075 + $0x63e] sm:$0xff]
        %v3660 = vld [vmem:[%s3075 + $0x646] sm:$0xff]
        %v3661 = vld [vmem:[%s3075 + $0x676] sm:$0xff]
        %v3662 = vld [vmem:[%s3075 + $0x67e] sm:$0xff]
        %v3663 = vld [vmem:[%s3075 + $0x6ae] sm:$0xff]
        %v3664 = vld [vmem:[%s3075 + $0x6b6] sm:$0xff]
        %v3665 = vld [vmem:[%s3075 + $0x6e6] sm:$0xff]
        %v3666 = vld [vmem:[%s3075 + $0x6ee] sm:$0xff]
        %v3667 = vld [vmem:[%s3075 + $0x71e] sm:$0xff]
        %v3668 = vld [vmem:[%s3075 + $0x726] sm:$0xff]
        %v3669 = vld [vmem:[%s3075 + $0x756] sm:$0xff]
        %v3670 = vld [vmem:[%s3075 + $0x75e] sm:$0xff]
        %v3671 = vld [vmem:[%s3075 + $0x78e] sm:$0xff]
        %v3672 = vld [vmem:[%s3075 + $0x796] sm:$0xff]
        %v3673 = vld [vmem:[%s3075 + $0x7c6] sm:$0xff]
        %v3674 = vld [vmem:[%s3075 + $0x7ce] sm:$0xff]
        %v3675 = vld [vmem:[%s3075 + $0x7fe] sm:$0xff]
        %v3676 = vld [vmem:[%s3075 + $0x806] sm:$0xff]
        %v3677 = vld [vmem:[%s3075 + $0x836] sm:$0xff]
        %v3678 = vld [vmem:[%s3075 + $0x83e] sm:$0xff]
        %v3679 = vld [vmem:[%s3075 + $0x86e] sm:$0xff]
        %v3680 = vld [vmem:[%s3075 + $0x876] sm:$0xff]
        %v3681 = vld [vmem:[%s3075 + $0x8a6] sm:$0xff]
        %v3682 = vld [vmem:[%s3075 + $0x8ae] sm:$0xff]
        %v3683 = vld [vmem:[%s3156 + $0x2] sm:$0x1]
        %v3684 = vperm.slane %v3683, 0
        %v3685 = vmul.f32 %v3603, %v3684
        %v3686 = vmul.f32 %v3604, %v3684
        %v3687 = vmul.f32 %v3605, %v3684
        %v3688 = vmul.f32 %v3606, %v3684
        %v3689 = vmul.f32 %v3607, %v3684
        %v3690 = vmul.f32 %v3608, %v3684
        %v3691 = vmul.f32 %v3609, %v3684
        %v3692 = vmul.f32 %v3610, %v3684
        %v3693 = vmul.f32 %v3611, %v3684
        %v3694 = vmul.f32 %v3612, %v3684
        %v3695 = vmul.f32 %v3613, %v3684
        %v3696 = vmul.f32 %v3614, %v3684
        %v3697 = vmul.f32 %v3615, %v3684
        %v3698 = vmul.f32 %v3616, %v3684
        %v3699 = vmul.f32 %v3617, %v3684
        %v3700 = vmul.f32 %v3618, %v3684
        %v3701 = vmul.f32 %v3619, %v3684
        %v3702 = vmul.f32 %v3620, %v3684
        %v3703 = vmul.f32 %v3621, %v3684
        %v3704 = vmul.f32 %v3622, %v3684
        %v3705 = vmul.f32 %v3623, %v3684
        %v3706 = vmul.f32 %v3624, %v3684
        %v3707 = vmul.f32 %v3625, %v3684
        %v3708 = vmul.f32 %v3626, %v3684
        %v3709 = vmul.f32 %v3627, %v3684
        %v3710 = vmul.f32 %v3628, %v3684
        %v3711 = vmul.f32 %v3629, %v3684
        %v3712 = vmul.f32 %v3630, %v3684
        %v3713 = vmul.f32 %v3631, %v3684
        %v3714 = vmul.f32 %v3632, %v3684
        %v3715 = vmul.f32 %v3633, %v3684
        %v3716 = vmul.f32 %v3634, %v3684
        %v3717 = vadd.f32 %v3571, %v3685
        %v3718 = vadd.f32 %v3572, %v3686
        %v3719 = vadd.f32 %v3573, %v3687
        %v3720 = vadd.f32 %v3574, %v3688
        %v3721 = vadd.f32 %v3575, %v3689
        %v3722 = vadd.f32 %v3576, %v3690
        %v3723 = vadd.f32 %v3577, %v3691
        %v3724 = vadd.f32 %v3578, %v3692
        %v3725 = vadd.f32 %v3579, %v3693
        %v3726 = vadd.f32 %v3580, %v3694
        %v3727 = vadd.f32 %v3581, %v3695
        %v3728 = vadd.f32 %v3582, %v3696
        %v3729 = vadd.f32 %v3583, %v3697
        %v3730 = vadd.f32 %v3584, %v3698
        %v3731 = vadd.f32 %v3585, %v3699
        %v3732 = vadd.f32 %v3586, %v3700
        %v3733 = vadd.f32 %v3587, %v3701
        %v3734 = vadd.f32 %v3588, %v3702
        %v3735 = vadd.f32 %v3589, %v3703
        %v3736 = vadd.f32 %v3590, %v3704
        %v3737 = vadd.f32 %v3591, %v3705
        %v3738 = vadd.f32 %v3592, %v3706
        %v3739 = vadd.f32 %v3593, %v3707
        %v3740 = vadd.f32 %v3594, %v3708
        %v3741 = vadd.f32 %v3595, %v3709
        %v3742 = vadd.f32 %v3596, %v3710
        %v3743 = vadd.f32 %v3597, %v3711
        %v3744 = vadd.f32 %v3598, %v3712
        %v3745 = vadd.f32 %v3599, %v3713
        %v3746 = vadd.f32 %v3600, %v3714
        %v3747 = vadd.f32 %v3601, %v3715
        %v3748 = vadd.f32 %v3602, %v3716
        %v3749 = vld [vmem:[%s3191 + $0x2] sm:$0x1]
        %v3750 = vperm.slane %v3749, 0
        %v3751 = vmul.f32 %v3627, %v3750
        %v3752 = vmul.f32 %v3628, %v3750
        %v3753 = vmul.f32 %v3629, %v3750
        %v3754 = vmul.f32 %v3630, %v3750
        %v3755 = vmul.f32 %v3631, %v3750
        %v3756 = vmul.f32 %v3632, %v3750
        %v3757 = vmul.f32 %v3633, %v3750
        %v3758 = vmul.f32 %v3634, %v3750
        %v3759 = vmul.f32 %v3635, %v3750
        %v3760 = vmul.f32 %v3636, %v3750
        %v3761 = vmul.f32 %v3637, %v3750
        %v3762 = vmul.f32 %v3638, %v3750
        %v3763 = vmul.f32 %v3639, %v3750
        %v3764 = vmul.f32 %v3640, %v3750
        %v3765 = vmul.f32 %v3641, %v3750
        %v3766 = vmul.f32 %v3642, %v3750
        %v3767 = vmul.f32 %v3643, %v3750
        %v3768 = vmul.f32 %v3644, %v3750
        %v3769 = vmul.f32 %v3645, %v3750
        %v3770 = vmul.f32 %v3646, %v3750
        %v3771 = vmul.f32 %v3647, %v3750
        %v3772 = vmul.f32 %v3648, %v3750
        %v3773 = vmul.f32 %v3649, %v3750
        %v3774 = vmul.f32 %v3650, %v3750
        %v3775 = vmul.f32 %v3651, %v3750
        %v3776 = vmul.f32 %v3652, %v3750
        %v3777 = vmul.f32 %v3653, %v3750
        %v3778 = vmul.f32 %v3654, %v3750
        %v3779 = vmul.f32 %v3655, %v3750
        %v3780 = vmul.f32 %v3656, %v3750
        %v3781 = vmul.f32 %v3657, %v3750
        %v3782 = vmul.f32 %v3658, %v3750
        %v3783 = vadd.f32 %v3717, %v3751
        %v3784 = vadd.f32 %v3718, %v3752
        %v3785 = vadd.f32 %v3719, %v3753
        %v3786 = vadd.f32 %v3720, %v3754
        %v3787 = vadd.f32 %v3721, %v3755
        %v3788 = vadd.f32 %v3722, %v3756
        %v3789 = vadd.f32 %v3723, %v3757
        %v3790 = vadd.f32 %v3724, %v3758
        %v3791 = vadd.f32 %v3725, %v3759
        %v3792 = vadd.f32 %v3726, %v3760
        %v3793 = vadd.f32 %v3727, %v3761
        %v3794 = vadd.f32 %v3728, %v3762
        %v3795 = vadd.f32 %v3729, %v3763
        %v3796 = vadd.f32 %v3730, %v3764
        %v3797 = vadd.f32 %v3731, %v3765
        %v3798 = vadd.f32 %v3732, %v3766
        %v3799 = vadd.f32 %v3733, %v3767
        %v3800 = vadd.f32 %v3734, %v3768
        %v3801 = vadd.f32 %v3735, %v3769
        %v3802 = vadd.f32 %v3736, %v3770
        %v3803 = vadd.f32 %v3737, %v3771
        %v3804 = vadd.f32 %v3738, %v3772
        %v3805 = vadd.f32 %v3739, %v3773
        %v3806 = vadd.f32 %v3740, %v3774
        %v3807 = vadd.f32 %v3741, %v3775
        %v3808 = vadd.f32 %v3742, %v3776
        %v3809 = vadd.f32 %v3743, %v3777
        %v3810 = vadd.f32 %v3744, %v3778
        %v3811 = vadd.f32 %v3745, %v3779
        %v3812 = vadd.f32 %v3746, %v3780
        %v3813 = vadd.f32 %v3747, %v3781
        %v3814 = vadd.f32 %v3748, %v3782
        %v3815 = vld [vmem:[%s3258 + $0x2] sm:$0x1]
        %v3816 = vperm.slane %v3815, 0
        %v3817 = vmul.f32 %v3651, %v3816
        %v3818 = vmul.f32 %v3652, %v3816
        %v3819 = vmul.f32 %v3653, %v3816
        %v3820 = vmul.f32 %v3654, %v3816
        %v3821 = vmul.f32 %v3655, %v3816
        %v3822 = vmul.f32 %v3656, %v3816
        %v3823 = vmul.f32 %v3657, %v3816
        %v3824 = vmul.f32 %v3658, %v3816
        %v3825 = vmul.f32 %v3659, %v3816
        %v3826 = vmul.f32 %v3660, %v3816
        %v3827 = vmul.f32 %v3661, %v3816
        %v3828 = vmul.f32 %v3662, %v3816
        %v3829 = vmul.f32 %v3663, %v3816
        %v3830 = vmul.f32 %v3664, %v3816
        %v3831 = vmul.f32 %v3665, %v3816
        %v3832 = vmul.f32 %v3666, %v3816
        %v3833 = vmul.f32 %v3667, %v3816
        %v3834 = vmul.f32 %v3668, %v3816
        %v3835 = vmul.f32 %v3669, %v3816
        %v3836 = vmul.f32 %v3670, %v3816
        %v3837 = vmul.f32 %v3671, %v3816
        %v3838 = vmul.f32 %v3672, %v3816
        %v3839 = vmul.f32 %v3673, %v3816
        %v3840 = vmul.f32 %v3674, %v3816
        %v3841 = vmul.f32 %v3675, %v3816
        %v3842 = vmul.f32 %v3676, %v3816
        %v3843 = vmul.f32 %v3677, %v3816
        %v3844 = vmul.f32 %v3678, %v3816
        %v3845 = vmul.f32 %v3679, %v3816
        %v3846 = vmul.f32 %v3680, %v3816
        %v3847 = vmul.f32 %v3681, %v3816
        %v3848 = vmul.f32 %v3682, %v3816
        %v3849 = vadd.f32 %v3783, %v3817
        %v3850 = vadd.f32 %v3784, %v3818
        %v3851 = vadd.f32 %v3785, %v3819
        %v3852 = vadd.f32 %v3786, %v3820
        %v3853 = vadd.f32 %v3787, %v3821
        %v3854 = vadd.f32 %v3788, %v3822
        %v3855 = vadd.f32 %v3789, %v3823
        %v3856 = vadd.f32 %v3790, %v3824
        %v3857 = vadd.f32 %v3791, %v3825
        %v3858 = vadd.f32 %v3792, %v3826
        %v3859 = vadd.f32 %v3793, %v3827
        %v3860 = vadd.f32 %v3794, %v3828
        %v3861 = vadd.f32 %v3795, %v3829
        %v3862 = vadd.f32 %v3796, %v3830
        %v3863 = vadd.f32 %v3797, %v3831
        %v3864 = vadd.f32 %v3798, %v3832
        %v3865 = vadd.f32 %v3799, %v3833
        %v3866 = vadd.f32 %v3800, %v3834
        %v3867 = vadd.f32 %v3801, %v3835
        %v3868 = vadd.f32 %v3802, %v3836
        %v3869 = vadd.f32 %v3803, %v3837
        %v3870 = vadd.f32 %v3804, %v3838
        %v3871 = vadd.f32 %v3805, %v3839
        %v3872 = vadd.f32 %v3806, %v3840
        %v3873 = vadd.f32 %v3807, %v3841
        %v3874 = vadd.f32 %v3808, %v3842
        %v3875 = vadd.f32 %v3809, %v3843
        %v3876 = vadd.f32 %v3810, %v3844
        %v3877 = vadd.f32 %v3811, %v3845
        %v3878 = vadd.f32 %v3812, %v3846
        %v3879 = vadd.f32 %v3813, %v3847
        %v3880 = vadd.f32 %v3814, %v3848
        %v3881 = vld [vmem:[%s2 + $0x1] sm:$0x1]
        %v3882 = vperm.slane %v3881, 0
        %v3883 = vadd.f32 %v3849, %v3882
        %v3884 = vadd.f32 %v3850, %v3882
        %v3885 = vadd.f32 %v3851, %v3882
        %v3886 = vadd.f32 %v3852, %v3882
        %v3887 = vadd.f32 %v3853, %v3882
        %v3888 = vadd.f32 %v3854, %v3882
        %v3889 = vadd.f32 %v3855, %v3882
        %v3890 = vadd.f32 %v3856, %v3882
        %v3891 = vadd.f32 %v3857, %v3882
        %v3892 = vadd.f32 %v3858, %v3882
        %v3893 = vadd.f32 %v3859, %v3882
        %v3894 = vadd.f32 %v3860, %v3882
        %v3895 = vadd.f32 %v3861, %v3882
        %v3896 = vadd.f32 %v3862, %v3882
        %v3897 = vadd.f32 %v3863, %v3882
        %v3898 = vadd.f32 %v3864, %v3882
        %v3899 = vadd.f32 %v3865, %v3882
        %v3900 = vadd.f32 %v3866, %v3882
        %v3901 = vadd.f32 %v3867, %v3882
        %v3902 = vadd.f32 %v3868, %v3882
        %v3903 = vadd.f32 %v3869, %v3882
        %v3904 = vadd.f32 %v3870, %v3882
        %v3905 = vadd.f32 %v3871, %v3882
        %v3906 = vadd.f32 %v3872, %v3882
        %v3907 = vadd.f32 %v3873, %v3882
        %v3908 = vadd.f32 %v3874, %v3882
        %v3909 = vadd.f32 %v3875, %v3882
        %v3910 = vadd.f32 %v3876, %v3882
        %v3911 = vadd.f32 %v3877, %v3882
        %v3912 = vadd.f32 %v3878, %v3882
        %v3913 = vadd.f32 %v3879, %v3882
        %v3914 = vadd.f32 %v3880, %v3882
        %v3915 = vmul.f32 %v3883, 0.5
        %v3916 = vmul.f32 %v3884, 0.5
        %v3917 = vmul.f32 %v3885, 0.5
        %v3918 = vmul.f32 %v3886, 0.5
        %v3919 = vmul.f32 %v3887, 0.5
        %v3920 = vmul.f32 %v3888, 0.5
        %v3921 = vmul.f32 %v3889, 0.5
        %v3922 = vmul.f32 %v3890, 0.5
        %v3923 = vmul.f32 %v3891, 0.5
        %v3924 = vmul.f32 %v3892, 0.5
        %v3925 = vmul.f32 %v3893, 0.5
        %v3926 = vmul.f32 %v3894, 0.5
        %v3927 = vmul.f32 %v3895, 0.5
        %v3928 = vmul.f32 %v3896, 0.5
        %v3929 = vmul.f32 %v3897, 0.5
        %v3930 = vmul.f32 %v3898, 0.5
        %v3931 = vmul.f32 %v3899, 0.5
        %v3932 = vmul.f32 %v3900, 0.5
        %v3933 = vmul.f32 %v3901, 0.5
        %v3934 = vmul.f32 %v3902, 0.5
        %v3935 = vmul.f32 %v3903, 0.5
        %v3936 = vmul.f32 %v3904, 0.5
        %v3937 = vmul.f32 %v3905, 0.5
        %v3938 = vmul.f32 %v3906, 0.5
        %v3939 = vmul.f32 %v3907, 0.5
        %v3940 = vmul.f32 %v3908, 0.5
        %v3941 = vmul.f32 %v3909, 0.5
        %v3942 = vmul.f32 %v3910, 0.5
        %v3943 = vmul.f32 %v3911, 0.5
        %v3944 = vmul.f32 %v3912, 0.5
        %v3945 = vmul.f32 %v3913, 0.5
        %v3946 = vmul.f32 %v3914, 0.5
        %v3947 = vmul.f32 %v3883, %v3883
        %v3948 = vmul.f32 %v3884, %v3884
        %v3949 = vmul.f32 %v3885, %v3885
        %v3950 = vmul.f32 %v3886, %v3886
        %v3951 = vmul.f32 %v3887, %v3887
        %v3952 = vmul.f32 %v3888, %v3888
        %v3953 = vmul.f32 %v3889, %v3889
        %v3954 = vmul.f32 %v3890, %v3890
        %v3955 = vmul.f32 %v3891, %v3891
        %v3956 = vmul.f32 %v3892, %v3892
        %v3957 = vmul.f32 %v3893, %v3893
        %v3958 = vmul.f32 %v3894, %v3894
        %v3959 = vmul.f32 %v3895, %v3895
        %v3960 = vmul.f32 %v3896, %v3896
        %v3961 = vmul.f32 %v3897, %v3897
        %v3962 = vmul.f32 %v3898, %v3898
        %v3963 = vmul.f32 %v3899, %v3899
        %v3964 = vmul.f32 %v3900, %v3900
        %v3965 = vmul.f32 %v3901, %v3901
        %v3966 = vmul.f32 %v3902, %v3902
        %v3967 = vmul.f32 %v3903, %v3903
        %v3968 = vmul.f32 %v3904, %v3904
        %v3969 = vmul.f32 %v3905, %v3905
        %v3970 = vmul.f32 %v3906, %v3906
        %v3971 = vmul.f32 %v3907, %v3907
        %v3972 = vmul.f32 %v3908, %v3908
        %v3973 = vmul.f32 %v3909, %v3909
        %v3974 = vmul.f32 %v3910, %v3910
        %v3975 = vmul.f32 %v3911, %v3911
        %v3976 = vmul.f32 %v3912, %v3912
        %v3977 = vmul.f32 %v3913, %v3913
        %v3978 = vmul.f32 %v3914, %v3914
        %v3979 = vmul.f32 %v3947, %v3883
        %v3980 = vmul.f32 %v3948, %v3884
        %v3981 = vmul.f32 %v3949, %v3885
        %v3982 = vmul.f32 %v3950, %v3886
        %v3983 = vmul.f32 %v3951, %v3887
        %v3984 = vmul.f32 %v3952, %v3888
        %v3985 = vmul.f32 %v3953, %v3889
        %v3986 = vmul.f32 %v3954, %v3890
        %v3987 = vmul.f32 %v3955, %v3891
        %v3988 = vmul.f32 %v3956, %v3892
        %v3989 = vmul.f32 %v3957, %v3893
        %v3990 = vmul.f32 %v3958, %v3894
        %v3991 = vmul.f32 %v3959, %v3895
        %v3992 = vmul.f32 %v3960, %v3896
        %v3993 = vmul.f32 %v3961, %v3897
        %v3994 = vmul.f32 %v3962, %v3898
        %v3995 = vmul.f32 %v3963, %v3899
        %v3996 = vmul.f32 %v3964, %v3900
        %v3997 = vmul.f32 %v3965, %v3901
        %v3998 = vmul.f32 %v3966, %v3902
        %v3999 = vmul.f32 %v3967, %v3903
        %v4000 = vmul.f32 %v3968, %v3904
        %v4001 = vmul.f32 %v3969, %v3905
        %v4002 = vmul.f32 %v3970, %v3906
        %v4003 = vmul.f32 %v3971, %v3907
        %v4004 = vmul.f32 %v3972, %v3908
        %v4005 = vmul.f32 %v3973, %v3909
        %v4006 = vmul.f32 %v3974, %v3910
        %v4007 = vmul.f32 %v3975, %v3911
        %v4008 = vmul.f32 %v3976, %v3912
        %v4009 = vmul.f32 %v3977, %v3913
        %v4010 = vmul.f32 %v3978, %v3914
        %v4011 = vmul.f32 %v3979, 0.044715
        %v4012 = vmul.f32 %v3980, 0.044715
        %v4013 = vmul.f32 %v3981, 0.044715
        %v4014 = vmul.f32 %v3982, 0.044715
        %v4015 = vmul.f32 %v3983, 0.044715
        %v4016 = vmul.f32 %v3984, 0.044715
        %v4017 = vmul.f32 %v3985, 0.044715
        %v4018 = vmul.f32 %v3986, 0.044715
        %v4019 = vmul.f32 %v3987, 0.044715
        %v4020 = vmul.f32 %v3988, 0.044715
        %v4021 = vmul.f32 %v3989, 0.044715
        %v4022 = vmul.f32 %v3990, 0.044715
        %v4023 = vmul.f32 %v3991, 0.044715
        %v4024 = vmul.f32 %v3992, 0.044715
        %v4025 = vmul.f32 %v3993, 0.044715
        %v4026 = vmul.f32 %v3994, 0.044715
        %v4027 = vmul.f32 %v3995, 0.044715
        %v4028 = vmul.f32 %v3996, 0.044715
        %v4029 = vmul.f32 %v3997, 0.044715
        %v4030 = vmul.f32 %v3998, 0.044715
        %v4031 = vmul.f32 %v3999, 0.044715
        %v4032 = vmul.f32 %v4000, 0.044715
        %v4033 = vmul.f32 %v4001, 0.044715
        %v4034 = vmul.f32 %v4002, 0.044715
        %v4035 = vmul.f32 %v4003, 0.044715
        %v4036 = vmul.f32 %v4004, 0.044715
        %v4037 = vmul.f32 %v4005, 0.044715
        %v4038 = vmul.f32 %v4006, 0.044715
        %v4039 = vmul.f32 %v4007, 0.044715
        %v4040 = vmul.f32 %v4008, 0.044715
        %v4041 = vmul.f32 %v4009, 0.044715
        %v4042 = vmul.f32 %v4010, 0.044715
        %v4043 = vadd.f32 %v3883, %v4011
        %v4044 = vadd.f32 %v3884, %v4012
        %v4045 = vadd.f32 %v3885, %v4013
        %v4046 = vadd.f32 %v3886, %v4014
        %v4047 = vadd.f32 %v3887, %v4015
        %v4048 = vadd.f32 %v3888, %v4016
        %v4049 = vadd.f32 %v3889, %v4017
        %v4050 = vadd.f32 %v3890, %v4018
        %v4051 = vadd.f32 %v3891, %v4019
        %v4052 = vadd.f32 %v3892, %v4020
        %v4053 = vadd.f32 %v3893, %v4021
        %v4054 = vadd.f32 %v3894, %v4022
        %v4055 = vadd.f32 %v3895, %v4023
        %v4056 = vadd.f32 %v3896, %v4024
        %v4057 = vadd.f32 %v3897, %v4025
        %v4058 = vadd.f32 %v3898, %v4026
        %v4059 = vadd.f32 %v3899, %v4027
        %v4060 = vadd.f32 %v3900, %v4028
        %v4061 = vadd.f32 %v3901, %v4029
        %v4062 = vadd.f32 %v3902, %v4030
        %v4063 = vadd.f32 %v3903, %v4031
        %v4064 = vadd.f32 %v3904, %v4032
        %v4065 = vadd.f32 %v3905, %v4033
        %v4066 = vadd.f32 %v3906, %v4034
        %v4067 = vadd.f32 %v3907, %v4035
        %v4068 = vadd.f32 %v3908, %v4036
        %v4069 = vadd.f32 %v3909, %v4037
        %v4070 = vadd.f32 %v3910, %v4038
        %v4071 = vadd.f32 %v3911, %v4039
        %v4072 = vadd.f32 %v3912, %v4040
        %v4073 = vadd.f32 %v3913, %v4041
        %v4074 = vadd.f32 %v3914, %v4042
        %v4075 = vmul.f32 %v4043, 0.7978846
        %v4076 = vmul.f32 %v4044, 0.7978846
        %v4077 = vmul.f32 %v4045, 0.7978846
        %v4078 = vmul.f32 %v4046, 0.7978846
        %v4079 = vmul.f32 %v4047, 0.7978846
        %v4080 = vmul.f32 %v4048, 0.7978846
        %v4081 = vmul.f32 %v4049, 0.7978846
        %v4082 = vmul.f32 %v4050, 0.7978846
        %v4083 = vmul.f32 %v4051, 0.7978846
        %v4084 = vmul.f32 %v4052, 0.7978846
        %v4085 = vmul.f32 %v4053, 0.7978846
        %v4086 = vmul.f32 %v4054, 0.7978846
        %v4087 = vmul.f32 %v4055, 0.7978846
        %v4088 = vmul.f32 %v4056, 0.7978846
        %v4089 = vmul.f32 %v4057, 0.7978846
        %v4090 = vmul.f32 %v4058, 0.7978846
        %v4091 = vmul.f32 %v4059, 0.7978846
        %v4092 = vmul.f32 %v4060, 0.7978846
        %v4093 = vmul.f32 %v4061, 0.7978846
        %v4094 = vmul.f32 %v4062, 0.7978846
        %v4095 = vmul.f32 %v4063, 0.7978846
        %v4096 = vmul.f32 %v4064, 0.7978846
        %v4097 = vmul.f32 %v4065, 0.7978846
        %v4098 = vmul.f32 %v4066, 0.7978846
        %v4099 = vmul.f32 %v4067, 0.7978846
        %v4100 = vmul.f32 %v4068, 0.7978846
        %v4101 = vmul.f32 %v4069, 0.7978846
        %v4102 = vmul.f32 %v4070, 0.7978846
        %v4103 = vmul.f32 %v4071, 0.7978846
        %v4104 = vmul.f32 %v4072, 0.7978846
        %v4105 = vmul.f32 %v4073, 0.7978846
        %v4106 = vmul.f32 %v4074, 0.7978846
        %v4107 = vtanh.pop %v4075
        %v4108 = vtanh.pop %v4076
        %v4109 = vtanh.pop %v4077
        %v4110 = vtanh.pop %v4078
        %v4111 = vtanh.pop %v4079
        %v4112 = vtanh.pop %v4080
        %v4113 = vtanh.pop %v4081
        %v4114 = vtanh.pop %v4082
        %v4115 = vtanh.pop %v4083
        %v4116 = vtanh.pop %v4084
        %v4117 = vtanh.pop %v4085
        %v4118 = vtanh.pop %v4086
        %v4119 = vtanh.pop %v4087
        %v4120 = vtanh.pop %v4088
        %v4121 = vtanh.pop %v4089
        %v4122 = vtanh.pop %v4090
        %v4123 = vtanh.pop %v4091
        %v4124 = vtanh.pop %v4092
        %v4125 = vtanh.pop %v4093
        %v4126 = vtanh.pop %v4094
        %v4127 = vtanh.pop %v4095
        %v4128 = vtanh.pop %v4096
        %v4129 = vtanh.pop %v4097
        %v4130 = vtanh.pop %v4098
        %v4131 = vtanh.pop %v4099
        %v4132 = vtanh.pop %v4100
        %v4133 = vtanh.pop %v4101
        %v4134 = vtanh.pop %v4102
        %v4135 = vtanh.pop %v4103
        %v4136 = vtanh.pop %v4104
        %v4137 = vtanh.pop %v4105
        %v4138 = vtanh.pop %v4106
        %v4139 = vadd.f32 %v4107, 1.0
        %v4140 = vadd.f32 %v4108, 1.0
        %v4141 = vadd.f32 %v4109, 1.0
        %v4142 = vadd.f32 %v4110, 1.0
        %v4143 = vadd.f32 %v4111, 1.0
        %v4144 = vadd.f32 %v4112, 1.0
        %v4145 = vadd.f32 %v4113, 1.0
        %v4146 = vadd.f32 %v4114, 1.0
        %v4147 = vadd.f32 %v4115, 1.0
        %v4148 = vadd.f32 %v4116, 1.0
        %v4149 = vadd.f32 %v4117, 1.0
        %v4150 = vadd.f32 %v4118, 1.0
        %v4151 = vadd.f32 %v4119, 1.0
        %v4152 = vadd.f32 %v4120, 1.0
        %v4153 = vadd.f32 %v4121, 1.0
        %v4154 = vadd.f32 %v4122, 1.0
        %v4155 = vadd.f32 %v4123, 1.0
        %v4156 = vadd.f32 %v4124, 1.0
        %v4157 = vadd.f32 %v4125, 1.0
        %v4158 = vadd.f32 %v4126, 1.0
        %v4159 = vadd.f32 %v4127, 1.0
        %v4160 = vadd.f32 %v4128, 1.0
        %v4161 = vadd.f32 %v4129, 1.0
        %v4162 = vadd.f32 %v4130, 1.0
        %v4163 = vadd.f32 %v4131, 1.0
        %v4164 = vadd.f32 %v4132, 1.0
        %v4165 = vadd.f32 %v4133, 1.0
        %v4166 = vadd.f32 %v4134, 1.0
        %v4167 = vadd.f32 %v4135, 1.0
        %v4168 = vadd.f32 %v4136, 1.0
        %v4169 = vadd.f32 %v4137, 1.0
        %v4170 = vadd.f32 %v4138, 1.0
        %v4171 = vmul.f32 %v3915, %v4139
        %v4172 = vmul.f32 %v3916, %v4140
        %v4173 = vmul.f32 %v3917, %v4141
        %v4174 = vmul.f32 %v3918, %v4142
        %v4175 = vmul.f32 %v3919, %v4143
        %v4176 = vmul.f32 %v3920, %v4144
        %v4177 = vmul.f32 %v3921, %v4145
        %v4178 = vmul.f32 %v3922, %v4146
        %v4179 = vmul.f32 %v3923, %v4147
        %v4180 = vmul.f32 %v3924, %v4148
        %v4181 = vmul.f32 %v3925, %v4149
        %v4182 = vmul.f32 %v3926, %v4150
        %v4183 = vmul.f32 %v3927, %v4151
        %v4184 = vmul.f32 %v3928, %v4152
        %v4185 = vmul.f32 %v3929, %v4153
        %v4186 = vmul.f32 %v3930, %v4154
        %v4187 = vmul.f32 %v3931, %v4155
        %v4188 = vmul.f32 %v3932, %v4156
        %v4189 = vmul.f32 %v3933, %v4157
        %v4190 = vmul.f32 %v3934, %v4158
        %v4191 = vmul.f32 %v3935, %v4159
        %v4192 = vmul.f32 %v3936, %v4160
        %v4193 = vmul.f32 %v3937, %v4161
        %v4194 = vmul.f32 %v3938, %v4162
        %v4195 = vmul.f32 %v3939, %v4163
        %v4196 = vmul.f32 %v3940, %v4164
        %v4197 = vmul.f32 %v3941, %v4165
        %v4198 = vmul.f32 %v3942, %v4166
        %v4199 = vmul.f32 %v3943, %v4167
        %v4200 = vmul.f32 %v3944, %v4168
        %v4201 = vmul.f32 %v3945, %v4169
        %v4202 = vmul.f32 %v3946, %v4170
        %v4203 = vmul.f32 %v4171, 0.5
        %v4204 = vmul.f32 %v4172, 0.5
        %v4205 = vmul.f32 %v4173, 0.5
        %v4206 = vmul.f32 %v4174, 0.5
        %v4207 = vmul.f32 %v4175, 0.5
        %v4208 = vmul.f32 %v4176, 0.5
        %v4209 = vmul.f32 %v4177, 0.5
        %v4210 = vmul.f32 %v4178, 0.5
        %v4211 = vmul.f32 %v4179, 0.5
        %v4212 = vmul.f32 %v4180, 0.5
        %v4213 = vmul.f32 %v4181, 0.5
        %v4214 = vmul.f32 %v4182, 0.5
        %v4215 = vmul.f32 %v4183, 0.5
        %v4216 = vmul.f32 %v4184, 0.5
        %v4217 = vmul.f32 %v4185, 0.5
        %v4218 = vmul.f32 %v4186, 0.5
        %v4219 = vmul.f32 %v4187, 0.5
        %v4220 = vmul.f32 %v4188, 0.5
        %v4221 = vmul.f32 %v4189, 0.5
        %v4222 = vmul.f32 %v4190, 0.5
        %v4223 = vmul.f32 %v4191, 0.5
        %v4224 = vmul.f32 %v4192, 0.5
        %v4225 = vmul.f32 %v4193, 0.5
        %v4226 = vmul.f32 %v4194, 0.5
        %v4227 = vmul.f32 %v4195, 0.5
        %v4228 = vmul.f32 %v4196, 0.5
        %v4229 = vmul.f32 %v4197, 0.5
        %v4230 = vmul.f32 %v4198, 0.5
        %v4231 = vmul.f32 %v4199, 0.5
        %v4232 = vmul.f32 %v4200, 0.5
        %v4233 = vmul.f32 %v4201, 0.5
        %v4234 = vmul.f32 %v4202, 0.5
        %v4235 = vmul.f32 %v4171, %v4171
        %v4236 = vmul.f32 %v4172, %v4172
        %v4237 = vmul.f32 %v4173, %v4173
        %v4238 = vmul.f32 %v4174, %v4174
        %v4239 = vmul.f32 %v4175, %v4175
        %v4240 = vmul.f32 %v4176, %v4176
        %v4241 = vmul.f32 %v4177, %v4177
        %v4242 = vmul.f32 %v4178, %v4178
        %v4243 = vmul.f32 %v4179, %v4179
        %v4244 = vmul.f32 %v4180, %v4180
        %v4245 = vmul.f32 %v4181, %v4181
        %v4246 = vmul.f32 %v4182, %v4182
        %v4247 = vmul.f32 %v4183, %v4183
        %v4248 = vmul.f32 %v4184, %v4184
        %v4249 = vmul.f32 %v4185, %v4185
        %v4250 = vmul.f32 %v4186, %v4186
        %v4251 = vmul.f32 %v4187, %v4187
        %v4252 = vmul.f32 %v4188, %v4188
        %v4253 = vmul.f32 %v4189, %v4189
        %v4254 = vmul.f32 %v4190, %v4190
        %v4255 = vmul.f32 %v4191, %v4191
        %v4256 = vmul.f32 %v4192, %v4192
        %v4257 = vmul.f32 %v4193, %v4193
        %v4258 = vmul.f32 %v4194, %v4194
        %v4259 = vmul.f32 %v4195, %v4195
        %v4260 = vmul.f32 %v4196, %v4196
        %v4261 = vmul.f32 %v4197, %v4197
        %v4262 = vmul.f32 %v4198, %v4198
        %v4263 = vmul.f32 %v4199, %v4199
        %v4264 = vmul.f32 %v4200, %v4200
        %v4265 = vmul.f32 %v4201, %v4201
        %v4266 = vmul.f32 %v4202, %v4202
        %v4267 = vmul.f32 %v4235, %v4171
        %v4268 = vmul.f32 %v4236, %v4172
        %v4269 = vmul.f32 %v4237, %v4173
        %v4270 = vmul.f32 %v4238, %v4174
        %v4271 = vmul.f32 %v4239, %v4175
        %v4272 = vmul.f32 %v4240, %v4176
        %v4273 = vmul.f32 %v4241, %v4177
        %v4274 = vmul.f32 %v4242, %v4178
        %v4275 = vmul.f32 %v4243, %v4179
        %v4276 = vmul.f32 %v4244, %v4180
        %v4277 = vmul.f32 %v4245, %v4181
        %v4278 = vmul.f32 %v4246, %v4182
        %v4279 = vmul.f32 %v4247, %v4183
        %v4280 = vmul.f32 %v4248, %v4184
        %v4281 = vmul.f32 %v4249, %v4185
        %v4282 = vmul.f32 %v4250, %v4186
        %v4283 = vmul.f32 %v4251, %v4187
        %v4284 = vmul.f32 %v4252, %v4188
        %v4285 = vmul.f32 %v4253, %v4189
        %v4286 = vmul.f32 %v4254, %v4190
        %v4287 = vmul.f32 %v4255, %v4191
        %v4288 = vmul.f32 %v4256, %v4192
        %v4289 = vmul.f32 %v4257, %v4193
        %v4290 = vmul.f32 %v4258, %v4194
        %v4291 = vmul.f32 %v4259, %v4195
        %v4292 = vmul.f32 %v4260, %v4196
        %v4293 = vmul.f32 %v4261, %v4197
        %v4294 = vmul.f32 %v4262, %v4198
        %v4295 = vmul.f32 %v4263, %v4199
        %v4296 = vmul.f32 %v4264, %v4200
        %v4297 = vmul.f32 %v4265, %v4201
        %v4298 = vmul.f32 %v4266, %v4202
        %v4299 = vmul.f32 %v4267, 0.044715
        %v4300 = vmul.f32 %v4268, 0.044715
        %v4301 = vmul.f32 %v4269, 0.044715
        %v4302 = vmul.f32 %v4270, 0.044715
        %v4303 = vmul.f32 %v4271, 0.044715
        %v4304 = vmul.f32 %v4272, 0.044715
        %v4305 = vmul.f32 %v4273, 0.044715
        %v4306 = vmul.f32 %v4274, 0.044715
        %v4307 = vmul.f32 %v4275, 0.044715
        %v4308 = vmul.f32 %v4276, 0.044715
        %v4309 = vmul.f32 %v4277, 0.044715
        %v4310 = vmul.f32 %v4278, 0.044715
        %v4311 = vmul.f32 %v4279, 0.044715
        %v4312 = vmul.f32 %v4280, 0.044715
        %v4313 = vmul.f32 %v4281, 0.044715
        %v4314 = vmul.f32 %v4282, 0.044715
        %v4315 = vmul.f32 %v4283, 0.044715
        %v4316 = vmul.f32 %v4284, 0.044715
        %v4317 = vmul.f32 %v4285, 0.044715
        %v4318 = vmul.f32 %v4286, 0.044715
        %v4319 = vmul.f32 %v4287, 0.044715
        %v4320 = vmul.f32 %v4288, 0.044715
        %v4321 = vmul.f32 %v4289, 0.044715
        %v4322 = vmul.f32 %v4290, 0.044715
        %v4323 = vmul.f32 %v4291, 0.044715
        %v4324 = vmul.f32 %v4292, 0.044715
        %v4325 = vmul.f32 %v4293, 0.044715
        %v4326 = vmul.f32 %v4294, 0.044715
        %v4327 = vmul.f32 %v4295, 0.044715
        %v4328 = vmul.f32 %v4296, 0.044715
        %v4329 = vmul.f32 %v4297, 0.044715
        %v4330 = vmul.f32 %v4298, 0.044715
        %v4331 = vadd.f32 %v4171, %v4299
        %v4332 = vadd.f32 %v4172, %v4300
        %v4333 = vadd.f32 %v4173, %v4301
        %v4334 = vadd.f32 %v4174, %v4302
        %v4335 = vadd.f32 %v4175, %v4303
        %v4336 = vadd.f32 %v4176, %v4304
        %v4337 = vadd.f32 %v4177, %v4305
        %v4338 = vadd.f32 %v4178, %v4306
        %v4339 = vadd.f32 %v4179, %v4307
        %v4340 = vadd.f32 %v4180, %v4308
        %v4341 = vadd.f32 %v4181, %v4309
        %v4342 = vadd.f32 %v4182, %v4310
        %v4343 = vadd.f32 %v4183, %v4311
        %v4344 = vadd.f32 %v4184, %v4312
        %v4345 = vadd.f32 %v4185, %v4313
        %v4346 = vadd.f32 %v4186, %v4314
        %v4347 = vadd.f32 %v4187, %v4315
        %v4348 = vadd.f32 %v4188, %v4316
        %v4349 = vadd.f32 %v4189, %v4317
        %v4350 = vadd.f32 %v4190, %v4318
        %v4351 = vadd.f32 %v4191, %v4319
        %v4352 = vadd.f32 %v4192, %v4320
        %v4353 = vadd.f32 %v4193, %v4321
        %v4354 = vadd.f32 %v4194, %v4322
        %v4355 = vadd.f32 %v4195, %v4323
        %v4356 = vadd.f32 %v4196, %v4324
        %v4357 = vadd.f32 %v4197, %v4325
        %v4358 = vadd.f32 %v4198, %v4326
        %v4359 = vadd.f32 %v4199, %v4327
        %v4360 = vadd.f32 %v4200, %v4328
        %v4361 = vadd.f32 %v4201, %v4329
        %v4362 = vadd.f32 %v4202, %v4330
        %v4363 = vmul.f32 %v4331, 0.7978846
        %v4364 = vmul.f32 %v4332, 0.7978846
        %v4365 = vmul.f32 %v4333, 0.7978846
        %v4366 = vmul.f32 %v4334, 0.7978846
        %v4367 = vmul.f32 %v4335, 0.7978846
        %v4368 = vmul.f32 %v4336, 0.7978846
        %v4369 = vmul.f32 %v4337, 0.7978846
        %v4370 = vmul.f32 %v4338, 0.7978846
        %v4371 = vmul.f32 %v4339, 0.7978846
        %v4372 = vmul.f32 %v4340, 0.7978846
        %v4373 = vmul.f32 %v4341, 0.7978846
        %v4374 = vmul.f32 %v4342, 0.7978846
        %v4375 = vmul.f32 %v4343, 0.7978846
        %v4376 = vmul.f32 %v4344, 0.7978846
        %v4377 = vmul.f32 %v4345, 0.7978846
        %v4378 = vmul.f32 %v4346, 0.7978846
        %v4379 = vmul.f32 %v4347, 0.7978846
        %v4380 = vmul.f32 %v4348, 0.7978846
        %v4381 = vmul.f32 %v4349, 0.7978846
        %v4382 = vmul.f32 %v4350, 0.7978846
        %v4383 = vmul.f32 %v4351, 0.7978846
        %v4384 = vmul.f32 %v4352, 0.7978846
        %v4385 = vmul.f32 %v4353, 0.7978846
        %v4386 = vmul.f32 %v4354, 0.7978846
        %v4387 = vmul.f32 %v4355, 0.7978846
        %v4388 = vmul.f32 %v4356, 0.7978846
        %v4389 = vmul.f32 %v4357, 0.7978846
        %v4390 = vmul.f32 %v4358, 0.7978846
        %v4391 = vmul.f32 %v4359, 0.7978846
        %v4392 = vmul.f32 %v4360, 0.7978846
        %v4393 = vmul.f32 %v4361, 0.7978846
        %v4394 = vmul.f32 %v4362, 0.7978846
        %v4395 = vtanh.pop %v4363
        %v4396 = vtanh.pop %v4364
        %v4397 = vtanh.pop %v4365
        %v4398 = vtanh.pop %v4366
        %v4399 = vtanh.pop %v4367
        %v4400 = vtanh.pop %v4368
        %v4401 = vtanh.pop %v4369
        %v4402 = vtanh.pop %v4370
        %v4403 = vtanh.pop %v4371
        %v4404 = vtanh.pop %v4372
        %v4405 = vtanh.pop %v4373
        %v4406 = vtanh.pop %v4374
        %v4407 = vtanh.pop %v4375
        %v4408 = vtanh.pop %v4376
        %v4409 = vtanh.pop %v4377
        %v4410 = vtanh.pop %v4378
        %v4411 = vtanh.pop %v4379
        %v4412 = vtanh.pop %v4380
        %v4413 = vtanh.pop %v4381
        %v4414 = vtanh.pop %v4382
        %v4415 = vtanh.pop %v4383
        %v4416 = vtanh.pop %v4384
        %v4417 = vtanh.pop %v4385
        %v4418 = vtanh.pop %v4386
        %v4419 = vtanh.pop %v4387
        %v4420 = vtanh.pop %v4388
        %v4421 = vtanh.pop %v4389
        %v4422 = vtanh.pop %v4390
        %v4423 = vtanh.pop %v4391
        %v4424 = vtanh.pop %v4392
        %v4425 = vtanh.pop %v4393
        %v4426 = vtanh.pop %v4394
        %v4427 = vadd.f32 %v4395, 1.0
        %v4428 = vadd.f32 %v4396, 1.0
        %v4429 = vadd.f32 %v4397, 1.0
        %v4430 = vadd.f32 %v4398, 1.0
        %v4431 = vadd.f32 %v4399, 1.0
        %v4432 = vadd.f32 %v4400, 1.0
        %v4433 = vadd.f32 %v4401, 1.0
        %v4434 = vadd.f32 %v4402, 1.0
        %v4435 = vadd.f32 %v4403, 1.0
        %v4436 = vadd.f32 %v4404, 1.0
        %v4437 = vadd.f32 %v4405, 1.0
        %v4438 = vadd.f32 %v4406, 1.0
        %v4439 = vadd.f32 %v4407, 1.0
        %v4440 = vadd.f32 %v4408, 1.0
        %v4441 = vadd.f32 %v4409, 1.0
        %v4442 = vadd.f32 %v4410, 1.0
        %v4443 = vadd.f32 %v4411, 1.0
        %v4444 = vadd.f32 %v4412, 1.0
        %v4445 = vadd.f32 %v4413, 1.0
        %v4446 = vadd.f32 %v4414, 1.0
        %v4447 = vadd.f32 %v4415, 1.0
        %v4448 = vadd.f32 %v4416, 1.0
        %v4449 = vadd.f32 %v4417, 1.0
        %v4450 = vadd.f32 %v4418, 1.0
        %v4451 = vadd.f32 %v4419, 1.0
        %v4452 = vadd.f32 %v4420, 1.0
        %v4453 = vadd.f32 %v4421, 1.0
        %v4454 = vadd.f32 %v4422, 1.0
        %v4455 = vadd.f32 %v4423, 1.0
        %v4456 = vadd.f32 %v4424, 1.0
        %v4457 = vadd.f32 %v4425, 1.0
        %v4458 = vadd.f32 %v4426, 1.0
        %v4459 = vmul.f32 %v4203, %v4427
        %v4460 = vmul.f32 %v4204, %v4428
        %v4461 = vmul.f32 %v4205, %v4429
        %v4462 = vmul.f32 %v4206, %v4430
        %v4463 = vmul.f32 %v4207, %v4431
        %v4464 = vmul.f32 %v4208, %v4432
        %v4465 = vmul.f32 %v4209, %v4433
        %v4466 = vmul.f32 %v4210, %v4434
        %v4467 = vmul.f32 %v4211, %v4435
        %v4468 = vmul.f32 %v4212, %v4436
        %v4469 = vmul.f32 %v4213, %v4437
        %v4470 = vmul.f32 %v4214, %v4438
        %v4471 = vmul.f32 %v4215, %v4439
        %v4472 = vmul.f32 %v4216, %v4440
        %v4473 = vmul.f32 %v4217, %v4441
        %v4474 = vmul.f32 %v4218, %v4442
        %v4475 = vmul.f32 %v4219, %v4443
        %v4476 = vmul.f32 %v4220, %v4444
        %v4477 = vmul.f32 %v4221, %v4445
        %v4478 = vmul.f32 %v4222, %v4446
        %v4479 = vmul.f32 %v4223, %v4447
        %v4480 = vmul.f32 %v4224, %v4448
        %v4481 = vmul.f32 %v4225, %v4449
        %v4482 = vmul.f32 %v4226, %v4450
        %v4483 = vmul.f32 %v4227, %v4451
        %v4484 = vmul.f32 %v4228, %v4452
        %v4485 = vmul.f32 %v4229, %v4453
        %v4486 = vmul.f32 %v4230, %v4454
        %v4487 = vmul.f32 %v4231, %v4455
        %v4488 = vmul.f32 %v4232, %v4456
        %v4489 = vmul.f32 %v4233, %v4457
        %v4490 = vmul.f32 %v4234, %v4458
        %s4491 = scalar_lea.vmem %s136, 256 [#allocation4]
        %4492 = vst [vmem:[%s4491] sm:$0xff] %v4459
        %4493 = vst [vmem:[%s4491 + $0x8] sm:$0xff] %v4460
        %4494 = vst [vmem:[%s4491 + $0x10] sm:$0xff] %v4461
        %4495 = vst [vmem:[%s4491 + $0x18] sm:$0xff] %v4462
        %4496 = vst [vmem:[%s4491 + $0x20] sm:$0xff] %v4463
        %4497 = vst [vmem:[%s4491 + $0x28] sm:$0xff] %v4464
        %4498 = vst [vmem:[%s4491 + $0x30] sm:$0xff] %v4465
        %4499 = vst [vmem:[%s4491 + $0x38] sm:$0xff] %v4466
        %4500 = vst [vmem:[%s4491 + $0x40] sm:$0xff] %v4467
        %4501 = vst [vmem:[%s4491 + $0x48] sm:$0xff] %v4468
        %4502 = vst [vmem:[%s4491 + $0x50] sm:$0xff] %v4469
        %4503 = vst [vmem:[%s4491 + $0x58] sm:$0xff] %v4470
        %4504 = vst [vmem:[%s4491 + $0x60] sm:$0xff] %v4471
        %4505 = vst [vmem:[%s4491 + $0x68] sm:$0xff] %v4472
        %4506 = vst [vmem:[%s4491 + $0x70] sm:$0xff] %v4473
        %4507 = vst [vmem:[%s4491 + $0x78] sm:$0xff] %v4474
        %4508 = vst [vmem:[%s4491 + $0x80] sm:$0xff] %v4475
        %4509 = vst [vmem:[%s4491 + $0x88] sm:$0xff] %v4476
        %4510 = vst [vmem:[%s4491 + $0x90] sm:$0xff] %v4477
        %4511 = vst [vmem:[%s4491 + $0x98] sm:$0xff] %v4478
        %4512 = vst [vmem:[%s4491 + $0xa0] sm:$0xff] %v4479
        %4513 = vst [vmem:[%s4491 + $0xa8] sm:$0xff] %v4480
        %4514 = vst [vmem:[%s4491 + $0xb0] sm:$0xff] %v4481
        %4515 = vst [vmem:[%s4491 + $0xb8] sm:$0xff] %v4482
        %4516 = vst [vmem:[%s4491 + $0xc0] sm:$0xff] %v4483
        %4517 = vst [vmem:[%s4491 + $0xc8] sm:$0xff] %v4484
        %4518 = vst [vmem:[%s4491 + $0xd0] sm:$0xff] %v4485
        %4519 = vst [vmem:[%s4491 + $0xd8] sm:$0xff] %v4486
        %4520 = vst [vmem:[%s4491 + $0xe0] sm:$0xff] %v4487
        %4521 = vst [vmem:[%s4491 + $0xe8] sm:$0xff] %v4488
        %4522 = vst [vmem:[%s4491 + $0xf0] sm:$0xff] %v4489
        %4523 = vst [vmem:[%s4491 + $0xf8] sm:$0xff] %v4490
        %v4524 = vld [vmem:[%s1692] sm:$0xff]
        %v4525 = vld [vmem:[%s1692 + $0x8] sm:$0xff]
        %v4526 = vld [vmem:[%s1692 + $0x38] sm:$0xff]
        %v4527 = vld [vmem:[%s1692 + $0x40] sm:$0xff]
        %v4528 = vld [vmem:[%s1692 + $0x70] sm:$0xff]
        %v4529 = vld [vmem:[%s1692 + $0x78] sm:$0xff]
        %v4530 = vld [vmem:[%s1692 + $0xa8] sm:$0xff]
        %v4531 = vld [vmem:[%s1692 + $0xb0] sm:$0xff]
        %v4532 = vld [vmem:[%s1692 + $0xe0] sm:$0xff]
        %v4533 = vld [vmem:[%s1692 + $0xe8] sm:$0xff]
        %v4534 = vld [vmem:[%s1692 + $0x118] sm:$0xff]
        %v4535 = vld [vmem:[%s1692 + $0x120] sm:$0xff]
        %v4536 = vld [vmem:[%s1692 + $0x150] sm:$0xff]
        %v4537 = vld [vmem:[%s1692 + $0x158] sm:$0xff]
        %v4538 = vld [vmem:[%s1692 + $0x188] sm:$0xff]
        %v4539 = vld [vmem:[%s1692 + $0x190] sm:$0xff]
        %v4540 = vld [vmem:[%s1692 + $0x1c0] sm:$0xff]
        %v4541 = vld [vmem:[%s1692 + $0x1c8] sm:$0xff]
        %v4542 = vld [vmem:[%s1692 + $0x1f8] sm:$0xff]
        %v4543 = vld [vmem:[%s1692 + $0x200] sm:$0xff]
        %v4544 = vld [vmem:[%s1692 + $0x230] sm:$0xff]
        %v4545 = vld [vmem:[%s1692 + $0x238] sm:$0xff]
        %v4546 = vld [vmem:[%s1692 + $0x268] sm:$0xff]
        %v4547 = vld [vmem:[%s1692 + $0x270] sm:$0xff]
        %v4548 = vld [vmem:[%s1692 + $0x2a0] sm:$0xff]
        %v4549 = vld [vmem:[%s1692 + $0x2a8] sm:$0xff]
        %v4550 = vld [vmem:[%s1692 + $0x2d8] sm:$0xff]
        %v4551 = vld [vmem:[%s1692 + $0x2e0] sm:$0xff]
        %v4552 = vld [vmem:[%s1692 + $0x310] sm:$0xff]
        %v4553 = vld [vmem:[%s1692 + $0x318] sm:$0xff]
        %v4554 = vld [vmem:[%s1692 + $0x348] sm:$0xff]
        %v4555 = vld [vmem:[%s1692 + $0x350] sm:$0xff]
        %v4556 = vld [vmem:[%s1692 + $0x3f0] sm:$0xff]
        %v4557 = vld [vmem:[%s1692 + $0x3f8] sm:$0xff]
        %v4558 = vld [vmem:[%s1692 + $0x428] sm:$0xff]
        %v4559 = vld [vmem:[%s1692 + $0x430] sm:$0xff]
        %v4560 = vld [vmem:[%s1692 + $0x460] sm:$0xff]
        %v4561 = vld [vmem:[%s1692 + $0x468] sm:$0xff]
        %v4562 = vld [vmem:[%s1692 + $0x498] sm:$0xff]
        %v4563 = vld [vmem:[%s1692 + $0x4a0] sm:$0xff]
        %v4564 = vld [vmem:[%s1692 + $0x4d0] sm:$0xff]
        %v4565 = vld [vmem:[%s1692 + $0x4d8] sm:$0xff]
        %v4566 = vld [vmem:[%s1692 + $0x508] sm:$0xff]
        %v4567 = vld [vmem:[%s1692 + $0x510] sm:$0xff]
        %v4568 = vld [vmem:[%s1692 + $0x540] sm:$0xff]
        %v4569 = vld [vmem:[%s1692 + $0x548] sm:$0xff]
        %v4570 = vld [vmem:[%s1692 + $0x578] sm:$0xff]
        %v4571 = vld [vmem:[%s1692 + $0x580] sm:$0xff]
        %v4572 = vld [vmem:[%s1692 + $0x5b0] sm:$0xff]
        %v4573 = vld [vmem:[%s1692 + $0x5b8] sm:$0xff]
        %v4574 = vld [vmem:[%s1692 + $0x5e8] sm:$0xff]
        %v4575 = vld [vmem:[%s1692 + $0x5f0] sm:$0xff]
        %v4576 = vld [vmem:[%s1692 + $0x620] sm:$0xff]
        %v4577 = vld [vmem:[%s1692 + $0x628] sm:$0xff]
        %v4578 = vld [vmem:[%s1692 + $0x658] sm:$0xff]
        %v4579 = vld [vmem:[%s1692 + $0x660] sm:$0xff]
        %v4580 = vld [vmem:[%s1692 + $0x690] sm:$0xff]
        %v4581 = vld [vmem:[%s1692 + $0x698] sm:$0xff]
        %v4582 = vld [vmem:[%s1692 + $0x6c8] sm:$0xff]
        %v4583 = vld [vmem:[%s1692 + $0x6d0] sm:$0xff]
        %v4584 = vld [vmem:[%s1692 + $0x700] sm:$0xff]
        %v4585 = vld [vmem:[%s1692 + $0x708] sm:$0xff]
        %v4586 = vld [vmem:[%s1692 + $0x738] sm:$0xff]
        %v4587 = vld [vmem:[%s1692 + $0x740] sm:$0xff]
        %v4588 = vld [vmem:[%s1692 + $0x7e0] sm:$0xff]
        %v4589 = vld [vmem:[%s1692 + $0x7e8] sm:$0xff]
        %v4590 = vld [vmem:[%s1692 + $0x818] sm:$0xff]
        %v4591 = vld [vmem:[%s1692 + $0x820] sm:$0xff]
        %v4592 = vld [vmem:[%s1692 + $0x850] sm:$0xff]
        %v4593 = vld [vmem:[%s1692 + $0x858] sm:$0xff]
        %v4594 = vld [vmem:[%s1692 + $0x888] sm:$0xff]
        %v4595 = vld [vmem:[%s1692 + $0x890] sm:$0xff]
        %v4596 = vld [vmem:[%s1692 + $0x8c0] sm:$0xff]
        %v4597 = vld [vmem:[%s1692 + $0x8c8] sm:$0xff]
        %v4598 = vld [vmem:[%s1692 + $0x8f8] sm:$0xff]
        %v4599 = vld [vmem:[%s1692 + $0x900] sm:$0xff]
        %v4600 = vld [vmem:[%s1692 + $0x930] sm:$0xff]
        %v4601 = vld [vmem:[%s1692 + $0x938] sm:$0xff]
        %v4602 = vld [vmem:[%s1692 + $0x968] sm:$0xff]
        %v4603 = vld [vmem:[%s1692 + $0x970] sm:$0xff]
        %v4604 = vld [vmem:[%s1692 + $0x9a0] sm:$0xff]
        %v4605 = vld [vmem:[%s1692 + $0x9a8] sm:$0xff]
        %v4606 = vld [vmem:[%s1692 + $0x9d8] sm:$0xff]
        %v4607 = vld [vmem:[%s1692 + $0x9e0] sm:$0xff]
        %v4608 = vld [vmem:[%s1692 + $0xa10] sm:$0xff]
        %v4609 = vld [vmem:[%s1692 + $0xa18] sm:$0xff]
        %v4610 = vld [vmem:[%s1692 + $0xa48] sm:$0xff]
        %v4611 = vld [vmem:[%s1692 + $0xa50] sm:$0xff]
        %v4612 = vld [vmem:[%s1692 + $0xa80] sm:$0xff]
        %v4613 = vld [vmem:[%s1692 + $0xa88] sm:$0xff]
        %v4614 = vld [vmem:[%s1692 + $0xab8] sm:$0xff]
        %v4615 = vld [vmem:[%s1692 + $0xac0] sm:$0xff]
        %v4616 = vld [vmem:[%s1692 + $0xaf0] sm:$0xff]
        %v4617 = vld [vmem:[%s1692 + $0xaf8] sm:$0xff]
        %v4618 = vld [vmem:[%s1692 + $0xb28] sm:$0xff]
        %v4619 = vld [vmem:[%s1692 + $0xb30] sm:$0xff]
        %s4620 = scalar_lea.vmem %s1, 24
        %v4621 = vld [vmem:[%s4620] sm:$0x1]
        %v4622 = vperm.slane %v4621, 0
        %v4623 = vmul.f32 %v4524, %v4622
        %v4624 = vmul.f32 %v4525, %v4622
        %v4625 = vmul.f32 %v4526, %v4622
        %v4626 = vmul.f32 %v4527, %v4622
        %v4627 = vmul.f32 %v4528, %v4622
        %v4628 = vmul.f32 %v4529, %v4622
        %v4629 = vmul.f32 %v4530, %v4622
        %v4630 = vmul.f32 %v4531, %v4622
        %v4631 = vmul.f32 %v4532, %v4622
        %v4632 = vmul.f32 %v4533, %v4622
        %v4633 = vmul.f32 %v4534, %v4622
        %v4634 = vmul.f32 %v4535, %v4622
        %v4635 = vmul.f32 %v4536, %v4622
        %v4636 = vmul.f32 %v4537, %v4622
        %v4637 = vmul.f32 %v4538, %v4622
        %v4638 = vmul.f32 %v4539, %v4622
        %v4639 = vmul.f32 %v4540, %v4622
        %v4640 = vmul.f32 %v4541, %v4622
        %v4641 = vmul.f32 %v4542, %v4622
        %v4642 = vmul.f32 %v4543, %v4622
        %v4643 = vmul.f32 %v4544, %v4622
        %v4644 = vmul.f32 %v4545, %v4622
        %v4645 = vmul.f32 %v4546, %v4622
        %v4646 = vmul.f32 %v4547, %v4622
        %v4647 = vmul.f32 %v4548, %v4622
        %v4648 = vmul.f32 %v4549, %v4622
        %v4649 = vmul.f32 %v4550, %v4622
        %v4650 = vmul.f32 %v4551, %v4622
        %v4651 = vmul.f32 %v4552, %v4622
        %v4652 = vmul.f32 %v4553, %v4622
        %v4653 = vmul.f32 %v4554, %v4622
        %v4654 = vmul.f32 %v4555, %v4622
        %s4655 = scalar_lea.vmem %s1, 28
        %v4656 = vld [vmem:[%s4655] sm:$0x1]
        %v4657 = vperm.slane %v4656, 0
        %v4658 = vmul.f32 %v4556, %v4657
        %v4659 = vmul.f32 %v4557, %v4657
        %v4660 = vmul.f32 %v4558, %v4657
        %v4661 = vmul.f32 %v4559, %v4657
        %v4662 = vmul.f32 %v4560, %v4657
        %v4663 = vmul.f32 %v4561, %v4657
        %v4664 = vmul.f32 %v4562, %v4657
        %v4665 = vmul.f32 %v4563, %v4657
        %v4666 = vmul.f32 %v4564, %v4657
        %v4667 = vmul.f32 %v4565, %v4657
        %v4668 = vmul.f32 %v4566, %v4657
        %v4669 = vmul.f32 %v4567, %v4657
        %v4670 = vmul.f32 %v4568, %v4657
        %v4671 = vmul.f32 %v4569, %v4657
        %v4672 = vmul.f32 %v4570, %v4657
        %v4673 = vmul.f32 %v4571, %v4657
        %v4674 = vmul.f32 %v4572, %v4657
        %v4675 = vmul.f32 %v4573, %v4657
        %v4676 = vmul.f32 %v4574, %v4657
        %v4677 = vmul.f32 %v4575, %v4657
        %v4678 = vmul.f32 %v4576, %v4657
        %v4679 = vmul.f32 %v4577, %v4657
        %v4680 = vmul.f32 %v4578, %v4657
        %v4681 = vmul.f32 %v4579, %v4657
        %v4682 = vmul.f32 %v4580, %v4657
        %v4683 = vmul.f32 %v4581, %v4657
        %v4684 = vmul.f32 %v4582, %v4657
        %v4685 = vmul.f32 %v4583, %v4657
        %v4686 = vmul.f32 %v4584, %v4657
        %v4687 = vmul.f32 %v4585, %v4657
        %v4688 = vmul.f32 %v4586, %v4657
        %v4689 = vmul.f32 %v4587, %v4657
        %v4690 = vadd.f32 %v4623, %v4658
        %v4691 = vadd.f32 %v4624, %v4659
        %v4692 = vadd.f32 %v4625, %v4660
        %v4693 = vadd.f32 %v4626, %v4661
        %v4694 = vadd.f32 %v4627, %v4662
        %v4695 = vadd.f32 %v4628, %v4663
        %v4696 = vadd.f32 %v4629, %v4664
        %v4697 = vadd.f32 %v4630, %v4665
        %v4698 = vadd.f32 %v4631, %v4666
        %v4699 = vadd.f32 %v4632, %v4667
        %v4700 = vadd.f32 %v4633, %v4668
        %v4701 = vadd.f32 %v4634, %v4669
        %v4702 = vadd.f32 %v4635, %v4670
        %v4703 = vadd.f32 %v4636, %v4671
        %v4704 = vadd.f32 %v4637, %v4672
        %v4705 = vadd.f32 %v4638, %v4673
        %v4706 = vadd.f32 %v4639, %v4674
        %v4707 = vadd.f32 %v4640, %v4675
        %v4708 = vadd.f32 %v4641, %v4676
        %v4709 = vadd.f32 %v4642, %v4677
        %v4710 = vadd.f32 %v4643, %v4678
        %v4711 = vadd.f32 %v4644, %v4679
        %v4712 = vadd.f32 %v4645, %v4680
        %v4713 = vadd.f32 %v4646, %v4681
        %v4714 = vadd.f32 %v4647, %v4682
        %v4715 = vadd.f32 %v4648, %v4683
        %v4716 = vadd.f32 %v4649, %v4684
        %v4717 = vadd.f32 %v4650, %v4685
        %v4718 = vadd.f32 %v4651, %v4686
        %v4719 = vadd.f32 %v4652, %v4687
        %v4720 = vadd.f32 %v4653, %v4688
        %v4721 = vadd.f32 %v4654, %v4689
        %s4722 = scalar_lea.vmem %s1, 32
        %v4723 = vld [vmem:[%s4722] sm:$0x1]
        %v4724 = vperm.slane %v4723, 0
        %v4725 = vmul.f32 %v4588, %v4724
        %v4726 = vmul.f32 %v4589, %v4724
        %v4727 = vmul.f32 %v4590, %v4724
        %v4728 = vmul.f32 %v4591, %v4724
        %v4729 = vmul.f32 %v4592, %v4724
        %v4730 = vmul.f32 %v4593, %v4724
        %v4731 = vmul.f32 %v4594, %v4724
        %v4732 = vmul.f32 %v4595, %v4724
        %v4733 = vmul.f32 %v4596, %v4724
        %v4734 = vmul.f32 %v4597, %v4724
        %v4735 = vmul.f32 %v4598, %v4724
        %v4736 = vmul.f32 %v4599, %v4724
        %v4737 = vmul.f32 %v4600, %v4724
        %v4738 = vmul.f32 %v4601, %v4724
        %v4739 = vmul.f32 %v4602, %v4724
        %v4740 = vmul.f32 %v4603, %v4724
        %v4741 = vmul.f32 %v4604, %v4724
        %v4742 = vmul.f32 %v4605, %v4724
        %v4743 = vmul.f32 %v4606, %v4724
        %v4744 = vmul.f32 %v4607, %v4724
        %v4745 = vmul.f32 %v4608, %v4724
        %v4746 = vmul.f32 %v4609, %v4724
        %v4747 = vmul.f32 %v4610, %v4724
        %v4748 = vmul.f32 %v4611, %v4724
        %v4749 = vmul.f32 %v4612, %v4724
        %v4750 = vmul.f32 %v4613, %v4724
        %v4751 = vmul.f32 %v4614, %v4724
        %v4752 = vmul.f32 %v4615, %v4724
        %v4753 = vmul.f32 %v4616, %v4724
        %v4754 = vmul.f32 %v4617, %v4724
        %v4755 = vmul.f32 %v4618, %v4724
        %v4756 = vmul.f32 %v4619, %v4724
        %v4757 = vadd.f32 %v4690, %v4725
        %v4758 = vadd.f32 %v4691, %v4726
        %v4759 = vadd.f32 %v4692, %v4727
        %v4760 = vadd.f32 %v4693, %v4728
        %v4761 = vadd.f32 %v4694, %v4729
        %v4762 = vadd.f32 %v4695, %v4730
        %v4763 = vadd.f32 %v4696, %v4731
        %v4764 = vadd.f32 %v4697, %v4732
        %v4765 = vadd.f32 %v4698, %v4733
        %v4766 = vadd.f32 %v4699, %v4734
        %v4767 = vadd.f32 %v4700, %v4735
        %v4768 = vadd.f32 %v4701, %v4736
        %v4769 = vadd.f32 %v4702, %v4737
        %v4770 = vadd.f32 %v4703, %v4738
        %v4771 = vadd.f32 %v4704, %v4739
        %v4772 = vadd.f32 %v4705, %v4740
        %v4773 = vadd.f32 %v4706, %v4741
        %v4774 = vadd.f32 %v4707, %v4742
        %v4775 = vadd.f32 %v4708, %v4743
        %v4776 = vadd.f32 %v4709, %v4744
        %v4777 = vadd.f32 %v4710, %v4745
        %v4778 = vadd.f32 %v4711, %v4746
        %v4779 = vadd.f32 %v4712, %v4747
        %v4780 = vadd.f32 %v4713, %v4748
        %v4781 = vadd.f32 %v4714, %v4749
        %v4782 = vadd.f32 %v4715, %v4750
        %v4783 = vadd.f32 %v4716, %v4751
        %v4784 = vadd.f32 %v4717, %v4752
        %v4785 = vadd.f32 %v4718, %v4753
        %v4786 = vadd.f32 %v4719, %v4754
        %v4787 = vadd.f32 %v4720, %v4755
        %v4788 = vadd.f32 %v4721, %v4756
        %v4789 = vld [vmem:[%s1692 + $0x12] sm:$0xff]
        %v4790 = vld [vmem:[%s1692 + $0x1a] sm:$0xff]
        %v4791 = vld [vmem:[%s1692 + $0x4a] sm:$0xff]
        %v4792 = vld [vmem:[%s1692 + $0x52] sm:$0xff]
        %v4793 = vld [vmem:[%s1692 + $0x82] sm:$0xff]
        %v4794 = vld [vmem:[%s1692 + $0x8a] sm:$0xff]
        %v4795 = vld [vmem:[%s1692 + $0xba] sm:$0xff]
        %v4796 = vld [vmem:[%s1692 + $0xc2] sm:$0xff]
        %v4797 = vld [vmem:[%s1692 + $0xf2] sm:$0xff]
        %v4798 = vld [vmem:[%s1692 + $0xfa] sm:$0xff]
        %v4799 = vld [vmem:[%s1692 + $0x12a] sm:$0xff]
        %v4800 = vld [vmem:[%s1692 + $0x132] sm:$0xff]
        %v4801 = vld [vmem:[%s1692 + $0x162] sm:$0xff]
        %v4802 = vld [vmem:[%s1692 + $0x16a] sm:$0xff]
        %v4803 = vld [vmem:[%s1692 + $0x19a] sm:$0xff]
        %v4804 = vld [vmem:[%s1692 + $0x1a2] sm:$0xff]
        %v4805 = vld [vmem:[%s1692 + $0x1d2] sm:$0xff]
        %v4806 = vld [vmem:[%s1692 + $0x1da] sm:$0xff]
        %v4807 = vld [vmem:[%s1692 + $0x20a] sm:$0xff]
        %v4808 = vld [vmem:[%s1692 + $0x212] sm:$0xff]
        %v4809 = vld [vmem:[%s1692 + $0x242] sm:$0xff]
        %v4810 = vld [vmem:[%s1692 + $0x24a] sm:$0xff]
        %v4811 = vld [vmem:[%s1692 + $0x27a] sm:$0xff]
        %v4812 = vld [vmem:[%s1692 + $0x282] sm:$0xff]
        %v4813 = vld [vmem:[%s1692 + $0x2b2] sm:$0xff]
        %v4814 = vld [vmem:[%s1692 + $0x2ba] sm:$0xff]
        %v4815 = vld [vmem:[%s1692 + $0x2ea] sm:$0xff]
        %v4816 = vld [vmem:[%s1692 + $0x2f2] sm:$0xff]
        %v4817 = vld [vmem:[%s1692 + $0x322] sm:$0xff]
        %v4818 = vld [vmem:[%s1692 + $0x32a] sm:$0xff]
        %v4819 = vld [vmem:[%s1692 + $0x35a] sm:$0xff]
        %v4820 = vld [vmem:[%s1692 + $0x362] sm:$0xff]
        %v4821 = vld [vmem:[%s1692 + $0x402] sm:$0xff]
        %v4822 = vld [vmem:[%s1692 + $0x40a] sm:$0xff]
        %v4823 = vld [vmem:[%s1692 + $0x43a] sm:$0xff]
        %v4824 = vld [vmem:[%s1692 + $0x442] sm:$0xff]
        %v4825 = vld [vmem:[%s1692 + $0x472] sm:$0xff]
        %v4826 = vld [vmem:[%s1692 + $0x47a] sm:$0xff]
        %v4827 = vld [vmem:[%s1692 + $0x4aa] sm:$0xff]
        %v4828 = vld [vmem:[%s1692 + $0x4b2] sm:$0xff]
        %v4829 = vld [vmem:[%s1692 + $0x4e2] sm:$0xff]
        %v4830 = vld [vmem:[%s1692 + $0x4ea] sm:$0xff]
        %v4831 = vld [vmem:[%s1692 + $0x51a] sm:$0xff]
        %v4832 = vld [vmem:[%s1692 + $0x522] sm:$0xff]
        %v4833 = vld [vmem:[%s1692 + $0x552] sm:$0xff]
        %v4834 = vld [vmem:[%s1692 + $0x55a] sm:$0xff]
        %v4835 = vld [vmem:[%s1692 + $0x58a] sm:$0xff]
        %v4836 = vld [vmem:[%s1692 + $0x592] sm:$0xff]
        %v4837 = vld [vmem:[%s1692 + $0x5c2] sm:$0xff]
        %v4838 = vld [vmem:[%s1692 + $0x5ca] sm:$0xff]
        %v4839 = vld [vmem:[%s1692 + $0x5fa] sm:$0xff]
        %v4840 = vld [vmem:[%s1692 + $0x602] sm:$0xff]
        %v4841 = vld [vmem:[%s1692 + $0x632] sm:$0xff]
        %v4842 = vld [vmem:[%s1692 + $0x63a] sm:$0xff]
        %v4843 = vld [vmem:[%s1692 + $0x66a] sm:$0xff]
        %v4844 = vld [vmem:[%s1692 + $0x672] sm:$0xff]
        %v4845 = vld [vmem:[%s1692 + $0x6a2] sm:$0xff]
        %v4846 = vld [vmem:[%s1692 + $0x6aa] sm:$0xff]
        %v4847 = vld [vmem:[%s1692 + $0x6da] sm:$0xff]
        %v4848 = vld [vmem:[%s1692 + $0x6e2] sm:$0xff]
        %v4849 = vld [vmem:[%s1692 + $0x712] sm:$0xff]
        %v4850 = vld [vmem:[%s1692 + $0x71a] sm:$0xff]
        %v4851 = vld [vmem:[%s1692 + $0x74a] sm:$0xff]
        %v4852 = vld [vmem:[%s1692 + $0x752] sm:$0xff]
        %v4853 = vld [vmem:[%s1692 + $0x7f2] sm:$0xff]
        %v4854 = vld [vmem:[%s1692 + $0x7fa] sm:$0xff]
        %v4855 = vld [vmem:[%s1692 + $0x82a] sm:$0xff]
        %v4856 = vld [vmem:[%s1692 + $0x832] sm:$0xff]
        %v4857 = vld [vmem:[%s1692 + $0x862] sm:$0xff]
        %v4858 = vld [vmem:[%s1692 + $0x86a] sm:$0xff]
        %v4859 = vld [vmem:[%s1692 + $0x89a] sm:$0xff]
        %v4860 = vld [vmem:[%s1692 + $0x8a2] sm:$0xff]
        %v4861 = vld [vmem:[%s1692 + $0x8d2] sm:$0xff]
        %v4862 = vld [vmem:[%s1692 + $0x8da] sm:$0xff]
        %v4863 = vld [vmem:[%s1692 + $0x90a] sm:$0xff]
        %v4864 = vld [vmem:[%s1692 + $0x912] sm:$0xff]
        %v4865 = vld [vmem:[%s1692 + $0x942] sm:$0xff]
        %v4866 = vld [vmem:[%s1692 + $0x94a] sm:$0xff]
        %v4867 = vld [vmem:[%s1692 + $0x97a] sm:$0xff]
        %v4868 = vld [vmem:[%s1692 + $0x982] sm:$0xff]
        %v4869 = vld [vmem:[%s1692 + $0x9b2] sm:$0xff]
        %v4870 = vld [vmem:[%s1692 + $0x9ba] sm:$0xff]
        %v4871 = vld [vmem:[%s1692 + $0x9ea] sm:$0xff]
        %v4872 = vld [vmem:[%s1692 + $0x9f2] sm:$0xff]
        %v4873 = vld [vmem:[%s1692 + $0xa22] sm:$0xff]
        %v4874 = vld [vmem:[%s1692 + $0xa2a] sm:$0xff]
        %v4875 = vld [vmem:[%s1692 + $0xa5a] sm:$0xff]
        %v4876 = vld [vmem:[%s1692 + $0xa62] sm:$0xff]
        %v4877 = vld [vmem:[%s1692 + $0xa92] sm:$0xff]
        %v4878 = vld [vmem:[%s1692 + $0xa9a] sm:$0xff]
        %v4879 = vld [vmem:[%s1692 + $0xaca] sm:$0xff]
        %v4880 = vld [vmem:[%s1692 + $0xad2] sm:$0xff]
        %v4881 = vld [vmem:[%s1692 + $0xb02] sm:$0xff]
        %v4882 = vld [vmem:[%s1692 + $0xb0a] sm:$0xff]
        %v4883 = vld [vmem:[%s1692 + $0xb3a] sm:$0xff]
        %v4884 = vld [vmem:[%s1692 + $0xb42] sm:$0xff]
        %v4885 = vld [vmem:[%s4620 + $0x1] sm:$0x1]
        %v4886 = vperm.slane %v4885, 0
        %v4887 = vmul.f32 %v4789, %v4886
        %v4888 = vmul.f32 %v4790, %v4886
        %v4889 = vmul.f32 %v4791, %v4886
        %v4890 = vmul.f32 %v4792, %v4886
        %v4891 = vmul.f32 %v4793, %v4886
        %v4892 = vmul.f32 %v4794, %v4886
        %v4893 = vmul.f32 %v4795, %v4886
        %v4894 = vmul.f32 %v4796, %v4886
        %v4895 = vmul.f32 %v4797, %v4886
        %v4896 = vmul.f32 %v4798, %v4886
        %v4897 = vmul.f32 %v4799, %v4886
        %v4898 = vmul.f32 %v4800, %v4886
        %v4899 = vmul.f32 %v4801, %v4886
        %v4900 = vmul.f32 %v4802, %v4886
        %v4901 = vmul.f32 %v4803, %v4886
        %v4902 = vmul.f32 %v4804, %v4886
        %v4903 = vmul.f32 %v4805, %v4886
        %v4904 = vmul.f32 %v4806, %v4886
        %v4905 = vmul.f32 %v4807, %v4886
        %v4906 = vmul.f32 %v4808, %v4886
        %v4907 = vmul.f32 %v4809, %v4886
        %v4908 = vmul.f32 %v4810, %v4886
        %v4909 = vmul.f32 %v4811, %v4886
        %v4910 = vmul.f32 %v4812, %v4886
        %v4911 = vmul.f32 %v4813, %v4886
        %v4912 = vmul.f32 %v4814, %v4886
        %v4913 = vmul.f32 %v4815, %v4886
        %v4914 = vmul.f32 %v4816, %v4886
        %v4915 = vmul.f32 %v4817, %v4886
        %v4916 = vmul.f32 %v4818, %v4886
        %v4917 = vmul.f32 %v4819, %v4886
        %v4918 = vmul.f32 %v4820, %v4886
        %v4919 = vadd.f32 %v4757, %v4887
        %v4920 = vadd.f32 %v4758, %v4888
        %v4921 = vadd.f32 %v4759, %v4889
        %v4922 = vadd.f32 %v4760, %v4890
        %v4923 = vadd.f32 %v4761, %v4891
        %v4924 = vadd.f32 %v4762, %v4892
        %v4925 = vadd.f32 %v4763, %v4893
        %v4926 = vadd.f32 %v4764, %v4894
        %v4927 = vadd.f32 %v4765, %v4895
        %v4928 = vadd.f32 %v4766, %v4896
        %v4929 = vadd.f32 %v4767, %v4897
        %v4930 = vadd.f32 %v4768, %v4898
        %v4931 = vadd.f32 %v4769, %v4899
        %v4932 = vadd.f32 %v4770, %v4900
        %v4933 = vadd.f32 %v4771, %v4901
        %v4934 = vadd.f32 %v4772, %v4902
        %v4935 = vadd.f32 %v4773, %v4903
        %v4936 = vadd.f32 %v4774, %v4904
        %v4937 = vadd.f32 %v4775, %v4905
        %v4938 = vadd.f32 %v4776, %v4906
        %v4939 = vadd.f32 %v4777, %v4907
        %v4940 = vadd.f32 %v4778, %v4908
        %v4941 = vadd.f32 %v4779, %v4909
        %v4942 = vadd.f32 %v4780, %v4910
        %v4943 = vadd.f32 %v4781, %v4911
        %v4944 = vadd.f32 %v4782, %v4912
        %v4945 = vadd.f32 %v4783, %v4913
        %v4946 = vadd.f32 %v4784, %v4914
        %v4947 = vadd.f32 %v4785, %v4915
        %v4948 = vadd.f32 %v4786, %v4916
        %v4949 = vadd.f32 %v4787, %v4917
        %v4950 = vadd.f32 %v4788, %v4918
        %v4951 = vld [vmem:[%s4655 + $0x1] sm:$0x1]
        %v4952 = vperm.slane %v4951, 0
        %v4953 = vmul.f32 %v4821, %v4952
        %v4954 = vmul.f32 %v4822, %v4952
        %v4955 = vmul.f32 %v4823, %v4952
        %v4956 = vmul.f32 %v4824, %v4952
        %v4957 = vmul.f32 %v4825, %v4952
        %v4958 = vmul.f32 %v4826, %v4952
        %v4959 = vmul.f32 %v4827, %v4952
        %v4960 = vmul.f32 %v4828, %v4952
        %v4961 = vmul.f32 %v4829, %v4952
        %v4962 = vmul.f32 %v4830, %v4952
        %v4963 = vmul.f32 %v4831, %v4952
        %v4964 = vmul.f32 %v4832, %v4952
        %v4965 = vmul.f32 %v4833, %v4952
        %v4966 = vmul.f32 %v4834, %v4952
        %v4967 = vmul.f32 %v4835, %v4952
        %v4968 = vmul.f32 %v4836, %v4952
        %v4969 = vmul.f32 %v4837, %v4952
        %v4970 = vmul.f32 %v4838, %v4952
        %v4971 = vmul.f32 %v4839, %v4952
        %v4972 = vmul.f32 %v4840, %v4952
        %v4973 = vmul.f32 %v4841, %v4952
        %v4974 = vmul.f32 %v4842, %v4952
        %v4975 = vmul.f32 %v4843, %v4952
        %v4976 = vmul.f32 %v4844, %v4952
        %v4977 = vmul.f32 %v4845, %v4952
        %v4978 = vmul.f32 %v4846, %v4952
        %v4979 = vmul.f32 %v4847, %v4952
        %v4980 = vmul.f32 %v4848, %v4952
        %v4981 = vmul.f32 %v4849, %v4952
        %v4982 = vmul.f32 %v4850, %v4952
        %v4983 = vmul.f32 %v4851, %v4952
        %v4984 = vmul.f32 %v4852, %v4952
        %v4985 = vadd.f32 %v4919, %v4953
        %v4986 = vadd.f32 %v4920, %v4954
        %v4987 = vadd.f32 %v4921, %v4955
        %v4988 = vadd.f32 %v4922, %v4956
        %v4989 = vadd.f32 %v4923, %v4957
        %v4990 = vadd.f32 %v4924, %v4958
        %v4991 = vadd.f32 %v4925, %v4959
        %v4992 = vadd.f32 %v4926, %v4960
        %v4993 = vadd.f32 %v4927, %v4961
        %v4994 = vadd.f32 %v4928, %v4962
        %v4995 = vadd.f32 %v4929, %v4963
        %v4996 = vadd.f32 %v4930, %v4964
        %v4997 = vadd.f32 %v4931, %v4965
        %v4998 = vadd.f32 %v4932, %v4966
        %v4999 = vadd.f32 %v4933, %v4967
        %v5000 = vadd.f32 %v4934, %v4968
        %v5001 = vadd.f32 %v4935, %v4969
        %v5002 = vadd.f32 %v4936, %v4970
        %v5003 = vadd.f32 %v4937, %v4971
        %v5004 = vadd.f32 %v4938, %v4972
        %v5005 = vadd.f32 %v4939, %v4973
        %v5006 = vadd.f32 %v4940, %v4974
        %v5007 = vadd.f32 %v4941, %v4975
        %v5008 = vadd.f32 %v4942, %v4976
        %v5009 = vadd.f32 %v4943, %v4977
        %v5010 = vadd.f32 %v4944, %v4978
        %v5011 = vadd.f32 %v4945, %v4979
        %v5012 = vadd.f32 %v4946, %v4980
        %v5013 = vadd.f32 %v4947, %v4981
        %v5014 = vadd.f32 %v4948, %v4982
        %v5015 = vadd.f32 %v4949, %v4983
        %v5016 = vadd.f32 %v4950, %v4984
        %v5017 = vld [vmem:[%s4722 + $0x1] sm:$0x1]
        %v5018 = vperm.slane %v5017, 0
        %v5019 = vmul.f32 %v4853, %v5018
        %v5020 = vmul.f32 %v4854, %v5018
        %v5021 = vmul.f32 %v4855, %v5018
        %v5022 = vmul.f32 %v4856, %v5018
        %v5023 = vmul.f32 %v4857, %v5018
        %v5024 = vmul.f32 %v4858, %v5018
        %v5025 = vmul.f32 %v4859, %v5018
        %v5026 = vmul.f32 %v4860, %v5018
        %v5027 = vmul.f32 %v4861, %v5018
        %v5028 = vmul.f32 %v4862, %v5018
        %v5029 = vmul.f32 %v4863, %v5018
        %v5030 = vmul.f32 %v4864, %v5018
        %v5031 = vmul.f32 %v4865, %v5018
        %v5032 = vmul.f32 %v4866, %v5018
        %v5033 = vmul.f32 %v4867, %v5018
        %v5034 = vmul.f32 %v4868, %v5018
        %v5035 = vmul.f32 %v4869, %v5018
        %v5036 = vmul.f32 %v4870, %v5018
        %v5037 = vmul.f32 %v4871, %v5018
        %v5038 = vmul.f32 %v4872, %v5018
        %v5039 = vmul.f32 %v4873, %v5018
        %v5040 = vmul.f32 %v4874, %v5018
        %v5041 = vmul.f32 %v4875, %v5018
        %v5042 = vmul.f32 %v4876, %v5018
        %v5043 = vmul.f32 %v4877, %v5018
        %v5044 = vmul.f32 %v4878, %v5018
        %v5045 = vmul.f32 %v4879, %v5018
        %v5046 = vmul.f32 %v4880, %v5018
        %v5047 = vmul.f32 %v4881, %v5018
        %v5048 = vmul.f32 %v4882, %v5018
        %v5049 = vmul.f32 %v4883, %v5018
        %v5050 = vmul.f32 %v4884, %v5018
        %v5051 = vadd.f32 %v4985, %v5019
        %v5052 = vadd.f32 %v4986, %v5020
        %v5053 = vadd.f32 %v4987, %v5021
        %v5054 = vadd.f32 %v4988, %v5022
        %v5055 = vadd.f32 %v4989, %v5023
        %v5056 = vadd.f32 %v4990, %v5024
        %v5057 = vadd.f32 %v4991, %v5025
        %v5058 = vadd.f32 %v4992, %v5026
        %v5059 = vadd.f32 %v4993, %v5027
        %v5060 = vadd.f32 %v4994, %v5028
        %v5061 = vadd.f32 %v4995, %v5029
        %v5062 = vadd.f32 %v4996, %v5030
        %v5063 = vadd.f32 %v4997, %v5031
        %v5064 = vadd.f32 %v4998, %v5032
        %v5065 = vadd.f32 %v4999, %v5033
        %v5066 = vadd.f32 %v5000, %v5034
        %v5067 = vadd.f32 %v5001, %v5035
        %v5068 = vadd.f32 %v5002, %v5036
        %v5069 = vadd.f32 %v5003, %v5037
        %v5070 = vadd.f32 %v5004, %v5038
        %v5071 = vadd.f32 %v5005, %v5039
        %v5072 = vadd.f32 %v5006, %v5040
        %v5073 = vadd.f32 %v5007, %v5041
        %v5074 = vadd.f32 %v5008, %v5042
        %v5075 = vadd.f32 %v5009, %v5043
        %v5076 = vadd.f32 %v5010, %v5044
        %v5077 = vadd.f32 %v5011, %v5045
        %v5078 = vadd.f32 %v5012, %v5046
        %v5079 = vadd.f32 %v5013, %v5047
        %v5080 = vadd.f32 %v5014, %v5048
        %v5081 = vadd.f32 %v5015, %v5049
        %v5082 = vadd.f32 %v5016, %v5050
        %v5083 = vld [vmem:[%s1692 + $0x24] sm:$0xff]
        %v5084 = vld [vmem:[%s1692 + $0x2c] sm:$0xff]
        %v5085 = vld [vmem:[%s1692 + $0x5c] sm:$0xff]
        %v5086 = vld [vmem:[%s1692 + $0x64] sm:$0xff]
        %v5087 = vld [vmem:[%s1692 + $0x94] sm:$0xff]
        %v5088 = vld [vmem:[%s1692 + $0x9c] sm:$0xff]
        %v5089 = vld [vmem:[%s1692 + $0xcc] sm:$0xff]
        %v5090 = vld [vmem:[%s1692 + $0xd4] sm:$0xff]
        %v5091 = vld [vmem:[%s1692 + $0x104] sm:$0xff]
        %v5092 = vld [vmem:[%s1692 + $0x10c] sm:$0xff]
        %v5093 = vld [vmem:[%s1692 + $0x13c] sm:$0xff]
        %v5094 = vld [vmem:[%s1692 + $0x144] sm:$0xff]
        %v5095 = vld [vmem:[%s1692 + $0x174] sm:$0xff]
        %v5096 = vld [vmem:[%s1692 + $0x17c] sm:$0xff]
        %v5097 = vld [vmem:[%s1692 + $0x1ac] sm:$0xff]
        %v5098 = vld [vmem:[%s1692 + $0x1b4] sm:$0xff]
        %v5099 = vld [vmem:[%s1692 + $0x1e4] sm:$0xff]
        %v5100 = vld [vmem:[%s1692 + $0x1ec] sm:$0xff]
        %v5101 = vld [vmem:[%s1692 + $0x21c] sm:$0xff]
        %v5102 = vld [vmem:[%s1692 + $0x224] sm:$0xff]
        %v5103 = vld [vmem:[%s1692 + $0x254] sm:$0xff]
        %v5104 = vld [vmem:[%s1692 + $0x25c] sm:$0xff]
        %v5105 = vld [vmem:[%s1692 + $0x28c] sm:$0xff]
        %v5106 = vld [vmem:[%s1692 + $0x294] sm:$0xff]
        %v5107 = vld [vmem:[%s1692 + $0x2c4] sm:$0xff]
        %v5108 = vld [vmem:[%s1692 + $0x2cc] sm:$0xff]
        %v5109 = vld [vmem:[%s1692 + $0x2fc] sm:$0xff]
        %v5110 = vld [vmem:[%s1692 + $0x304] sm:$0xff]
        %v5111 = vld [vmem:[%s1692 + $0x334] sm:$0xff]
        %v5112 = vld [vmem:[%s1692 + $0x33c] sm:$0xff]
        %v5113 = vld [vmem:[%s1692 + $0x36c] sm:$0xff]
        %v5114 = vld [vmem:[%s1692 + $0x374] sm:$0xff]
        %v5115 = vld [vmem:[%s1692 + $0x414] sm:$0xff]
        %v5116 = vld [vmem:[%s1692 + $0x41c] sm:$0xff]
        %v5117 = vld [vmem:[%s1692 + $0x44c] sm:$0xff]
        %v5118 = vld [vmem:[%s1692 + $0x454] sm:$0xff]
        %v5119 = vld [vmem:[%s1692 + $0x484] sm:$0xff]
        %v5120 = vld [vmem:[%s1692 + $0x48c] sm:$0xff]
        %v5121 = vld [vmem:[%s1692 + $0x4bc] sm:$0xff]
        %v5122 = vld [vmem:[%s1692 + $0x4c4] sm:$0xff]
        %v5123 = vld [vmem:[%s1692 + $0x4f4] sm:$0xff]
        %v5124 = vld [vmem:[%s1692 + $0x4fc] sm:$0xff]
        %v5125 = vld [vmem:[%s1692 + $0x52c] sm:$0xff]
        %v5126 = vld [vmem:[%s1692 + $0x534] sm:$0xff]
        %v5127 = vld [vmem:[%s1692 + $0x564] sm:$0xff]
        %v5128 = vld [vmem:[%s1692 + $0x56c] sm:$0xff]
        %v5129 = vld [vmem:[%s1692 + $0x59c] sm:$0xff]
        %v5130 = vld [vmem:[%s1692 + $0x5a4] sm:$0xff]
        %v5131 = vld [vmem:[%s1692 + $0x5d4] sm:$0xff]
        %v5132 = vld [vmem:[%s1692 + $0x5dc] sm:$0xff]
        %v5133 = vld [vmem:[%s1692 + $0x60c] sm:$0xff]
        %v5134 = vld [vmem:[%s1692 + $0x614] sm:$0xff]
        %v5135 = vld [vmem:[%s1692 + $0x644] sm:$0xff]
        %v5136 = vld [vmem:[%s1692 + $0x64c] sm:$0xff]
        %v5137 = vld [vmem:[%s1692 + $0x67c] sm:$0xff]
        %v5138 = vld [vmem:[%s1692 + $0x684] sm:$0xff]
        %v5139 = vld [vmem:[%s1692 + $0x6b4] sm:$0xff]
        %v5140 = vld [vmem:[%s1692 + $0x6bc] sm:$0xff]
        %v5141 = vld [vmem:[%s1692 + $0x6ec] sm:$0xff]
        %v5142 = vld [vmem:[%s1692 + $0x6f4] sm:$0xff]
        %v5143 = vld [vmem:[%s1692 + $0x724] sm:$0xff]
        %v5144 = vld [vmem:[%s1692 + $0x72c] sm:$0xff]
        %v5145 = vld [vmem:[%s1692 + $0x75c] sm:$0xff]
        %v5146 = vld [vmem:[%s1692 + $0x764] sm:$0xff]
        %v5147 = vld [vmem:[%s1692 + $0x804] sm:$0xff]
        %v5148 = vld [vmem:[%s1692 + $0x80c] sm:$0xff]
        %v5149 = vld [vmem:[%s1692 + $0x83c] sm:$0xff]
        %v5150 = vld [vmem:[%s1692 + $0x844] sm:$0xff]
        %v5151 = vld [vmem:[%s1692 + $0x874] sm:$0xff]
        %v5152 = vld [vmem:[%s1692 + $0x87c] sm:$0xff]
        %v5153 = vld [vmem:[%s1692 + $0x8ac] sm:$0xff]
        %v5154 = vld [vmem:[%s1692 + $0x8b4] sm:$0xff]
        %v5155 = vld [vmem:[%s1692 + $0x8e4] sm:$0xff]
        %v5156 = vld [vmem:[%s1692 + $0x8ec] sm:$0xff]
        %v5157 = vld [vmem:[%s1692 + $0x91c] sm:$0xff]
        %v5158 = vld [vmem:[%s1692 + $0x924] sm:$0xff]
        %v5159 = vld [vmem:[%s1692 + $0x954] sm:$0xff]
        %v5160 = vld [vmem:[%s1692 + $0x95c] sm:$0xff]
        %v5161 = vld [vmem:[%s1692 + $0x98c] sm:$0xff]
        %v5162 = vld [vmem:[%s1692 + $0x994] sm:$0xff]
        %v5163 = vld [vmem:[%s1692 + $0x9c4] sm:$0xff]
        %v5164 = vld [vmem:[%s1692 + $0x9cc] sm:$0xff]
        %v5165 = vld [vmem:[%s1692 + $0x9fc] sm:$0xff]
        %v5166 = vld [vmem:[%s1692 + $0xa04] sm:$0xff]
        %v5167 = vld [vmem:[%s1692 + $0xa34] sm:$0xff]
        %v5168 = vld [vmem:[%s1692 + $0xa3c] sm:$0xff]
        %v5169 = vld [vmem:[%s1692 + $0xa6c] sm:$0xff]
        %v5170 = vld [vmem:[%s1692 + $0xa74] sm:$0xff]
        %v5171 = vld [vmem:[%s1692 + $0xaa4] sm:$0xff]
        %v5172 = vld [vmem:[%s1692 + $0xaac] sm:$0xff]
        %v5173 = vld [vmem:[%s1692 + $0xadc] sm:$0xff]
        %v5174 = vld [vmem:[%s1692 + $0xae4] sm:$0xff]
        %v5175 = vld [vmem:[%s1692 + $0xb14] sm:$0xff]
        %v5176 = vld [vmem:[%s1692 + $0xb1c] sm:$0xff]
        %v5177 = vld [vmem:[%s1692 + $0xb4c] sm:$0xff]
        %v5178 = vld [vmem:[%s1692 + $0xb54] sm:$0xff]
        %v5179 = vld [vmem:[%s4620 + $0x2] sm:$0x1]
        %v5180 = vperm.slane %v5179, 0
        %v5181 = vmul.f32 %v5083, %v5180
        %v5182 = vmul.f32 %v5084, %v5180
        %v5183 = vmul.f32 %v5085, %v5180
        %v5184 = vmul.f32 %v5086, %v5180
        %v5185 = vmul.f32 %v5087, %v5180
        %v5186 = vmul.f32 %v5088, %v5180
        %v5187 = vmul.f32 %v5089, %v5180
        %v5188 = vmul.f32 %v5090, %v5180
        %v5189 = vmul.f32 %v5091, %v5180
        %v5190 = vmul.f32 %v5092, %v5180
        %v5191 = vmul.f32 %v5093, %v5180
        %v5192 = vmul.f32 %v5094, %v5180
        %v5193 = vmul.f32 %v5095, %v5180
        %v5194 = vmul.f32 %v5096, %v5180
        %v5195 = vmul.f32 %v5097, %v5180
        %v5196 = vmul.f32 %v5098, %v5180
        %v5197 = vmul.f32 %v5099, %v5180
        %v5198 = vmul.f32 %v5100, %v5180
        %v5199 = vmul.f32 %v5101, %v5180
        %v5200 = vmul.f32 %v5102, %v5180
        %v5201 = vmul.f32 %v5103, %v5180
        %v5202 = vmul.f32 %v5104, %v5180
        %v5203 = vmul.f32 %v5105, %v5180
        %v5204 = vmul.f32 %v5106, %v5180
        %v5205 = vmul.f32 %v5107, %v5180
        %v5206 = vmul.f32 %v5108, %v5180
        %v5207 = vmul.f32 %v5109, %v5180
        %v5208 = vmul.f32 %v5110, %v5180
        %v5209 = vmul.f32 %v5111, %v5180
        %v5210 = vmul.f32 %v5112, %v5180
        %v5211 = vmul.f32 %v5113, %v5180
        %v5212 = vmul.f32 %v5114, %v5180
        %v5213 = vadd.f32 %v5051, %v5181
        %v5214 = vadd.f32 %v5052, %v5182
        %v5215 = vadd.f32 %v5053, %v5183
        %v5216 = vadd.f32 %v5054, %v5184
        %v5217 = vadd.f32 %v5055, %v5185
        %v5218 = vadd.f32 %v5056, %v5186
        %v5219 = vadd.f32 %v5057, %v5187
        %v5220 = vadd.f32 %v5058, %v5188
        %v5221 = vadd.f32 %v5059, %v5189
        %v5222 = vadd.f32 %v5060, %v5190
        %v5223 = vadd.f32 %v5061, %v5191
        %v5224 = vadd.f32 %v5062, %v5192
        %v5225 = vadd.f32 %v5063, %v5193
        %v5226 = vadd.f32 %v5064, %v5194
        %v5227 = vadd.f32 %v5065, %v5195
        %v5228 = vadd.f32 %v5066, %v5196
        %v5229 = vadd.f32 %v5067, %v5197
        %v5230 = vadd.f32 %v5068, %v5198
        %v5231 = vadd.f32 %v5069, %v5199
        %v5232 = vadd.f32 %v5070, %v5200
        %v5233 = vadd.f32 %v5071, %v5201
        %v5234 = vadd.f32 %v5072, %v5202
        %v5235 = vadd.f32 %v5073, %v5203
        %v5236 = vadd.f32 %v5074, %v5204
        %v5237 = vadd.f32 %v5075, %v5205
        %v5238 = vadd.f32 %v5076, %v5206
        %v5239 = vadd.f32 %v5077, %v5207
        %v5240 = vadd.f32 %v5078, %v5208
        %v5241 = vadd.f32 %v5079, %v5209
        %v5242 = vadd.f32 %v5080, %v5210
        %v5243 = vadd.f32 %v5081, %v5211
        %v5244 = vadd.f32 %v5082, %v5212
        %v5245 = vld [vmem:[%s4655 + $0x2] sm:$0x1]
        %v5246 = vperm.slane %v5245, 0
        %v5247 = vmul.f32 %v5115, %v5246
        %v5248 = vmul.f32 %v5116, %v5246
        %v5249 = vmul.f32 %v5117, %v5246
        %v5250 = vmul.f32 %v5118, %v5246
        %v5251 = vmul.f32 %v5119, %v5246
        %v5252 = vmul.f32 %v5120, %v5246
        %v5253 = vmul.f32 %v5121, %v5246
        %v5254 = vmul.f32 %v5122, %v5246
        %v5255 = vmul.f32 %v5123, %v5246
        %v5256 = vmul.f32 %v5124, %v5246
        %v5257 = vmul.f32 %v5125, %v5246
        %v5258 = vmul.f32 %v5126, %v5246
        %v5259 = vmul.f32 %v5127, %v5246
        %v5260 = vmul.f32 %v5128, %v5246
        %v5261 = vmul.f32 %v5129, %v5246
        %v5262 = vmul.f32 %v5130, %v5246
        %v5263 = vmul.f32 %v5131, %v5246
        %v5264 = vmul.f32 %v5132, %v5246
        %v5265 = vmul.f32 %v5133, %v5246
        %v5266 = vmul.f32 %v5134, %v5246
        %v5267 = vmul.f32 %v5135, %v5246
        %v5268 = vmul.f32 %v5136, %v5246
        %v5269 = vmul.f32 %v5137, %v5246
        %v5270 = vmul.f32 %v5138, %v5246
        %v5271 = vmul.f32 %v5139, %v5246
        %v5272 = vmul.f32 %v5140, %v5246
        %v5273 = vmul.f32 %v5141, %v5246
        %v5274 = vmul.f32 %v5142, %v5246
        %v5275 = vmul.f32 %v5143, %v5246
        %v5276 = vmul.f32 %v5144, %v5246
        %v5277 = vmul.f32 %v5145, %v5246
        %v5278 = vmul.f32 %v5146, %v5246
        %v5279 = vadd.f32 %v5213, %v5247
        %v5280 = vadd.f32 %v5214, %v5248
        %v5281 = vadd.f32 %v5215, %v5249
        %v5282 = vadd.f32 %v5216, %v5250
        %v5283 = vadd.f32 %v5217, %v5251
        %v5284 = vadd.f32 %v5218, %v5252
        %v5285 = vadd.f32 %v5219, %v5253
        %v5286 = vadd.f32 %v5220, %v5254
        %v5287 = vadd.f32 %v5221, %v5255
        %v5288 = vadd.f32 %v5222, %v5256
        %v5289 = vadd.f32 %v5223, %v5257
        %v5290 = vadd.f32 %v5224, %v5258
        %v5291 = vadd.f32 %v5225, %v5259
        %v5292 = vadd.f32 %v5226, %v5260
        %v5293 = vadd.f32 %v5227, %v5261
        %v5294 = vadd.f32 %v5228, %v5262
        %v5295 = vadd.f32 %v5229, %v5263
        %v5296 = vadd.f32 %v5230, %v5264
        %v5297 = vadd.f32 %v5231, %v5265
        %v5298 = vadd.f32 %v5232, %v5266
        %v5299 = vadd.f32 %v5233, %v5267
        %v5300 = vadd.f32 %v5234, %v5268
        %v5301 = vadd.f32 %v5235, %v5269
        %v5302 = vadd.f32 %v5236, %v5270
        %v5303 = vadd.f32 %v5237, %v5271
        %v5304 = vadd.f32 %v5238, %v5272
        %v5305 = vadd.f32 %v5239, %v5273
        %v5306 = vadd.f32 %v5240, %v5274
        %v5307 = vadd.f32 %v5241, %v5275
        %v5308 = vadd.f32 %v5242, %v5276
        %v5309 = vadd.f32 %v5243, %v5277
        %v5310 = vadd.f32 %v5244, %v5278
        %v5311 = vld [vmem:[%s4722 + $0x2] sm:$0x1]
        %v5312 = vperm.slane %v5311, 0
        %v5313 = vmul.f32 %v5147, %v5312
        %v5314 = vmul.f32 %v5148, %v5312
        %v5315 = vmul.f32 %v5149, %v5312
        %v5316 = vmul.f32 %v5150, %v5312
        %v5317 = vmul.f32 %v5151, %v5312
        %v5318 = vmul.f32 %v5152, %v5312
        %v5319 = vmul.f32 %v5153, %v5312
        %v5320 = vmul.f32 %v5154, %v5312
        %v5321 = vmul.f32 %v5155, %v5312
        %v5322 = vmul.f32 %v5156, %v5312
        %v5323 = vmul.f32 %v5157, %v5312
        %v5324 = vmul.f32 %v5158, %v5312
        %v5325 = vmul.f32 %v5159, %v5312
        %v5326 = vmul.f32 %v5160, %v5312
        %v5327 = vmul.f32 %v5161, %v5312
        %v5328 = vmul.f32 %v5162, %v5312
        %v5329 = vmul.f32 %v5163, %v5312
        %v5330 = vmul.f32 %v5164, %v5312
        %v5331 = vmul.f32 %v5165, %v5312
        %v5332 = vmul.f32 %v5166, %v5312
        %v5333 = vmul.f32 %v5167, %v5312
        %v5334 = vmul.f32 %v5168, %v5312
        %v5335 = vmul.f32 %v5169, %v5312
        %v5336 = vmul.f32 %v5170, %v5312
        %v5337 = vmul.f32 %v5171, %v5312
        %v5338 = vmul.f32 %v5172, %v5312
        %v5339 = vmul.f32 %v5173, %v5312
        %v5340 = vmul.f32 %v5174, %v5312
        %v5341 = vmul.f32 %v5175, %v5312
        %v5342 = vmul.f32 %v5176, %v5312
        %v5343 = vmul.f32 %v5177, %v5312
        %v5344 = vmul.f32 %v5178, %v5312
        %v5345 = vadd.f32 %v5279, %v5313
        %v5346 = vadd.f32 %v5280, %v5314
        %v5347 = vadd.f32 %v5281, %v5315
        %v5348 = vadd.f32 %v5282, %v5316
        %v5349 = vadd.f32 %v5283, %v5317
        %v5350 = vadd.f32 %v5284, %v5318
        %v5351 = vadd.f32 %v5285, %v5319
        %v5352 = vadd.f32 %v5286, %v5320
        %v5353 = vadd.f32 %v5287, %v5321
        %v5354 = vadd.f32 %v5288, %v5322
        %v5355 = vadd.f32 %v5289, %v5323
        %v5356 = vadd.f32 %v5290, %v5324
        %v5357 = vadd.f32 %v5291, %v5325
        %v5358 = vadd.f32 %v5292, %v5326
        %v5359 = vadd.f32 %v5293, %v5327
        %v5360 = vadd.f32 %v5294, %v5328
        %v5361 = vadd.f32 %v5295, %v5329
        %v5362 = vadd.f32 %v5296, %v5330
        %v5363 = vadd.f32 %v5297, %v5331
        %v5364 = vadd.f32 %v5298, %v5332
        %v5365 = vadd.f32 %v5299, %v5333
        %v5366 = vadd.f32 %v5300, %v5334
        %v5367 = vadd.f32 %v5301, %v5335
        %v5368 = vadd.f32 %v5302, %v5336
        %v5369 = vadd.f32 %v5303, %v5337
        %v5370 = vadd.f32 %v5304, %v5338
        %v5371 = vadd.f32 %v5305, %v5339
        %v5372 = vadd.f32 %v5306, %v5340
        %v5373 = vadd.f32 %v5307, %v5341
        %v5374 = vadd.f32 %v5308, %v5342
        %v5375 = vadd.f32 %v5309, %v5343
        %v5376 = vadd.f32 %v5310, %v5344
        %v5377 = vld [vmem:[%s2 + $0x2] sm:$0x1]
        %v5378 = vperm.slane %v5377, 0
        %v5379 = vadd.f32 %v5345, %v5378
        %v5380 = vadd.f32 %v5346, %v5378
        %v5381 = vadd.f32 %v5347, %v5378
        %v5382 = vadd.f32 %v5348, %v5378
        %v5383 = vadd.f32 %v5349, %v5378
        %v5384 = vadd.f32 %v5350, %v5378
        %v5385 = vadd.f32 %v5351, %v5378
        %v5386 = vadd.f32 %v5352, %v5378
        %v5387 = vadd.f32 %v5353, %v5378
        %v5388 = vadd.f32 %v5354, %v5378
        %v5389 = vadd.f32 %v5355, %v5378
        %v5390 = vadd.f32 %v5356, %v5378
        %v5391 = vadd.f32 %v5357, %v5378
        %v5392 = vadd.f32 %v5358, %v5378
        %v5393 = vadd.f32 %v5359, %v5378
        %v5394 = vadd.f32 %v5360, %v5378
        %v5395 = vadd.f32 %v5361, %v5378
        %v5396 = vadd.f32 %v5362, %v5378
        %v5397 = vadd.f32 %v5363, %v5378
        %v5398 = vadd.f32 %v5364, %v5378
        %v5399 = vadd.f32 %v5365, %v5378
        %v5400 = vadd.f32 %v5366, %v5378
        %v5401 = vadd.f32 %v5367, %v5378
        %v5402 = vadd.f32 %v5368, %v5378
        %v5403 = vadd.f32 %v5369, %v5378
        %v5404 = vadd.f32 %v5370, %v5378
        %v5405 = vadd.f32 %v5371, %v5378
        %v5406 = vadd.f32 %v5372, %v5378
        %v5407 = vadd.f32 %v5373, %v5378
        %v5408 = vadd.f32 %v5374, %v5378
        %v5409 = vadd.f32 %v5375, %v5378
        %v5410 = vadd.f32 %v5376, %v5378
        %v5411 = vmul.f32 %v5379, 0.5
        %v5412 = vmul.f32 %v5380, 0.5
        %v5413 = vmul.f32 %v5381, 0.5
        %v5414 = vmul.f32 %v5382, 0.5
        %v5415 = vmul.f32 %v5383, 0.5
        %v5416 = vmul.f32 %v5384, 0.5
        %v5417 = vmul.f32 %v5385, 0.5
        %v5418 = vmul.f32 %v5386, 0.5
        %v5419 = vmul.f32 %v5387, 0.5
        %v5420 = vmul.f32 %v5388, 0.5
        %v5421 = vmul.f32 %v5389, 0.5
        %v5422 = vmul.f32 %v5390, 0.5
        %v5423 = vmul.f32 %v5391, 0.5
        %v5424 = vmul.f32 %v5392, 0.5
        %v5425 = vmul.f32 %v5393, 0.5
        %v5426 = vmul.f32 %v5394, 0.5
        %v5427 = vmul.f32 %v5395, 0.5
        %v5428 = vmul.f32 %v5396, 0.5
        %v5429 = vmul.f32 %v5397, 0.5
        %v5430 = vmul.f32 %v5398, 0.5
        %v5431 = vmul.f32 %v5399, 0.5
        %v5432 = vmul.f32 %v5400, 0.5
        %v5433 = vmul.f32 %v5401, 0.5
        %v5434 = vmul.f32 %v5402, 0.5
        %v5435 = vmul.f32 %v5403, 0.5
        %v5436 = vmul.f32 %v5404, 0.5
        %v5437 = vmul.f32 %v5405, 0.5
        %v5438 = vmul.f32 %v5406, 0.5
        %v5439 = vmul.f32 %v5407, 0.5
        %v5440 = vmul.f32 %v5408, 0.5
        %v5441 = vmul.f32 %v5409, 0.5
        %v5442 = vmul.f32 %v5410, 0.5
        %v5443 = vmul.f32 %v5379, %v5379
        %v5444 = vmul.f32 %v5380, %v5380
        %v5445 = vmul.f32 %v5381, %v5381
        %v5446 = vmul.f32 %v5382, %v5382
        %v5447 = vmul.f32 %v5383, %v5383
        %v5448 = vmul.f32 %v5384, %v5384
        %v5449 = vmul.f32 %v5385, %v5385
        %v5450 = vmul.f32 %v5386, %v5386
        %v5451 = vmul.f32 %v5387, %v5387
        %v5452 = vmul.f32 %v5388, %v5388
        %v5453 = vmul.f32 %v5389, %v5389
        %v5454 = vmul.f32 %v5390, %v5390
        %v5455 = vmul.f32 %v5391, %v5391
        %v5456 = vmul.f32 %v5392, %v5392
        %v5457 = vmul.f32 %v5393, %v5393
        %v5458 = vmul.f32 %v5394, %v5394
        %v5459 = vmul.f32 %v5395, %v5395
        %v5460 = vmul.f32 %v5396, %v5396
        %v5461 = vmul.f32 %v5397, %v5397
        %v5462 = vmul.f32 %v5398, %v5398
        %v5463 = vmul.f32 %v5399, %v5399
        %v5464 = vmul.f32 %v5400, %v5400
        %v5465 = vmul.f32 %v5401, %v5401
        %v5466 = vmul.f32 %v5402, %v5402
        %v5467 = vmul.f32 %v5403, %v5403
        %v5468 = vmul.f32 %v5404, %v5404
        %v5469 = vmul.f32 %v5405, %v5405
        %v5470 = vmul.f32 %v5406, %v5406
        %v5471 = vmul.f32 %v5407, %v5407
        %v5472 = vmul.f32 %v5408, %v5408
        %v5473 = vmul.f32 %v5409, %v5409
        %v5474 = vmul.f32 %v5410, %v5410
        %v5475 = vmul.f32 %v5443, %v5379
        %v5476 = vmul.f32 %v5444, %v5380
        %v5477 = vmul.f32 %v5445, %v5381
        %v5478 = vmul.f32 %v5446, %v5382
        %v5479 = vmul.f32 %v5447, %v5383
        %v5480 = vmul.f32 %v5448, %v5384
        %v5481 = vmul.f32 %v5449, %v5385
        %v5482 = vmul.f32 %v5450, %v5386
        %v5483 = vmul.f32 %v5451, %v5387
        %v5484 = vmul.f32 %v5452, %v5388
        %v5485 = vmul.f32 %v5453, %v5389
        %v5486 = vmul.f32 %v5454, %v5390
        %v5487 = vmul.f32 %v5455, %v5391
        %v5488 = vmul.f32 %v5456, %v5392
        %v5489 = vmul.f32 %v5457, %v5393
        %v5490 = vmul.f32 %v5458, %v5394
        %v5491 = vmul.f32 %v5459, %v5395
        %v5492 = vmul.f32 %v5460, %v5396
        %v5493 = vmul.f32 %v5461, %v5397
        %v5494 = vmul.f32 %v5462, %v5398
        %v5495 = vmul.f32 %v5463, %v5399
        %v5496 = vmul.f32 %v5464, %v5400
        %v5497 = vmul.f32 %v5465, %v5401
        %v5498 = vmul.f32 %v5466, %v5402
        %v5499 = vmul.f32 %v5467, %v5403
        %v5500 = vmul.f32 %v5468, %v5404
        %v5501 = vmul.f32 %v5469, %v5405
        %v5502 = vmul.f32 %v5470, %v5406
        %v5503 = vmul.f32 %v5471, %v5407
        %v5504 = vmul.f32 %v5472, %v5408
        %v5505 = vmul.f32 %v5473, %v5409
        %v5506 = vmul.f32 %v5474, %v5410
        %v5507 = vmul.f32 %v5475, 0.044715
        %v5508 = vmul.f32 %v5476, 0.044715
        %v5509 = vmul.f32 %v5477, 0.044715
        %v5510 = vmul.f32 %v5478, 0.044715
        %v5511 = vmul.f32 %v5479, 0.044715
        %v5512 = vmul.f32 %v5480, 0.044715
        %v5513 = vmul.f32 %v5481, 0.044715
        %v5514 = vmul.f32 %v5482, 0.044715
        %v5515 = vmul.f32 %v5483, 0.044715
        %v5516 = vmul.f32 %v5484, 0.044715
        %v5517 = vmul.f32 %v5485, 0.044715
        %v5518 = vmul.f32 %v5486, 0.044715
        %v5519 = vmul.f32 %v5487, 0.044715
        %v5520 = vmul.f32 %v5488, 0.044715
        %v5521 = vmul.f32 %v5489, 0.044715
        %v5522 = vmul.f32 %v5490, 0.044715
        %v5523 = vmul.f32 %v5491, 0.044715
        %v5524 = vmul.f32 %v5492, 0.044715
        %v5525 = vmul.f32 %v5493, 0.044715
        %v5526 = vmul.f32 %v5494, 0.044715
        %v5527 = vmul.f32 %v5495, 0.044715
        %v5528 = vmul.f32 %v5496, 0.044715
        %v5529 = vmul.f32 %v5497, 0.044715
        %v5530 = vmul.f32 %v5498, 0.044715
        %v5531 = vmul.f32 %v5499, 0.044715
        %v5532 = vmul.f32 %v5500, 0.044715
        %v5533 = vmul.f32 %v5501, 0.044715
        %v5534 = vmul.f32 %v5502, 0.044715
        %v5535 = vmul.f32 %v5503, 0.044715
        %v5536 = vmul.f32 %v5504, 0.044715
        %v5537 = vmul.f32 %v5505, 0.044715
        %v5538 = vmul.f32 %v5506, 0.044715
        %v5539 = vadd.f32 %v5379, %v5507
        %v5540 = vadd.f32 %v5380, %v5508
        %v5541 = vadd.f32 %v5381, %v5509
        %v5542 = vadd.f32 %v5382, %v5510
        %v5543 = vadd.f32 %v5383, %v5511
        %v5544 = vadd.f32 %v5384, %v5512
        %v5545 = vadd.f32 %v5385, %v5513
        %v5546 = vadd.f32 %v5386, %v5514
        %v5547 = vadd.f32 %v5387, %v5515
        %v5548 = vadd.f32 %v5388, %v5516
        %v5549 = vadd.f32 %v5389, %v5517
        %v5550 = vadd.f32 %v5390, %v5518
        %v5551 = vadd.f32 %v5391, %v5519
        %v5552 = vadd.f32 %v5392, %v5520
        %v5553 = vadd.f32 %v5393, %v5521
        %v5554 = vadd.f32 %v5394, %v5522
        %v5555 = vadd.f32 %v5395, %v5523
        %v5556 = vadd.f32 %v5396, %v5524
        %v5557 = vadd.f32 %v5397, %v5525
        %v5558 = vadd.f32 %v5398, %v5526
        %v5559 = vadd.f32 %v5399, %v5527
        %v5560 = vadd.f32 %v5400, %v5528
        %v5561 = vadd.f32 %v5401, %v5529
        %v5562 = vadd.f32 %v5402, %v5530
        %v5563 = vadd.f32 %v5403, %v5531
        %v5564 = vadd.f32 %v5404, %v5532
        %v5565 = vadd.f32 %v5405, %v5533
        %v5566 = vadd.f32 %v5406, %v5534
        %v5567 = vadd.f32 %v5407, %v5535
        %v5568 = vadd.f32 %v5408, %v5536
        %v5569 = vadd.f32 %v5409, %v5537
        %v5570 = vadd.f32 %v5410, %v5538
        %v5571 = vmul.f32 %v5539, 0.7978846
        %v5572 = vmul.f32 %v5540, 0.7978846
        %v5573 = vmul.f32 %v5541, 0.7978846
        %v5574 = vmul.f32 %v5542, 0.7978846
        %v5575 = vmul.f32 %v5543, 0.7978846
        %v5576 = vmul.f32 %v5544, 0.7978846
        %v5577 = vmul.f32 %v5545, 0.7978846
        %v5578 = vmul.f32 %v5546, 0.7978846
        %v5579 = vmul.f32 %v5547, 0.7978846
        %v5580 = vmul.f32 %v5548, 0.7978846
        %v5581 = vmul.f32 %v5549, 0.7978846
        %v5582 = vmul.f32 %v5550, 0.7978846
        %v5583 = vmul.f32 %v5551, 0.7978846
        %v5584 = vmul.f32 %v5552, 0.7978846
        %v5585 = vmul.f32 %v5553, 0.7978846
        %v5586 = vmul.f32 %v5554, 0.7978846
        %v5587 = vmul.f32 %v5555, 0.7978846
        %v5588 = vmul.f32 %v5556, 0.7978846
        %v5589 = vmul.f32 %v5557, 0.7978846
        %v5590 = vmul.f32 %v5558, 0.7978846
        %v5591 = vmul.f32 %v5559, 0.7978846
        %v5592 = vmul.f32 %v5560, 0.7978846
        %v5593 = vmul.f32 %v5561, 0.7978846
        %v5594 = vmul.f32 %v5562, 0.7978846
        %v5595 = vmul.f32 %v5563, 0.7978846
        %v5596 = vmul.f32 %v5564, 0.7978846
        %v5597 = vmul.f32 %v5565, 0.7978846
        %v5598 = vmul.f32 %v5566, 0.7978846
        %v5599 = vmul.f32 %v5567, 0.7978846
        %v5600 = vmul.f32 %v5568, 0.7978846
        %v5601 = vmul.f32 %v5569, 0.7978846
        %v5602 = vmul.f32 %v5570, 0.7978846
        %v5603 = vtanh.pop %v5571
        %v5604 = vtanh.pop %v5572
        %v5605 = vtanh.pop %v5573
        %v5606 = vtanh.pop %v5574
        %v5607 = vtanh.pop %v5575
        %v5608 = vtanh.pop %v5576
        %v5609 = vtanh.pop %v5577
        %v5610 = vtanh.pop %v5578
        %v5611 = vtanh.pop %v5579
        %v5612 = vtanh.pop %v5580
        %v5613 = vtanh.pop %v5581
        %v5614 = vtanh.pop %v5582
        %v5615 = vtanh.pop %v5583
        %v5616 = vtanh.pop %v5584
        %v5617 = vtanh.pop %v5585
        %v5618 = vtanh.pop %v5586
        %v5619 = vtanh.pop %v5587
        %v5620 = vtanh.pop %v5588
        %v5621 = vtanh.pop %v5589
        %v5622 = vtanh.pop %v5590
        %v5623 = vtanh.pop %v5591
        %v5624 = vtanh.pop %v5592
        %v5625 = vtanh.pop %v5593
        %v5626 = vtanh.pop %v5594
        %v5627 = vtanh.pop %v5595
        %v5628 = vtanh.pop %v5596
        %v5629 = vtanh.pop %v5597
        %v5630 = vtanh.pop %v5598
        %v5631 = vtanh.pop %v5599
        %v5632 = vtanh.pop %v5600
        %v5633 = vtanh.pop %v5601
        %v5634 = vtanh.pop %v5602
        %v5635 = vadd.f32 %v5603, 1.0
        %v5636 = vadd.f32 %v5604, 1.0
        %v5637 = vadd.f32 %v5605, 1.0
        %v5638 = vadd.f32 %v5606, 1.0
        %v5639 = vadd.f32 %v5607, 1.0
        %v5640 = vadd.f32 %v5608, 1.0
        %v5641 = vadd.f32 %v5609, 1.0
        %v5642 = vadd.f32 %v5610, 1.0
        %v5643 = vadd.f32 %v5611, 1.0
        %v5644 = vadd.f32 %v5612, 1.0
        %v5645 = vadd.f32 %v5613, 1.0
        %v5646 = vadd.f32 %v5614, 1.0
        %v5647 = vadd.f32 %v5615, 1.0
        %v5648 = vadd.f32 %v5616, 1.0
        %v5649 = vadd.f32 %v5617, 1.0
        %v5650 = vadd.f32 %v5618, 1.0
        %v5651 = vadd.f32 %v5619, 1.0
        %v5652 = vadd.f32 %v5620, 1.0
        %v5653 = vadd.f32 %v5621, 1.0
        %v5654 = vadd.f32 %v5622, 1.0
        %v5655 = vadd.f32 %v5623, 1.0
        %v5656 = vadd.f32 %v5624, 1.0
        %v5657 = vadd.f32 %v5625, 1.0
        %v5658 = vadd.f32 %v5626, 1.0
        %v5659 = vadd.f32 %v5627, 1.0
        %v5660 = vadd.f32 %v5628, 1.0
        %v5661 = vadd.f32 %v5629, 1.0
        %v5662 = vadd.f32 %v5630, 1.0
        %v5663 = vadd.f32 %v5631, 1.0
        %v5664 = vadd.f32 %v5632, 1.0
        %v5665 = vadd.f32 %v5633, 1.0
        %v5666 = vadd.f32 %v5634, 1.0
        %v5667 = vmul.f32 %v5411, %v5635
        %v5668 = vmul.f32 %v5412, %v5636
        %v5669 = vmul.f32 %v5413, %v5637
        %v5670 = vmul.f32 %v5414, %v5638
        %v5671 = vmul.f32 %v5415, %v5639
        %v5672 = vmul.f32 %v5416, %v5640
        %v5673 = vmul.f32 %v5417, %v5641
        %v5674 = vmul.f32 %v5418, %v5642
        %v5675 = vmul.f32 %v5419, %v5643
        %v5676 = vmul.f32 %v5420, %v5644
        %v5677 = vmul.f32 %v5421, %v5645
        %v5678 = vmul.f32 %v5422, %v5646
        %v5679 = vmul.f32 %v5423, %v5647
        %v5680 = vmul.f32 %v5424, %v5648
        %v5681 = vmul.f32 %v5425, %v5649
        %v5682 = vmul.f32 %v5426, %v5650
        %v5683 = vmul.f32 %v5427, %v5651
        %v5684 = vmul.f32 %v5428, %v5652
        %v5685 = vmul.f32 %v5429, %v5653
        %v5686 = vmul.f32 %v5430, %v5654
        %v5687 = vmul.f32 %v5431, %v5655
        %v5688 = vmul.f32 %v5432, %v5656
        %v5689 = vmul.f32 %v5433, %v5657
        %v5690 = vmul.f32 %v5434, %v5658
        %v5691 = vmul.f32 %v5435, %v5659
        %v5692 = vmul.f32 %v5436, %v5660
        %v5693 = vmul.f32 %v5437, %v5661
        %v5694 = vmul.f32 %v5438, %v5662
        %v5695 = vmul.f32 %v5439, %v5663
        %v5696 = vmul.f32 %v5440, %v5664
        %v5697 = vmul.f32 %v5441, %v5665
        %v5698 = vmul.f32 %v5442, %v5666
        %v5699 = vmul.f32 %v5667, 0.5
        %v5700 = vmul.f32 %v5668, 0.5
        %v5701 = vmul.f32 %v5669, 0.5
        %v5702 = vmul.f32 %v5670, 0.5
        %v5703 = vmul.f32 %v5671, 0.5
        %v5704 = vmul.f32 %v5672, 0.5
        %v5705 = vmul.f32 %v5673, 0.5
        %v5706 = vmul.f32 %v5674, 0.5
        %v5707 = vmul.f32 %v5675, 0.5
        %v5708 = vmul.f32 %v5676, 0.5
        %v5709 = vmul.f32 %v5677, 0.5
        %v5710 = vmul.f32 %v5678, 0.5
        %v5711 = vmul.f32 %v5679, 0.5
        %v5712 = vmul.f32 %v5680, 0.5
        %v5713 = vmul.f32 %v5681, 0.5
        %v5714 = vmul.f32 %v5682, 0.5
        %v5715 = vmul.f32 %v5683, 0.5
        %v5716 = vmul.f32 %v5684, 0.5
        %v5717 = vmul.f32 %v5685, 0.5
        %v5718 = vmul.f32 %v5686, 0.5
        %v5719 = vmul.f32 %v5687, 0.5
        %v5720 = vmul.f32 %v5688, 0.5
        %v5721 = vmul.f32 %v5689, 0.5
        %v5722 = vmul.f32 %v5690, 0.5
        %v5723 = vmul.f32 %v5691, 0.5
        %v5724 = vmul.f32 %v5692, 0.5
        %v5725 = vmul.f32 %v5693, 0.5
        %v5726 = vmul.f32 %v5694, 0.5
        %v5727 = vmul.f32 %v5695, 0.5
        %v5728 = vmul.f32 %v5696, 0.5
        %v5729 = vmul.f32 %v5697, 0.5
        %v5730 = vmul.f32 %v5698, 0.5
        %v5731 = vmul.f32 %v5667, %v5667
        %v5732 = vmul.f32 %v5668, %v5668
        %v5733 = vmul.f32 %v5669, %v5669
        %v5734 = vmul.f32 %v5670, %v5670
        %v5735 = vmul.f32 %v5671, %v5671
        %v5736 = vmul.f32 %v5672, %v5672
        %v5737 = vmul.f32 %v5673, %v5673
        %v5738 = vmul.f32 %v5674, %v5674
        %v5739 = vmul.f32 %v5675, %v5675
        %v5740 = vmul.f32 %v5676, %v5676
        %v5741 = vmul.f32 %v5677, %v5677
        %v5742 = vmul.f32 %v5678, %v5678
        %v5743 = vmul.f32 %v5679, %v5679
        %v5744 = vmul.f32 %v5680, %v5680
        %v5745 = vmul.f32 %v5681, %v5681
        %v5746 = vmul.f32 %v5682, %v5682
        %v5747 = vmul.f32 %v5683, %v5683
        %v5748 = vmul.f32 %v5684, %v5684
        %v5749 = vmul.f32 %v5685, %v5685
        %v5750 = vmul.f32 %v5686, %v5686
        %v5751 = vmul.f32 %v5687, %v5687
        %v5752 = vmul.f32 %v5688, %v5688
        %v5753 = vmul.f32 %v5689, %v5689
        %v5754 = vmul.f32 %v5690, %v5690
        %v5755 = vmul.f32 %v5691, %v5691
        %v5756 = vmul.f32 %v5692, %v5692
        %v5757 = vmul.f32 %v5693, %v5693
        %v5758 = vmul.f32 %v5694, %v5694
        %v5759 = vmul.f32 %v5695, %v5695
        %v5760 = vmul.f32 %v5696, %v5696
        %v5761 = vmul.f32 %v5697, %v5697
        %v5762 = vmul.f32 %v5698, %v5698
        %v5763 = vmul.f32 %v5731, %v5667
        %v5764 = vmul.f32 %v5732, %v5668
        %v5765 = vmul.f32 %v5733, %v5669
        %v5766 = vmul.f32 %v5734, %v5670
        %v5767 = vmul.f32 %v5735, %v5671
        %v5768 = vmul.f32 %v5736, %v5672
        %v5769 = vmul.f32 %v5737, %v5673
        %v5770 = vmul.f32 %v5738, %v5674
        %v5771 = vmul.f32 %v5739, %v5675
        %v5772 = vmul.f32 %v5740, %v5676
        %v5773 = vmul.f32 %v5741, %v5677
        %v5774 = vmul.f32 %v5742, %v5678
        %v5775 = vmul.f32 %v5743, %v5679
        %v5776 = vmul.f32 %v5744, %v5680
        %v5777 = vmul.f32 %v5745, %v5681
        %v5778 = vmul.f32 %v5746, %v5682
        %v5779 = vmul.f32 %v5747, %v5683
        %v5780 = vmul.f32 %v5748, %v5684
        %v5781 = vmul.f32 %v5749, %v5685
        %v5782 = vmul.f32 %v5750, %v5686
        %v5783 = vmul.f32 %v5751, %v5687
        %v5784 = vmul.f32 %v5752, %v5688
        %v5785 = vmul.f32 %v5753, %v5689
        %v5786 = vmul.f32 %v5754, %v5690
        %v5787 = vmul.f32 %v5755, %v5691
        %v5788 = vmul.f32 %v5756, %v5692
        %v5789 = vmul.f32 %v5757, %v5693
        %v5790 = vmul.f32 %v5758, %v5694
        %v5791 = vmul.f32 %v5759, %v5695
        %v5792 = vmul.f32 %v5760, %v5696
        %v5793 = vmul.f32 %v5761, %v5697
        %v5794 = vmul.f32 %v5762, %v5698
        %v5795 = vmul.f32 %v5763, 0.044715
        %v5796 = vmul.f32 %v5764, 0.044715
        %v5797 = vmul.f32 %v5765, 0.044715
        %v5798 = vmul.f32 %v5766, 0.044715
        %v5799 = vmul.f32 %v5767, 0.044715
        %v5800 = vmul.f32 %v5768, 0.044715
        %v5801 = vmul.f32 %v5769, 0.044715
        %v5802 = vmul.f32 %v5770, 0.044715
        %v5803 = vmul.f32 %v5771, 0.044715
        %v5804 = vmul.f32 %v5772, 0.044715
        %v5805 = vmul.f32 %v5773, 0.044715
        %v5806 = vmul.f32 %v5774, 0.044715
        %v5807 = vmul.f32 %v5775, 0.044715
        %v5808 = vmul.f32 %v5776, 0.044715
        %v5809 = vmul.f32 %v5777, 0.044715
        %v5810 = vmul.f32 %v5778, 0.044715
        %v5811 = vmul.f32 %v5779, 0.044715
        %v5812 = vmul.f32 %v5780, 0.044715
        %v5813 = vmul.f32 %v5781, 0.044715
        %v5814 = vmul.f32 %v5782, 0.044715
        %v5815 = vmul.f32 %v5783, 0.044715
        %v5816 = vmul.f32 %v5784, 0.044715
        %v5817 = vmul.f32 %v5785, 0.044715
        %v5818 = vmul.f32 %v5786, 0.044715
        %v5819 = vmul.f32 %v5787, 0.044715
        %v5820 = vmul.f32 %v5788, 0.044715
        %v5821 = vmul.f32 %v5789, 0.044715
        %v5822 = vmul.f32 %v5790, 0.044715
        %v5823 = vmul.f32 %v5791, 0.044715
        %v5824 = vmul.f32 %v5792, 0.044715
        %v5825 = vmul.f32 %v5793, 0.044715
        %v5826 = vmul.f32 %v5794, 0.044715
        %v5827 = vadd.f32 %v5667, %v5795
        %v5828 = vadd.f32 %v5668, %v5796
        %v5829 = vadd.f32 %v5669, %v5797
        %v5830 = vadd.f32 %v5670, %v5798
        %v5831 = vadd.f32 %v5671, %v5799
        %v5832 = vadd.f32 %v5672, %v5800
        %v5833 = vadd.f32 %v5673, %v5801
        %v5834 = vadd.f32 %v5674, %v5802
        %v5835 = vadd.f32 %v5675, %v5803
        %v5836 = vadd.f32 %v5676, %v5804
        %v5837 = vadd.f32 %v5677, %v5805
        %v5838 = vadd.f32 %v5678, %v5806
        %v5839 = vadd.f32 %v5679, %v5807
        %v5840 = vadd.f32 %v5680, %v5808
        %v5841 = vadd.f32 %v5681, %v5809
        %v5842 = vadd.f32 %v5682, %v5810
        %v5843 = vadd.f32 %v5683, %v5811
        %v5844 = vadd.f32 %v5684, %v5812
        %v5845 = vadd.f32 %v5685, %v5813
        %v5846 = vadd.f32 %v5686, %v5814
        %v5847 = vadd.f32 %v5687, %v5815
        %v5848 = vadd.f32 %v5688, %v5816
        %v5849 = vadd.f32 %v5689, %v5817
        %v5850 = vadd.f32 %v5690, %v5818
        %v5851 = vadd.f32 %v5691, %v5819
        %v5852 = vadd.f32 %v5692, %v5820
        %v5853 = vadd.f32 %v5693, %v5821
        %v5854 = vadd.f32 %v5694, %v5822
        %v5855 = vadd.f32 %v5695, %v5823
        %v5856 = vadd.f32 %v5696, %v5824
        %v5857 = vadd.f32 %v5697, %v5825
        %v5858 = vadd.f32 %v5698, %v5826
        %v5859 = vmul.f32 %v5827, 0.7978846
        %v5860 = vmul.f32 %v5828, 0.7978846
        %v5861 = vmul.f32 %v5829, 0.7978846
        %v5862 = vmul.f32 %v5830, 0.7978846
        %v5863 = vmul.f32 %v5831, 0.7978846
        %v5864 = vmul.f32 %v5832, 0.7978846
        %v5865 = vmul.f32 %v5833, 0.7978846
        %v5866 = vmul.f32 %v5834, 0.7978846
        %v5867 = vmul.f32 %v5835, 0.7978846
        %v5868 = vmul.f32 %v5836, 0.7978846
        %v5869 = vmul.f32 %v5837, 0.7978846
        %v5870 = vmul.f32 %v5838, 0.7978846
        %v5871 = vmul.f32 %v5839, 0.7978846
        %v5872 = vmul.f32 %v5840, 0.7978846
        %v5873 = vmul.f32 %v5841, 0.7978846
        %v5874 = vmul.f32 %v5842, 0.7978846
        %v5875 = vmul.f32 %v5843, 0.7978846
        %v5876 = vmul.f32 %v5844, 0.7978846
        %v5877 = vmul.f32 %v5845, 0.7978846
        %v5878 = vmul.f32 %v5846, 0.7978846
        %v5879 = vmul.f32 %v5847, 0.7978846
        %v5880 = vmul.f32 %v5848, 0.7978846
        %v5881 = vmul.f32 %v5849, 0.7978846
        %v5882 = vmul.f32 %v5850, 0.7978846
        %v5883 = vmul.f32 %v5851, 0.7978846
        %v5884 = vmul.f32 %v5852, 0.7978846
        %v5885 = vmul.f32 %v5853, 0.7978846
        %v5886 = vmul.f32 %v5854, 0.7978846
        %v5887 = vmul.f32 %v5855, 0.7978846
        %v5888 = vmul.f32 %v5856, 0.7978846
        %v5889 = vmul.f32 %v5857, 0.7978846
        %v5890 = vmul.f32 %v5858, 0.7978846
        %v5891 = vtanh.pop %v5859
        %v5892 = vtanh.pop %v5860
        %v5893 = vtanh.pop %v5861
        %v5894 = vtanh.pop %v5862
        %v5895 = vtanh.pop %v5863
        %v5896 = vtanh.pop %v5864
        %v5897 = vtanh.pop %v5865
        %v5898 = vtanh.pop %v5866
        %v5899 = vtanh.pop %v5867
        %v5900 = vtanh.pop %v5868
        %v5901 = vtanh.pop %v5869
        %v5902 = vtanh.pop %v5870
        %v5903 = vtanh.pop %v5871
        %v5904 = vtanh.pop %v5872
        %v5905 = vtanh.pop %v5873
        %v5906 = vtanh.pop %v5874
        %v5907 = vtanh.pop %v5875
        %v5908 = vtanh.pop %v5876
        %v5909 = vtanh.pop %v5877
        %v5910 = vtanh.pop %v5878
        %v5911 = vtanh.pop %v5879
        %v5912 = vtanh.pop %v5880
        %v5913 = vtanh.pop %v5881
        %v5914 = vtanh.pop %v5882
        %v5915 = vtanh.pop %v5883
        %v5916 = vtanh.pop %v5884
        %v5917 = vtanh.pop %v5885
        %v5918 = vtanh.pop %v5886
        %v5919 = vtanh.pop %v5887
        %v5920 = vtanh.pop %v5888
        %v5921 = vtanh.pop %v5889
        %v5922 = vtanh.pop %v5890
        %v5923 = vadd.f32 %v5891, 1.0
        %v5924 = vadd.f32 %v5892, 1.0
        %v5925 = vadd.f32 %v5893, 1.0
        %v5926 = vadd.f32 %v5894, 1.0
        %v5927 = vadd.f32 %v5895, 1.0
        %v5928 = vadd.f32 %v5896, 1.0
        %v5929 = vadd.f32 %v5897, 1.0
        %v5930 = vadd.f32 %v5898, 1.0
        %v5931 = vadd.f32 %v5899, 1.0
        %v5932 = vadd.f32 %v5900, 1.0
        %v5933 = vadd.f32 %v5901, 1.0
        %v5934 = vadd.f32 %v5902, 1.0
        %v5935 = vadd.f32 %v5903, 1.0
        %v5936 = vadd.f32 %v5904, 1.0
        %v5937 = vadd.f32 %v5905, 1.0
        %v5938 = vadd.f32 %v5906, 1.0
        %v5939 = vadd.f32 %v5907, 1.0
        %v5940 = vadd.f32 %v5908, 1.0
        %v5941 = vadd.f32 %v5909, 1.0
        %v5942 = vadd.f32 %v5910, 1.0
        %v5943 = vadd.f32 %v5911, 1.0
        %v5944 = vadd.f32 %v5912, 1.0
        %v5945 = vadd.f32 %v5913, 1.0
        %v5946 = vadd.f32 %v5914, 1.0
        %v5947 = vadd.f32 %v5915, 1.0
        %v5948 = vadd.f32 %v5916, 1.0
        %v5949 = vadd.f32 %v5917, 1.0
        %v5950 = vadd.f32 %v5918, 1.0
        %v5951 = vadd.f32 %v5919, 1.0
        %v5952 = vadd.f32 %v5920, 1.0
        %v5953 = vadd.f32 %v5921, 1.0
        %v5954 = vadd.f32 %v5922, 1.0
        %v5955 = vmul.f32 %v5699, %v5923
        %v5956 = vmul.f32 %v5700, %v5924
        %v5957 = vmul.f32 %v5701, %v5925
        %v5958 = vmul.f32 %v5702, %v5926
        %v5959 = vmul.f32 %v5703, %v5927
        %v5960 = vmul.f32 %v5704, %v5928
        %v5961 = vmul.f32 %v5705, %v5929
        %v5962 = vmul.f32 %v5706, %v5930
        %v5963 = vmul.f32 %v5707, %v5931
        %v5964 = vmul.f32 %v5708, %v5932
        %v5965 = vmul.f32 %v5709, %v5933
        %v5966 = vmul.f32 %v5710, %v5934
        %v5967 = vmul.f32 %v5711, %v5935
        %v5968 = vmul.f32 %v5712, %v5936
        %v5969 = vmul.f32 %v5713, %v5937
        %v5970 = vmul.f32 %v5714, %v5938
        %v5971 = vmul.f32 %v5715, %v5939
        %v5972 = vmul.f32 %v5716, %v5940
        %v5973 = vmul.f32 %v5717, %v5941
        %v5974 = vmul.f32 %v5718, %v5942
        %v5975 = vmul.f32 %v5719, %v5943
        %v5976 = vmul.f32 %v5720, %v5944
        %v5977 = vmul.f32 %v5721, %v5945
        %v5978 = vmul.f32 %v5722, %v5946
        %v5979 = vmul.f32 %v5723, %v5947
        %v5980 = vmul.f32 %v5724, %v5948
        %v5981 = vmul.f32 %v5725, %v5949
        %v5982 = vmul.f32 %v5726, %v5950
        %v5983 = vmul.f32 %v5727, %v5951
        %v5984 = vmul.f32 %v5728, %v5952
        %v5985 = vmul.f32 %v5729, %v5953
        %v5986 = vmul.f32 %v5730, %v5954
        %s5987 = scalar_lea.vmem %s136, 512 [#allocation4]
        %5988 = vst [vmem:[%s5987] sm:$0xff] %v5955
        %5989 = vst [vmem:[%s5987 + $0x8] sm:$0xff] %v5956
        %5990 = vst [vmem:[%s5987 + $0x10] sm:$0xff] %v5957
        %5991 = vst [vmem:[%s5987 + $0x18] sm:$0xff] %v5958
        %5992 = vst [vmem:[%s5987 + $0x20] sm:$0xff] %v5959
        %5993 = vst [vmem:[%s5987 + $0x28] sm:$0xff] %v5960
        %5994 = vst [vmem:[%s5987 + $0x30] sm:$0xff] %v5961
        %5995 = vst [vmem:[%s5987 + $0x38] sm:$0xff] %v5962
        %5996 = vst [vmem:[%s5987 + $0x40] sm:$0xff] %v5963
        %5997 = vst [vmem:[%s5987 + $0x48] sm:$0xff] %v5964
        %5998 = vst [vmem:[%s5987 + $0x50] sm:$0xff] %v5965
        %5999 = vst [vmem:[%s5987 + $0x58] sm:$0xff] %v5966
        %6000 = vst [vmem:[%s5987 + $0x60] sm:$0xff] %v5967
        %6001 = vst [vmem:[%s5987 + $0x68] sm:$0xff] %v5968
        %6002 = vst [vmem:[%s5987 + $0x70] sm:$0xff] %v5969
        %6003 = vst [vmem:[%s5987 + $0x78] sm:$0xff] %v5970
        %6004 = vst [vmem:[%s5987 + $0x80] sm:$0xff] %v5971
        %6005 = vst [vmem:[%s5987 + $0x88] sm:$0xff] %v5972
        %6006 = vst [vmem:[%s5987 + $0x90] sm:$0xff] %v5973
        %6007 = vst [vmem:[%s5987 + $0x98] sm:$0xff] %v5974
        %6008 = vst [vmem:[%s5987 + $0xa0] sm:$0xff] %v5975
        %6009 = vst [vmem:[%s5987 + $0xa8] sm:$0xff] %v5976
        %6010 = vst [vmem:[%s5987 + $0xb0] sm:$0xff] %v5977
        %6011 = vst [vmem:[%s5987 + $0xb8] sm:$0xff] %v5978
        %6012 = vst [vmem:[%s5987 + $0xc0] sm:$0xff] %v5979
        %6013 = vst [vmem:[%s5987 + $0xc8] sm:$0xff] %v5980
        %6014 = vst [vmem:[%s5987 + $0xd0] sm:$0xff] %v5981
        %6015 = vst [vmem:[%s5987 + $0xd8] sm:$0xff] %v5982
        %6016 = vst [vmem:[%s5987 + $0xe0] sm:$0xff] %v5983
        %6017 = vst [vmem:[%s5987 + $0xe8] sm:$0xff] %v5984
        %6018 = vst [vmem:[%s5987 + $0xf0] sm:$0xff] %v5985
        %6019 = vst [vmem:[%s5987 + $0xf8] sm:$0xff] %v5986
        %s6020 = sand.u32 %s81, 1
        %s6021 = scalar_lea.sflag [#allocation5], %s6020
        %s6022 = sand.u32 %s81, 1
        %s6023 = smul.addr %s6022, 768
        %s6024 = scalar_lea.vmem [#allocation4], %s6023
        // Predicated region
        $region81: #{tpu_custom_call.1} parent=27 // pred_check
          %p6025 = pneg %p91
        $region82: #{tpu_custom_call.1} parent=27 // pred_check_branch
          %6027 = sbr.rel (%p6025) target = $region84
        $region83: #{tpu_custom_call.1} parent=27 // pred_region
          %s6028 = smul.u32 3, %s21
          %s6029 = smul.u32 16, %s22
          %6031 = vsyncadd %s6021, 0
          %s6032 = smul.addr %s6029, 2
          %s6033 = smul.addr %s6028, 32
          %s6034 = sadd.s32 %s6032, %s6033
          %s6035 = smul.addr %s6034, 8
          %s6036 = scalar_lea.hbm %s3, %s6035
          %s6037 = sshll.u32 %s6024, 4
          %s6038 = int_to_ptr.vmem [resolvable:$true] %s6037
          %s6039 = sshll.u32 %s6036, 4
          %s6040 = int_to_ptr.hbm [resolvable:$true] %s6039
          %6045 = dma.vmem_to_hbm [thread:$0]  %s6038, 12288, %s6040, %s6021, 128, 128, 8
        $region84: #{tpu_custom_call.1} parent=27 // pred_fallthru
          _
      $region28: #{tpu_custom_call.1} parent=5 // pred_fallthru
        _
      %p6046 = scmp.le.s32.totalorder 2, %s12
      // Predicated region
      $region85: #{tpu_custom_call.1} parent=5 // pred_check
        %p6047 = pneg %p6046
      $region86: #{tpu_custom_call.1} parent=5 // pred_check_branch
        %6049 = sbr.rel (%p6047) target = $region88
      $region87: #{tpu_custom_call.1} parent=5 // pred_region
        %s6050 = ssub.s32 %s12, 2
        // Predicated region
        $region89: #{tpu_custom_call.1} parent=87 // pred_check
          %p6051 = pneg %p97
        $region90: #{tpu_custom_call.1} parent=87 // pred_check_branch
          %6053 = sbr.rel (%p6051) target = $region92
        $region91: #{tpu_custom_call.1} parent=87 // pred_region
          %s6054 = sand.u32 %s82, 1
          %s6055 = scalar_lea.sflag [#allocation5], %s6054
          %s6056 = sand.u32 %s82, 1
          %s6057 = smul.addr %s6056, 768
          %s6058 = scalar_lea.vmem [#allocation4], %s6057
          %6060 = dma.done %s6055, 12288
        $region92: #{tpu_custom_call.1} parent=87 // pred_fallthru
          _
      $region88: #{tpu_custom_call.1} parent=5 // pred_fallthru
        _
    $region6: #{tpu_custom_call.1} parent=1 // loop_footer
      %s16 = sadd.s32 1, %s12
    $region7: #{tpu_custom_call.1} parent=1 // loop_footer_branch
      %11 = sbr.rel target = $region3
    $region8: #{tpu_custom_call.1} parent=1 // loop_exit
      _
    %6061 = vsyncpa [#allocation5], 1
    %s6062 = scalar_lea.sflag [#allocation5], 1
    %6063 = vsyncpa %s6062, 1
  %6064 = vsyncmov [#allocation3]
  %s6065 = vpop.sfrf %6064
  %p6066 = scmp.eq.s32.totalorder %s6065, 0
  %p6067 = pneg %p6066
  %6069 = shalt.err (%p6067)
  %s6070 = scalar_lea.sflag [#allocation3], 1
  %6071 = vsyncmov %s6070
  %s6072 = vpop.sfrf %6071
  %p6073 = scmp.eq.s32.totalorder %s6072, 0
  %p6074 = pneg %p6073
  %6076 = shalt.err (%p6074)

</llo_original>
